<compile_context>
chip_gen: v7x
topology: tpu7x:2x2x1
jax: 0.10.0
libtpu: 0.0.40
codegen_flags: <defaults>
</compile_context>

<pallas_src>
import functools

import jax
import jax.numpy as jnp
from jax import lax
from jax.experimental import pallas as pl
from jax.experimental.pallas import tpu as pltpu

# ---- model config (small, lane-dense) ----
T = 256          # number of tokens (one causal prompt sequence)
D = 128          # hidden_size / embed_dim   (lane-dense)
NUM_HEADS = 4
HEAD_DIM = D // NUM_HEADS
FFN = 512        # ffn_dim                   (lane-dense)
Q_TILE = 128     # query rows per grid step
LN_EPS = 1e-5
DO_LAYER_NORM_BEFORE = True   # standard OPT config


def _layernorm(x, w, b):
    # single-pass: reuse (x - mean) for the variance
    mean = jnp.mean(x, axis=-1, keepdims=True)
    xc = x - mean
    var = jnp.mean(xc * xc, axis=-1, keepdims=True)
    return xc * lax.rsqrt(var + LN_EPS) * w + b


def opt_decoder_layer_kernel(
    x_ref,
    ln1w_ref, ln1b_ref,
    wq_ref, bq_ref,
    wkv_ref, bkv_ref,
    wo3_ref, bo_ref,
    ln2w_ref, ln2b_ref,
    w1_ref, b1_ref, w2_ref, b2_ref,
    out_ref,
    *, num_heads, head_dim, q_tile, do_ln_before,
):
    bf16 = jnp.bfloat16
    f32 = jnp.float32
    d_model = num_heads * head_dim
    t_total = x_ref.shape[0]

    i = pl.program_id(0)
    q_start = pl.multiple_of(i * q_tile, q_tile)

    x_all = x_ref[...]                              # [T, D]  fp32 (resident across grid)
    x_q = x_ref[pl.ds(q_start, q_tile), :]          # [TQ, D] fp32 (residual / query rows)

    ln1w = ln1w_ref[...]
    ln1b = ln1b_ref[...]
    if do_ln_before:
        h_all = _layernorm(x_all, ln1w, ln1b)       # K/V need the full causal prefix
        h_q = _layernorm(x_q, ln1w, ln1b)
    else:
        h_all, h_q = x_all, x_q

    # ---- projections: Q for this tile, fused K|V for all tokens (bf16 in, fp32 acc) ----
    q = jnp.dot(h_q.astype(bf16), wq_ref[...],
                preferred_element_type=f32) + bq_ref[...]          # [TQ, D]
    kv = jnp.dot(h_all.astype(bf16), wkv_ref[...],
                 preferred_element_type=f32) + bkv_ref[...]        # [T, 2D]
    k = kv[:, :d_model]
    v = kv[:, d_model:]

    scale = head_dim ** -0.5
    q = q * scale

    # head-major [H, rows, head_dim] via static lane slices (no VMEM scratch, no stores)
    def to_heads(m):
        return jnp.stack(
            [m[:, h * head_dim:(h + 1) * head_dim] for h in range(num_heads)], axis=0)

    q3 = to_heads(q).astype(bf16)                   # [H, TQ, hd]
    k3 = to_heads(k).astype(bf16)                   # [H, T,  hd]
    v3 = to_heads(v).astype(bf16)                   # [H, T,  hd]

    # batched (per-head) attention scores on the MXU
    s = jnp.einsum("hqd,hkd->hqk", q3, k3, preferred_element_type=f32)  # [H, TQ, T]

    row = q_start + lax.broadcasted_iota(jnp.int32, s.shape, 1)         # global query idx
    col = lax.broadcasted_iota(jnp.int32, s.shape, 2)                   # key idx
    s = jnp.where(row >= col, s, -1e30)

    m = jnp.max(s, axis=-1, keepdims=True)
    e = jnp.exp(s - m)
    p = e * pl.reciprocal(jnp.sum(e, axis=-1, keepdims=True), approx=True)

    ctx = jnp.einsum("hqk,hkd->hqd", p.astype(bf16), v3,
                     preferred_element_type=f32)                        # [H, TQ, hd]

    # fused per-head out-projection: [H,TQ,hd] x [H,hd,D] -> sum over heads -> [TQ, D]
    attn_out = jnp.einsum("hqd,hdn->hqn", ctx.astype(bf16), wo3_ref[...],
                          preferred_element_type=f32).sum(axis=0) + bo_ref[...]

    h1 = x_q + attn_out
    if not do_ln_before:
        h1 = _layernorm(h1, ln1w, ln1b)

    # ---- MLP block ----
    ln2w = ln2w_ref[...]
    ln2b = ln2b_ref[...]
    h2 = _layernorm(h1, ln2w, ln2b) if do_ln_before else h1
    f = jnp.dot(h2.astype(bf16), w1_ref[...], preferred_element_type=f32) + b1_ref[...]
    f = jnp.maximum(f, 0.0)                                             # ReLU
    f = jnp.dot(f.astype(bf16), w2_ref[...], preferred_element_type=f32) + b2_ref[...]
    out = h1 + f
    if not do_ln_before:
        out = _layernorm(out, ln2w, ln2b)

    out_ref[...] = out                                                   # lane-dense [TQ, D]


def opt_decoder_layer(x, params, *, q_tile=Q_TILE):
    """x: [T, D] fp32, params: dict of fp32 arrays (weights stored [in, out])."""
    t, d = x.shape
    assert t % q_tile == 0 and d == NUM_HEADS * HEAD_DIM

    # host-side fusion / dtype prep (bf16 matmul weights, fp32 biases & LN params)
    wq = params["wq"].astype(jnp.bfloat16)
    wkv = jnp.concatenate([params["wk"], params["wv"]], axis=1).astype(jnp.bfloat16)
    bkv = jnp.concatenate([params["bk"], params["bv"]], axis=1)
    wo3 = params["wo"].reshape(NUM_HEADS, HEAD_DIM, d).astype(jnp.bfloat16)

    args = (
        x,
        params["ln1_w"], params["ln1_b"],
        wq, params["bq"],
        wkv, bkv,
        wo3, params["bo"],
        params["ln2_w"], params["ln2_b"],
        params["w1"].astype(jnp.bfloat16), params["b1"],
        params["w2"].astype(jnp.bfloat16), params["b2"],
    )

    def full_spec(a):
        shp = a.shape
        return pl.BlockSpec(shp, lambda *_: (0,) * len(shp))

    in_specs = [full_spec(a) for a in args]
    out_specs = pl.BlockSpec((q_tile, d), lambda i: (i, 0))

    kernel = functools.partial(
        opt_decoder_layer_kernel,
        num_heads=NUM_HEADS, head_dim=HEAD_DIM,
        q_tile=q_tile, do_ln_before=DO_LAYER_NORM_BEFORE)

    return pl.pallas_call(
        kernel,
        out_shape=jax.ShapeDtypeStruct((t, d), jnp.float32),
        grid=(t // q_tile,),
        in_specs=in_specs,
        out_specs=out_specs,
        compiler_params=pltpu.CompilerParams(
            dimension_semantics=("parallel",)),
    )(*args)


def opt_decoder_layer_ref(x, params):
    """Plain-JAX fp32 reference (mirrors the torch forward)."""
    t, d = x.shape
    hd = d // NUM_HEADS
    residual = x
    h = _layernorm(x, params["ln1_w"], params["ln1_b"]) if DO_LAYER_NORM_BEFORE else x
    q = h @ params["wq"] + params["bq"]
    k = h @ params["wk"] + params["bk"]
    v = h @ params["wv"] + params["bv"]
    q = q.reshape(t, NUM_HEADS, hd)
    k = k.reshape(t, NUM_HEADS, hd)
    v = v.reshape(t, NUM_HEADS, hd)
    s = jnp.einsum("qhd,khd->hqk", q, k) * (hd ** -0.5)
    mask = jnp.tril(jnp.ones((t, t), dtype=bool))
    s = jnp.where(mask[None], s, -1e30)
    p = jax.nn.softmax(s, axis=-1)
    o = jnp.einsum("hqk,khd->qhd", p, v).reshape(t, d)
    attn_out = o @ params["wo"] + params["bo"]
    h1 = residual + attn_out
    if not DO_LAYER_NORM_BEFORE:
        h1 = _layernorm(h1, params["ln1_w"], params["ln1_b"])
    h2 = _layernorm(h1, params["ln2_w"], params["ln2_b"]) if DO_LAYER_NORM_BEFORE else h1
    f = jnp.maximum(h2 @ params["w1"] + params["b1"], 0.0)
    f = f @ params["w2"] + params["b2"]
    out = h1 + f
    if not DO_LAYER_NORM_BEFORE:
        out = _layernorm(out, params["ln2_w"], params["ln2_b"])
    return out


def init_params(key):
    ks = jax.random.split(key, 12)
    std = 0.02
    return {
        "ln1_w": jnp.ones((1, D), jnp.float32),
        "ln1_b": jnp.zeros((1, D), jnp.float32),
        "ln2_w": jnp.ones((1, D), jnp.float32),
        "ln2_b": jnp.zeros((1, D), jnp.float32),
        "wq": std * jax.random.normal(ks[0], (D, D), jnp.float32),
        "wk": std * jax.random.normal(ks[1], (D, D), jnp.float32),
        "wv": std * jax.random.normal(ks[2], (D, D), jnp.float32),
        "wo": std * jax.random.normal(ks[3], (D, D), jnp.float32),
        "bq": std * jax.random.normal(ks[4], (1, D), jnp.float32),
        "bk": std * jax.random.normal(ks[5], (1, D), jnp.float32),
        "bv": std * jax.random.normal(ks[6], (1, D), jnp.float32),
        "bo": std * jax.random.normal(ks[7], (1, D), jnp.float32),
        "w1": std * jax.random.normal(ks[8], (D, FFN), jnp.float32),
        "b1": std * jax.random.normal(ks[9], (1, FFN), jnp.float32),
        "w2": std * jax.random.normal(ks[10], (FFN, D), jnp.float32),
        "b2": std * jax.random.normal(ks[11], (1, D), jnp.float32),
    }


if __name__ == "__main__":
    key = jax.random.PRNGKey(0)
    kx, kp = jax.random.split(key)
    x = jax.random.normal(kx, (T, D), jnp.float32)
    params = init_params(kp)

    out = jax.block_until_ready(opt_decoder_layer(x, params))
    ref = jax.block_until_ready(opt_decoder_layer_ref(x, params))

    assert out.shape == (T, D)
    max_err = float(jnp.max(jnp.abs(out - ref)))
    assert bool(jnp.allclose(out, ref, atol=2e-2, rtol=2e-2)), \
        f"mismatch vs reference (max abs err {max_err})"
    print("KERNEL_OK")
</pallas_src>

<mosaic_0001>
module attributes {stable_mosaic.version = 11 : i64} {
  func.func @opt_decoder_layer_kernel(%arg0: i32, %arg1: memref<256x128xf32, #tpu.memory_space<vmem>>, %arg2: memref<1x128xf32, #tpu.memory_space<vmem>>, %arg3: memref<1x128xf32, #tpu.memory_space<vmem>>, %arg4: memref<128x128xbf16, #tpu.memory_space<vmem>>, %arg5: memref<1x128xf32, #tpu.memory_space<vmem>>, %arg6: memref<128x256xbf16, #tpu.memory_space<vmem>>, %arg7: memref<1x256xf32, #tpu.memory_space<vmem>>, %arg8: memref<4x32x128xbf16, #tpu.memory_space<vmem>>, %arg9: memref<1x128xf32, #tpu.memory_space<vmem>>, %arg10: memref<1x128xf32, #tpu.memory_space<vmem>>, %arg11: memref<1x128xf32, #tpu.memory_space<vmem>>, %arg12: memref<128x512xbf16, #tpu.memory_space<vmem>>, %arg13: memref<1x512xf32, #tpu.memory_space<vmem>>, %arg14: memref<512x128xbf16, #tpu.memory_space<vmem>>, %arg15: memref<1x128xf32, #tpu.memory_space<vmem>>, %arg16: memref<128x128xf32, #tpu.memory_space<vmem>>) attributes {dimension_semantics = [#tpu.dimension_semantics<parallel>], iteration_bounds = array<i64: 2>, scalar_prefetch = 0 : i64, scratch_operands = 0 : i64, tpu.core_type = #tpu.core_type<tc>, window_params = [{pipeline_mode = #tpu.pipeline_mode<synchronous>, transform_indices = @transform_0, window_bounds = array<i64: 256, 128>}, {pipeline_mode = #tpu.pipeline_mode<synchronous>, transform_indices = @transform_1, window_bounds = array<i64: 1, 128>}, {pipeline_mode = #tpu.pipeline_mode<synchronous>, transform_indices = @transform_2, window_bounds = array<i64: 1, 128>}, {pipeline_mode = #tpu.pipeline_mode<synchronous>, transform_indices = @transform_3, window_bounds = array<i64: 128, 128>}, {pipeline_mode = #tpu.pipeline_mode<synchronous>, transform_indices = @transform_4, window_bounds = array<i64: 1, 128>}, {pipeline_mode = #tpu.pipeline_mode<synchronous>, transform_indices = @transform_5, window_bounds = array<i64: 128, 256>}, {pipeline_mode = #tpu.pipeline_mode<synchronous>, transform_indices = @transform_6, window_bounds = array<i64: 1, 256>}, {pipeline_mode = #tpu.pipeline_mode<synchronous>, transform_indices = @transform_7, window_bounds = array<i64: 4, 32, 128>}, {pipeline_mode = #tpu.pipeline_mode<synchronous>, transform_indices = @transform_8, window_bounds = array<i64: 1, 128>}, {pipeline_mode = #tpu.pipeline_mode<synchronous>, transform_indices = @transform_9, window_bounds = array<i64: 1, 128>}, {pipeline_mode = #tpu.pipeline_mode<synchronous>, transform_indices = @transform_10, window_bounds = array<i64: 1, 128>}, {pipeline_mode = #tpu.pipeline_mode<synchronous>, transform_indices = @transform_11, window_bounds = array<i64: 128, 512>}, {pipeline_mode = #tpu.pipeline_mode<synchronous>, transform_indices = @transform_12, window_bounds = array<i64: 1, 512>}, {pipeline_mode = #tpu.pipeline_mode<synchronous>, transform_indices = @transform_13, window_bounds = array<i64: 512, 128>}, {pipeline_mode = #tpu.pipeline_mode<synchronous>, transform_indices = @transform_14, window_bounds = array<i64: 1, 128>}, {transform_indices = @transform_15, window_bounds = array<i64: 128, 128>}]} {
    %c128_i32 = arith.constant 128 : i32
    %0 = arith.muli %arg0, %c128_i32 : i32
    %1 = tpu.assume_multiple %0, 128 : i32
    %c0 = arith.constant 0 : index
    %c0_0 = arith.constant 0 : index
    %2 = vector.load %arg1[%c0, %c0_0] : memref<256x128xf32, #tpu.memory_space<vmem>>, vector<256x128xf32>
    %3 = arith.index_cast %1 : i32 to index
    %c0_1 = arith.constant 0 : index
    %4 = vector.load %arg1[%3, %c0_1] : memref<256x128xf32, #tpu.memory_space<vmem>>, vector<128x128xf32>
    %c0_2 = arith.constant 0 : index
    %c0_3 = arith.constant 0 : index
    %5 = vector.load %arg2[%c0_2, %c0_3] : memref<1x128xf32, #tpu.memory_space<vmem>>, vector<1x128xf32>
    %c0_4 = arith.constant 0 : index
    %c0_5 = arith.constant 0 : index
    %6 = vector.load %arg3[%c0_4, %c0_5] : memref<1x128xf32, #tpu.memory_space<vmem>>, vector<1x128xf32>
    %cst = arith.constant dense<0.000000e+00> : vector<256xf32>
    %7 = vector.multi_reduction <add>, %2, %cst [1] : vector<256x128xf32> to vector<256xf32>
    %8 = vector.shape_cast %7 : vector<256xf32> to vector<256x1xf32>
    %cst_6 = arith.constant 1.280000e+02 : f32
    %9 = vector.broadcast %cst_6 : f32 to vector<256x1xf32>
    %10 = arith.divf %8, %9 : vector<256x1xf32>
    %11 = vector.broadcast %10 : vector<256x1xf32> to vector<256x128xf32>
    %12 = arith.subf %2, %11 : vector<256x128xf32>
    %13 = arith.mulf %12, %12 : vector<256x128xf32>
    %cst_7 = arith.constant dense<0.000000e+00> : vector<256xf32>
    %14 = vector.multi_reduction <add>, %13, %cst_7 [1] : vector<256x128xf32> to vector<256xf32>
    %15 = vector.shape_cast %14 : vector<256xf32> to vector<256x1xf32>
    %cst_8 = arith.constant 1.280000e+02 : f32
    %16 = vector.broadcast %cst_8 : f32 to vector<256x1xf32>
    %17 = arith.divf %15, %16 : vector<256x1xf32>
    %cst_9 = arith.constant 9.99999974E-6 : f32
    %18 = vector.broadcast %cst_9 : f32 to vector<256x1xf32>
    %19 = arith.addf %17, %18 : vector<256x1xf32>
    %20 = math.rsqrt %19 : vector<256x1xf32>
    %21 = vector.broadcast %20 : vector<256x1xf32> to vector<256x128xf32>
    %22 = arith.mulf %12, %21 : vector<256x128xf32>
    %23 = vector.broadcast %5 : vector<1x128xf32> to vector<256x128xf32>
    %24 = arith.mulf %22, %23 : vector<256x128xf32>
    %25 = vector.broadcast %6 : vector<1x128xf32> to vector<256x128xf32>
    %26 = arith.addf %24, %25 : vector<256x128xf32>
    %cst_10 = arith.constant dense<0.000000e+00> : vector<128xf32>
    %27 = vector.multi_reduction <add>, %4, %cst_10 [1] : vector<128x128xf32> to vector<128xf32>
    %28 = vector.shape_cast %27 : vector<128xf32> to vector<128x1xf32>
    %cst_11 = arith.constant 1.280000e+02 : f32
    %29 = vector.broadcast %cst_11 : f32 to vector<128x1xf32>
    %30 = arith.divf %28, %29 : vector<128x1xf32>
    %31 = vector.broadcast %30 : vector<128x1xf32> to vector<128x128xf32>
    %32 = arith.subf %4, %31 : vector<128x128xf32>
    %33 = arith.mulf %32, %32 : vector<128x128xf32>
    %cst_12 = arith.constant dense<0.000000e+00> : vector<128xf32>
    %34 = vector.multi_reduction <add>, %33, %cst_12 [1] : vector<128x128xf32> to vector<128xf32>
    %35 = vector.shape_cast %34 : vector<128xf32> to vector<128x1xf32>
    %cst_13 = arith.constant 1.280000e+02 : f32
    %36 = vector.broadcast %cst_13 : f32 to vector<128x1xf32>
    %37 = arith.divf %35, %36 : vector<128x1xf32>
    %cst_14 = arith.constant 9.99999974E-6 : f32
    %38 = vector.broadcast %cst_14 : f32 to vector<128x1xf32>
    %39 = arith.addf %37, %38 : vector<128x1xf32>
    %40 = math.rsqrt %39 : vector<128x1xf32>
    %41 = vector.broadcast %40 : vector<128x1xf32> to vector<128x128xf32>
    %42 = arith.mulf %32, %41 : vector<128x128xf32>
    %43 = vector.broadcast %5 : vector<1x128xf32> to vector<128x128xf32>
    %44 = arith.mulf %42, %43 : vector<128x128xf32>
    %45 = vector.broadcast %6 : vector<1x128xf32> to vector<128x128xf32>
    %46 = arith.addf %44, %45 : vector<128x128xf32>
    %47 = arith.truncf %46 : vector<128x128xf32> to vector<128x128xbf16>
    %c0_15 = arith.constant 0 : index
    %c0_16 = arith.constant 0 : index
    %48 = vector.load %arg4[%c0_15, %c0_16] : memref<128x128xbf16, #tpu.memory_space<vmem>>, vector<128x128xbf16>
    %cst_17 = arith.constant dense<0.000000e+00> : vector<128x128xf32>
    %49 = tpu.matmul %47, %48, %cst_17 {dimension_numbers = #tpu.dot_dimension_numbers<[1], [0], [0], [1], [0, 0, 1, 1], [], []>} : vector<128x128xbf16>, vector<128x128xbf16>, vector<128x128xf32> -> vector<128x128xf32>
    %c0_18 = arith.constant 0 : index
    %c0_19 = arith.constant 0 : index
    %50 = vector.load %arg5[%c0_18, %c0_19] : memref<1x128xf32, #tpu.memory_space<vmem>>, vector<1x128xf32>
    %51 = vector.broadcast %50 : vector<1x128xf32> to vector<128x128xf32>
    %52 = arith.addf %49, %51 : vector<128x128xf32>
    %53 = arith.truncf %26 : vector<256x128xf32> to vector<256x128xbf16>
    %c0_20 = arith.constant 0 : index
    %c0_21 = arith.constant 0 : index
    %54 = vector.load %arg6[%c0_20, %c0_21] : memref<128x256xbf16, #tpu.memory_space<vmem>>, vector<128x256xbf16>
    %cst_22 = arith.constant dense<0.000000e+00> : vector<256x256xf32>
    %55 = tpu.matmul %53, %54, %cst_22 {dimension_numbers = #tpu.dot_dimension_numbers<[1], [0], [0], [1], [0, 0, 1, 1], [], []>} : vector<256x128xbf16>, vector<128x256xbf16>, vector<256x256xf32> -> vector<256x256xf32>
    %c0_23 = arith.constant 0 : index
    %c0_24 = arith.constant 0 : index
    %56 = vector.load %arg7[%c0_23, %c0_24] : memref<1x256xf32, #tpu.memory_space<vmem>>, vector<1x256xf32>
    %57 = vector.broadcast %56 : vector<1x256xf32> to vector<256x256xf32>
    %58 = arith.addf %55, %57 : vector<256x256xf32>
    %59 = vector.extract_strided_slice %58 {offsets = [0, 0], sizes = [256, 128], strides = [1, 1]} : vector<256x256xf32> to vector<256x128xf32>
    %60 = vector.extract_strided_slice %58 {offsets = [0, 128], sizes = [256, 128], strides = [1, 1]} : vector<256x256xf32> to vector<256x128xf32>
    %cst_25 = arith.constant 0.176776692 : f32
    %61 = vector.broadcast %cst_25 : f32 to vector<128x128xf32>
    %62 = arith.mulf %52, %61 : vector<128x128xf32>
    %63 = vector.extract_strided_slice %62 {offsets = [0, 0], sizes = [128, 32], strides = [1, 1]} : vector<128x128xf32> to vector<128x32xf32>
    %64 = vector.extract_strided_slice %62 {offsets = [0, 32], sizes = [128, 32], strides = [1, 1]} : vector<128x128xf32> to vector<128x32xf32>
    %65 = vector.extract_strided_slice %62 {offsets = [0, 64], sizes = [128, 32], strides = [1, 1]} : vector<128x128xf32> to vector<128x32xf32>
    %66 = vector.extract_strided_slice %62 {offsets = [0, 96], sizes = [128, 32], strides = [1, 1]} : vector<128x128xf32> to vector<128x32xf32>
    %67 = vector.shape_cast %63 : vector<128x32xf32> to vector<1x128x32xf32>
    %68 = vector.shape_cast %64 : vector<128x32xf32> to vector<1x128x32xf32>
    %69 = vector.shape_cast %65 : vector<128x32xf32> to vector<1x128x32xf32>
    %70 = vector.shape_cast %66 : vector<128x32xf32> to vector<1x128x32xf32>
    %71 = tpu.concatenate %67, %68, %69, %70 in 0 : vector<1x128x32xf32>, vector<1x128x32xf32>, vector<1x128x32xf32>, vector<1x128x32xf32> -> vector<4x128x32xf32>
    %72 = arith.truncf %71 : vector<4x128x32xf32> to vector<4x128x32xbf16>
    %73 = vector.extract_strided_slice %59 {offsets = [0, 0], sizes = [256, 32], strides = [1, 1]} : vector<256x128xf32> to vector<256x32xf32>
    %74 = vector.extract_strided_slice %59 {offsets = [0, 32], sizes = [256, 32], strides = [1, 1]} : vector<256x128xf32> to vector<256x32xf32>
    %75 = vector.extract_strided_slice %59 {offsets = [0, 64], sizes = [256, 32], strides = [1, 1]} : vector<256x128xf32> to vector<256x32xf32>
    %76 = vector.extract_strided_slice %59 {offsets = [0, 96], sizes = [256, 32], strides = [1, 1]} : vector<256x128xf32> to vector<256x32xf32>
    %77 = vector.shape_cast %73 : vector<256x32xf32> to vector<1x256x32xf32>
    %78 = vector.shape_cast %74 : vector<256x32xf32> to vector<1x256x32xf32>
    %79 = vector.shape_cast %75 : vector<256x32xf32> to vector<1x256x32xf32>
    %80 = vector.shape_cast %76 : vector<256x32xf32> to vector<1x256x32xf32>
    %81 = tpu.concatenate %77, %78, %79, %80 in 0 : vector<1x256x32xf32>, vector<1x256x32xf32>, vector<1x256x32xf32>, vector<1x256x32xf32> -> vector<4x256x32xf32>
    %82 = arith.truncf %81 : vector<4x256x32xf32> to vector<4x256x32xbf16>
    %83 = vector.extract_strided_slice %60 {offsets = [0, 0], sizes = [256, 32], strides = [1, 1]} : vector<256x128xf32> to vector<256x32xf32>
    %84 = vector.extract_strided_slice %60 {offsets = [0, 32], sizes = [256, 32], strides = [1, 1]} : vector<256x128xf32> to vector<256x32xf32>
    %85 = vector.extract_strided_slice %60 {offsets = [0, 64], sizes = [256, 32], strides = [1, 1]} : vector<256x128xf32> to vector<256x32xf32>
    %86 = vector.extract_strided_slice %60 {offsets = [0, 96], sizes = [256, 32], strides = [1, 1]} : vector<256x128xf32> to vector<256x32xf32>
    %87 = vector.shape_cast %83 : vector<256x32xf32> to vector<1x256x32xf32>
    %88 = vector.shape_cast %84 : vector<256x32xf32> to vector<1x256x32xf32>
    %89 = vector.shape_cast %85 : vector<256x32xf32> to vector<1x256x32xf32>
    %90 = vector.shape_cast %86 : vector<256x32xf32> to vector<1x256x32xf32>
    %91 = tpu.concatenate %87, %88, %89, %90 in 0 : vector<1x256x32xf32>, vector<1x256x32xf32>, vector<1x256x32xf32>, vector<1x256x32xf32> -> vector<4x256x32xf32>
    %92 = arith.truncf %91 : vector<4x256x32xf32> to vector<4x256x32xbf16>
    "tpu.trace_start"() <{level = 10 : i32, message = "hqd,hkd->hqk"}> : () -> ()
    %cst_26 = arith.constant dense<0.000000e+00> : vector<4x128x256xf32>
    %93 = tpu.matmul %72, %82, %cst_26 {dimension_numbers = #tpu.dot_dimension_numbers<[2], [2], [1], [1], [0, 0, 0, 1, 1, 1], [0], [0]>} : vector<4x128x32xbf16>, vector<4x256x32xbf16>, vector<4x128x256xf32> -> vector<4x128x256xf32>
    "tpu.trace_stop"() : () -> ()
    %94 = tpu.iota {dimensions = array<i32: 1>} : vector<4x128x256xi32>
    %95 = vector.broadcast %1 : i32 to vector<4x128x256xi32>
    %96 = arith.addi %95, %94 : vector<4x128x256xi32>
    %97 = tpu.iota {dimensions = array<i32: 2>} : vector<4x128x256xi32>
    %98 = arith.cmpi sge, %96, %97 : vector<4x128x256xi32>
    %cst_27 = arith.constant -1.000000e+30 : f32
    %99 = vector.broadcast %cst_27 : f32 to vector<4x128x256xf32>
    %100 = arith.select %98, %93, %99 : vector<4x128x256xi1>, vector<4x128x256xf32>
    %cst_28 = arith.constant dense<0xFF800000> : vector<4x128xf32>
    %101 = vector.multi_reduction <maximumf>, %100, %cst_28 [2] : vector<4x128x256xf32> to vector<4x128xf32>
    %102 = vector.shape_cast %101 : vector<4x128xf32> to vector<4x128x1xf32>
    %103 = vector.broadcast %102 : vector<4x128x1xf32> to vector<4x128x256xf32>
    %104 = arith.subf %100, %103 : vector<4x128x256xf32>
    %105 = math.exp %104 : vector<4x128x256xf32>
    %cst_29 = arith.constant dense<0.000000e+00> : vector<4x128xf32>
    %106 = vector.multi_reduction <add>, %105, %cst_29 [2] : vector<4x128x256xf32> to vector<4x128xf32>
    %107 = vector.shape_cast %106 : vector<4x128xf32> to vector<4x128x1xf32>
    %108 = tpu.reciprocal %107 {approx = true} : vector<4x128x1xf32> -> vector<4x128x1xf32>
    %109 = vector.broadcast %108 : vector<4x128x1xf32> to vector<4x128x256xf32>
    %110 = arith.mulf %105, %109 : vector<4x128x256xf32>
    %111 = arith.truncf %110 : vector<4x128x256xf32> to vector<4x128x256xbf16>
    "tpu.trace_start"() <{level = 10 : i32, message = "hqk,hkd->hqd"}> : () -> ()
    %cst_30 = arith.constant dense<0.000000e+00> : vector<4x128x32xf32>
    %112 = tpu.matmul %111, %92, %cst_30 {dimension_numbers = #tpu.dot_dimension_numbers<[2], [1], [1], [2], [0, 0, 0, 1, 1, 2], [0], [0]>} : vector<4x128x256xbf16>, vector<4x256x32xbf16>, vector<4x128x32xf32> -> vector<4x128x32xf32>
    "tpu.trace_stop"() : () -> ()
    %113 = arith.truncf %112 : vector<4x128x32xf32> to vector<4x128x32xbf16>
    %c0_31 = arith.constant 0 : index
    %c0_32 = arith.constant 0 : index
    %c0_33 = arith.constant 0 : index
    %114 = vector.load %arg8[%c0_31, %c0_32, %c0_33] : memref<4x32x128xbf16, #tpu.memory_space<vmem>>, vector<4x32x128xbf16>
    "tpu.trace_start"() <{level = 10 : i32, message = "hqd,hdn->hqn"}> : () -> ()
    %cst_34 = arith.constant dense<0.000000e+00> : vector<4x128x128xf32>
    %115 = tpu.matmul %113, %114, %cst_34 {dimension_numbers = #tpu.dot_dimension_numbers<[2], [1], [1], [2], [0, 0, 0, 1, 1, 2], [0], [0]>} : vector<4x128x32xbf16>, vector<4x32x128xbf16>, vector<4x128x128xf32> -> vector<4x128x128xf32>
    "tpu.trace_stop"() : () -> ()
    %cst_35 = arith.constant dense<0.000000e+00> : vector<128x128xf32>
    %116 = vector.multi_reduction <add>, %115, %cst_35 [0] : vector<4x128x128xf32> to vector<128x128xf32>
    %c0_36 = arith.constant 0 : index
    %c0_37 = arith.constant 0 : index
    %117 = vector.load %arg9[%c0_36, %c0_37] : memref<1x128xf32, #tpu.memory_space<vmem>>, vector<1x128xf32>
    %118 = vector.broadcast %117 : vector<1x128xf32> to vector<128x128xf32>
    %119 = arith.addf %116, %118 : vector<128x128xf32>
    %120 = arith.addf %4, %119 : vector<128x128xf32>
    %c0_38 = arith.constant 0 : index
    %c0_39 = arith.constant 0 : index
    %121 = vector.load %arg10[%c0_38, %c0_39] : memref<1x128xf32, #tpu.memory_space<vmem>>, vector<1x128xf32>
    %c0_40 = arith.constant 0 : index
    %c0_41 = arith.constant 0 : index
    %122 = vector.load %arg11[%c0_40, %c0_41] : memref<1x128xf32, #tpu.memory_space<vmem>>, vector<1x128xf32>
    %cst_42 = arith.constant dense<0.000000e+00> : vector<128xf32>
    %123 = vector.multi_reduction <add>, %120, %cst_42 [1] : vector<128x128xf32> to vector<128xf32>
    %124 = vector.shape_cast %123 : vector<128xf32> to vector<128x1xf32>
    %cst_43 = arith.constant 1.280000e+02 : f32
    %125 = vector.broadcast %cst_43 : f32 to vector<128x1xf32>
    %126 = arith.divf %124, %125 : vector<128x1xf32>
    %127 = vector.broadcast %126 : vector<128x1xf32> to vector<128x128xf32>
    %128 = arith.subf %120, %127 : vector<128x128xf32>
    %129 = arith.mulf %128, %128 : vector<128x128xf32>
    %cst_44 = arith.constant dense<0.000000e+00> : vector<128xf32>
    %130 = vector.multi_reduction <add>, %129, %cst_44 [1] : vector<128x128xf32> to vector<128xf32>
    %131 = vector.shape_cast %130 : vector<128xf32> to vector<128x1xf32>
    %cst_45 = arith.constant 1.280000e+02 : f32
    %132 = vector.broadcast %cst_45 : f32 to vector<128x1xf32>
    %133 = arith.divf %131, %132 : vector<128x1xf32>
    %cst_46 = arith.constant 9.99999974E-6 : f32
    %134 = vector.broadcast %cst_46 : f32 to vector<128x1xf32>
    %135 = arith.addf %133, %134 : vector<128x1xf32>
    %136 = math.rsqrt %135 : vector<128x1xf32>
    %137 = vector.broadcast %136 : vector<128x1xf32> to vector<128x128xf32>
    %138 = arith.mulf %128, %137 : vector<128x128xf32>
    %139 = vector.broadcast %121 : vector<1x128xf32> to vector<128x128xf32>
    %140 = arith.mulf %138, %139 : vector<128x128xf32>
    %141 = vector.broadcast %122 : vector<1x128xf32> to vector<128x128xf32>
    %142 = arith.addf %140, %141 : vector<128x128xf32>
    %143 = arith.truncf %142 : vector<128x128xf32> to vector<128x128xbf16>
    %c0_47 = arith.constant 0 : index
    %c0_48 = arith.constant 0 : index
    %144 = vector.load %arg12[%c0_47, %c0_48] : memref<128x512xbf16, #tpu.memory_space<vmem>>, vector<128x512xbf16>
    %cst_49 = arith.constant dense<0.000000e+00> : vector<128x512xf32>
    %145 = tpu.matmul %143, %144, %cst_49 {dimension_numbers = #tpu.dot_dimension_numbers<[1], [0], [0], [1], [0, 0, 1, 1], [], []>} : vector<128x128xbf16>, vector<128x512xbf16>, vector<128x512xf32> -> vector<128x512xf32>
    %c0_50 = arith.constant 0 : index
    %c0_51 = arith.constant 0 : index
    %146 = vector.load %arg13[%c0_50, %c0_51] : memref<1x512xf32, #tpu.memory_space<vmem>>, vector<1x512xf32>
    %147 = vector.broadcast %146 : vector<1x512xf32> to vector<128x512xf32>
    %148 = arith.addf %145, %147 : vector<128x512xf32>
    %cst_52 = arith.constant 0.000000e+00 : f32
    %149 = vector.broadcast %cst_52 : f32 to vector<128x512xf32>
    %150 = arith.maximumf %148, %149 : vector<128x512xf32>
    %151 = arith.truncf %150 : vector<128x512xf32> to vector<128x512xbf16>
    %c0_53 = arith.constant 0 : index
    %c0_54 = arith.constant 0 : index
    %152 = vector.load %arg14[%c0_53, %c0_54] : memref<512x128xbf16, #tpu.memory_space<vmem>>, vector<512x128xbf16>
    %cst_55 = arith.constant dense<0.000000e+00> : vector<128x128xf32>
    %153 = tpu.matmul %151, %152, %cst_55 {dimension_numbers = #tpu.dot_dimension_numbers<[1], [0], [0], [1], [0, 0, 1, 1], [], []>} : vector<128x512xbf16>, vector<512x128xbf16>, vector<128x128xf32> -> vector<128x128xf32>
    %c0_56 = arith.constant 0 : index
    %c0_57 = arith.constant 0 : index
    %154 = vector.load %arg15[%c0_56, %c0_57] : memref<1x128xf32, #tpu.memory_space<vmem>>, vector<1x128xf32>
    %155 = vector.broadcast %154 : vector<1x128xf32> to vector<128x128xf32>
    %156 = arith.addf %153, %155 : vector<128x128xf32>
    %157 = arith.addf %120, %156 : vector<128x128xf32>
    %c0_58 = arith.constant 0 : index
    %c0_59 = arith.constant 0 : index
    %158 = vector.load %arg16[%c0_58, %c0_59] : memref<128x128xf32, #tpu.memory_space<vmem>>, vector<128x128xf32>
    tpu.vector_store %arg16[%c0_58, %c0_59], %157 {strides = array<i32>} : memref<128x128xf32, #tpu.memory_space<vmem>>, vector<128x128xf32>,
    return
  }
  func.func @transform_0(%arg0: i32) -> (i32, i32) {
    %c0_i32 = arith.constant 0 : i32
    %c0_i32_0 = arith.constant 0 : i32
    %c0_i32_1 = arith.constant 0 : i32
    return %c0_i32, %c0_i32_0 : i32, i32
  }
  func.func @transform_1(%arg0: i32) -> (i32, i32) {
    %c0_i32 = arith.constant 0 : i32
    %c0_i32_0 = arith.constant 0 : i32
    %c0_i32_1 = arith.constant 0 : i32
    return %c0_i32, %c0_i32_0 : i32, i32
  }
  func.func @transform_2(%arg0: i32) -> (i32, i32) {
    %c0_i32 = arith.constant 0 : i32
    %c0_i32_0 = arith.constant 0 : i32
    %c0_i32_1 = arith.constant 0 : i32
    return %c0_i32, %c0_i32_0 : i32, i32
  }
  func.func @transform_3(%arg0: i32) -> (i32, i32) {
    %c0_i32 = arith.constant 0 : i32
    %c0_i32_0 = arith.constant 0 : i32
    %c0_i32_1 = arith.constant 0 : i32
    return %c0_i32, %c0_i32_0 : i32, i32
  }
  func.func @transform_4(%arg0: i32) -> (i32, i32) {
    %c0_i32 = arith.constant 0 : i32
    %c0_i32_0 = arith.constant 0 : i32
    %c0_i32_1 = arith.constant 0 : i32
    return %c0_i32, %c0_i32_0 : i32, i32
  }
  func.func @transform_5(%arg0: i32) -> (i32, i32) {
    %c0_i32 = arith.constant 0 : i32
    %c0_i32_0 = arith.constant 0 : i32
    %c0_i32_1 = arith.constant 0 : i32
    return %c0_i32, %c0_i32_0 : i32, i32
  }
  func.func @transform_6(%arg0: i32) -> (i32, i32) {
    %c0_i32 = arith.constant 0 : i32
    %c0_i32_0 = arith.constant 0 : i32
    %c0_i32_1 = arith.constant 0 : i32
    return %c0_i32, %c0_i32_0 : i32, i32
  }
  func.func @transform_7(%arg0: i32) -> (i32, i32, i32) {
    %c0_i32 = arith.constant 0 : i32
    %c0_i32_0 = arith.constant 0 : i32
    %c0_i32_1 = arith.constant 0 : i32
    %c0_i32_2 = arith.constant 0 : i32
    return %c0_i32, %c0_i32_0, %c0_i32_1 : i32, i32, i32
  }
  func.func @transform_8(%arg0: i32) -> (i32, i32) {
    %c0_i32 = arith.constant 0 : i32
    %c0_i32_0 = arith.constant 0 : i32
    %c0_i32_1 = arith.constant 0 : i32
    return %c0_i32, %c0_i32_0 : i32, i32
  }
  func.func @transform_9(%arg0: i32) -> (i32, i32) {
    %c0_i32 = arith.constant 0 : i32
    %c0_i32_0 = arith.constant 0 : i32
    %c0_i32_1 = arith.constant 0 : i32
    return %c0_i32, %c0_i32_0 : i32, i32
  }
  func.func @transform_10(%arg0: i32) -> (i32, i32) {
    %c0_i32 = arith.constant 0 : i32
    %c0_i32_0 = arith.constant 0 : i32
    %c0_i32_1 = arith.constant 0 : i32
    return %c0_i32, %c0_i32_0 : i32, i32
  }
  func.func @transform_11(%arg0: i32) -> (i32, i32) {
    %c0_i32 = arith.constant 0 : i32
    %c0_i32_0 = arith.constant 0 : i32
    %c0_i32_1 = arith.constant 0 : i32
    return %c0_i32, %c0_i32_0 : i32, i32
  }
  func.func @transform_12(%arg0: i32) -> (i32, i32) {
    %c0_i32 = arith.constant 0 : i32
    %c0_i32_0 = arith.constant 0 : i32
    %c0_i32_1 = arith.constant 0 : i32
    return %c0_i32, %c0_i32_0 : i32, i32
  }
  func.func @transform_13(%arg0: i32) -> (i32, i32) {
    %c0_i32 = arith.constant 0 : i32
    %c0_i32_0 = arith.constant 0 : i32
    %c0_i32_1 = arith.constant 0 : i32
    return %c0_i32, %c0_i32_0 : i32, i32
  }
  func.func @transform_14(%arg0: i32) -> (i32, i32) {
    %c0_i32 = arith.constant 0 : i32
    %c0_i32_0 = arith.constant 0 : i32
    %c0_i32_1 = arith.constant 0 : i32
    return %c0_i32, %c0_i32_0 : i32, i32
  }
  func.func @transform_15(%arg0: i32) -> (i32, i32) {
    %c0_i32 = arith.constant 0 : i32
    %c0_i32_0 = arith.constant 0 : i32
    return %arg0, %c0_i32 : i32, i32
  }
}

</mosaic_0001>

<llo_original>
// kernel: tpu_custom_call.1
$region0: #{tpu_custom_call.1}
  #allocation0 [shape = 'u32[]', space=smem, size = 0x4, offset = 0x4, fixed_abs, tag = 'smem constant byte address 0x4 - core index']
  #allocation1 [shape = 'u32[144,128]{1,0:T(1,128)}', space=vmem, size = 0x12000, scoped, tag = 'internal scratch']
  %s0 = inlined_call_operand.hbm [shape: f32[256,128], index: 0, kind: input, shape index: {}]
  %s1 = inlined_call_operand.vmem [shape: f32[1,128], index: 1, kind: input, shape index: {}]
  %s2 = inlined_call_operand.hbm [shape: f32[1,128], index: 2, kind: input, shape index: {}]
  %s3 = inlined_call_operand.hbm [shape: bf16[128,128], index: 3, kind: input, shape index: {}]
  %s4 = inlined_call_operand.vmem [shape: f32[1,128], index: 4, kind: input, shape index: {}]
  %s5 = inlined_call_operand.hbm [shape: bf16[128,256], index: 5, kind: input, shape index: {}]
  %s6 = inlined_call_operand.vmem [shape: f32[1,256], index: 6, kind: input, shape index: {}]
  %s7 = inlined_call_operand.hbm [shape: bf16[4,32,128], index: 7, kind: input, shape index: {}]
  %s8 = inlined_call_operand.vmem [shape: f32[1,128], index: 8, kind: input, shape index: {}]
  %s9 = inlined_call_operand.vmem [shape: f32[1,128], index: 9, kind: input, shape index: {}]
  %s10 = inlined_call_operand.vmem [shape: f32[1,128], index: 10, kind: input, shape index: {}]
  %s11 = inlined_call_operand.hbm [shape: bf16[128,512], index: 11, kind: input, shape index: {}]
  %s12 = inlined_call_operand.vmem [shape: f32[1,512], index: 12, kind: input, shape index: {}]
  %s13 = inlined_call_operand.hbm [shape: bf16[512,128], index: 13, kind: input, shape index: {}]
  %s14 = inlined_call_operand.vmem [shape: f32[1,128], index: 14, kind: input, shape index: {}]
  %s15 = inlined_call_operand.hbm [shape: f32[256,128], index: 15, kind: output, shape index: {}]
  %s16 = sld [smem:[#allocation0]]
  $region121: #{tpu_custom_call.1} parent=0
    _
  %s18 = ssub.s32 1, %s16
  %s19 = scalar_select 0, %s18, %s16
  $region1: #{tpu_custom_call.1} parent=0
    #allocation2 [shape = 'u8[131072]{0}', space=vmem, size = 0x20000, scoped, tag = 'input window, operand 0, single buffered']
    #allocation3 [shape = 's32[2]{0}', space=sflag, size = 0x8, scoped, tag = 'scoped memory for tpu_custom_call.1']
    #allocation4 [shape = 's32[2]{0}', space=sflag, size = 0x8, scoped, tag = 'scoped memory for tpu_custom_call.1']
    #allocation5 [shape = 'u8[512]{0}', space=vmem, size = 0x400, scoped, tag = 'input window, operand 2, single buffered']
    #allocation6 [shape = 's32[1]{0}', space=sflag, size = 0x4, scoped, tag = 'scoped memory for tpu_custom_call.1']
    #allocation7 [shape = 'u8[32768]{0}', space=vmem, size = 0x8000, scoped, tag = 'input window, operand 3, single buffered']
    #allocation8 [shape = 'u8[65536]{0}', space=vmem, size = 0x10000, scoped, tag = 'input window, operand 5, single buffered']
    #allocation9 [shape = 's32[1]{0}', space=sflag, size = 0x4, scoped, tag = 'scoped memory for tpu_custom_call.1']
    #allocation10 [shape = 'u8[32768]{0}', space=vmem, size = 0x8000, scoped, tag = 'input window, operand 7, single buffered']
    #allocation11 [shape = 'u8[131072]{0}', space=vmem, size = 0x20000, scoped, tag = 'input window, operand 11, single buffered']
    #allocation12 [shape = 's32[1]{0}', space=sflag, size = 0x4, scoped, tag = 'scoped memory for tpu_custom_call.1']
    #allocation13 [shape = 'u8[131072]{0}', space=vmem, size = 0x20000, scoped, tag = 'input window, operand 13, single buffered']
    #allocation14 [shape = 'u8[131072]{0}', space=vmem, size = 0x20000, scoped, tag = 'output window, operand 0']
    %20 = vsyncpa [#allocation3], 0
    %21 = vsyncpa [#allocation6], 0
    %22 = vsyncpa [#allocation9], 0
    %23 = vsyncpa [#allocation12], 0
    %24 = vsyncpa [#allocation4], 0
    %s25 = scalar_lea.sflag [#allocation4], 1
    %26 = vsyncpa %s25, 0
    loop: start=0, step=1, limit=4
    $region2: #{tpu_custom_call.1} parent=1 // loop_pre_header
      _
    $region3: #{tpu_custom_call.1} parent=1 // loop_header
      %s28 = sphi 0, %s32
      %p29 = scmp.ge.s32.totalorder %s28, 4
      %s36 = sphi 0, %s36
      %s38 = sphi 0, %s36
      %s39 = sphi 0, %s38
      %s53 = sphi 0, %s39
      %s57 = sphi 0, %s57
      %s59 = sphi 0, %s57
      %s60 = sphi 0, %s59
      %s74 = sphi 0, %s60
      %s78 = sphi 0, %s78
      %s80 = sphi 0, %s78
      %s81 = sphi 0, %s80
      %s95 = sphi 0, %s81
      %s99 = sphi 0, %s99
      %s101 = sphi 0, %s99
      %s102 = sphi 0, %s101
      %s116 = sphi 0, %s102
      %s120 = sphi 0, %s120
      %s122 = sphi 0, %s120
      %s123 = sphi 0, %s122
      %s137 = sphi 0, %s123
      %s141 = sphi 0, %s141
      %s143 = sphi 0, %s141
      %s144 = sphi 0, %s143
      %s158 = sphi 0, %s144
      %s162 = sphi 0, %s162
      %s164 = sphi 0, %s162
      %s165 = sphi 0, %s164
      %s179 = sphi 0, %s165
      %s183 = sphi 0, %s183
      %s185 = sphi 0, %s183
      %s186 = sphi 0, %s185
      %s200 = sphi 0, %s186
      %s204 = sphi 0, %s204
      %s206 = sphi 0, %s204
      %s207 = sphi 0, %s206
      %s221 = sphi 0, %s207
      %s225 = sphi 0, %s225
      %s227 = sphi 0, %s225
      %s228 = sphi 0, %s227
      %s242 = sphi 0, %s228
      %s246 = sphi 0, %s246
      %s248 = sphi 0, %s246
      %s249 = sphi 0, %s248
      %s263 = sphi 0, %s249
      %s267 = sphi 0, %s267
      %s269 = sphi 0, %s267
      %s270 = sphi 0, %s269
      %s284 = sphi 0, %s270
      %s288 = sphi 0, %s288
      %s290 = sphi 0, %s288
      %s291 = sphi 0, %s290
      %s305 = sphi 0, %s291
      %s309 = sphi 0, %s309
      %s311 = sphi 0, %s309
      %s312 = sphi 0, %s311
      %s326 = sphi 0, %s312
      %s330 = sphi 0, %s330
      %s332 = sphi 0, %s330
      %s333 = sphi 0, %s332
      %s347 = sphi 0, %s333
      %s353 = sphi 0, %s355
      %s356 = sphi 0, %s353
      %s357 = sphi 0, %s356
      %s373 = sphi 0, %s357
    $region4: #{tpu_custom_call.1} parent=1 // loop_header_branch
      %31 = sbr.rel (%p29) target = $region8
    $region5: #{tpu_custom_call.1} parent=1 // loop_body
      %s33 = ssub.s32 %s28, 1
      %s34 = ssub.s32 %s28, 2
      %s35 = sadd.s32 %s28, 1
      %s37 = sadd.s32 %s36, 1
      %p40 = scmp.eq.s32.totalorder %s28, 1
      %p41 = scmp.ne.s32.totalorder %s36, %s38
      %p42 = scmp.eq.s32.totalorder %s28, 0
      %p43 = por %p41, %p42
      %p44 = scmp.ne.s32.totalorder %s36, %s38
      %p45 = scmp.eq.s32.totalorder %s33, 1
      %p46 = por %p44, %p45
      %p47 = scmp.ne.s32.totalorder %s38, %s39
      %p48 = scmp.eq.s32.totalorder %s33, 0
      %p49 = por %p47, %p48
      %p50 = scmp.ne.s32.totalorder %s38, %s39
      %p51 = scmp.eq.s32.totalorder %s34, 1
      %p52 = por %p50, %p51
      %p54 = scmp.ne.s32.totalorder %s39, %s53
      %p55 = scmp.eq.s32.totalorder %s34, 0
      %p56 = por %p54, %p55
      %s58 = sadd.s32 %s57, 1
      %p61 = scmp.eq.s32.totalorder %s28, 1
      %p62 = scmp.ne.s32.totalorder %s57, %s59
      %p63 = scmp.eq.s32.totalorder %s28, 0
      %p64 = por %p62, %p63
      %p65 = scmp.ne.s32.totalorder %s57, %s59
      %p66 = scmp.eq.s32.totalorder %s33, 1
      %p67 = por %p65, %p66
      %p68 = scmp.ne.s32.totalorder %s59, %s60
      %p69 = scmp.eq.s32.totalorder %s33, 0
      %p70 = por %p68, %p69
      %p71 = scmp.ne.s32.totalorder %s59, %s60
      %p72 = scmp.eq.s32.totalorder %s34, 1
      %p73 = por %p71, %p72
      %p75 = scmp.ne.s32.totalorder %s60, %s74
      %p76 = scmp.eq.s32.totalorder %s34, 0
      %p77 = por %p75, %p76
      %s79 = sadd.s32 %s78, 1
      %p82 = scmp.eq.s32.totalorder %s28, 1
      %p83 = scmp.ne.s32.totalorder %s78, %s80
      %p84 = scmp.eq.s32.totalorder %s28, 0
      %p85 = por %p83, %p84
      %p86 = scmp.ne.s32.totalorder %s78, %s80
      %p87 = scmp.eq.s32.totalorder %s33, 1
      %p88 = por %p86, %p87
      %p89 = scmp.ne.s32.totalorder %s80, %s81
      %p90 = scmp.eq.s32.totalorder %s33, 0
      %p91 = por %p89, %p90
      %p92 = scmp.ne.s32.totalorder %s80, %s81
      %p93 = scmp.eq.s32.totalorder %s34, 1
      %p94 = por %p92, %p93
      %p96 = scmp.ne.s32.totalorder %s81, %s95
      %p97 = scmp.eq.s32.totalorder %s34, 0
      %p98 = por %p96, %p97
      %s100 = sadd.s32 %s99, 1
      %p103 = scmp.eq.s32.totalorder %s28, 1
      %p104 = scmp.ne.s32.totalorder %s99, %s101
      %p105 = scmp.eq.s32.totalorder %s28, 0
      %p106 = por %p104, %p105
      %p107 = scmp.ne.s32.totalorder %s99, %s101
      %p108 = scmp.eq.s32.totalorder %s33, 1
      %p109 = por %p107, %p108
      %p110 = scmp.ne.s32.totalorder %s101, %s102
      %p111 = scmp.eq.s32.totalorder %s33, 0
      %p112 = por %p110, %p111
      %p113 = scmp.ne.s32.totalorder %s101, %s102
      %p114 = scmp.eq.s32.totalorder %s34, 1
      %p115 = por %p113, %p114
      %p117 = scmp.ne.s32.totalorder %s102, %s116
      %p118 = scmp.eq.s32.totalorder %s34, 0
      %p119 = por %p117, %p118
      %s121 = sadd.s32 %s120, 1
      %p124 = scmp.eq.s32.totalorder %s28, 1
      %p125 = scmp.ne.s32.totalorder %s120, %s122
      %p126 = scmp.eq.s32.totalorder %s28, 0
      %p127 = por %p125, %p126
      %p128 = scmp.ne.s32.totalorder %s120, %s122
      %p129 = scmp.eq.s32.totalorder %s33, 1
      %p130 = por %p128, %p129
      %p131 = scmp.ne.s32.totalorder %s122, %s123
      %p132 = scmp.eq.s32.totalorder %s33, 0
      %p133 = por %p131, %p132
      %p134 = scmp.ne.s32.totalorder %s122, %s123
      %p135 = scmp.eq.s32.totalorder %s34, 1
      %p136 = por %p134, %p135
      %p138 = scmp.ne.s32.totalorder %s123, %s137
      %p139 = scmp.eq.s32.totalorder %s34, 0
      %p140 = por %p138, %p139
      %s142 = sadd.s32 %s141, 1
      %p145 = scmp.eq.s32.totalorder %s28, 1
      %p146 = scmp.ne.s32.totalorder %s141, %s143
      %p147 = scmp.eq.s32.totalorder %s28, 0
      %p148 = por %p146, %p147
      %p149 = scmp.ne.s32.totalorder %s141, %s143
      %p150 = scmp.eq.s32.totalorder %s33, 1
      %p151 = por %p149, %p150
      %p152 = scmp.ne.s32.totalorder %s143, %s144
      %p153 = scmp.eq.s32.totalorder %s33, 0
      %p154 = por %p152, %p153
      %p155 = scmp.ne.s32.totalorder %s143, %s144
      %p156 = scmp.eq.s32.totalorder %s34, 1
      %p157 = por %p155, %p156
      %p159 = scmp.ne.s32.totalorder %s144, %s158
      %p160 = scmp.eq.s32.totalorder %s34, 0
      %p161 = por %p159, %p160
      %s163 = sadd.s32 %s162, 1
      %p166 = scmp.eq.s32.totalorder %s28, 1
      %p167 = scmp.ne.s32.totalorder %s162, %s164
      %p168 = scmp.eq.s32.totalorder %s28, 0
      %p169 = por %p167, %p168
      %p170 = scmp.ne.s32.totalorder %s162, %s164
      %p171 = scmp.eq.s32.totalorder %s33, 1
      %p172 = por %p170, %p171
      %p173 = scmp.ne.s32.totalorder %s164, %s165
      %p174 = scmp.eq.s32.totalorder %s33, 0
      %p175 = por %p173, %p174
      %p176 = scmp.ne.s32.totalorder %s164, %s165
      %p177 = scmp.eq.s32.totalorder %s34, 1
      %p178 = por %p176, %p177
      %p180 = scmp.ne.s32.totalorder %s165, %s179
      %p181 = scmp.eq.s32.totalorder %s34, 0
      %p182 = por %p180, %p181
      %s184 = sadd.s32 %s183, 1
      %p187 = scmp.eq.s32.totalorder %s28, 1
      %p188 = scmp.ne.s32.totalorder %s183, %s185
      %p189 = scmp.eq.s32.totalorder %s28, 0
      %p190 = por %p188, %p189
      %p191 = scmp.ne.s32.totalorder %s183, %s185
      %p192 = scmp.eq.s32.totalorder %s33, 1
      %p193 = por %p191, %p192
      %p194 = scmp.ne.s32.totalorder %s185, %s186
      %p195 = scmp.eq.s32.totalorder %s33, 0
      %p196 = por %p194, %p195
      %p197 = scmp.ne.s32.totalorder %s185, %s186
      %p198 = scmp.eq.s32.totalorder %s34, 1
      %p199 = por %p197, %p198
      %p201 = scmp.ne.s32.totalorder %s186, %s200
      %p202 = scmp.eq.s32.totalorder %s34, 0
      %p203 = por %p201, %p202
      %s205 = sadd.s32 %s204, 1
      %p208 = scmp.eq.s32.totalorder %s28, 1
      %p209 = scmp.ne.s32.totalorder %s204, %s206
      %p210 = scmp.eq.s32.totalorder %s28, 0
      %p211 = por %p209, %p210
      %p212 = scmp.ne.s32.totalorder %s204, %s206
      %p213 = scmp.eq.s32.totalorder %s33, 1
      %p214 = por %p212, %p213
      %p215 = scmp.ne.s32.totalorder %s206, %s207
      %p216 = scmp.eq.s32.totalorder %s33, 0
      %p217 = por %p215, %p216
      %p218 = scmp.ne.s32.totalorder %s206, %s207
      %p219 = scmp.eq.s32.totalorder %s34, 1
      %p220 = por %p218, %p219
      %p222 = scmp.ne.s32.totalorder %s207, %s221
      %p223 = scmp.eq.s32.totalorder %s34, 0
      %p224 = por %p222, %p223
      %s226 = sadd.s32 %s225, 1
      %p229 = scmp.eq.s32.totalorder %s28, 1
      %p230 = scmp.ne.s32.totalorder %s225, %s227
      %p231 = scmp.eq.s32.totalorder %s28, 0
      %p232 = por %p230, %p231
      %p233 = scmp.ne.s32.totalorder %s225, %s227
      %p234 = scmp.eq.s32.totalorder %s33, 1
      %p235 = por %p233, %p234
      %p236 = scmp.ne.s32.totalorder %s227, %s228
      %p237 = scmp.eq.s32.totalorder %s33, 0
      %p238 = por %p236, %p237
      %p239 = scmp.ne.s32.totalorder %s227, %s228
      %p240 = scmp.eq.s32.totalorder %s34, 1
      %p241 = por %p239, %p240
      %p243 = scmp.ne.s32.totalorder %s228, %s242
      %p244 = scmp.eq.s32.totalorder %s34, 0
      %p245 = por %p243, %p244
      %s247 = sadd.s32 %s246, 1
      %p250 = scmp.eq.s32.totalorder %s28, 1
      %p251 = scmp.ne.s32.totalorder %s246, %s248
      %p252 = scmp.eq.s32.totalorder %s28, 0
      %p253 = por %p251, %p252
      %p254 = scmp.ne.s32.totalorder %s246, %s248
      %p255 = scmp.eq.s32.totalorder %s33, 1
      %p256 = por %p254, %p255
      %p257 = scmp.ne.s32.totalorder %s248, %s249
      %p258 = scmp.eq.s32.totalorder %s33, 0
      %p259 = por %p257, %p258
      %p260 = scmp.ne.s32.totalorder %s248, %s249
      %p261 = scmp.eq.s32.totalorder %s34, 1
      %p262 = por %p260, %p261
      %p264 = scmp.ne.s32.totalorder %s249, %s263
      %p265 = scmp.eq.s32.totalorder %s34, 0
      %p266 = por %p264, %p265
      %s268 = sadd.s32 %s267, 1
      %p271 = scmp.eq.s32.totalorder %s28, 1
      %p272 = scmp.ne.s32.totalorder %s267, %s269
      %p273 = scmp.eq.s32.totalorder %s28, 0
      %p274 = por %p272, %p273
      %p275 = scmp.ne.s32.totalorder %s267, %s269
      %p276 = scmp.eq.s32.totalorder %s33, 1
      %p277 = por %p275, %p276
      %p278 = scmp.ne.s32.totalorder %s269, %s270
      %p279 = scmp.eq.s32.totalorder %s33, 0
      %p280 = por %p278, %p279
      %p281 = scmp.ne.s32.totalorder %s269, %s270
      %p282 = scmp.eq.s32.totalorder %s34, 1
      %p283 = por %p281, %p282
      %p285 = scmp.ne.s32.totalorder %s270, %s284
      %p286 = scmp.eq.s32.totalorder %s34, 0
      %p287 = por %p285, %p286
      %s289 = sadd.s32 %s288, 1
      %p292 = scmp.eq.s32.totalorder %s28, 1
      %p293 = scmp.ne.s32.totalorder %s288, %s290
      %p294 = scmp.eq.s32.totalorder %s28, 0
      %p295 = por %p293, %p294
      %p296 = scmp.ne.s32.totalorder %s288, %s290
      %p297 = scmp.eq.s32.totalorder %s33, 1
      %p298 = por %p296, %p297
      %p299 = scmp.ne.s32.totalorder %s290, %s291
      %p300 = scmp.eq.s32.totalorder %s33, 0
      %p301 = por %p299, %p300
      %p302 = scmp.ne.s32.totalorder %s290, %s291
      %p303 = scmp.eq.s32.totalorder %s34, 1
      %p304 = por %p302, %p303
      %p306 = scmp.ne.s32.totalorder %s291, %s305
      %p307 = scmp.eq.s32.totalorder %s34, 0
      %p308 = por %p306, %p307
      %s310 = sadd.s32 %s309, 1
      %p313 = scmp.eq.s32.totalorder %s28, 1
      %p314 = scmp.ne.s32.totalorder %s309, %s311
      %p315 = scmp.eq.s32.totalorder %s28, 0
      %p316 = por %p314, %p315
      %p317 = scmp.ne.s32.totalorder %s309, %s311
      %p318 = scmp.eq.s32.totalorder %s33, 1
      %p319 = por %p317, %p318
      %p320 = scmp.ne.s32.totalorder %s311, %s312
      %p321 = scmp.eq.s32.totalorder %s33, 0
      %p322 = por %p320, %p321
      %p323 = scmp.ne.s32.totalorder %s311, %s312
      %p324 = scmp.eq.s32.totalorder %s34, 1
      %p325 = por %p323, %p324
      %p327 = scmp.ne.s32.totalorder %s312, %s326
      %p328 = scmp.eq.s32.totalorder %s34, 0
      %p329 = por %p327, %p328
      %s331 = sadd.s32 %s330, 1
      %p334 = scmp.eq.s32.totalorder %s28, 1
      %p335 = scmp.ne.s32.totalorder %s330, %s332
      %p336 = scmp.eq.s32.totalorder %s28, 0
      %p337 = por %p335, %p336
      %p338 = scmp.ne.s32.totalorder %s330, %s332
      %p339 = scmp.eq.s32.totalorder %s33, 1
      %p340 = por %p338, %p339
      %p341 = scmp.ne.s32.totalorder %s332, %s333
      %p342 = scmp.eq.s32.totalorder %s33, 0
      %p343 = por %p341, %p342
      %p344 = scmp.ne.s32.totalorder %s332, %s333
      %p345 = scmp.eq.s32.totalorder %s34, 1
      %p346 = por %p344, %p345
      %p348 = scmp.ne.s32.totalorder %s333, %s347
      %p349 = scmp.eq.s32.totalorder %s34, 0
      %p350 = por %p348, %p349
      %s351 = ssub.s32 %s28, %s35
      %p352 = scmp.eq.s32.totalorder %s351, 0
      %s354 = sadd.s32 %s353, 1
      %s355 = scalar_select %p352, %s353, %s354
      %p358 = pneg %p352
      %p359 = scmp.eq.s32.totalorder %s28, 1
      %p360 = por %p358, %p359
      %p361 = scmp.ne.s32.totalorder %s353, %s356
      %p362 = scmp.eq.s32.totalorder %s28, 0
      %p363 = por %p361, %p362
      %p364 = scmp.ne.s32.totalorder %s353, %s356
      %p365 = scmp.eq.s32.totalorder %s33, 1
      %p366 = por %p364, %p365
      %p367 = scmp.ne.s32.totalorder %s356, %s357
      %p368 = scmp.eq.s32.totalorder %s33, 0
      %p369 = por %p367, %p368
      %p370 = scmp.ne.s32.totalorder %s356, %s357
      %p371 = scmp.eq.s32.totalorder %s34, 1
      %p372 = por %p370, %p371
      %p374 = scmp.ne.s32.totalorder %s357, %s373
      %p375 = scmp.eq.s32.totalorder %s34, 0
      %p376 = por %p374, %p375
      %p377 = scmp.le.s32.totalorder 1, %s28
      %p378 = scmp.lt.s32.totalorder %s28, 3
      %p379 = pnand %p377, %p378
      %p380 = pneg %p379
      // Predicated region
      $region9: #{tpu_custom_call.1} parent=5 // pred_check
        _
      $region10: #{tpu_custom_call.1} parent=5 // pred_check_branch
        %382 = sbr.rel (%p379) target = $region12
      $region11: #{tpu_custom_call.1} parent=5 // pred_region
        %s383 = ssub.s32 %s28, 1
        // Predicated region
        $region13: #{tpu_custom_call.1} parent=11 // pred_check
          %p384 = pneg %p49
        $region14: #{tpu_custom_call.1} parent=11 // pred_check_branch
          %386 = sbr.rel (%p384) target = $region16
        $region15: #{tpu_custom_call.1} parent=11 // pred_region
          %s388 = ssub.s32 4096, 4096
          %389 = vsyncadd [#allocation3], %s388
          %s390 = sshll.u32 [#allocation2], 4
          %s391 = int_to_ptr.vmem [resolvable:$true] %s390
          %396 = dma.hbm_to_vmem [thread:$0]  %s0, 4096, %s391, [#allocation3], 128, 128, 8
        $region16: #{tpu_custom_call.1} parent=11 // pred_fallthru
          _
        // Predicated region
        $region17: #{tpu_custom_call.1} parent=11 // pred_check
          %p397 = pneg %p70
        $region18: #{tpu_custom_call.1} parent=11 // pred_check_branch
          %399 = sbr.rel (%p397) target = $region20
        $region19: #{tpu_custom_call.1} parent=11 // pred_region
          _
        $region20: #{tpu_custom_call.1} parent=11 // pred_fallthru
          _
        // Predicated region
        $region21: #{tpu_custom_call.1} parent=11 // pred_check
          %p400 = pneg %p91
        $region22: #{tpu_custom_call.1} parent=11 // pred_check_branch
          %402 = sbr.rel (%p400) target = $region24
        $region23: #{tpu_custom_call.1} parent=11 // pred_region
          %s404 = ssub.s32 16, 16
          %405 = vsyncadd [#allocation6], %s404
          %s407 = sshll.u32 [#allocation5], 4
          %s408 = int_to_ptr.vmem [resolvable:$true] %s407
          %410 = dma.hbm_to_vmem [thread:$0]  %s2, 16, %s408, [#allocation6]
        $region24: #{tpu_custom_call.1} parent=11 // pred_fallthru
          _
        // Predicated region
        $region25: #{tpu_custom_call.1} parent=11 // pred_check
          %p411 = pneg %p112
        $region26: #{tpu_custom_call.1} parent=11 // pred_check_branch
          %413 = sbr.rel (%p411) target = $region28
        $region27: #{tpu_custom_call.1} parent=11 // pred_region
          %s415 = ssub.s32 1024, 1024
          %416 = vsyncadd [#allocation6], %s415
          %s417 = sshll.u32 [#allocation7], 4
          %s418 = int_to_ptr.vmem [resolvable:$true] %s417
          %423 = dma.hbm_to_vmem [thread:$0]  %s3, 1024, %s418, [#allocation6], 64, 64, 4
        $region28: #{tpu_custom_call.1} parent=11 // pred_fallthru
          _
        // Predicated region
        $region29: #{tpu_custom_call.1} parent=11 // pred_check
          %p424 = pneg %p133
        $region30: #{tpu_custom_call.1} parent=11 // pred_check_branch
          %426 = sbr.rel (%p424) target = $region32
        $region31: #{tpu_custom_call.1} parent=11 // pred_region
          _
        $region32: #{tpu_custom_call.1} parent=11 // pred_fallthru
          _
        // Predicated region
        $region33: #{tpu_custom_call.1} parent=11 // pred_check
          %p427 = pneg %p154
        $region34: #{tpu_custom_call.1} parent=11 // pred_check_branch
          %429 = sbr.rel (%p427) target = $region36
        $region35: #{tpu_custom_call.1} parent=11 // pred_region
          %s431 = ssub.s32 2048, 2048
          %432 = vsyncadd [#allocation9], %s431
          %s433 = sshll.u32 [#allocation8], 4
          %s434 = int_to_ptr.vmem [resolvable:$true] %s433
          %439 = dma.hbm_to_vmem [thread:$0]  %s5, 2048, %s434, [#allocation9], 128, 128, 8
        $region36: #{tpu_custom_call.1} parent=11 // pred_fallthru
          _
        // Predicated region
        $region37: #{tpu_custom_call.1} parent=11 // pred_check
          %p440 = pneg %p175
        $region38: #{tpu_custom_call.1} parent=11 // pred_check_branch
          %442 = sbr.rel (%p440) target = $region40
        $region39: #{tpu_custom_call.1} parent=11 // pred_region
          _
        $region40: #{tpu_custom_call.1} parent=11 // pred_fallthru
          _
        // Predicated region
        $region41: #{tpu_custom_call.1} parent=11 // pred_check
          %p443 = pneg %p196
        $region42: #{tpu_custom_call.1} parent=11 // pred_check_branch
          %445 = sbr.rel (%p443) target = $region44
        $region43: #{tpu_custom_call.1} parent=11 // pred_region
          %s447 = ssub.s32 1024, 1024
          %448 = vsyncadd [#allocation9], %s447
          %s449 = sshll.u32 [#allocation10], 4
          %s450 = int_to_ptr.vmem [resolvable:$true] %s449
          %455 = dma.hbm_to_vmem [thread:$0]  %s7, 1024, %s450, [#allocation9], 64, 64, 4
        $region44: #{tpu_custom_call.1} parent=11 // pred_fallthru
          _
        // Predicated region
        $region45: #{tpu_custom_call.1} parent=11 // pred_check
          %p456 = pneg %p217
        $region46: #{tpu_custom_call.1} parent=11 // pred_check_branch
          %458 = sbr.rel (%p456) target = $region48
        $region47: #{tpu_custom_call.1} parent=11 // pred_region
          _
        $region48: #{tpu_custom_call.1} parent=11 // pred_fallthru
          _
        // Predicated region
        $region49: #{tpu_custom_call.1} parent=11 // pred_check
          %p459 = pneg %p238
        $region50: #{tpu_custom_call.1} parent=11 // pred_check_branch
          %461 = sbr.rel (%p459) target = $region52
        $region51: #{tpu_custom_call.1} parent=11 // pred_region
          _
        $region52: #{tpu_custom_call.1} parent=11 // pred_fallthru
          _
        // Predicated region
        $region53: #{tpu_custom_call.1} parent=11 // pred_check
          %p462 = pneg %p259
        $region54: #{tpu_custom_call.1} parent=11 // pred_check_branch
          %464 = sbr.rel (%p462) target = $region56
        $region55: #{tpu_custom_call.1} parent=11 // pred_region
          _
        $region56: #{tpu_custom_call.1} parent=11 // pred_fallthru
          _
        // Predicated region
        $region57: #{tpu_custom_call.1} parent=11 // pred_check
          %p465 = pneg %p280
        $region58: #{tpu_custom_call.1} parent=11 // pred_check_branch
          %467 = sbr.rel (%p465) target = $region60
        $region59: #{tpu_custom_call.1} parent=11 // pred_region
          %s469 = ssub.s32 4096, 4096
          %470 = vsyncadd [#allocation12], %s469
          %s471 = sshll.u32 [#allocation11], 4
          %s472 = int_to_ptr.vmem [resolvable:$true] %s471
          %477 = dma.hbm_to_vmem [thread:$0]  %s11, 4096, %s472, [#allocation12], 256, 256, 16
        $region60: #{tpu_custom_call.1} parent=11 // pred_fallthru
          _
        // Predicated region
        $region61: #{tpu_custom_call.1} parent=11 // pred_check
          %p478 = pneg %p301
        $region62: #{tpu_custom_call.1} parent=11 // pred_check_branch
          %480 = sbr.rel (%p478) target = $region64
        $region63: #{tpu_custom_call.1} parent=11 // pred_region
          _
        $region64: #{tpu_custom_call.1} parent=11 // pred_fallthru
          _
        // Predicated region
        $region65: #{tpu_custom_call.1} parent=11 // pred_check
          %p481 = pneg %p322
        $region66: #{tpu_custom_call.1} parent=11 // pred_check_branch
          %483 = sbr.rel (%p481) target = $region68
        $region67: #{tpu_custom_call.1} parent=11 // pred_region
          %s485 = ssub.s32 4096, 4096
          %486 = vsyncadd [#allocation12], %s485
          %s487 = sshll.u32 [#allocation13], 4
          %s488 = int_to_ptr.vmem [resolvable:$true] %s487
          %493 = dma.hbm_to_vmem [thread:$0]  %s13, 4096, %s488, [#allocation12], 64, 64, 4
        $region68: #{tpu_custom_call.1} parent=11 // pred_fallthru
          _
        // Predicated region
        $region69: #{tpu_custom_call.1} parent=11 // pred_check
          %p494 = pneg %p343
        $region70: #{tpu_custom_call.1} parent=11 // pred_check_branch
          %496 = sbr.rel (%p494) target = $region72
        $region71: #{tpu_custom_call.1} parent=11 // pred_region
          _
        $region72: #{tpu_custom_call.1} parent=11 // pred_fallthru
          _
      $region12: #{tpu_custom_call.1} parent=5 // pred_fallthru
        _
      %p497 = scmp.lt.s32.totalorder %s28, 2
      // Predicated region
      $region73: #{tpu_custom_call.1} parent=5 // pred_check
        %p498 = pneg %p497
      $region74: #{tpu_custom_call.1} parent=5 // pred_check_branch
        %500 = sbr.rel (%p498) target = $region76
      $region75: #{tpu_custom_call.1} parent=5 // pred_region
        _
      $region76: #{tpu_custom_call.1} parent=5 // pred_fallthru
        _
      %p501 = scmp.le.s32.totalorder 1, %s28
      %p502 = scmp.lt.s32.totalorder %s28, 3
      %p503 = pnand %p501, %p502
      %p504 = pneg %p503
      // Predicated region
      $region77: #{tpu_custom_call.1} parent=5 // pred_check
        _
      $region78: #{tpu_custom_call.1} parent=5 // pred_check_branch
        %506 = sbr.rel (%p503) target = $region80
      $region79: #{tpu_custom_call.1} parent=5 // pred_region
        %s507 = ssub.s32 %s28, 1
        // Predicated region
        $region81: #{tpu_custom_call.1} parent=79 // pred_check
          %p508 = pneg %p49
        $region82: #{tpu_custom_call.1} parent=79 // pred_check_branch
          %510 = sbr.rel (%p508) target = $region84
        $region83: #{tpu_custom_call.1} parent=79 // pred_region
          %511 = dma.done [#allocation3], 4096
        $region84: #{tpu_custom_call.1} parent=79 // pred_fallthru
          _
        // Predicated region
        $region85: #{tpu_custom_call.1} parent=79 // pred_check
          %p512 = pneg %p91
        $region86: #{tpu_custom_call.1} parent=79 // pred_check_branch
          %514 = sbr.rel (%p512) target = $region88
        $region87: #{tpu_custom_call.1} parent=79 // pred_region
          %515 = dma.done [#allocation6], 16
        $region88: #{tpu_custom_call.1} parent=79 // pred_fallthru
          _
        // Predicated region
        $region89: #{tpu_custom_call.1} parent=79 // pred_check
          %p516 = pneg %p112
        $region90: #{tpu_custom_call.1} parent=79 // pred_check_branch
          %518 = sbr.rel (%p516) target = $region92
        $region91: #{tpu_custom_call.1} parent=79 // pred_region
          %519 = dma.done [#allocation6], 1024
        $region92: #{tpu_custom_call.1} parent=79 // pred_fallthru
          _
        // Predicated region
        $region93: #{tpu_custom_call.1} parent=79 // pred_check
          %p520 = pneg %p154
        $region94: #{tpu_custom_call.1} parent=79 // pred_check_branch
          %522 = sbr.rel (%p520) target = $region96
        $region95: #{tpu_custom_call.1} parent=79 // pred_region
          %523 = dma.done [#allocation9], 2048
        $region96: #{tpu_custom_call.1} parent=79 // pred_fallthru
          _
        // Predicated region
        $region97: #{tpu_custom_call.1} parent=79 // pred_check
          %p524 = pneg %p196
        $region98: #{tpu_custom_call.1} parent=79 // pred_check_branch
          %526 = sbr.rel (%p524) target = $region100
        $region99: #{tpu_custom_call.1} parent=79 // pred_region
          %527 = dma.done [#allocation9], 1024
        $region100: #{tpu_custom_call.1} parent=79 // pred_fallthru
          _
        // Predicated region
        $region101: #{tpu_custom_call.1} parent=79 // pred_check
          %p528 = pneg %p280
        $region102: #{tpu_custom_call.1} parent=79 // pred_check_branch
          %530 = sbr.rel (%p528) target = $region104
        $region103: #{tpu_custom_call.1} parent=79 // pred_region
          %531 = dma.done [#allocation12], 4096
        $region104: #{tpu_custom_call.1} parent=79 // pred_fallthru
          _
        // Predicated region
        $region105: #{tpu_custom_call.1} parent=79 // pred_check
          %p532 = pneg %p322
        $region106: #{tpu_custom_call.1} parent=79 // pred_check_branch
          %534 = sbr.rel (%p532) target = $region108
        $region107: #{tpu_custom_call.1} parent=79 // pred_region
          %535 = dma.done [#allocation12], 4096
        $region108: #{tpu_custom_call.1} parent=79 // pred_fallthru
          _
        %p536 = pneg %p49
        %p537 = pneg %p46
        %p538 = pneg %p70
        %p539 = pneg %p67
        %p540 = pneg %p91
        %p541 = pneg %p88
        %p542 = pneg %p112
        %p543 = pneg %p109
        %p544 = pneg %p133
        %p545 = pneg %p130
        %p546 = pneg %p154
        %p547 = pneg %p151
        %p548 = pneg %p175
        %p549 = pneg %p172
        %p550 = pneg %p196
        %p551 = pneg %p193
        %p552 = pneg %p217
        %p553 = pneg %p214
        %p554 = pneg %p238
        %p555 = pneg %p235
        %p556 = pneg %p259
        %p557 = pneg %p256
        %p558 = pneg %p280
        %p559 = pneg %p277
        %p560 = pneg %p301
        %p561 = pneg %p298
        %p562 = pneg %p322
        %p563 = pneg %p319
        %p564 = pneg %p343
        %p565 = pneg %p340
        %p566 = pneg %p369
        %p567 = pneg %p366
        %s568 = sand.u32 %s356, 1
        %s569 = scalar_lea.sflag [#allocation4], %s568
        %s570 = sand.u32 %s356, 1
        %s571 = smul.addr %s570, 128
        %s572 = scalar_lea.vmem [#allocation14], %s571
        %s573 = smul.u32 16, %s33
        %s575 = smul.u32 %s33, 128
        %v576 = vld [vmem:[#allocation2] sm:$0xff]
        %v577 = vld [vmem:[#allocation2 + $0x8] sm:$0xff]
        %v578 = vld [vmem:[#allocation2 + $0x10] sm:$0xff]
        %v579 = vld [vmem:[#allocation2 + $0x18] sm:$0xff]
        %v580 = vld [vmem:[#allocation2 + $0x20] sm:$0xff]
        %v581 = vld [vmem:[#allocation2 + $0x28] sm:$0xff]
        %v582 = vld [vmem:[#allocation2 + $0x30] sm:$0xff]
        %v583 = vld [vmem:[#allocation2 + $0x38] sm:$0xff]
        %v584 = vld [vmem:[#allocation2 + $0x40] sm:$0xff]
        %v585 = vld [vmem:[#allocation2 + $0x48] sm:$0xff]
        %v586 = vld [vmem:[#allocation2 + $0x50] sm:$0xff]
        %v587 = vld [vmem:[#allocation2 + $0x58] sm:$0xff]
        %v588 = vld [vmem:[#allocation2 + $0x60] sm:$0xff]
        %v589 = vld [vmem:[#allocation2 + $0x68] sm:$0xff]
        %v590 = vld [vmem:[#allocation2 + $0x70] sm:$0xff]
        %v591 = vld [vmem:[#allocation2 + $0x78] sm:$0xff]
        %v592 = vld [vmem:[#allocation2 + $0x80] sm:$0xff]
        %v593 = vld [vmem:[#allocation2 + $0x88] sm:$0xff]
        %v594 = vld [vmem:[#allocation2 + $0x90] sm:$0xff]
        %v595 = vld [vmem:[#allocation2 + $0x98] sm:$0xff]
        %v596 = vld [vmem:[#allocation2 + $0xa0] sm:$0xff]
        %v597 = vld [vmem:[#allocation2 + $0xa8] sm:$0xff]
        %v598 = vld [vmem:[#allocation2 + $0xb0] sm:$0xff]
        %v599 = vld [vmem:[#allocation2 + $0xb8] sm:$0xff]
        %v600 = vld [vmem:[#allocation2 + $0xc0] sm:$0xff]
        %v601 = vld [vmem:[#allocation2 + $0xc8] sm:$0xff]
        %v602 = vld [vmem:[#allocation2 + $0xd0] sm:$0xff]
        %v603 = vld [vmem:[#allocation2 + $0xd8] sm:$0xff]
        %v604 = vld [vmem:[#allocation2 + $0xe0] sm:$0xff]
        %v605 = vld [vmem:[#allocation2 + $0xe8] sm:$0xff]
        %v606 = vld [vmem:[#allocation2 + $0xf0] sm:$0xff]
        %v607 = vld [vmem:[#allocation2 + $0xf8] sm:$0xff]
        %s608 = scalar_lea.vmem [#allocation2], %s575
        %v609 = vld [vmem:[%s608] sm:$0xff]
        %v610 = vld [vmem:[%s608 + $0x8] sm:$0xff]
        %v611 = vld [vmem:[%s608 + $0x10] sm:$0xff]
        %v612 = vld [vmem:[%s608 + $0x18] sm:$0xff]
        %v613 = vld [vmem:[%s608 + $0x20] sm:$0xff]
        %v614 = vld [vmem:[%s608 + $0x28] sm:$0xff]
        %v615 = vld [vmem:[%s608 + $0x30] sm:$0xff]
        %v616 = vld [vmem:[%s608 + $0x38] sm:$0xff]
        %v617 = vld [vmem:[%s608 + $0x40] sm:$0xff]
        %v618 = vld [vmem:[%s608 + $0x48] sm:$0xff]
        %v619 = vld [vmem:[%s608 + $0x50] sm:$0xff]
        %v620 = vld [vmem:[%s608 + $0x58] sm:$0xff]
        %v621 = vld [vmem:[%s608 + $0x60] sm:$0xff]
        %v622 = vld [vmem:[%s608 + $0x68] sm:$0xff]
        %v623 = vld [vmem:[%s608 + $0x70] sm:$0xff]
        %v624 = vld [vmem:[%s608 + $0x78] sm:$0xff]
        %v625 = vld [vmem:[%s1] sm:$0x1]
        %v626 = vld [vmem:[#allocation5] sm:$0x1]
        %627 = vadd.xlane.f32.xlu0 %v576
        %v628 = vpop.xlane.xlu0 %627
        %629 = vadd.xlane.f32.xlu0 %v577
        %v630 = vpop.xlane.xlu0 %629
        %631 = vadd.xlane.f32.xlu0 %v578
        %v632 = vpop.xlane.xlu0 %631
        %633 = vadd.xlane.f32.xlu0 %v579
        %v634 = vpop.xlane.xlu0 %633
        %635 = vadd.xlane.f32.xlu0 %v580
        %v636 = vpop.xlane.xlu0 %635
        %637 = vadd.xlane.f32.xlu0 %v581
        %v638 = vpop.xlane.xlu0 %637
        %639 = vadd.xlane.f32.xlu0 %v582
        %v640 = vpop.xlane.xlu0 %639
        %641 = vadd.xlane.f32.xlu0 %v583
        %v642 = vpop.xlane.xlu0 %641
        %643 = vadd.xlane.f32.xlu0 %v584
        %v644 = vpop.xlane.xlu0 %643
        %645 = vadd.xlane.f32.xlu0 %v585
        %v646 = vpop.xlane.xlu0 %645
        %647 = vadd.xlane.f32.xlu0 %v586
        %v648 = vpop.xlane.xlu0 %647
        %649 = vadd.xlane.f32.xlu0 %v587
        %v650 = vpop.xlane.xlu0 %649
        %651 = vadd.xlane.f32.xlu0 %v588
        %v652 = vpop.xlane.xlu0 %651
        %653 = vadd.xlane.f32.xlu0 %v589
        %v654 = vpop.xlane.xlu0 %653
        %655 = vadd.xlane.f32.xlu0 %v590
        %v656 = vpop.xlane.xlu0 %655
        %657 = vadd.xlane.f32.xlu0 %v591
        %v658 = vpop.xlane.xlu0 %657
        %659 = vadd.xlane.f32.xlu0 %v592
        %v660 = vpop.xlane.xlu0 %659
        %661 = vadd.xlane.f32.xlu0 %v593
        %v662 = vpop.xlane.xlu0 %661
        %663 = vadd.xlane.f32.xlu0 %v594
        %v664 = vpop.xlane.xlu0 %663
        %665 = vadd.xlane.f32.xlu0 %v595
        %v666 = vpop.xlane.xlu0 %665
        %667 = vadd.xlane.f32.xlu0 %v596
        %v668 = vpop.xlane.xlu0 %667
        %669 = vadd.xlane.f32.xlu0 %v597
        %v670 = vpop.xlane.xlu0 %669
        %671 = vadd.xlane.f32.xlu0 %v598
        %v672 = vpop.xlane.xlu0 %671
        %673 = vadd.xlane.f32.xlu0 %v599
        %v674 = vpop.xlane.xlu0 %673
        %675 = vadd.xlane.f32.xlu0 %v600
        %v676 = vpop.xlane.xlu0 %675
        %677 = vadd.xlane.f32.xlu0 %v601
        %v678 = vpop.xlane.xlu0 %677
        %679 = vadd.xlane.f32.xlu0 %v602
        %v680 = vpop.xlane.xlu0 %679
        %681 = vadd.xlane.f32.xlu0 %v603
        %v682 = vpop.xlane.xlu0 %681
        %683 = vadd.xlane.f32.xlu0 %v604
        %v684 = vpop.xlane.xlu0 %683
        %685 = vadd.xlane.f32.xlu0 %v605
        %v686 = vpop.xlane.xlu0 %685
        %687 = vadd.xlane.f32.xlu0 %v606
        %v688 = vpop.xlane.xlu0 %687
        %689 = vadd.xlane.f32.xlu0 %v607
        %v690 = vpop.xlane.xlu0 %689
        %v691 = vrcp.pop 128.0
        %v692 = vmul.f32 %v628, %v691
        %v693 = vmul.f32 %v630, %v691
        %v694 = vmul.f32 %v632, %v691
        %v695 = vmul.f32 %v634, %v691
        %v696 = vmul.f32 %v636, %v691
        %v697 = vmul.f32 %v638, %v691
        %v698 = vmul.f32 %v640, %v691
        %v699 = vmul.f32 %v642, %v691
        %v700 = vmul.f32 %v644, %v691
        %v701 = vmul.f32 %v646, %v691
        %v702 = vmul.f32 %v648, %v691
        %v703 = vmul.f32 %v650, %v691
        %v704 = vmul.f32 %v652, %v691
        %v705 = vmul.f32 %v654, %v691
        %v706 = vmul.f32 %v656, %v691
        %v707 = vmul.f32 %v658, %v691
        %v708 = vmul.f32 %v660, %v691
        %v709 = vmul.f32 %v662, %v691
        %v710 = vmul.f32 %v664, %v691
        %v711 = vmul.f32 %v666, %v691
        %v712 = vmul.f32 %v668, %v691
        %v713 = vmul.f32 %v670, %v691
        %v714 = vmul.f32 %v672, %v691
        %v715 = vmul.f32 %v674, %v691
        %v716 = vmul.f32 %v676, %v691
        %v717 = vmul.f32 %v678, %v691
        %v718 = vmul.f32 %v680, %v691
        %v719 = vmul.f32 %v682, %v691
        %v720 = vmul.f32 %v684, %v691
        %v721 = vmul.f32 %v686, %v691
        %v722 = vmul.f32 %v688, %v691
        %v723 = vmul.f32 %v690, %v691
        %v724 = vsub.f32 %v576, %v692
        %v725 = vsub.f32 %v577, %v693
        %v726 = vsub.f32 %v578, %v694
        %v727 = vsub.f32 %v579, %v695
        %v728 = vsub.f32 %v580, %v696
        %v729 = vsub.f32 %v581, %v697
        %v730 = vsub.f32 %v582, %v698
        %v731 = vsub.f32 %v583, %v699
        %v732 = vsub.f32 %v584, %v700
        %v733 = vsub.f32 %v585, %v701
        %v734 = vsub.f32 %v586, %v702
        %v735 = vsub.f32 %v587, %v703
        %v736 = vsub.f32 %v588, %v704
        %v737 = vsub.f32 %v589, %v705
        %v738 = vsub.f32 %v590, %v706
        %v739 = vsub.f32 %v591, %v707
        %v740 = vsub.f32 %v592, %v708
        %v741 = vsub.f32 %v593, %v709
        %v742 = vsub.f32 %v594, %v710
        %v743 = vsub.f32 %v595, %v711
        %v744 = vsub.f32 %v596, %v712
        %v745 = vsub.f32 %v597, %v713
        %v746 = vsub.f32 %v598, %v714
        %v747 = vsub.f32 %v599, %v715
        %v748 = vsub.f32 %v600, %v716
        %v749 = vsub.f32 %v601, %v717
        %v750 = vsub.f32 %v602, %v718
        %v751 = vsub.f32 %v603, %v719
        %v752 = vsub.f32 %v604, %v720
        %v753 = vsub.f32 %v605, %v721
        %v754 = vsub.f32 %v606, %v722
        %v755 = vsub.f32 %v607, %v723
        %v756 = vmul.f32 %v724, %v724
        %v757 = vmul.f32 %v725, %v725
        %v758 = vmul.f32 %v726, %v726
        %v759 = vmul.f32 %v727, %v727
        %v760 = vmul.f32 %v728, %v728
        %v761 = vmul.f32 %v729, %v729
        %v762 = vmul.f32 %v730, %v730
        %v763 = vmul.f32 %v731, %v731
        %v764 = vmul.f32 %v732, %v732
        %v765 = vmul.f32 %v733, %v733
        %v766 = vmul.f32 %v734, %v734
        %v767 = vmul.f32 %v735, %v735
        %v768 = vmul.f32 %v736, %v736
        %v769 = vmul.f32 %v737, %v737
        %v770 = vmul.f32 %v738, %v738
        %v771 = vmul.f32 %v739, %v739
        %v772 = vmul.f32 %v740, %v740
        %v773 = vmul.f32 %v741, %v741
        %v774 = vmul.f32 %v742, %v742
        %v775 = vmul.f32 %v743, %v743
        %v776 = vmul.f32 %v744, %v744
        %v777 = vmul.f32 %v745, %v745
        %v778 = vmul.f32 %v746, %v746
        %v779 = vmul.f32 %v747, %v747
        %v780 = vmul.f32 %v748, %v748
        %v781 = vmul.f32 %v749, %v749
        %v782 = vmul.f32 %v750, %v750
        %v783 = vmul.f32 %v751, %v751
        %v784 = vmul.f32 %v752, %v752
        %v785 = vmul.f32 %v753, %v753
        %v786 = vmul.f32 %v754, %v754
        %v787 = vmul.f32 %v755, %v755
        %788 = vadd.xlane.f32.xlu0 %v756
        %v789 = vpop.xlane.xlu0 %788
        %790 = vadd.xlane.f32.xlu0 %v757
        %v791 = vpop.xlane.xlu0 %790
        %792 = vadd.xlane.f32.xlu0 %v758
        %v793 = vpop.xlane.xlu0 %792
        %794 = vadd.xlane.f32.xlu0 %v759
        %v795 = vpop.xlane.xlu0 %794
        %796 = vadd.xlane.f32.xlu0 %v760
        %v797 = vpop.xlane.xlu0 %796
        %798 = vadd.xlane.f32.xlu0 %v761
        %v799 = vpop.xlane.xlu0 %798
        %800 = vadd.xlane.f32.xlu0 %v762
        %v801 = vpop.xlane.xlu0 %800
        %802 = vadd.xlane.f32.xlu0 %v763
        %v803 = vpop.xlane.xlu0 %802
        %804 = vadd.xlane.f32.xlu0 %v764
        %v805 = vpop.xlane.xlu0 %804
        %806 = vadd.xlane.f32.xlu0 %v765
        %v807 = vpop.xlane.xlu0 %806
        %808 = vadd.xlane.f32.xlu0 %v766
        %v809 = vpop.xlane.xlu0 %808
        %810 = vadd.xlane.f32.xlu0 %v767
        %v811 = vpop.xlane.xlu0 %810
        %812 = vadd.xlane.f32.xlu0 %v768
        %v813 = vpop.xlane.xlu0 %812
        %814 = vadd.xlane.f32.xlu0 %v769
        %v815 = vpop.xlane.xlu0 %814
        %816 = vadd.xlane.f32.xlu0 %v770
        %v817 = vpop.xlane.xlu0 %816
        %818 = vadd.xlane.f32.xlu0 %v771
        %v819 = vpop.xlane.xlu0 %818
        %820 = vadd.xlane.f32.xlu0 %v772
        %v821 = vpop.xlane.xlu0 %820
        %822 = vadd.xlane.f32.xlu0 %v773
        %v823 = vpop.xlane.xlu0 %822
        %824 = vadd.xlane.f32.xlu0 %v774
        %v825 = vpop.xlane.xlu0 %824
        %826 = vadd.xlane.f32.xlu0 %v775
        %v827 = vpop.xlane.xlu0 %826
        %828 = vadd.xlane.f32.xlu0 %v776
        %v829 = vpop.xlane.xlu0 %828
        %830 = vadd.xlane.f32.xlu0 %v777
        %v831 = vpop.xlane.xlu0 %830
        %832 = vadd.xlane.f32.xlu0 %v778
        %v833 = vpop.xlane.xlu0 %832
        %834 = vadd.xlane.f32.xlu0 %v779
        %v835 = vpop.xlane.xlu0 %834
        %836 = vadd.xlane.f32.xlu0 %v780
        %v837 = vpop.xlane.xlu0 %836
        %838 = vadd.xlane.f32.xlu0 %v781
        %v839 = vpop.xlane.xlu0 %838
        %840 = vadd.xlane.f32.xlu0 %v782
        %v841 = vpop.xlane.xlu0 %840
        %842 = vadd.xlane.f32.xlu0 %v783
        %v843 = vpop.xlane.xlu0 %842
        %844 = vadd.xlane.f32.xlu0 %v784
        %v845 = vpop.xlane.xlu0 %844
        %846 = vadd.xlane.f32.xlu0 %v785
        %v847 = vpop.xlane.xlu0 %846
        %848 = vadd.xlane.f32.xlu0 %v786
        %v849 = vpop.xlane.xlu0 %848
        %850 = vadd.xlane.f32.xlu0 %v787
        %v851 = vpop.xlane.xlu0 %850
        %v852 = vmul.f32 %v789, %v691
        %v853 = vmul.f32 %v791, %v691
        %v854 = vmul.f32 %v793, %v691
        %v855 = vmul.f32 %v795, %v691
        %v856 = vmul.f32 %v797, %v691
        %v857 = vmul.f32 %v799, %v691
        %v858 = vmul.f32 %v801, %v691
        %v859 = vmul.f32 %v803, %v691
        %v860 = vmul.f32 %v805, %v691
        %v861 = vmul.f32 %v807, %v691
        %v862 = vmul.f32 %v809, %v691
        %v863 = vmul.f32 %v811, %v691
        %v864 = vmul.f32 %v813, %v691
        %v865 = vmul.f32 %v815, %v691
        %v866 = vmul.f32 %v817, %v691
        %v867 = vmul.f32 %v819, %v691
        %v868 = vmul.f32 %v821, %v691
        %v869 = vmul.f32 %v823, %v691
        %v870 = vmul.f32 %v825, %v691
        %v871 = vmul.f32 %v827, %v691
        %v872 = vmul.f32 %v829, %v691
        %v873 = vmul.f32 %v831, %v691
        %v874 = vmul.f32 %v833, %v691
        %v875 = vmul.f32 %v835, %v691
        %v876 = vmul.f32 %v837, %v691
        %v877 = vmul.f32 %v839, %v691
        %v878 = vmul.f32 %v841, %v691
        %v879 = vmul.f32 %v843, %v691
        %v880 = vmul.f32 %v845, %v691
        %v881 = vmul.f32 %v847, %v691
        %v882 = vmul.f32 %v849, %v691
        %v883 = vmul.f32 %v851, %v691
        %v884 = vadd.f32 %v852, 1e-05
        %v885 = vadd.f32 %v853, 1e-05
        %v886 = vadd.f32 %v854, 1e-05
        %v887 = vadd.f32 %v855, 1e-05
        %v888 = vadd.f32 %v856, 1e-05
        %v889 = vadd.f32 %v857, 1e-05
        %v890 = vadd.f32 %v858, 1e-05
        %v891 = vadd.f32 %v859, 1e-05
        %v892 = vadd.f32 %v860, 1e-05
        %v893 = vadd.f32 %v861, 1e-05
        %v894 = vadd.f32 %v862, 1e-05
        %v895 = vadd.f32 %v863, 1e-05
        %v896 = vadd.f32 %v864, 1e-05
        %v897 = vadd.f32 %v865, 1e-05
        %v898 = vadd.f32 %v866, 1e-05
        %v899 = vadd.f32 %v867, 1e-05
        %v900 = vadd.f32 %v868, 1e-05
        %v901 = vadd.f32 %v869, 1e-05
        %v902 = vadd.f32 %v870, 1e-05
        %v903 = vadd.f32 %v871, 1e-05
        %v904 = vadd.f32 %v872, 1e-05
        %v905 = vadd.f32 %v873, 1e-05
        %v906 = vadd.f32 %v874, 1e-05
        %v907 = vadd.f32 %v875, 1e-05
        %v908 = vadd.f32 %v876, 1e-05
        %v909 = vadd.f32 %v877, 1e-05
        %v910 = vadd.f32 %v878, 1e-05
        %v911 = vadd.f32 %v879, 1e-05
        %v912 = vadd.f32 %v880, 1e-05
        %v913 = vadd.f32 %v881, 1e-05
        %v914 = vadd.f32 %v882, 1e-05
        %v915 = vadd.f32 %v883, 1e-05
        %v916 = vrsqrt.pop %v884
        %v917 = vrsqrt.pop %v885
        %v918 = vrsqrt.pop %v886
        %v919 = vrsqrt.pop %v887
        %v920 = vrsqrt.pop %v888
        %v921 = vrsqrt.pop %v889
        %v922 = vrsqrt.pop %v890
        %v923 = vrsqrt.pop %v891
        %v924 = vrsqrt.pop %v892
        %v925 = vrsqrt.pop %v893
        %v926 = vrsqrt.pop %v894
        %v927 = vrsqrt.pop %v895
        %v928 = vrsqrt.pop %v896
        %v929 = vrsqrt.pop %v897
        %v930 = vrsqrt.pop %v898
        %v931 = vrsqrt.pop %v899
        %v932 = vrsqrt.pop %v900
        %v933 = vrsqrt.pop %v901
        %v934 = vrsqrt.pop %v902
        %v935 = vrsqrt.pop %v903
        %v936 = vrsqrt.pop %v904
        %v937 = vrsqrt.pop %v905
        %v938 = vrsqrt.pop %v906
        %v939 = vrsqrt.pop %v907
        %v940 = vrsqrt.pop %v908
        %v941 = vrsqrt.pop %v909
        %v942 = vrsqrt.pop %v910
        %v943 = vrsqrt.pop %v911
        %v944 = vrsqrt.pop %v912
        %v945 = vrsqrt.pop %v913
        %v946 = vrsqrt.pop %v914
        %v947 = vrsqrt.pop %v915
        %v948 = vmul.f32 %v724, %v916
        %v949 = vmul.f32 %v725, %v917
        %v950 = vmul.f32 %v726, %v918
        %v951 = vmul.f32 %v727, %v919
        %v952 = vmul.f32 %v728, %v920
        %v953 = vmul.f32 %v729, %v921
        %v954 = vmul.f32 %v730, %v922
        %v955 = vmul.f32 %v731, %v923
        %v956 = vmul.f32 %v732, %v924
        %v957 = vmul.f32 %v733, %v925
        %v958 = vmul.f32 %v734, %v926
        %v959 = vmul.f32 %v735, %v927
        %v960 = vmul.f32 %v736, %v928
        %v961 = vmul.f32 %v737, %v929
        %v962 = vmul.f32 %v738, %v930
        %v963 = vmul.f32 %v739, %v931
        %v964 = vmul.f32 %v740, %v932
        %v965 = vmul.f32 %v741, %v933
        %v966 = vmul.f32 %v742, %v934
        %v967 = vmul.f32 %v743, %v935
        %v968 = vmul.f32 %v744, %v936
        %v969 = vmul.f32 %v745, %v937
        %v970 = vmul.f32 %v746, %v938
        %v971 = vmul.f32 %v747, %v939
        %v972 = vmul.f32 %v748, %v940
        %v973 = vmul.f32 %v749, %v941
        %v974 = vmul.f32 %v750, %v942
        %v975 = vmul.f32 %v751, %v943
        %v976 = vmul.f32 %v752, %v944
        %v977 = vmul.f32 %v753, %v945
        %v978 = vmul.f32 %v754, %v946
        %v979 = vmul.f32 %v755, %v947
        %v981 = vlaneseq
        %v982 = vshrl.u32 %v981, 7
        %v983 = vsub.s32 0, %v982
        %v984 = vrot.slane %v625, %v983
        %v986 = vmul.f32 %v948, %v984
        %v987 = vmul.f32 %v949, %v984
        %v988 = vmul.f32 %v950, %v984
        %v989 = vmul.f32 %v951, %v984
        %v990 = vmul.f32 %v952, %v984
        %v991 = vmul.f32 %v953, %v984
        %v992 = vmul.f32 %v954, %v984
        %v993 = vmul.f32 %v955, %v984
        %v994 = vmul.f32 %v956, %v984
        %v995 = vmul.f32 %v957, %v984
        %v996 = vmul.f32 %v958, %v984
        %v997 = vmul.f32 %v959, %v984
        %v998 = vmul.f32 %v960, %v984
        %v999 = vmul.f32 %v961, %v984
        %v1000 = vmul.f32 %v962, %v984
        %v1001 = vmul.f32 %v963, %v984
        %v1002 = vmul.f32 %v964, %v984
        %v1003 = vmul.f32 %v965, %v984
        %v1004 = vmul.f32 %v966, %v984
        %v1005 = vmul.f32 %v967, %v984
        %v1006 = vmul.f32 %v968, %v984
        %v1007 = vmul.f32 %v969, %v984
        %v1008 = vmul.f32 %v970, %v984
        %v1009 = vmul.f32 %v971, %v984
        %v1010 = vmul.f32 %v972, %v984
        %v1011 = vmul.f32 %v973, %v984
        %v1012 = vmul.f32 %v974, %v984
        %v1013 = vmul.f32 %v975, %v984
        %v1014 = vmul.f32 %v976, %v984
        %v1015 = vmul.f32 %v977, %v984
        %v1016 = vmul.f32 %v978, %v984
        %v1017 = vmul.f32 %v979, %v984
        %v1019 = vlaneseq
        %v1020 = vshrl.u32 %v1019, 7
        %v1021 = vsub.s32 0, %v1020
        %v1022 = vrot.slane %v626, %v1021
        %v1024 = vadd.f32 %v986, %v1022
        %v1025 = vadd.f32 %v987, %v1022
        %v1026 = vadd.f32 %v988, %v1022
        %v1027 = vadd.f32 %v989, %v1022
        %v1028 = vadd.f32 %v990, %v1022
        %v1029 = vadd.f32 %v991, %v1022
        %v1030 = vadd.f32 %v992, %v1022
        %v1031 = vadd.f32 %v993, %v1022
        %v1032 = vadd.f32 %v994, %v1022
        %v1033 = vadd.f32 %v995, %v1022
        %v1034 = vadd.f32 %v996, %v1022
        %v1035 = vadd.f32 %v997, %v1022
        %v1036 = vadd.f32 %v998, %v1022
        %v1037 = vadd.f32 %v999, %v1022
        %v1038 = vadd.f32 %v1000, %v1022
        %v1039 = vadd.f32 %v1001, %v1022
        %v1040 = vadd.f32 %v1002, %v1022
        %v1041 = vadd.f32 %v1003, %v1022
        %v1042 = vadd.f32 %v1004, %v1022
        %v1043 = vadd.f32 %v1005, %v1022
        %v1044 = vadd.f32 %v1006, %v1022
        %v1045 = vadd.f32 %v1007, %v1022
        %v1046 = vadd.f32 %v1008, %v1022
        %v1047 = vadd.f32 %v1009, %v1022
        %v1048 = vadd.f32 %v1010, %v1022
        %v1049 = vadd.f32 %v1011, %v1022
        %v1050 = vadd.f32 %v1012, %v1022
        %v1051 = vadd.f32 %v1013, %v1022
        %v1052 = vadd.f32 %v1014, %v1022
        %v1053 = vadd.f32 %v1015, %v1022
        %v1054 = vadd.f32 %v1016, %v1022
        %v1055 = vadd.f32 %v1017, %v1022
        %1056 = vadd.xlane.f32.xlu0 %v609
        %v1057 = vpop.xlane.xlu0 %1056
        %1058 = vadd.xlane.f32.xlu0 %v610
        %v1059 = vpop.xlane.xlu0 %1058
        %1060 = vadd.xlane.f32.xlu0 %v611
        %v1061 = vpop.xlane.xlu0 %1060
        %1062 = vadd.xlane.f32.xlu0 %v612
        %v1063 = vpop.xlane.xlu0 %1062
        %1064 = vadd.xlane.f32.xlu0 %v613
        %v1065 = vpop.xlane.xlu0 %1064
        %1066 = vadd.xlane.f32.xlu0 %v614
        %v1067 = vpop.xlane.xlu0 %1066
        %1068 = vadd.xlane.f32.xlu0 %v615
        %v1069 = vpop.xlane.xlu0 %1068
        %1070 = vadd.xlane.f32.xlu0 %v616
        %v1071 = vpop.xlane.xlu0 %1070
        %1072 = vadd.xlane.f32.xlu0 %v617
        %v1073 = vpop.xlane.xlu0 %1072
        %1074 = vadd.xlane.f32.xlu0 %v618
        %v1075 = vpop.xlane.xlu0 %1074
        %1076 = vadd.xlane.f32.xlu0 %v619
        %v1077 = vpop.xlane.xlu0 %1076
        %1078 = vadd.xlane.f32.xlu0 %v620
        %v1079 = vpop.xlane.xlu0 %1078
        %1080 = vadd.xlane.f32.xlu0 %v621
        %v1081 = vpop.xlane.xlu0 %1080
        %1082 = vadd.xlane.f32.xlu0 %v622
        %v1083 = vpop.xlane.xlu0 %1082
        %1084 = vadd.xlane.f32.xlu0 %v623
        %v1085 = vpop.xlane.xlu0 %1084
        %1086 = vadd.xlane.f32.xlu0 %v624
        %v1087 = vpop.xlane.xlu0 %1086
        %v1088 = vmul.f32 %v1057, %v691
        %v1089 = vmul.f32 %v1059, %v691
        %v1090 = vmul.f32 %v1061, %v691
        %v1091 = vmul.f32 %v1063, %v691
        %v1092 = vmul.f32 %v1065, %v691
        %v1093 = vmul.f32 %v1067, %v691
        %v1094 = vmul.f32 %v1069, %v691
        %v1095 = vmul.f32 %v1071, %v691
        %v1096 = vmul.f32 %v1073, %v691
        %v1097 = vmul.f32 %v1075, %v691
        %v1098 = vmul.f32 %v1077, %v691
        %v1099 = vmul.f32 %v1079, %v691
        %v1100 = vmul.f32 %v1081, %v691
        %v1101 = vmul.f32 %v1083, %v691
        %v1102 = vmul.f32 %v1085, %v691
        %v1103 = vmul.f32 %v1087, %v691
        %v1104 = vsub.f32 %v609, %v1088
        %v1105 = vsub.f32 %v610, %v1089
        %v1106 = vsub.f32 %v611, %v1090
        %v1107 = vsub.f32 %v612, %v1091
        %v1108 = vsub.f32 %v613, %v1092
        %v1109 = vsub.f32 %v614, %v1093
        %v1110 = vsub.f32 %v615, %v1094
        %v1111 = vsub.f32 %v616, %v1095
        %v1112 = vsub.f32 %v617, %v1096
        %v1113 = vsub.f32 %v618, %v1097
        %v1114 = vsub.f32 %v619, %v1098
        %v1115 = vsub.f32 %v620, %v1099
        %v1116 = vsub.f32 %v621, %v1100
        %v1117 = vsub.f32 %v622, %v1101
        %v1118 = vsub.f32 %v623, %v1102
        %v1119 = vsub.f32 %v624, %v1103
        %v1120 = vmul.f32 %v1104, %v1104
        %v1121 = vmul.f32 %v1105, %v1105
        %v1122 = vmul.f32 %v1106, %v1106
        %v1123 = vmul.f32 %v1107, %v1107
        %v1124 = vmul.f32 %v1108, %v1108
        %v1125 = vmul.f32 %v1109, %v1109
        %v1126 = vmul.f32 %v1110, %v1110
        %v1127 = vmul.f32 %v1111, %v1111
        %v1128 = vmul.f32 %v1112, %v1112
        %v1129 = vmul.f32 %v1113, %v1113
        %v1130 = vmul.f32 %v1114, %v1114
        %v1131 = vmul.f32 %v1115, %v1115
        %v1132 = vmul.f32 %v1116, %v1116
        %v1133 = vmul.f32 %v1117, %v1117
        %v1134 = vmul.f32 %v1118, %v1118
        %v1135 = vmul.f32 %v1119, %v1119
        %1136 = vadd.xlane.f32.xlu0 %v1120
        %v1137 = vpop.xlane.xlu0 %1136
        %1138 = vadd.xlane.f32.xlu0 %v1121
        %v1139 = vpop.xlane.xlu0 %1138
        %1140 = vadd.xlane.f32.xlu0 %v1122
        %v1141 = vpop.xlane.xlu0 %1140
        %1142 = vadd.xlane.f32.xlu0 %v1123
        %v1143 = vpop.xlane.xlu0 %1142
        %1144 = vadd.xlane.f32.xlu0 %v1124
        %v1145 = vpop.xlane.xlu0 %1144
        %1146 = vadd.xlane.f32.xlu0 %v1125
        %v1147 = vpop.xlane.xlu0 %1146
        %1148 = vadd.xlane.f32.xlu0 %v1126
        %v1149 = vpop.xlane.xlu0 %1148
        %1150 = vadd.xlane.f32.xlu0 %v1127
        %v1151 = vpop.xlane.xlu0 %1150
        %1152 = vadd.xlane.f32.xlu0 %v1128
        %v1153 = vpop.xlane.xlu0 %1152
        %1154 = vadd.xlane.f32.xlu0 %v1129
        %v1155 = vpop.xlane.xlu0 %1154
        %1156 = vadd.xlane.f32.xlu0 %v1130
        %v1157 = vpop.xlane.xlu0 %1156
        %1158 = vadd.xlane.f32.xlu0 %v1131
        %v1159 = vpop.xlane.xlu0 %1158
        %1160 = vadd.xlane.f32.xlu0 %v1132
        %v1161 = vpop.xlane.xlu0 %1160
        %1162 = vadd.xlane.f32.xlu0 %v1133
        %v1163 = vpop.xlane.xlu0 %1162
        %1164 = vadd.xlane.f32.xlu0 %v1134
        %v1165 = vpop.xlane.xlu0 %1164
        %1166 = vadd.xlane.f32.xlu0 %v1135
        %v1167 = vpop.xlane.xlu0 %1166
        %v1168 = vmul.f32 %v1137, %v691
        %v1169 = vmul.f32 %v1139, %v691
        %v1170 = vmul.f32 %v1141, %v691
        %v1171 = vmul.f32 %v1143, %v691
        %v1172 = vmul.f32 %v1145, %v691
        %v1173 = vmul.f32 %v1147, %v691
        %v1174 = vmul.f32 %v1149, %v691
        %v1175 = vmul.f32 %v1151, %v691
        %v1176 = vmul.f32 %v1153, %v691
        %v1177 = vmul.f32 %v1155, %v691
        %v1178 = vmul.f32 %v1157, %v691
        %v1179 = vmul.f32 %v1159, %v691
        %v1180 = vmul.f32 %v1161, %v691
        %v1181 = vmul.f32 %v1163, %v691
        %v1182 = vmul.f32 %v1165, %v691
        %v1183 = vmul.f32 %v1167, %v691
        %v1184 = vadd.f32 %v1168, 1e-05
        %v1185 = vadd.f32 %v1169, 1e-05
        %v1186 = vadd.f32 %v1170, 1e-05
        %v1187 = vadd.f32 %v1171, 1e-05
        %v1188 = vadd.f32 %v1172, 1e-05
        %v1189 = vadd.f32 %v1173, 1e-05
        %v1190 = vadd.f32 %v1174, 1e-05
        %v1191 = vadd.f32 %v1175, 1e-05
        %v1192 = vadd.f32 %v1176, 1e-05
        %v1193 = vadd.f32 %v1177, 1e-05
        %v1194 = vadd.f32 %v1178, 1e-05
        %v1195 = vadd.f32 %v1179, 1e-05
        %v1196 = vadd.f32 %v1180, 1e-05
        %v1197 = vadd.f32 %v1181, 1e-05
        %v1198 = vadd.f32 %v1182, 1e-05
        %v1199 = vadd.f32 %v1183, 1e-05
        %v1200 = vrsqrt.pop %v1184
        %v1201 = vrsqrt.pop %v1185
        %v1202 = vrsqrt.pop %v1186
        %v1203 = vrsqrt.pop %v1187
        %v1204 = vrsqrt.pop %v1188
        %v1205 = vrsqrt.pop %v1189
        %v1206 = vrsqrt.pop %v1190
        %v1207 = vrsqrt.pop %v1191
        %v1208 = vrsqrt.pop %v1192
        %v1209 = vrsqrt.pop %v1193
        %v1210 = vrsqrt.pop %v1194
        %v1211 = vrsqrt.pop %v1195
        %v1212 = vrsqrt.pop %v1196
        %v1213 = vrsqrt.pop %v1197
        %v1214 = vrsqrt.pop %v1198
        %v1215 = vrsqrt.pop %v1199
        %v1216 = vmul.f32 %v1104, %v1200
        %v1217 = vmul.f32 %v1105, %v1201
        %v1218 = vmul.f32 %v1106, %v1202
        %v1219 = vmul.f32 %v1107, %v1203
        %v1220 = vmul.f32 %v1108, %v1204
        %v1221 = vmul.f32 %v1109, %v1205
        %v1222 = vmul.f32 %v1110, %v1206
        %v1223 = vmul.f32 %v1111, %v1207
        %v1224 = vmul.f32 %v1112, %v1208
        %v1225 = vmul.f32 %v1113, %v1209
        %v1226 = vmul.f32 %v1114, %v1210
        %v1227 = vmul.f32 %v1115, %v1211
        %v1228 = vmul.f32 %v1116, %v1212
        %v1229 = vmul.f32 %v1117, %v1213
        %v1230 = vmul.f32 %v1118, %v1214
        %v1231 = vmul.f32 %v1119, %v1215
        %v1232 = vmul.f32 %v1216, %v984
        %v1233 = vmul.f32 %v1217, %v984
        %v1234 = vmul.f32 %v1218, %v984
        %v1235 = vmul.f32 %v1219, %v984
        %v1236 = vmul.f32 %v1220, %v984
        %v1237 = vmul.f32 %v1221, %v984
        %v1238 = vmul.f32 %v1222, %v984
        %v1239 = vmul.f32 %v1223, %v984
        %v1240 = vmul.f32 %v1224, %v984
        %v1241 = vmul.f32 %v1225, %v984
        %v1242 = vmul.f32 %v1226, %v984
        %v1243 = vmul.f32 %v1227, %v984
        %v1244 = vmul.f32 %v1228, %v984
        %v1245 = vmul.f32 %v1229, %v984
        %v1246 = vmul.f32 %v1230, %v984
        %v1247 = vmul.f32 %v1231, %v984
        %v1248 = vadd.f32 %v1232, %v1022
        %v1249 = vadd.f32 %v1233, %v1022
        %v1250 = vadd.f32 %v1234, %v1022
        %v1251 = vadd.f32 %v1235, %v1022
        %v1252 = vadd.f32 %v1236, %v1022
        %v1253 = vadd.f32 %v1237, %v1022
        %v1254 = vadd.f32 %v1238, %v1022
        %v1255 = vadd.f32 %v1239, %v1022
        %v1256 = vadd.f32 %v1240, %v1022
        %v1257 = vadd.f32 %v1241, %v1022
        %v1258 = vadd.f32 %v1242, %v1022
        %v1259 = vadd.f32 %v1243, %v1022
        %v1260 = vadd.f32 %v1244, %v1022
        %v1261 = vadd.f32 %v1245, %v1022
        %v1262 = vadd.f32 %v1246, %v1022
        %v1263 = vadd.f32 %v1247, %v1022
        %v1264 = vpack.c.bf16 %v1249, %v1248
        %v1265 = vpack.c.bf16 %v1251, %v1250
        %v1266 = vpack.c.bf16 %v1253, %v1252
        %v1267 = vpack.c.bf16 %v1255, %v1254
        %v1268 = vpack.c.bf16 %v1257, %v1256
        %v1269 = vpack.c.bf16 %v1259, %v1258
        %v1270 = vpack.c.bf16 %v1261, %v1260
        %v1271 = vpack.c.bf16 %v1263, %v1262
        %v1272 = vld [vmem:[#allocation7] sm:$0xf]
        %v1273 = vld [vmem:[#allocation7 + $0x4] sm:$0xf]
        %v1274 = vld [vmem:[#allocation7 + $0x8] sm:$0xf]
        %v1275 = vld [vmem:[#allocation7 + $0xc] sm:$0xf]
        %v1276 = vld [vmem:[#allocation7 + $0x10] sm:$0xf]
        %v1277 = vld [vmem:[#allocation7 + $0x14] sm:$0xf]
        %v1278 = vld [vmem:[#allocation7 + $0x18] sm:$0xf]
        %v1279 = vld [vmem:[#allocation7 + $0x1c] sm:$0xf]
        %v1280 = vld [vmem:[#allocation7 + $0x20] sm:$0xf]
        %v1281 = vld [vmem:[#allocation7 + $0x24] sm:$0xf]
        %v1282 = vld [vmem:[#allocation7 + $0x28] sm:$0xf]
        %v1283 = vld [vmem:[#allocation7 + $0x2c] sm:$0xf]
        %v1284 = vld [vmem:[#allocation7 + $0x30] sm:$0xf]
        %v1285 = vld [vmem:[#allocation7 + $0x34] sm:$0xf]
        %v1286 = vld [vmem:[#allocation7 + $0x38] sm:$0xf]
        %v1287 = vld [vmem:[#allocation7 + $0x3c] sm:$0xf]
        %v1288 = vld [vmem:[%s4] sm:$0x1]
        %v1290 = vlaneseq
        %v1291 = vshrl.u32 %v1290, 7
        %v1292 = vsub.s32 0, %v1291
        %v1293 = vrot.slane %v1288, %v1292
        %v1311 = vunpack.c.l.b16 %v1272
        %v1312 = vunpack.c.l.b16 %v1273
        %v1313 = vunpack.c.l.b16 %v1274
        %v1314 = vunpack.c.l.b16 %v1275
        %v1315 = vunpack.c.l.b16 %v1276
        %v1316 = vunpack.c.l.b16 %v1277
        %v1317 = vunpack.c.l.b16 %v1278
        %v1318 = vunpack.c.l.b16 %v1279
        %v1319 = vunpack.c.l.b16 %v1280
        %v1320 = vunpack.c.l.b16 %v1281
        %v1321 = vunpack.c.l.b16 %v1282
        %v1322 = vunpack.c.l.b16 %v1283
        %v1323 = vunpack.c.l.b16 %v1284
        %v1324 = vunpack.c.l.b16 %v1285
        %v1325 = vunpack.c.l.b16 %v1286
        %v1326 = vunpack.c.l.b16 %v1287
        %v1327 = vpack.c.b16 %v1312, %v1311
        %v1328 = vpack.c.b16 %v1314, %v1313
        %v1329 = vpack.c.b16 %v1316, %v1315
        %v1330 = vpack.c.b16 %v1318, %v1317
        %v1331 = vpack.c.b16 %v1320, %v1319
        %v1332 = vpack.c.b16 %v1322, %v1321
        %v1333 = vpack.c.b16 %v1324, %v1323
        %v1334 = vpack.c.b16 %v1326, %v1325
        %1343 = vmatprep.subr.bf16.mxu0 0
        %1344 = vmatpush1.bf16.msra.mxu0 %v1327
        %1345 = vmatprep.subr.bf16.mxu0 0
        %1346 = vmatpush1.bf16.msra.mxu0 %v1328
        %1347 = vmatprep.subr.bf16.mxu0 0
        %1348 = vmatpush1.bf16.msra.mxu0 %v1329
        %1349 = vmatprep.subr.bf16.mxu0 0
        %1350 = vmatpush1.bf16.msra.mxu0 %v1330
        %1351 = vmatprep.subr.bf16.mxu0 0
        %1352 = vmatpush1.bf16.msra.mxu0 %v1331
        %1353 = vmatprep.subr.bf16.mxu0 0
        %1354 = vmatpush1.bf16.msra.mxu0 %v1332
        %1355 = vmatprep.subr.bf16.mxu0 0
        %1356 = vmatpush1.bf16.msra.mxu0 %v1333
        %1357 = vmatprep.subr.bf16.mxu0 0
        %1358 = vmatpush1.bf16.msra.mxu0 %v1334
        %1359 = vmatprep.subr.bf16.mxu0 0
        %1360 = vmatpush1.bf16.msra.mxu0 0
        %1361 = vmatprep.subr.bf16.mxu0 0
        %1362 = vmatpush1.bf16.msra.mxu0 0
        %1363 = vmatprep.subr.bf16.mxu0 0
        %1364 = vmatpush1.bf16.msra.mxu0 0
        %1365 = vmatprep.subr.bf16.mxu0 0
        %1366 = vmatpush1.bf16.msra.mxu0 0
        %1367 = vmatprep.subr.bf16.mxu0 0
        %1368 = vmatpush1.bf16.msra.mxu0 0
        %1369 = vmatprep.subr.bf16.mxu0 0
        %1370 = vmatpush1.bf16.msra.mxu0 0
        %1371 = vmatprep.subr.bf16.mxu0 0
        %1372 = vmatpush1.bf16.msra.mxu0 0
        %1373 = vmatprep.subr.bf16.mxu0 0
        %1374 = vmatpush1.bf16.msra.mxu0 0
        %1375 = vmatprep.mubr.bf16.mxu0 0
        %1376 = vmatmul.mubr.bf16.gmra.mrb[0].mxu0 %v1264
        %v1377 = vpop.f32.mrb[0].mxu0
        %v1378 = vadd.f32 %v1293, %v1377
        %v1379 = vpop.f32.mrb[0].mxu0
        %v1380 = vpop.f32.mrb[0].mxu0
        %v1381 = vadd.f32 %v1293, %v1380
        %v1382 = vpop.f32.mrb[0].mxu0
        %1383 = vmatprep.mubr.bf16.mxu0 0
        %1384 = vmatmul.mubr.bf16.gmra.mrb[0].mxu0 %v1265
        %v1385 = vpop.f32.mrb[0].mxu0
        %v1386 = vadd.f32 %v1293, %v1385
        %v1387 = vpop.f32.mrb[0].mxu0
        %v1388 = vpop.f32.mrb[0].mxu0
        %v1389 = vadd.f32 %v1293, %v1388
        %v1390 = vpop.f32.mrb[0].mxu0
        %1391 = vmatprep.mubr.bf16.mxu0 0
        %1392 = vmatmul.mubr.bf16.gmra.mrb[0].mxu0 %v1266
        %v1393 = vpop.f32.mrb[0].mxu0
        %v1394 = vadd.f32 %v1293, %v1393
        %v1395 = vpop.f32.mrb[0].mxu0
        %v1396 = vpop.f32.mrb[0].mxu0
        %v1397 = vadd.f32 %v1293, %v1396
        %v1398 = vpop.f32.mrb[0].mxu0
        %1399 = vmatprep.mubr.bf16.mxu0 0
        %1400 = vmatmul.mubr.bf16.gmra.mrb[0].mxu0 %v1267
        %v1401 = vpop.f32.mrb[0].mxu0
        %v1402 = vadd.f32 %v1293, %v1401
        %v1403 = vpop.f32.mrb[0].mxu0
        %v1404 = vpop.f32.mrb[0].mxu0
        %v1405 = vadd.f32 %v1293, %v1404
        %v1406 = vpop.f32.mrb[0].mxu0
        %1407 = vmatprep.mubr.bf16.mxu0 0
        %1408 = vmatmul.mubr.bf16.gmra.mrb[0].mxu0 %v1268
        %v1409 = vpop.f32.mrb[0].mxu0
        %v1410 = vadd.f32 %v1293, %v1409
        %v1411 = vpop.f32.mrb[0].mxu0
        %v1412 = vpop.f32.mrb[0].mxu0
        %v1413 = vadd.f32 %v1293, %v1412
        %v1414 = vpop.f32.mrb[0].mxu0
        %1415 = vmatprep.mubr.bf16.mxu0 0
        %1416 = vmatmul.mubr.bf16.gmra.mrb[0].mxu0 %v1269
        %v1417 = vpop.f32.mrb[0].mxu0
        %v1418 = vadd.f32 %v1293, %v1417
        %v1419 = vpop.f32.mrb[0].mxu0
        %v1420 = vpop.f32.mrb[0].mxu0
        %v1421 = vadd.f32 %v1293, %v1420
        %v1422 = vpop.f32.mrb[0].mxu0
        %1423 = vmatprep.mubr.bf16.mxu0 0
        %1424 = vmatmul.mubr.bf16.gmra.mrb[0].mxu0 %v1270
        %v1425 = vpop.f32.mrb[0].mxu0
        %v1426 = vadd.f32 %v1293, %v1425
        %v1427 = vpop.f32.mrb[0].mxu0
        %v1428 = vpop.f32.mrb[0].mxu0
        %v1429 = vadd.f32 %v1293, %v1428
        %v1430 = vpop.f32.mrb[0].mxu0
        %1431 = vmatprep.mubr.bf16.mxu0 0
        %1432 = vmatmul.mubr.bf16.gmra.mrb[0].mxu0 %v1271
        %v1433 = vpop.f32.mrb[0].mxu0
        %v1434 = vadd.f32 %v1293, %v1433
        %v1435 = vpop.f32.mrb[0].mxu0
        %v1436 = vpop.f32.mrb[0].mxu0
        %v1437 = vadd.f32 %v1293, %v1436
        %v1438 = vpop.f32.mrb[0].mxu0
        %1439 = vdwg.mxu0
        %v1440 = vpack.c.bf16 %v1025, %v1024
        %v1441 = vpack.c.bf16 %v1027, %v1026
        %v1442 = vpack.c.bf16 %v1029, %v1028
        %v1443 = vpack.c.bf16 %v1031, %v1030
        %v1444 = vpack.c.bf16 %v1033, %v1032
        %v1445 = vpack.c.bf16 %v1035, %v1034
        %v1446 = vpack.c.bf16 %v1037, %v1036
        %v1447 = vpack.c.bf16 %v1039, %v1038
        %v1448 = vpack.c.bf16 %v1041, %v1040
        %v1449 = vpack.c.bf16 %v1043, %v1042
        %v1450 = vpack.c.bf16 %v1045, %v1044
        %v1451 = vpack.c.bf16 %v1047, %v1046
        %v1452 = vpack.c.bf16 %v1049, %v1048
        %v1453 = vpack.c.bf16 %v1051, %v1050
        %v1454 = vpack.c.bf16 %v1053, %v1052
        %v1455 = vpack.c.bf16 %v1055, %v1054
        %v1456 = vld [vmem:[#allocation8] sm:$0xff]
        %v1457 = vld [vmem:[#allocation8 + $0x8] sm:$0xff]
        %v1458 = vld [vmem:[#allocation8 + $0x10] sm:$0xff]
        %v1459 = vld [vmem:[#allocation8 + $0x18] sm:$0xff]
        %v1460 = vld [vmem:[#allocation8 + $0x20] sm:$0xff]
        %v1461 = vld [vmem:[#allocation8 + $0x28] sm:$0xff]
        %v1462 = vld [vmem:[#allocation8 + $0x30] sm:$0xff]
        %v1463 = vld [vmem:[#allocation8 + $0x38] sm:$0xff]
        %v1464 = vld [vmem:[#allocation8 + $0x40] sm:$0xff]
        %v1465 = vld [vmem:[#allocation8 + $0x48] sm:$0xff]
        %v1466 = vld [vmem:[#allocation8 + $0x50] sm:$0xff]
        %v1467 = vld [vmem:[#allocation8 + $0x58] sm:$0xff]
        %v1468 = vld [vmem:[#allocation8 + $0x60] sm:$0xff]
        %v1469 = vld [vmem:[#allocation8 + $0x68] sm:$0xff]
        %v1470 = vld [vmem:[#allocation8 + $0x70] sm:$0xff]
        %v1471 = vld [vmem:[#allocation8 + $0x78] sm:$0xff]
        %v1472 = vld [vmem:[%s6] sm:$0x3]
        %v1474 = vlaneseq
        %v1475 = vshrl.u32 %v1474, 7
        %v1476 = vsub.s32 0, %v1475
        %v1477 = vrot.slane %v1472, %v1476
        %v1478 = vlaneseq
        %v1479 = vshrl.u32 %v1478, 7
        %v1480 = vsub.s32 1, %v1479
        %v1481 = vrot.slane %v1472, %v1480
        %v1500 = vunpack.c.l.b16 %v1456
        %v1501 = vunpack.c.h.b16 %v1456
        %v1502 = vunpack.c.l.b16 %v1457
        %v1503 = vunpack.c.h.b16 %v1457
        %v1504 = vunpack.c.l.b16 %v1458
        %v1505 = vunpack.c.h.b16 %v1458
        %v1506 = vunpack.c.l.b16 %v1459
        %v1507 = vunpack.c.h.b16 %v1459
        %v1508 = vunpack.c.l.b16 %v1460
        %v1509 = vunpack.c.h.b16 %v1460
        %v1510 = vunpack.c.l.b16 %v1461
        %v1511 = vunpack.c.h.b16 %v1461
        %v1512 = vunpack.c.l.b16 %v1462
        %v1513 = vunpack.c.h.b16 %v1462
        %v1514 = vunpack.c.l.b16 %v1463
        %v1515 = vunpack.c.h.b16 %v1463
        %v1516 = vunpack.c.l.b16 %v1464
        %v1517 = vunpack.c.h.b16 %v1464
        %v1518 = vunpack.c.l.b16 %v1465
        %v1519 = vunpack.c.h.b16 %v1465
        %v1520 = vunpack.c.l.b16 %v1466
        %v1521 = vunpack.c.h.b16 %v1466
        %v1522 = vunpack.c.l.b16 %v1467
        %v1523 = vunpack.c.h.b16 %v1467
        %v1524 = vunpack.c.l.b16 %v1468
        %v1525 = vunpack.c.h.b16 %v1468
        %v1526 = vunpack.c.l.b16 %v1469
        %v1527 = vunpack.c.h.b16 %v1469
        %v1528 = vunpack.c.l.b16 %v1470
        %v1529 = vunpack.c.h.b16 %v1470
        %v1530 = vunpack.c.l.b16 %v1471
        %v1531 = vunpack.c.h.b16 %v1471
        %v1532 = vpack.c.b16 %v1502, %v1500
        %v1533 = vpack.c.b16 %v1503, %v1501
        %v1534 = vpack.c.b16 %v1506, %v1504
        %v1535 = vpack.c.b16 %v1507, %v1505
        %v1536 = vpack.c.b16 %v1510, %v1508
        %v1537 = vpack.c.b16 %v1511, %v1509
        %v1538 = vpack.c.b16 %v1514, %v1512
        %v1539 = vpack.c.b16 %v1515, %v1513
        %v1540 = vpack.c.b16 %v1518, %v1516
        %v1541 = vpack.c.b16 %v1519, %v1517
        %v1542 = vpack.c.b16 %v1522, %v1520
        %v1543 = vpack.c.b16 %v1523, %v1521
        %v1544 = vpack.c.b16 %v1526, %v1524
        %v1545 = vpack.c.b16 %v1527, %v1525
        %v1546 = vpack.c.b16 %v1530, %v1528
        %v1547 = vpack.c.b16 %v1531, %v1529
        %1564 = vmatprep.subr.bf16.mxu0 %v1533
        %1565 = vmatpush1.bf16.msra.mxu0 %v1532
        %1566 = vmatprep.subr.bf16.mxu0 %v1535
        %1567 = vmatpush1.bf16.msra.mxu0 %v1534
        %1568 = vmatprep.subr.bf16.mxu0 %v1537
        %1569 = vmatpush1.bf16.msra.mxu0 %v1536
        %1570 = vmatprep.subr.bf16.mxu0 %v1539
        %1571 = vmatpush1.bf16.msra.mxu0 %v1538
        %1572 = vmatprep.subr.bf16.mxu0 %v1541
        %1573 = vmatpush1.bf16.msra.mxu0 %v1540
        %1574 = vmatprep.subr.bf16.mxu0 %v1543
        %1575 = vmatpush1.bf16.msra.mxu0 %v1542
        %1576 = vmatprep.subr.bf16.mxu0 %v1545
        %1577 = vmatpush1.bf16.msra.mxu0 %v1544
        %1578 = vmatprep.subr.bf16.mxu0 %v1547
        %1579 = vmatpush1.bf16.msra.mxu0 %v1546
        %1580 = vmatprep.subr.bf16.mxu0 0
        %1581 = vmatpush1.bf16.msra.mxu0 0
        %1582 = vmatprep.subr.bf16.mxu0 0
        %1583 = vmatpush1.bf16.msra.mxu0 0
        %1584 = vmatprep.subr.bf16.mxu0 0
        %1585 = vmatpush1.bf16.msra.mxu0 0
        %1586 = vmatprep.subr.bf16.mxu0 0
        %1587 = vmatpush1.bf16.msra.mxu0 0
        %1588 = vmatprep.subr.bf16.mxu0 0
        %1589 = vmatpush1.bf16.msra.mxu0 0
        %1590 = vmatprep.subr.bf16.mxu0 0
        %1591 = vmatpush1.bf16.msra.mxu0 0
        %1592 = vmatprep.subr.bf16.mxu0 0
        %1593 = vmatpush1.bf16.msra.mxu0 0
        %1594 = vmatprep.subr.bf16.mxu0 0
        %1595 = vmatpush1.bf16.msra.mxu0 0
        %1596 = vmatprep.mubr.bf16.mxu0 0
        %1597 = vmatmul.mubr.bf16.gmra.mrb[0].mxu0 %v1440
        %v1598 = vpop.f32.mrb[0].mxu0
        %v1599 = vadd.f32 %v1477, %v1598
        %v1600 = vpop.f32.mrb[0].mxu0
        %v1601 = vadd.f32 %v1481, %v1600
        %v1602 = vpop.f32.mrb[0].mxu0
        %v1603 = vadd.f32 %v1477, %v1602
        %v1604 = vpop.f32.mrb[0].mxu0
        %v1605 = vadd.f32 %v1481, %v1604
        %1606 = vmatprep.mubr.bf16.mxu0 0
        %1607 = vmatmul.mubr.bf16.gmra.mrb[0].mxu0 %v1441
        %v1608 = vpop.f32.mrb[0].mxu0
        %v1609 = vadd.f32 %v1477, %v1608
        %v1610 = vpop.f32.mrb[0].mxu0
        %v1611 = vadd.f32 %v1481, %v1610
        %v1612 = vpop.f32.mrb[0].mxu0
        %v1613 = vadd.f32 %v1477, %v1612
        %v1614 = vpop.f32.mrb[0].mxu0
        %v1615 = vadd.f32 %v1481, %v1614
        %1616 = vmatprep.mubr.bf16.mxu0 0
        %1617 = vmatmul.mubr.bf16.gmra.mrb[0].mxu0 %v1442
        %v1618 = vpop.f32.mrb[0].mxu0
        %v1619 = vadd.f32 %v1477, %v1618
        %v1620 = vpop.f32.mrb[0].mxu0
        %v1621 = vadd.f32 %v1481, %v1620
        %v1622 = vpop.f32.mrb[0].mxu0
        %v1623 = vadd.f32 %v1477, %v1622
        %v1624 = vpop.f32.mrb[0].mxu0
        %v1625 = vadd.f32 %v1481, %v1624
        %1626 = vmatprep.mubr.bf16.mxu0 0
        %1627 = vmatmul.mubr.bf16.gmra.mrb[0].mxu0 %v1443
        %v1628 = vpop.f32.mrb[0].mxu0
        %v1629 = vadd.f32 %v1477, %v1628
        %v1630 = vpop.f32.mrb[0].mxu0
        %v1631 = vadd.f32 %v1481, %v1630
        %v1632 = vpop.f32.mrb[0].mxu0
        %v1633 = vadd.f32 %v1477, %v1632
        %v1634 = vpop.f32.mrb[0].mxu0
        %v1635 = vadd.f32 %v1481, %v1634
        %1636 = vmatprep.mubr.bf16.mxu0 0
        %1637 = vmatmul.mubr.bf16.gmra.mrb[0].mxu0 %v1444
        %v1638 = vpop.f32.mrb[0].mxu0
        %v1639 = vadd.f32 %v1477, %v1638
        %v1640 = vpop.f32.mrb[0].mxu0
        %v1641 = vadd.f32 %v1481, %v1640
        %v1642 = vpop.f32.mrb[0].mxu0
        %v1643 = vadd.f32 %v1477, %v1642
        %v1644 = vpop.f32.mrb[0].mxu0
        %v1645 = vadd.f32 %v1481, %v1644
        %1646 = vmatprep.mubr.bf16.mxu0 0
        %1647 = vmatmul.mubr.bf16.gmra.mrb[0].mxu0 %v1445
        %v1648 = vpop.f32.mrb[0].mxu0
        %v1649 = vadd.f32 %v1477, %v1648
        %v1650 = vpop.f32.mrb[0].mxu0
        %v1651 = vadd.f32 %v1481, %v1650
        %v1652 = vpop.f32.mrb[0].mxu0
        %v1653 = vadd.f32 %v1477, %v1652
        %v1654 = vpop.f32.mrb[0].mxu0
        %v1655 = vadd.f32 %v1481, %v1654
        %1656 = vmatprep.mubr.bf16.mxu0 0
        %1657 = vmatmul.mubr.bf16.gmra.mrb[0].mxu0 %v1446
        %v1658 = vpop.f32.mrb[0].mxu0
        %v1659 = vadd.f32 %v1477, %v1658
        %v1660 = vpop.f32.mrb[0].mxu0
        %v1661 = vadd.f32 %v1481, %v1660
        %v1662 = vpop.f32.mrb[0].mxu0
        %v1663 = vadd.f32 %v1477, %v1662
        %v1664 = vpop.f32.mrb[0].mxu0
        %v1665 = vadd.f32 %v1481, %v1664
        %1666 = vmatprep.mubr.bf16.mxu0 0
        %1667 = vmatmul.mubr.bf16.gmra.mrb[0].mxu0 %v1447
        %v1668 = vpop.f32.mrb[0].mxu0
        %v1669 = vadd.f32 %v1477, %v1668
        %v1670 = vpop.f32.mrb[0].mxu0
        %v1671 = vadd.f32 %v1481, %v1670
        %v1672 = vpop.f32.mrb[0].mxu0
        %v1673 = vadd.f32 %v1477, %v1672
        %v1674 = vpop.f32.mrb[0].mxu0
        %v1675 = vadd.f32 %v1481, %v1674
        %1676 = vmatprep.mubr.bf16.mxu0 0
        %1677 = vmatmul.mubr.bf16.gmra.mrb[0].mxu0 %v1448
        %v1678 = vpop.f32.mrb[0].mxu0
        %v1679 = vadd.f32 %v1477, %v1678
        %v1680 = vpop.f32.mrb[0].mxu0
        %v1681 = vadd.f32 %v1481, %v1680
        %v1682 = vpop.f32.mrb[0].mxu0
        %v1683 = vadd.f32 %v1477, %v1682
        %v1684 = vpop.f32.mrb[0].mxu0
        %v1685 = vadd.f32 %v1481, %v1684
        %1686 = vmatprep.mubr.bf16.mxu0 0
        %1687 = vmatmul.mubr.bf16.gmra.mrb[0].mxu0 %v1449
        %v1688 = vpop.f32.mrb[0].mxu0
        %v1689 = vadd.f32 %v1477, %v1688
        %v1690 = vpop.f32.mrb[0].mxu0
        %v1691 = vadd.f32 %v1481, %v1690
        %v1692 = vpop.f32.mrb[0].mxu0
        %v1693 = vadd.f32 %v1477, %v1692
        %v1694 = vpop.f32.mrb[0].mxu0
        %v1695 = vadd.f32 %v1481, %v1694
        %1696 = vmatprep.mubr.bf16.mxu0 0
        %1697 = vmatmul.mubr.bf16.gmra.mrb[0].mxu0 %v1450
        %v1698 = vpop.f32.mrb[0].mxu0
        %v1699 = vadd.f32 %v1477, %v1698
        %v1700 = vpop.f32.mrb[0].mxu0
        %v1701 = vadd.f32 %v1481, %v1700
        %v1702 = vpop.f32.mrb[0].mxu0
        %v1703 = vadd.f32 %v1477, %v1702
        %v1704 = vpop.f32.mrb[0].mxu0
        %v1705 = vadd.f32 %v1481, %v1704
        %1706 = vmatprep.mubr.bf16.mxu0 0
        %1707 = vmatmul.mubr.bf16.gmra.mrb[0].mxu0 %v1451
        %v1708 = vpop.f32.mrb[0].mxu0
        %v1709 = vadd.f32 %v1477, %v1708
        %v1710 = vpop.f32.mrb[0].mxu0
        %v1711 = vadd.f32 %v1481, %v1710
        %v1712 = vpop.f32.mrb[0].mxu0
        %v1713 = vadd.f32 %v1477, %v1712
        %v1714 = vpop.f32.mrb[0].mxu0
        %v1715 = vadd.f32 %v1481, %v1714
        %1716 = vmatprep.mubr.bf16.mxu0 0
        %1717 = vmatmul.mubr.bf16.gmra.mrb[0].mxu0 %v1452
        %v1718 = vpop.f32.mrb[0].mxu0
        %v1719 = vadd.f32 %v1477, %v1718
        %v1720 = vpop.f32.mrb[0].mxu0
        %v1721 = vadd.f32 %v1481, %v1720
        %v1722 = vpop.f32.mrb[0].mxu0
        %v1723 = vadd.f32 %v1477, %v1722
        %v1724 = vpop.f32.mrb[0].mxu0
        %v1725 = vadd.f32 %v1481, %v1724
        %1726 = vmatprep.mubr.bf16.mxu0 0
        %1727 = vmatmul.mubr.bf16.gmra.mrb[0].mxu0 %v1453
        %v1728 = vpop.f32.mrb[0].mxu0
        %v1729 = vadd.f32 %v1477, %v1728
        %v1730 = vpop.f32.mrb[0].mxu0
        %v1731 = vadd.f32 %v1481, %v1730
        %v1732 = vpop.f32.mrb[0].mxu0
        %v1733 = vadd.f32 %v1477, %v1732
        %v1734 = vpop.f32.mrb[0].mxu0
        %v1735 = vadd.f32 %v1481, %v1734
        %1736 = vmatprep.mubr.bf16.mxu0 0
        %1737 = vmatmul.mubr.bf16.gmra.mrb[0].mxu0 %v1454
        %v1738 = vpop.f32.mrb[0].mxu0
        %v1739 = vadd.f32 %v1477, %v1738
        %v1740 = vpop.f32.mrb[0].mxu0
        %v1741 = vadd.f32 %v1481, %v1740
        %v1742 = vpop.f32.mrb[0].mxu0
        %v1743 = vadd.f32 %v1477, %v1742
        %v1744 = vpop.f32.mrb[0].mxu0
        %v1745 = vadd.f32 %v1481, %v1744
        %1746 = vmatprep.mubr.bf16.mxu0 0
        %1747 = vmatmul.mubr.bf16.gmra.mrb[0].mxu0 %v1455
        %v1748 = vpop.f32.mrb[0].mxu0
        %v1749 = vadd.f32 %v1477, %v1748
        %v1750 = vpop.f32.mrb[0].mxu0
        %v1751 = vadd.f32 %v1481, %v1750
        %v1752 = vpop.f32.mrb[0].mxu0
        %v1753 = vadd.f32 %v1477, %v1752
        %v1754 = vpop.f32.mrb[0].mxu0
        %v1755 = vadd.f32 %v1481, %v1754
        %1756 = vdwg.mxu0
        %v1757 = vmul.f32 %v1378, 0.17677669
        %v1758 = vmul.f32 %v1381, 0.17677669
        %v1759 = vmul.f32 %v1386, 0.17677669
        %v1760 = vmul.f32 %v1389, 0.17677669
        %v1761 = vmul.f32 %v1394, 0.17677669
        %v1762 = vmul.f32 %v1397, 0.17677669
        %v1763 = vmul.f32 %v1402, 0.17677669
        %v1764 = vmul.f32 %v1405, 0.17677669
        %v1765 = vmul.f32 %v1410, 0.17677669
        %v1766 = vmul.f32 %v1413, 0.17677669
        %v1767 = vmul.f32 %v1418, 0.17677669
        %v1768 = vmul.f32 %v1421, 0.17677669
        %v1769 = vmul.f32 %v1426, 0.17677669
        %v1770 = vmul.f32 %v1429, 0.17677669
        %v1771 = vmul.f32 %v1434, 0.17677669
        %v1772 = vmul.f32 %v1437, 0.17677669
        %1789 = vrot.lane.b32.xlu0 %v1757, 96
        %v1790 = vpop.permute.xlu0 %1789
        %1791 = vrot.lane.b32.xlu0 %v1758, 96
        %v1792 = vpop.permute.xlu0 %1791
        %1793 = vrot.lane.b32.xlu0 %v1759, 96
        %v1794 = vpop.permute.xlu0 %1793
        %1795 = vrot.lane.b32.xlu0 %v1760, 96
        %v1796 = vpop.permute.xlu0 %1795
        %1797 = vrot.lane.b32.xlu0 %v1761, 96
        %v1798 = vpop.permute.xlu0 %1797
        %1799 = vrot.lane.b32.xlu0 %v1762, 96
        %v1800 = vpop.permute.xlu0 %1799
        %1801 = vrot.lane.b32.xlu0 %v1763, 96
        %v1802 = vpop.permute.xlu0 %1801
        %1803 = vrot.lane.b32.xlu0 %v1764, 96
        %v1804 = vpop.permute.xlu0 %1803
        %1805 = vrot.lane.b32.xlu0 %v1765, 96
        %v1806 = vpop.permute.xlu0 %1805
        %1807 = vrot.lane.b32.xlu0 %v1766, 96
        %v1808 = vpop.permute.xlu0 %1807
        %1809 = vrot.lane.b32.xlu0 %v1767, 96
        %v1810 = vpop.permute.xlu0 %1809
        %1811 = vrot.lane.b32.xlu0 %v1768, 96
        %v1812 = vpop.permute.xlu0 %1811
        %1813 = vrot.lane.b32.xlu0 %v1769, 96
        %v1814 = vpop.permute.xlu0 %1813
        %1815 = vrot.lane.b32.xlu0 %v1770, 96
        %v1816 = vpop.permute.xlu0 %1815
        %1817 = vrot.lane.b32.xlu0 %v1771, 96
        %v1818 = vpop.permute.xlu0 %1817
        %1819 = vrot.lane.b32.xlu0 %v1772, 96
        %v1820 = vpop.permute.xlu0 %1819
        %1837 = vrot.lane.b32.xlu0 %v1757, 64
        %v1838 = vpop.permute.xlu0 %1837
        %1839 = vrot.lane.b32.xlu0 %v1758, 64
        %v1840 = vpop.permute.xlu0 %1839
        %1841 = vrot.lane.b32.xlu0 %v1759, 64
        %v1842 = vpop.permute.xlu0 %1841
        %1843 = vrot.lane.b32.xlu0 %v1760, 64
        %v1844 = vpop.permute.xlu0 %1843
        %1845 = vrot.lane.b32.xlu0 %v1761, 64
        %v1846 = vpop.permute.xlu0 %1845
        %1847 = vrot.lane.b32.xlu0 %v1762, 64
        %v1848 = vpop.permute.xlu0 %1847
        %1849 = vrot.lane.b32.xlu0 %v1763, 64
        %v1850 = vpop.permute.xlu0 %1849
        %1851 = vrot.lane.b32.xlu0 %v1764, 64
        %v1852 = vpop.permute.xlu0 %1851
        %1853 = vrot.lane.b32.xlu0 %v1765, 64
        %v1854 = vpop.permute.xlu0 %1853
        %1855 = vrot.lane.b32.xlu0 %v1766, 64
        %v1856 = vpop.permute.xlu0 %1855
        %1857 = vrot.lane.b32.xlu0 %v1767, 64
        %v1858 = vpop.permute.xlu0 %1857
        %1859 = vrot.lane.b32.xlu0 %v1768, 64
        %v1860 = vpop.permute.xlu0 %1859
        %1861 = vrot.lane.b32.xlu0 %v1769, 64
        %v1862 = vpop.permute.xlu0 %1861
        %1863 = vrot.lane.b32.xlu0 %v1770, 64
        %v1864 = vpop.permute.xlu0 %1863
        %1865 = vrot.lane.b32.xlu0 %v1771, 64
        %v1866 = vpop.permute.xlu0 %1865
        %1867 = vrot.lane.b32.xlu0 %v1772, 64
        %v1868 = vpop.permute.xlu0 %1867
        %1885 = vrot.lane.b32.xlu0 %v1757, 32
        %v1886 = vpop.permute.xlu0 %1885
        %1887 = vrot.lane.b32.xlu0 %v1758, 32
        %v1888 = vpop.permute.xlu0 %1887
        %1889 = vrot.lane.b32.xlu0 %v1759, 32
        %v1890 = vpop.permute.xlu0 %1889
        %1891 = vrot.lane.b32.xlu0 %v1760, 32
        %v1892 = vpop.permute.xlu0 %1891
        %1893 = vrot.lane.b32.xlu0 %v1761, 32
        %v1894 = vpop.permute.xlu0 %1893
        %1895 = vrot.lane.b32.xlu0 %v1762, 32
        %v1896 = vpop.permute.xlu0 %1895
        %1897 = vrot.lane.b32.xlu0 %v1763, 32
        %v1898 = vpop.permute.xlu0 %1897
        %1899 = vrot.lane.b32.xlu0 %v1764, 32
        %v1900 = vpop.permute.xlu0 %1899
        %1901 = vrot.lane.b32.xlu0 %v1765, 32
        %v1902 = vpop.permute.xlu0 %1901
        %1903 = vrot.lane.b32.xlu0 %v1766, 32
        %v1904 = vpop.permute.xlu0 %1903
        %1905 = vrot.lane.b32.xlu0 %v1767, 32
        %v1906 = vpop.permute.xlu0 %1905
        %1907 = vrot.lane.b32.xlu0 %v1768, 32
        %v1908 = vpop.permute.xlu0 %1907
        %1909 = vrot.lane.b32.xlu0 %v1769, 32
        %v1910 = vpop.permute.xlu0 %1909
        %1911 = vrot.lane.b32.xlu0 %v1770, 32
        %v1912 = vpop.permute.xlu0 %1911
        %1913 = vrot.lane.b32.xlu0 %v1771, 32
        %v1914 = vpop.permute.xlu0 %1913
        %1915 = vrot.lane.b32.xlu0 %v1772, 32
        %v1916 = vpop.permute.xlu0 %1915
        %v1933 = vpack.c.bf16 %v1758, %v1757
        %v1934 = vpack.c.bf16 %v1760, %v1759
        %v1935 = vpack.c.bf16 %v1762, %v1761
        %v1936 = vpack.c.bf16 %v1764, %v1763
        %v1937 = vpack.c.bf16 %v1766, %v1765
        %v1938 = vpack.c.bf16 %v1768, %v1767
        %v1939 = vpack.c.bf16 %v1770, %v1769
        %v1940 = vpack.c.bf16 %v1772, %v1771
        %v1941 = vpack.c.bf16 %v1792, %v1790
        %v1942 = vpack.c.bf16 %v1796, %v1794
        %v1943 = vpack.c.bf16 %v1800, %v1798
        %v1944 = vpack.c.bf16 %v1804, %v1802
        %v1945 = vpack.c.bf16 %v1808, %v1806
        %v1946 = vpack.c.bf16 %v1812, %v1810
        %v1947 = vpack.c.bf16 %v1816, %v1814
        %v1948 = vpack.c.bf16 %v1820, %v1818
        %v1949 = vpack.c.bf16 %v1840, %v1838
        %v1950 = vpack.c.bf16 %v1844, %v1842
        %v1951 = vpack.c.bf16 %v1848, %v1846
        %v1952 = vpack.c.bf16 %v1852, %v1850
        %v1953 = vpack.c.bf16 %v1856, %v1854
        %v1954 = vpack.c.bf16 %v1860, %v1858
        %v1955 = vpack.c.bf16 %v1864, %v1862
        %v1956 = vpack.c.bf16 %v1868, %v1866
        %v1957 = vpack.c.bf16 %v1888, %v1886
        %v1958 = vpack.c.bf16 %v1892, %v1890
        %v1959 = vpack.c.bf16 %v1896, %v1894
        %v1960 = vpack.c.bf16 %v1900, %v1898
        %v1961 = vpack.c.bf16 %v1904, %v1902
        %v1962 = vpack.c.bf16 %v1908, %v1906
        %v1963 = vpack.c.bf16 %v1912, %v1910
        %v1964 = vpack.c.bf16 %v1916, %v1914
        %1997 = vrot.lane.b32.xlu0 %v1599, 96
        %v1998 = vpop.permute.xlu0 %1997
        %1999 = vrot.lane.b32.xlu0 %v1603, 96
        %v2000 = vpop.permute.xlu0 %1999
        %2001 = vrot.lane.b32.xlu0 %v1609, 96
        %v2002 = vpop.permute.xlu0 %2001
        %2003 = vrot.lane.b32.xlu0 %v1613, 96
        %v2004 = vpop.permute.xlu0 %2003
        %2005 = vrot.lane.b32.xlu0 %v1619, 96
        %v2006 = vpop.permute.xlu0 %2005
        %2007 = vrot.lane.b32.xlu0 %v1623, 96
        %v2008 = vpop.permute.xlu0 %2007
        %2009 = vrot.lane.b32.xlu0 %v1629, 96
        %v2010 = vpop.permute.xlu0 %2009
        %2011 = vrot.lane.b32.xlu0 %v1633, 96
        %v2012 = vpop.permute.xlu0 %2011
        %2013 = vrot.lane.b32.xlu0 %v1639, 96
        %v2014 = vpop.permute.xlu0 %2013
        %2015 = vrot.lane.b32.xlu0 %v1643, 96
        %v2016 = vpop.permute.xlu0 %2015
        %2017 = vrot.lane.b32.xlu0 %v1649, 96
        %v2018 = vpop.permute.xlu0 %2017
        %2019 = vrot.lane.b32.xlu0 %v1653, 96
        %v2020 = vpop.permute.xlu0 %2019
        %2021 = vrot.lane.b32.xlu0 %v1659, 96
        %v2022 = vpop.permute.xlu0 %2021
        %2023 = vrot.lane.b32.xlu0 %v1663, 96
        %v2024 = vpop.permute.xlu0 %2023
        %2025 = vrot.lane.b32.xlu0 %v1669, 96
        %v2026 = vpop.permute.xlu0 %2025
        %2027 = vrot.lane.b32.xlu0 %v1673, 96
        %v2028 = vpop.permute.xlu0 %2027
        %2029 = vrot.lane.b32.xlu0 %v1679, 96
        %v2030 = vpop.permute.xlu0 %2029
        %2031 = vrot.lane.b32.xlu0 %v1683, 96
        %v2032 = vpop.permute.xlu0 %2031
        %2033 = vrot.lane.b32.xlu0 %v1689, 96
        %v2034 = vpop.permute.xlu0 %2033
        %2035 = vrot.lane.b32.xlu0 %v1693, 96
        %v2036 = vpop.permute.xlu0 %2035
        %2037 = vrot.lane.b32.xlu0 %v1699, 96
        %v2038 = vpop.permute.xlu0 %2037
        %2039 = vrot.lane.b32.xlu0 %v1703, 96
        %v2040 = vpop.permute.xlu0 %2039
        %2041 = vrot.lane.b32.xlu0 %v1709, 96
        %v2042 = vpop.permute.xlu0 %2041
        %2043 = vrot.lane.b32.xlu0 %v1713, 96
        %v2044 = vpop.permute.xlu0 %2043
        %2045 = vrot.lane.b32.xlu0 %v1719, 96
        %v2046 = vpop.permute.xlu0 %2045
        %2047 = vrot.lane.b32.xlu0 %v1723, 96
        %v2048 = vpop.permute.xlu0 %2047
        %2049 = vrot.lane.b32.xlu0 %v1729, 96
        %v2050 = vpop.permute.xlu0 %2049
        %2051 = vrot.lane.b32.xlu0 %v1733, 96
        %v2052 = vpop.permute.xlu0 %2051
        %2053 = vrot.lane.b32.xlu0 %v1739, 96
        %v2054 = vpop.permute.xlu0 %2053
        %2055 = vrot.lane.b32.xlu0 %v1743, 96
        %v2056 = vpop.permute.xlu0 %2055
        %2057 = vrot.lane.b32.xlu0 %v1749, 96
        %v2058 = vpop.permute.xlu0 %2057
        %2059 = vrot.lane.b32.xlu0 %v1753, 96
        %v2060 = vpop.permute.xlu0 %2059
        %2093 = vrot.lane.b32.xlu0 %v1599, 64
        %v2094 = vpop.permute.xlu0 %2093
        %2095 = vrot.lane.b32.xlu0 %v1603, 64
        %v2096 = vpop.permute.xlu0 %2095
        %2097 = vrot.lane.b32.xlu0 %v1609, 64
        %v2098 = vpop.permute.xlu0 %2097
        %2099 = vrot.lane.b32.xlu0 %v1613, 64
        %v2100 = vpop.permute.xlu0 %2099
        %2101 = vrot.lane.b32.xlu0 %v1619, 64
        %v2102 = vpop.permute.xlu0 %2101
        %2103 = vrot.lane.b32.xlu0 %v1623, 64
        %v2104 = vpop.permute.xlu0 %2103
        %2105 = vrot.lane.b32.xlu0 %v1629, 64
        %v2106 = vpop.permute.xlu0 %2105
        %2107 = vrot.lane.b32.xlu0 %v1633, 64
        %v2108 = vpop.permute.xlu0 %2107
        %2109 = vrot.lane.b32.xlu0 %v1639, 64
        %v2110 = vpop.permute.xlu0 %2109
        %2111 = vrot.lane.b32.xlu0 %v1643, 64
        %v2112 = vpop.permute.xlu0 %2111
        %2113 = vrot.lane.b32.xlu0 %v1649, 64
        %v2114 = vpop.permute.xlu0 %2113
        %2115 = vrot.lane.b32.xlu0 %v1653, 64
        %v2116 = vpop.permute.xlu0 %2115
        %2117 = vrot.lane.b32.xlu0 %v1659, 64
        %v2118 = vpop.permute.xlu0 %2117
        %2119 = vrot.lane.b32.xlu0 %v1663, 64
        %v2120 = vpop.permute.xlu0 %2119
        %2121 = vrot.lane.b32.xlu0 %v1669, 64
        %v2122 = vpop.permute.xlu0 %2121
        %2123 = vrot.lane.b32.xlu0 %v1673, 64
        %v2124 = vpop.permute.xlu0 %2123
        %2125 = vrot.lane.b32.xlu0 %v1679, 64
        %v2126 = vpop.permute.xlu0 %2125
        %2127 = vrot.lane.b32.xlu0 %v1683, 64
        %v2128 = vpop.permute.xlu0 %2127
        %2129 = vrot.lane.b32.xlu0 %v1689, 64
        %v2130 = vpop.permute.xlu0 %2129
        %2131 = vrot.lane.b32.xlu0 %v1693, 64
        %v2132 = vpop.permute.xlu0 %2131
        %2133 = vrot.lane.b32.xlu0 %v1699, 64
        %v2134 = vpop.permute.xlu0 %2133
        %2135 = vrot.lane.b32.xlu0 %v1703, 64
        %v2136 = vpop.permute.xlu0 %2135
        %2137 = vrot.lane.b32.xlu0 %v1709, 64
        %v2138 = vpop.permute.xlu0 %2137
        %2139 = vrot.lane.b32.xlu0 %v1713, 64
        %v2140 = vpop.permute.xlu0 %2139
        %2141 = vrot.lane.b32.xlu0 %v1719, 64
        %v2142 = vpop.permute.xlu0 %2141
        %2143 = vrot.lane.b32.xlu0 %v1723, 64
        %v2144 = vpop.permute.xlu0 %2143
        %2145 = vrot.lane.b32.xlu0 %v1729, 64
        %v2146 = vpop.permute.xlu0 %2145
        %2147 = vrot.lane.b32.xlu0 %v1733, 64
        %v2148 = vpop.permute.xlu0 %2147
        %2149 = vrot.lane.b32.xlu0 %v1739, 64
        %v2150 = vpop.permute.xlu0 %2149
        %2151 = vrot.lane.b32.xlu0 %v1743, 64
        %v2152 = vpop.permute.xlu0 %2151
        %2153 = vrot.lane.b32.xlu0 %v1749, 64
        %v2154 = vpop.permute.xlu0 %2153
        %2155 = vrot.lane.b32.xlu0 %v1753, 64
        %v2156 = vpop.permute.xlu0 %2155
        %2189 = vrot.lane.b32.xlu0 %v1599, 32
        %v2190 = vpop.permute.xlu0 %2189
        %2191 = vrot.lane.b32.xlu0 %v1603, 32
        %v2192 = vpop.permute.xlu0 %2191
        %2193 = vrot.lane.b32.xlu0 %v1609, 32
        %v2194 = vpop.permute.xlu0 %2193
        %2195 = vrot.lane.b32.xlu0 %v1613, 32
        %v2196 = vpop.permute.xlu0 %2195
        %2197 = vrot.lane.b32.xlu0 %v1619, 32
        %v2198 = vpop.permute.xlu0 %2197
        %2199 = vrot.lane.b32.xlu0 %v1623, 32
        %v2200 = vpop.permute.xlu0 %2199
        %2201 = vrot.lane.b32.xlu0 %v1629, 32
        %v2202 = vpop.permute.xlu0 %2201
        %2203 = vrot.lane.b32.xlu0 %v1633, 32
        %v2204 = vpop.permute.xlu0 %2203
        %2205 = vrot.lane.b32.xlu0 %v1639, 32
        %v2206 = vpop.permute.xlu0 %2205
        %2207 = vrot.lane.b32.xlu0 %v1643, 32
        %v2208 = vpop.permute.xlu0 %2207
        %2209 = vrot.lane.b32.xlu0 %v1649, 32
        %v2210 = vpop.permute.xlu0 %2209
        %2211 = vrot.lane.b32.xlu0 %v1653, 32
        %v2212 = vpop.permute.xlu0 %2211
        %2213 = vrot.lane.b32.xlu0 %v1659, 32
        %v2214 = vpop.permute.xlu0 %2213
        %2215 = vrot.lane.b32.xlu0 %v1663, 32
        %v2216 = vpop.permute.xlu0 %2215
        %2217 = vrot.lane.b32.xlu0 %v1669, 32
        %v2218 = vpop.permute.xlu0 %2217
        %2219 = vrot.lane.b32.xlu0 %v1673, 32
        %v2220 = vpop.permute.xlu0 %2219
        %2221 = vrot.lane.b32.xlu0 %v1679, 32
        %v2222 = vpop.permute.xlu0 %2221
        %2223 = vrot.lane.b32.xlu0 %v1683, 32
        %v2224 = vpop.permute.xlu0 %2223
        %2225 = vrot.lane.b32.xlu0 %v1689, 32
        %v2226 = vpop.permute.xlu0 %2225
        %2227 = vrot.lane.b32.xlu0 %v1693, 32
        %v2228 = vpop.permute.xlu0 %2227
        %2229 = vrot.lane.b32.xlu0 %v1699, 32
        %v2230 = vpop.permute.xlu0 %2229
        %2231 = vrot.lane.b32.xlu0 %v1703, 32
        %v2232 = vpop.permute.xlu0 %2231
        %2233 = vrot.lane.b32.xlu0 %v1709, 32
        %v2234 = vpop.permute.xlu0 %2233
        %2235 = vrot.lane.b32.xlu0 %v1713, 32
        %v2236 = vpop.permute.xlu0 %2235
        %2237 = vrot.lane.b32.xlu0 %v1719, 32
        %v2238 = vpop.permute.xlu0 %2237
        %2239 = vrot.lane.b32.xlu0 %v1723, 32
        %v2240 = vpop.permute.xlu0 %2239
        %2241 = vrot.lane.b32.xlu0 %v1729, 32
        %v2242 = vpop.permute.xlu0 %2241
        %2243 = vrot.lane.b32.xlu0 %v1733, 32
        %v2244 = vpop.permute.xlu0 %2243
        %2245 = vrot.lane.b32.xlu0 %v1739, 32
        %v2246 = vpop.permute.xlu0 %2245
        %2247 = vrot.lane.b32.xlu0 %v1743, 32
        %v2248 = vpop.permute.xlu0 %2247
        %2249 = vrot.lane.b32.xlu0 %v1749, 32
        %v2250 = vpop.permute.xlu0 %2249
        %2251 = vrot.lane.b32.xlu0 %v1753, 32
        %v2252 = vpop.permute.xlu0 %2251
        %v2285 = vpack.c.bf16 %v1603, %v1599
        %v2286 = vpack.c.bf16 %v1613, %v1609
        %v2287 = vpack.c.bf16 %v1623, %v1619
        %v2288 = vpack.c.bf16 %v1633, %v1629
        %v2289 = vpack.c.bf16 %v1643, %v1639
        %v2290 = vpack.c.bf16 %v1653, %v1649
        %v2291 = vpack.c.bf16 %v1663, %v1659
        %v2292 = vpack.c.bf16 %v1673, %v1669
        %v2293 = vpack.c.bf16 %v1683, %v1679
        %v2294 = vpack.c.bf16 %v1693, %v1689
        %v2295 = vpack.c.bf16 %v1703, %v1699
        %v2296 = vpack.c.bf16 %v1713, %v1709
        %v2297 = vpack.c.bf16 %v1723, %v1719
        %v2298 = vpack.c.bf16 %v1733, %v1729
        %v2299 = vpack.c.bf16 %v1743, %v1739
        %v2300 = vpack.c.bf16 %v1753, %v1749
        %v2301 = vpack.c.bf16 %v2000, %v1998
        %v2302 = vpack.c.bf16 %v2004, %v2002
        %v2303 = vpack.c.bf16 %v2008, %v2006
        %v2304 = vpack.c.bf16 %v2012, %v2010
        %v2305 = vpack.c.bf16 %v2016, %v2014
        %v2306 = vpack.c.bf16 %v2020, %v2018
        %v2307 = vpack.c.bf16 %v2024, %v2022
        %v2308 = vpack.c.bf16 %v2028, %v2026
        %v2309 = vpack.c.bf16 %v2032, %v2030
        %v2310 = vpack.c.bf16 %v2036, %v2034
        %v2311 = vpack.c.bf16 %v2040, %v2038
        %v2312 = vpack.c.bf16 %v2044, %v2042
        %v2313 = vpack.c.bf16 %v2048, %v2046
        %v2314 = vpack.c.bf16 %v2052, %v2050
        %v2315 = vpack.c.bf16 %v2056, %v2054
        %v2316 = vpack.c.bf16 %v2060, %v2058
        %v2317 = vpack.c.bf16 %v2096, %v2094
        %v2318 = vpack.c.bf16 %v2100, %v2098
        %v2319 = vpack.c.bf16 %v2104, %v2102
        %v2320 = vpack.c.bf16 %v2108, %v2106
        %v2321 = vpack.c.bf16 %v2112, %v2110
        %v2322 = vpack.c.bf16 %v2116, %v2114
        %v2323 = vpack.c.bf16 %v2120, %v2118
        %v2324 = vpack.c.bf16 %v2124, %v2122
        %v2325 = vpack.c.bf16 %v2128, %v2126
        %v2326 = vpack.c.bf16 %v2132, %v2130
        %v2327 = vpack.c.bf16 %v2136, %v2134
        %v2328 = vpack.c.bf16 %v2140, %v2138
        %v2329 = vpack.c.bf16 %v2144, %v2142
        %v2330 = vpack.c.bf16 %v2148, %v2146
        %v2331 = vpack.c.bf16 %v2152, %v2150
        %v2332 = vpack.c.bf16 %v2156, %v2154
        %v2333 = vpack.c.bf16 %v2192, %v2190
        %v2334 = vpack.c.bf16 %v2196, %v2194
        %v2335 = vpack.c.bf16 %v2200, %v2198
        %v2336 = vpack.c.bf16 %v2204, %v2202
        %v2337 = vpack.c.bf16 %v2208, %v2206
        %v2338 = vpack.c.bf16 %v2212, %v2210
        %v2339 = vpack.c.bf16 %v2216, %v2214
        %v2340 = vpack.c.bf16 %v2220, %v2218
        %v2341 = vpack.c.bf16 %v2224, %v2222
        %v2342 = vpack.c.bf16 %v2228, %v2226
        %v2343 = vpack.c.bf16 %v2232, %v2230
        %v2344 = vpack.c.bf16 %v2236, %v2234
        %v2345 = vpack.c.bf16 %v2240, %v2238
        %v2346 = vpack.c.bf16 %v2244, %v2242
        %v2347 = vpack.c.bf16 %v2248, %v2246
        %v2348 = vpack.c.bf16 %v2252, %v2250
        %2381 = vrot.lane.b32.xlu0 %v1601, 96
        %v2382 = vpop.permute.xlu0 %2381
        %2383 = vrot.lane.b32.xlu0 %v1605, 96
        %v2384 = vpop.permute.xlu0 %2383
        %2385 = vrot.lane.b32.xlu0 %v1611, 96
        %v2386 = vpop.permute.xlu0 %2385
        %2387 = vrot.lane.b32.xlu0 %v1615, 96
        %v2388 = vpop.permute.xlu0 %2387
        %2389 = vrot.lane.b32.xlu0 %v1621, 96
        %v2390 = vpop.permute.xlu0 %2389
        %2391 = vrot.lane.b32.xlu0 %v1625, 96
        %v2392 = vpop.permute.xlu0 %2391
        %2393 = vrot.lane.b32.xlu0 %v1631, 96
        %v2394 = vpop.permute.xlu0 %2393
        %2395 = vrot.lane.b32.xlu0 %v1635, 96
        %v2396 = vpop.permute.xlu0 %2395
        %2397 = vrot.lane.b32.xlu0 %v1641, 96
        %v2398 = vpop.permute.xlu0 %2397
        %2399 = vrot.lane.b32.xlu0 %v1645, 96
        %v2400 = vpop.permute.xlu0 %2399
        %2401 = vrot.lane.b32.xlu0 %v1651, 96
        %v2402 = vpop.permute.xlu0 %2401
        %2403 = vrot.lane.b32.xlu0 %v1655, 96
        %v2404 = vpop.permute.xlu0 %2403
        %2405 = vrot.lane.b32.xlu0 %v1661, 96
        %v2406 = vpop.permute.xlu0 %2405
        %2407 = vrot.lane.b32.xlu0 %v1665, 96
        %v2408 = vpop.permute.xlu0 %2407
        %2409 = vrot.lane.b32.xlu0 %v1671, 96
        %v2410 = vpop.permute.xlu0 %2409
        %2411 = vrot.lane.b32.xlu0 %v1675, 96
        %v2412 = vpop.permute.xlu0 %2411
        %2413 = vrot.lane.b32.xlu0 %v1681, 96
        %v2414 = vpop.permute.xlu0 %2413
        %2415 = vrot.lane.b32.xlu0 %v1685, 96
        %v2416 = vpop.permute.xlu0 %2415
        %2417 = vrot.lane.b32.xlu0 %v1691, 96
        %v2418 = vpop.permute.xlu0 %2417
        %2419 = vrot.lane.b32.xlu0 %v1695, 96
        %v2420 = vpop.permute.xlu0 %2419
        %2421 = vrot.lane.b32.xlu0 %v1701, 96
        %v2422 = vpop.permute.xlu0 %2421
        %2423 = vrot.lane.b32.xlu0 %v1705, 96
        %v2424 = vpop.permute.xlu0 %2423
        %2425 = vrot.lane.b32.xlu0 %v1711, 96
        %v2426 = vpop.permute.xlu0 %2425
        %2427 = vrot.lane.b32.xlu0 %v1715, 96
        %v2428 = vpop.permute.xlu0 %2427
        %2429 = vrot.lane.b32.xlu0 %v1721, 96
        %v2430 = vpop.permute.xlu0 %2429
        %2431 = vrot.lane.b32.xlu0 %v1725, 96
        %v2432 = vpop.permute.xlu0 %2431
        %2433 = vrot.lane.b32.xlu0 %v1731, 96
        %v2434 = vpop.permute.xlu0 %2433
        %2435 = vrot.lane.b32.xlu0 %v1735, 96
        %v2436 = vpop.permute.xlu0 %2435
        %2437 = vrot.lane.b32.xlu0 %v1741, 96
        %v2438 = vpop.permute.xlu0 %2437
        %2439 = vrot.lane.b32.xlu0 %v1745, 96
        %v2440 = vpop.permute.xlu0 %2439
        %2441 = vrot.lane.b32.xlu0 %v1751, 96
        %v2442 = vpop.permute.xlu0 %2441
        %2443 = vrot.lane.b32.xlu0 %v1755, 96
        %v2444 = vpop.permute.xlu0 %2443
        %2477 = vrot.lane.b32.xlu0 %v1601, 64
        %v2478 = vpop.permute.xlu0 %2477
        %2479 = vrot.lane.b32.xlu0 %v1605, 64
        %v2480 = vpop.permute.xlu0 %2479
        %2481 = vrot.lane.b32.xlu0 %v1611, 64
        %v2482 = vpop.permute.xlu0 %2481
        %2483 = vrot.lane.b32.xlu0 %v1615, 64
        %v2484 = vpop.permute.xlu0 %2483
        %2485 = vrot.lane.b32.xlu0 %v1621, 64
        %v2486 = vpop.permute.xlu0 %2485
        %2487 = vrot.lane.b32.xlu0 %v1625, 64
        %v2488 = vpop.permute.xlu0 %2487
        %2489 = vrot.lane.b32.xlu0 %v1631, 64
        %v2490 = vpop.permute.xlu0 %2489
        %2491 = vrot.lane.b32.xlu0 %v1635, 64
        %v2492 = vpop.permute.xlu0 %2491
        %2493 = vrot.lane.b32.xlu0 %v1641, 64
        %v2494 = vpop.permute.xlu0 %2493
        %2495 = vrot.lane.b32.xlu0 %v1645, 64
        %v2496 = vpop.permute.xlu0 %2495
        %2497 = vrot.lane.b32.xlu0 %v1651, 64
        %v2498 = vpop.permute.xlu0 %2497
        %2499 = vrot.lane.b32.xlu0 %v1655, 64
        %v2500 = vpop.permute.xlu0 %2499
        %2501 = vrot.lane.b32.xlu0 %v1661, 64
        %v2502 = vpop.permute.xlu0 %2501
        %2503 = vrot.lane.b32.xlu0 %v1665, 64
        %v2504 = vpop.permute.xlu0 %2503
        %2505 = vrot.lane.b32.xlu0 %v1671, 64
        %v2506 = vpop.permute.xlu0 %2505
        %2507 = vrot.lane.b32.xlu0 %v1675, 64
        %v2508 = vpop.permute.xlu0 %2507
        %2509 = vrot.lane.b32.xlu0 %v1681, 64
        %v2510 = vpop.permute.xlu0 %2509
        %2511 = vrot.lane.b32.xlu0 %v1685, 64
        %v2512 = vpop.permute.xlu0 %2511
        %2513 = vrot.lane.b32.xlu0 %v1691, 64
        %v2514 = vpop.permute.xlu0 %2513
        %2515 = vrot.lane.b32.xlu0 %v1695, 64
        %v2516 = vpop.permute.xlu0 %2515
        %2517 = vrot.lane.b32.xlu0 %v1701, 64
        %v2518 = vpop.permute.xlu0 %2517
        %2519 = vrot.lane.b32.xlu0 %v1705, 64
        %v2520 = vpop.permute.xlu0 %2519
        %2521 = vrot.lane.b32.xlu0 %v1711, 64
        %v2522 = vpop.permute.xlu0 %2521
        %2523 = vrot.lane.b32.xlu0 %v1715, 64
        %v2524 = vpop.permute.xlu0 %2523
        %2525 = vrot.lane.b32.xlu0 %v1721, 64
        %v2526 = vpop.permute.xlu0 %2525
        %2527 = vrot.lane.b32.xlu0 %v1725, 64
        %v2528 = vpop.permute.xlu0 %2527
        %2529 = vrot.lane.b32.xlu0 %v1731, 64
        %v2530 = vpop.permute.xlu0 %2529
        %2531 = vrot.lane.b32.xlu0 %v1735, 64
        %v2532 = vpop.permute.xlu0 %2531
        %2533 = vrot.lane.b32.xlu0 %v1741, 64
        %v2534 = vpop.permute.xlu0 %2533
        %2535 = vrot.lane.b32.xlu0 %v1745, 64
        %v2536 = vpop.permute.xlu0 %2535
        %2537 = vrot.lane.b32.xlu0 %v1751, 64
        %v2538 = vpop.permute.xlu0 %2537
        %2539 = vrot.lane.b32.xlu0 %v1755, 64
        %v2540 = vpop.permute.xlu0 %2539
        %2573 = vrot.lane.b32.xlu0 %v1601, 32
        %v2574 = vpop.permute.xlu0 %2573
        %2575 = vrot.lane.b32.xlu0 %v1605, 32
        %v2576 = vpop.permute.xlu0 %2575
        %2577 = vrot.lane.b32.xlu0 %v1611, 32
        %v2578 = vpop.permute.xlu0 %2577
        %2579 = vrot.lane.b32.xlu0 %v1615, 32
        %v2580 = vpop.permute.xlu0 %2579
        %2581 = vrot.lane.b32.xlu0 %v1621, 32
        %v2582 = vpop.permute.xlu0 %2581
        %2583 = vrot.lane.b32.xlu0 %v1625, 32
        %v2584 = vpop.permute.xlu0 %2583
        %2585 = vrot.lane.b32.xlu0 %v1631, 32
        %v2586 = vpop.permute.xlu0 %2585
        %2587 = vrot.lane.b32.xlu0 %v1635, 32
        %v2588 = vpop.permute.xlu0 %2587
        %2589 = vrot.lane.b32.xlu0 %v1641, 32
        %v2590 = vpop.permute.xlu0 %2589
        %2591 = vrot.lane.b32.xlu0 %v1645, 32
        %v2592 = vpop.permute.xlu0 %2591
        %2593 = vrot.lane.b32.xlu0 %v1651, 32
        %v2594 = vpop.permute.xlu0 %2593
        %2595 = vrot.lane.b32.xlu0 %v1655, 32
        %v2596 = vpop.permute.xlu0 %2595
        %2597 = vrot.lane.b32.xlu0 %v1661, 32
        %v2598 = vpop.permute.xlu0 %2597
        %2599 = vrot.lane.b32.xlu0 %v1665, 32
        %v2600 = vpop.permute.xlu0 %2599
        %2601 = vrot.lane.b32.xlu0 %v1671, 32
        %v2602 = vpop.permute.xlu0 %2601
        %2603 = vrot.lane.b32.xlu0 %v1675, 32
        %v2604 = vpop.permute.xlu0 %2603
        %2605 = vrot.lane.b32.xlu0 %v1681, 32
        %v2606 = vpop.permute.xlu0 %2605
        %2607 = vrot.lane.b32.xlu0 %v1685, 32
        %v2608 = vpop.permute.xlu0 %2607
        %2609 = vrot.lane.b32.xlu0 %v1691, 32
        %v2610 = vpop.permute.xlu0 %2609
        %2611 = vrot.lane.b32.xlu0 %v1695, 32
        %v2612 = vpop.permute.xlu0 %2611
        %2613 = vrot.lane.b32.xlu0 %v1701, 32
        %v2614 = vpop.permute.xlu0 %2613
        %2615 = vrot.lane.b32.xlu0 %v1705, 32
        %v2616 = vpop.permute.xlu0 %2615
        %2617 = vrot.lane.b32.xlu0 %v1711, 32
        %v2618 = vpop.permute.xlu0 %2617
        %2619 = vrot.lane.b32.xlu0 %v1715, 32
        %v2620 = vpop.permute.xlu0 %2619
        %2621 = vrot.lane.b32.xlu0 %v1721, 32
        %v2622 = vpop.permute.xlu0 %2621
        %2623 = vrot.lane.b32.xlu0 %v1725, 32
        %v2624 = vpop.permute.xlu0 %2623
        %2625 = vrot.lane.b32.xlu0 %v1731, 32
        %v2626 = vpop.permute.xlu0 %2625
        %2627 = vrot.lane.b32.xlu0 %v1735, 32
        %v2628 = vpop.permute.xlu0 %2627
        %2629 = vrot.lane.b32.xlu0 %v1741, 32
        %v2630 = vpop.permute.xlu0 %2629
        %2631 = vrot.lane.b32.xlu0 %v1745, 32
        %v2632 = vpop.permute.xlu0 %2631
        %2633 = vrot.lane.b32.xlu0 %v1751, 32
        %v2634 = vpop.permute.xlu0 %2633
        %2635 = vrot.lane.b32.xlu0 %v1755, 32
        %v2636 = vpop.permute.xlu0 %2635
        %v2669 = vpack.c.bf16 %v1605, %v1601
        %v2670 = vpack.c.bf16 %v1615, %v1611
        %v2671 = vpack.c.bf16 %v1625, %v1621
        %v2672 = vpack.c.bf16 %v1635, %v1631
        %v2673 = vpack.c.bf16 %v1645, %v1641
        %v2674 = vpack.c.bf16 %v1655, %v1651
        %v2675 = vpack.c.bf16 %v1665, %v1661
        %v2676 = vpack.c.bf16 %v1675, %v1671
        %v2677 = vpack.c.bf16 %v1685, %v1681
        %v2678 = vpack.c.bf16 %v1695, %v1691
        %v2679 = vpack.c.bf16 %v1705, %v1701
        %v2680 = vpack.c.bf16 %v1715, %v1711
        %v2681 = vpack.c.bf16 %v1725, %v1721
        %v2682 = vpack.c.bf16 %v1735, %v1731
        %v2683 = vpack.c.bf16 %v1745, %v1741
        %v2684 = vpack.c.bf16 %v1755, %v1751
        %v2685 = vpack.c.bf16 %v2384, %v2382
        %v2686 = vpack.c.bf16 %v2388, %v2386
        %v2687 = vpack.c.bf16 %v2392, %v2390
        %v2688 = vpack.c.bf16 %v2396, %v2394
        %v2689 = vpack.c.bf16 %v2400, %v2398
        %v2690 = vpack.c.bf16 %v2404, %v2402
        %v2691 = vpack.c.bf16 %v2408, %v2406
        %v2692 = vpack.c.bf16 %v2412, %v2410
        %v2693 = vpack.c.bf16 %v2416, %v2414
        %v2694 = vpack.c.bf16 %v2420, %v2418
        %v2695 = vpack.c.bf16 %v2424, %v2422
        %v2696 = vpack.c.bf16 %v2428, %v2426
        %v2697 = vpack.c.bf16 %v2432, %v2430
        %v2698 = vpack.c.bf16 %v2436, %v2434
        %v2699 = vpack.c.bf16 %v2440, %v2438
        %v2700 = vpack.c.bf16 %v2444, %v2442
        %v2701 = vpack.c.bf16 %v2480, %v2478
        %v2702 = vpack.c.bf16 %v2484, %v2482
        %v2703 = vpack.c.bf16 %v2488, %v2486
        %v2704 = vpack.c.bf16 %v2492, %v2490
        %v2705 = vpack.c.bf16 %v2496, %v2494
        %v2706 = vpack.c.bf16 %v2500, %v2498
        %v2707 = vpack.c.bf16 %v2504, %v2502
        %v2708 = vpack.c.bf16 %v2508, %v2506
        %v2709 = vpack.c.bf16 %v2512, %v2510
        %v2710 = vpack.c.bf16 %v2516, %v2514
        %v2711 = vpack.c.bf16 %v2520, %v2518
        %v2712 = vpack.c.bf16 %v2524, %v2522
        %v2713 = vpack.c.bf16 %v2528, %v2526
        %v2714 = vpack.c.bf16 %v2532, %v2530
        %v2715 = vpack.c.bf16 %v2536, %v2534
        %v2716 = vpack.c.bf16 %v2540, %v2538
        %v2717 = vpack.c.bf16 %v2576, %v2574
        %v2718 = vpack.c.bf16 %v2580, %v2578
        %v2719 = vpack.c.bf16 %v2584, %v2582
        %v2720 = vpack.c.bf16 %v2588, %v2586
        %v2721 = vpack.c.bf16 %v2592, %v2590
        %v2722 = vpack.c.bf16 %v2596, %v2594
        %v2723 = vpack.c.bf16 %v2600, %v2598
        %v2724 = vpack.c.bf16 %v2604, %v2602
        %v2725 = vpack.c.bf16 %v2608, %v2606
        %v2726 = vpack.c.bf16 %v2612, %v2610
        %v2727 = vpack.c.bf16 %v2616, %v2614
        %v2728 = vpack.c.bf16 %v2620, %v2618
        %v2729 = vpack.c.bf16 %v2624, %v2622
        %v2730 = vpack.c.bf16 %v2628, %v2626
        %v2731 = vpack.c.bf16 %v2632, %v2630
        %v2732 = vpack.c.bf16 %v2636, %v2634
        %vm2733 = vcmask 261120
        %v2735 = vsel %vm2733, %v1933, 0
        %v2738 = vsel %vm2733, %v1934, 0
        %v2741 = vsel %vm2733, %v1935, 0
        %v2744 = vsel %vm2733, %v1936, 0
        %v2747 = vsel %vm2733, %v1937, 0
        %v2750 = vsel %vm2733, %v1938, 0
        %v2753 = vsel %vm2733, %v1939, 0
        %v2756 = vsel %vm2733, %v1940, 0
        %v2759 = vsel %vm2733, %v2285, 0
        %v2762 = vsel %vm2733, %v2286, 0
        %v2765 = vsel %vm2733, %v2287, 0
        %v2768 = vsel %vm2733, %v2288, 0
        %v2771 = vsel %vm2733, %v2289, 0
        %v2774 = vsel %vm2733, %v2290, 0
        %v2777 = vsel %vm2733, %v2291, 0
        %v2780 = vsel %vm2733, %v2292, 0
        %v2783 = vsel %vm2733, %v2293, 0
        %v2786 = vsel %vm2733, %v2294, 0
        %v2789 = vsel %vm2733, %v2295, 0
        %v2792 = vsel %vm2733, %v2296, 0
        %v2795 = vsel %vm2733, %v2297, 0
        %v2798 = vsel %vm2733, %v2298, 0
        %v2801 = vsel %vm2733, %v2299, 0
        %v2804 = vsel %vm2733, %v2300, 0
        %2806 = vmatprep.subr.bf16.mxu0 0
        %2807 = vmatpush1.bf16.xpose.msra.mxu0 %v2759
        %2808 = vmatprep.subr.bf16.mxu0 0
        %2809 = vmatpush1.bf16.xpose.msra.mxu0 %v2762
        %2810 = vmatprep.subr.bf16.mxu0 0
        %2811 = vmatpush1.bf16.xpose.msra.mxu0 %v2765
        %2812 = vmatprep.subr.bf16.mxu0 0
        %2813 = vmatpush1.bf16.xpose.msra.mxu0 %v2768
        %2814 = vmatprep.subr.bf16.mxu0 0
        %2815 = vmatpush1.bf16.xpose.msra.mxu0 %v2771
        %2816 = vmatprep.subr.bf16.mxu0 0
        %2817 = vmatpush1.bf16.xpose.msra.mxu0 %v2774
        %2818 = vmatprep.subr.bf16.mxu0 0
        %2819 = vmatpush1.bf16.xpose.msra.mxu0 %v2777
        %2820 = vmatprep.subr.bf16.mxu0 0
        %2821 = vmatpush1.bf16.xpose.msra.mxu0 %v2780
        %2822 = vmatprep.subr.bf16.mxu0 0
        %2823 = vmatpush1.bf16.xpose.msra.mxu0 %v2783
        %2824 = vmatprep.subr.bf16.mxu0 0
        %2825 = vmatpush1.bf16.xpose.msra.mxu0 %v2786
        %2826 = vmatprep.subr.bf16.mxu0 0
        %2827 = vmatpush1.bf16.xpose.msra.mxu0 %v2789
        %2828 = vmatprep.subr.bf16.mxu0 0
        %2829 = vmatpush1.bf16.xpose.msra.mxu0 %v2792
        %2830 = vmatprep.subr.bf16.mxu0 0
        %2831 = vmatpush1.bf16.xpose.msra.mxu0 %v2795
        %2832 = vmatprep.subr.bf16.mxu0 0
        %2833 = vmatpush1.bf16.xpose.msra.mxu0 %v2798
        %2834 = vmatprep.subr.bf16.mxu0 0
        %2835 = vmatpush1.bf16.xpose.msra.mxu0 %v2801
        %2836 = vmatprep.subr.bf16.mxu0 0
        %2837 = vmatpush1.bf16.xpose.msra.mxu0 %v2804
        %2838 = vmatprep.mubr.bf16.mxu0 0
        %2839 = vmatmul.mubr.bf16.gmra.mrb[0].mxu0 %v2735
        %v2840 = vpop.f32.mrb[0].mxu0
        %v2841 = vadd.f32 0.0, %v2840
        %v2842 = vpop.f32.mrb[0].mxu0
        %v2843 = vadd.f32 0.0, %v2842
        %v2844 = vpop.f32.mrb[0].mxu0
        %v2845 = vadd.f32 0.0, %v2844
        %v2846 = vpop.f32.mrb[0].mxu0
        %v2847 = vadd.f32 0.0, %v2846
        %2848 = vmatprep.mubr.bf16.mxu0 0
        %2849 = vmatmul.mubr.bf16.gmra.mrb[0].mxu0 %v2738
        %v2850 = vpop.f32.mrb[0].mxu0
        %v2851 = vadd.f32 0.0, %v2850
        %v2852 = vpop.f32.mrb[0].mxu0
        %v2853 = vadd.f32 0.0, %v2852
        %v2854 = vpop.f32.mrb[0].mxu0
        %v2855 = vadd.f32 0.0, %v2854
        %v2856 = vpop.f32.mrb[0].mxu0
        %v2857 = vadd.f32 0.0, %v2856
        %2858 = vmatprep.mubr.bf16.mxu0 0
        %2859 = vmatmul.mubr.bf16.gmra.mrb[0].mxu0 %v2741
        %v2860 = vpop.f32.mrb[0].mxu0
        %v2861 = vadd.f32 0.0, %v2860
        %v2862 = vpop.f32.mrb[0].mxu0
        %v2863 = vadd.f32 0.0, %v2862
        %v2864 = vpop.f32.mrb[0].mxu0
        %v2865 = vadd.f32 0.0, %v2864
        %v2866 = vpop.f32.mrb[0].mxu0
        %v2867 = vadd.f32 0.0, %v2866
        %2868 = vmatprep.mubr.bf16.mxu0 0
        %2869 = vmatmul.mubr.bf16.gmra.mrb[0].mxu0 %v2744
        %v2870 = vpop.f32.mrb[0].mxu0
        %v2871 = vadd.f32 0.0, %v2870
        %v2872 = vpop.f32.mrb[0].mxu0
        %v2873 = vadd.f32 0.0, %v2872
        %v2874 = vpop.f32.mrb[0].mxu0
        %v2875 = vadd.f32 0.0, %v2874
        %v2876 = vpop.f32.mrb[0].mxu0
        %v2877 = vadd.f32 0.0, %v2876
        %2878 = vmatprep.mubr.bf16.mxu0 0
        %2879 = vmatmul.mubr.bf16.gmra.mrb[0].mxu0 %v2747
        %v2880 = vpop.f32.mrb[0].mxu0
        %v2881 = vadd.f32 0.0, %v2880
        %v2882 = vpop.f32.mrb[0].mxu0
        %v2883 = vadd.f32 0.0, %v2882
        %v2884 = vpop.f32.mrb[0].mxu0
        %v2885 = vadd.f32 0.0, %v2884
        %v2886 = vpop.f32.mrb[0].mxu0
        %v2887 = vadd.f32 0.0, %v2886
        %2888 = vmatprep.mubr.bf16.mxu0 0
        %2889 = vmatmul.mubr.bf16.gmra.mrb[0].mxu0 %v2750
        %v2890 = vpop.f32.mrb[0].mxu0
        %v2891 = vadd.f32 0.0, %v2890
        %v2892 = vpop.f32.mrb[0].mxu0
        %v2893 = vadd.f32 0.0, %v2892
        %v2894 = vpop.f32.mrb[0].mxu0
        %v2895 = vadd.f32 0.0, %v2894
        %v2896 = vpop.f32.mrb[0].mxu0
        %v2897 = vadd.f32 0.0, %v2896
        %2898 = vmatprep.mubr.bf16.mxu0 0
        %2899 = vmatmul.mubr.bf16.gmra.mrb[0].mxu0 %v2753
        %v2900 = vpop.f32.mrb[0].mxu0
        %v2901 = vadd.f32 0.0, %v2900
        %v2902 = vpop.f32.mrb[0].mxu0
        %v2903 = vadd.f32 0.0, %v2902
        %v2904 = vpop.f32.mrb[0].mxu0
        %v2905 = vadd.f32 0.0, %v2904
        %v2906 = vpop.f32.mrb[0].mxu0
        %v2907 = vadd.f32 0.0, %v2906
        %2908 = vmatprep.mubr.bf16.mxu0 0
        %2909 = vmatmul.mubr.bf16.gmra.mrb[0].mxu0 %v2756
        %v2910 = vpop.f32.mrb[0].mxu0
        %v2911 = vadd.f32 0.0, %v2910
        %v2912 = vpop.f32.mrb[0].mxu0
        %v2913 = vadd.f32 0.0, %v2912
        %v2914 = vpop.f32.mrb[0].mxu0
        %v2915 = vadd.f32 0.0, %v2914
        %v2916 = vpop.f32.mrb[0].mxu0
        %v2917 = vadd.f32 0.0, %v2916
        %2918 = vdwg.mxu0
        %v2920 = vsel %vm2733, %v1941, 0
        %v2923 = vsel %vm2733, %v1942, 0
        %v2926 = vsel %vm2733, %v1943, 0
        %v2929 = vsel %vm2733, %v1944, 0
        %v2932 = vsel %vm2733, %v1945, 0
        %v2935 = vsel %vm2733, %v1946, 0
        %v2938 = vsel %vm2733, %v1947, 0
        %v2941 = vsel %vm2733, %v1948, 0
        %v2944 = vsel %vm2733, %v2301, 0
        %v2947 = vsel %vm2733, %v2302, 0
        %v2950 = vsel %vm2733, %v2303, 0
        %v2953 = vsel %vm2733, %v2304, 0
        %v2956 = vsel %vm2733, %v2305, 0
        %v2959 = vsel %vm2733, %v2306, 0
        %v2962 = vsel %vm2733, %v2307, 0
        %v2965 = vsel %vm2733, %v2308, 0
        %v2968 = vsel %vm2733, %v2309, 0
        %v2971 = vsel %vm2733, %v2310, 0
        %v2974 = vsel %vm2733, %v2311, 0
        %v2977 = vsel %vm2733, %v2312, 0
        %v2980 = vsel %vm2733, %v2313, 0
        %v2983 = vsel %vm2733, %v2314, 0
        %v2986 = vsel %vm2733, %v2315, 0
        %v2989 = vsel %vm2733, %v2316, 0
        %2991 = vmatprep.subr.bf16.mxu0 0
        %2992 = vmatpush1.bf16.xpose.msra.mxu0 %v2944
        %2993 = vmatprep.subr.bf16.mxu0 0
        %2994 = vmatpush1.bf16.xpose.msra.mxu0 %v2947
        %2995 = vmatprep.subr.bf16.mxu0 0
        %2996 = vmatpush1.bf16.xpose.msra.mxu0 %v2950
        %2997 = vmatprep.subr.bf16.mxu0 0
        %2998 = vmatpush1.bf16.xpose.msra.mxu0 %v2953
        %2999 = vmatprep.subr.bf16.mxu0 0
        %3000 = vmatpush1.bf16.xpose.msra.mxu0 %v2956
        %3001 = vmatprep.subr.bf16.mxu0 0
        %3002 = vmatpush1.bf16.xpose.msra.mxu0 %v2959
        %3003 = vmatprep.subr.bf16.mxu0 0
        %3004 = vmatpush1.bf16.xpose.msra.mxu0 %v2962
        %3005 = vmatprep.subr.bf16.mxu0 0
        %3006 = vmatpush1.bf16.xpose.msra.mxu0 %v2965
        %3007 = vmatprep.subr.bf16.mxu0 0
        %3008 = vmatpush1.bf16.xpose.msra.mxu0 %v2968
        %3009 = vmatprep.subr.bf16.mxu0 0
        %3010 = vmatpush1.bf16.xpose.msra.mxu0 %v2971
        %3011 = vmatprep.subr.bf16.mxu0 0
        %3012 = vmatpush1.bf16.xpose.msra.mxu0 %v2974
        %3013 = vmatprep.subr.bf16.mxu0 0
        %3014 = vmatpush1.bf16.xpose.msra.mxu0 %v2977
        %3015 = vmatprep.subr.bf16.mxu0 0
        %3016 = vmatpush1.bf16.xpose.msra.mxu0 %v2980
        %3017 = vmatprep.subr.bf16.mxu0 0
        %3018 = vmatpush1.bf16.xpose.msra.mxu0 %v2983
        %3019 = vmatprep.subr.bf16.mxu0 0
        %3020 = vmatpush1.bf16.xpose.msra.mxu0 %v2986
        %3021 = vmatprep.subr.bf16.mxu0 0
        %3022 = vmatpush1.bf16.xpose.msra.mxu0 %v2989
        %3023 = vmatprep.mubr.bf16.mxu0 0
        %3024 = vmatmul.mubr.bf16.gmra.mrb[0].mxu0 %v2920
        %v3025 = vpop.f32.mrb[0].mxu0
        %v3026 = vadd.f32 0.0, %v3025
        %v3027 = vpop.f32.mrb[0].mxu0
        %v3028 = vadd.f32 0.0, %v3027
        %v3029 = vpop.f32.mrb[0].mxu0
        %v3030 = vadd.f32 0.0, %v3029
        %v3031 = vpop.f32.mrb[0].mxu0
        %v3032 = vadd.f32 0.0, %v3031
        %3033 = vmatprep.mubr.bf16.mxu0 0
        %3034 = vmatmul.mubr.bf16.gmra.mrb[0].mxu0 %v2923
        %v3035 = vpop.f32.mrb[0].mxu0
        %v3036 = vadd.f32 0.0, %v3035
        %v3037 = vpop.f32.mrb[0].mxu0
        %v3038 = vadd.f32 0.0, %v3037
        %v3039 = vpop.f32.mrb[0].mxu0
        %v3040 = vadd.f32 0.0, %v3039
        %v3041 = vpop.f32.mrb[0].mxu0
        %v3042 = vadd.f32 0.0, %v3041
        %3043 = vmatprep.mubr.bf16.mxu0 0
        %3044 = vmatmul.mubr.bf16.gmra.mrb[0].mxu0 %v2926
        %v3045 = vpop.f32.mrb[0].mxu0
        %v3046 = vadd.f32 0.0, %v3045
        %v3047 = vpop.f32.mrb[0].mxu0
        %v3048 = vadd.f32 0.0, %v3047
        %v3049 = vpop.f32.mrb[0].mxu0
        %v3050 = vadd.f32 0.0, %v3049
        %v3051 = vpop.f32.mrb[0].mxu0
        %v3052 = vadd.f32 0.0, %v3051
        %3053 = vmatprep.mubr.bf16.mxu0 0
        %3054 = vmatmul.mubr.bf16.gmra.mrb[0].mxu0 %v2929
        %v3055 = vpop.f32.mrb[0].mxu0
        %v3056 = vadd.f32 0.0, %v3055
        %v3057 = vpop.f32.mrb[0].mxu0
        %v3058 = vadd.f32 0.0, %v3057
        %v3059 = vpop.f32.mrb[0].mxu0
        %v3060 = vadd.f32 0.0, %v3059
        %v3061 = vpop.f32.mrb[0].mxu0
        %v3062 = vadd.f32 0.0, %v3061
        %3063 = vmatprep.mubr.bf16.mxu0 0
        %3064 = vmatmul.mubr.bf16.gmra.mrb[0].mxu0 %v2932
        %v3065 = vpop.f32.mrb[0].mxu0
        %v3066 = vadd.f32 0.0, %v3065
        %v3067 = vpop.f32.mrb[0].mxu0
        %v3068 = vadd.f32 0.0, %v3067
        %v3069 = vpop.f32.mrb[0].mxu0
        %v3070 = vadd.f32 0.0, %v3069
        %v3071 = vpop.f32.mrb[0].mxu0
        %v3072 = vadd.f32 0.0, %v3071
        %3073 = vmatprep.mubr.bf16.mxu0 0
        %3074 = vmatmul.mubr.bf16.gmra.mrb[0].mxu0 %v2935
        %v3075 = vpop.f32.mrb[0].mxu0
        %v3076 = vadd.f32 0.0, %v3075
        %v3077 = vpop.f32.mrb[0].mxu0
        %v3078 = vadd.f32 0.0, %v3077
        %v3079 = vpop.f32.mrb[0].mxu0
        %v3080 = vadd.f32 0.0, %v3079
        %v3081 = vpop.f32.mrb[0].mxu0
        %v3082 = vadd.f32 0.0, %v3081
        %3083 = vmatprep.mubr.bf16.mxu0 0
        %3084 = vmatmul.mubr.bf16.gmra.mrb[0].mxu0 %v2938
        %v3085 = vpop.f32.mrb[0].mxu0
        %v3086 = vadd.f32 0.0, %v3085
        %v3087 = vpop.f32.mrb[0].mxu0
        %v3088 = vadd.f32 0.0, %v3087
        %v3089 = vpop.f32.mrb[0].mxu0
        %v3090 = vadd.f32 0.0, %v3089
        %v3091 = vpop.f32.mrb[0].mxu0
        %v3092 = vadd.f32 0.0, %v3091
        %3093 = vmatprep.mubr.bf16.mxu0 0
        %3094 = vmatmul.mubr.bf16.gmra.mrb[0].mxu0 %v2941
        %v3095 = vpop.f32.mrb[0].mxu0
        %v3096 = vadd.f32 0.0, %v3095
        %v3097 = vpop.f32.mrb[0].mxu0
        %v3098 = vadd.f32 0.0, %v3097
        %v3099 = vpop.f32.mrb[0].mxu0
        %v3100 = vadd.f32 0.0, %v3099
        %v3101 = vpop.f32.mrb[0].mxu0
        %v3102 = vadd.f32 0.0, %v3101
        %3103 = vdwg.mxu0
        %v3105 = vsel %vm2733, %v1949, 0
        %v3108 = vsel %vm2733, %v1950, 0
        %v3111 = vsel %vm2733, %v1951, 0
        %v3114 = vsel %vm2733, %v1952, 0
        %v3117 = vsel %vm2733, %v1953, 0
        %v3120 = vsel %vm2733, %v1954, 0
        %v3123 = vsel %vm2733, %v1955, 0
        %v3126 = vsel %vm2733, %v1956, 0
        %v3129 = vsel %vm2733, %v2317, 0
        %v3132 = vsel %vm2733, %v2318, 0
        %v3135 = vsel %vm2733, %v2319, 0
        %v3138 = vsel %vm2733, %v2320, 0
        %v3141 = vsel %vm2733, %v2321, 0
        %v3144 = vsel %vm2733, %v2322, 0
        %v3147 = vsel %vm2733, %v2323, 0
        %v3150 = vsel %vm2733, %v2324, 0
        %v3153 = vsel %vm2733, %v2325, 0
        %v3156 = vsel %vm2733, %v2326, 0
        %v3159 = vsel %vm2733, %v2327, 0
        %v3162 = vsel %vm2733, %v2328, 0
        %v3165 = vsel %vm2733, %v2329, 0
        %v3168 = vsel %vm2733, %v2330, 0
        %v3171 = vsel %vm2733, %v2331, 0
        %v3174 = vsel %vm2733, %v2332, 0
        %3176 = vmatprep.subr.bf16.mxu0 0
        %3177 = vmatpush1.bf16.xpose.msra.mxu0 %v3129
        %3178 = vmatprep.subr.bf16.mxu0 0
        %3179 = vmatpush1.bf16.xpose.msra.mxu0 %v3132
        %3180 = vmatprep.subr.bf16.mxu0 0
        %3181 = vmatpush1.bf16.xpose.msra.mxu0 %v3135
        %3182 = vmatprep.subr.bf16.mxu0 0
        %3183 = vmatpush1.bf16.xpose.msra.mxu0 %v3138
        %3184 = vmatprep.subr.bf16.mxu0 0
        %3185 = vmatpush1.bf16.xpose.msra.mxu0 %v3141
        %3186 = vmatprep.subr.bf16.mxu0 0
        %3187 = vmatpush1.bf16.xpose.msra.mxu0 %v3144
        %3188 = vmatprep.subr.bf16.mxu0 0
        %3189 = vmatpush1.bf16.xpose.msra.mxu0 %v3147
        %3190 = vmatprep.subr.bf16.mxu0 0
        %3191 = vmatpush1.bf16.xpose.msra.mxu0 %v3150
        %3192 = vmatprep.subr.bf16.mxu0 0
        %3193 = vmatpush1.bf16.xpose.msra.mxu0 %v3153
        %3194 = vmatprep.subr.bf16.mxu0 0
        %3195 = vmatpush1.bf16.xpose.msra.mxu0 %v3156
        %3196 = vmatprep.subr.bf16.mxu0 0
        %3197 = vmatpush1.bf16.xpose.msra.mxu0 %v3159
        %3198 = vmatprep.subr.bf16.mxu0 0
        %3199 = vmatpush1.bf16.xpose.msra.mxu0 %v3162
        %3200 = vmatprep.subr.bf16.mxu0 0
        %3201 = vmatpush1.bf16.xpose.msra.mxu0 %v3165
        %3202 = vmatprep.subr.bf16.mxu0 0
        %3203 = vmatpush1.bf16.xpose.msra.mxu0 %v3168
        %3204 = vmatprep.subr.bf16.mxu0 0
        %3205 = vmatpush1.bf16.xpose.msra.mxu0 %v3171
        %3206 = vmatprep.subr.bf16.mxu0 0
        %3207 = vmatpush1.bf16.xpose.msra.mxu0 %v3174
        %3208 = vmatprep.mubr.bf16.mxu0 0
        %3209 = vmatmul.mubr.bf16.gmra.mrb[0].mxu0 %v3105
        %v3210 = vpop.f32.mrb[0].mxu0
        %v3211 = vadd.f32 0.0, %v3210
        %v3212 = vpop.f32.mrb[0].mxu0
        %v3213 = vadd.f32 0.0, %v3212
        %v3214 = vpop.f32.mrb[0].mxu0
        %v3215 = vadd.f32 0.0, %v3214
        %v3216 = vpop.f32.mrb[0].mxu0
        %v3217 = vadd.f32 0.0, %v3216
        %3218 = vmatprep.mubr.bf16.mxu0 0
        %3219 = vmatmul.mubr.bf16.gmra.mrb[0].mxu0 %v3108
        %v3220 = vpop.f32.mrb[0].mxu0
        %v3221 = vadd.f32 0.0, %v3220
        %v3222 = vpop.f32.mrb[0].mxu0
        %v3223 = vadd.f32 0.0, %v3222
        %v3224 = vpop.f32.mrb[0].mxu0
        %v3225 = vadd.f32 0.0, %v3224
        %v3226 = vpop.f32.mrb[0].mxu0
        %v3227 = vadd.f32 0.0, %v3226
        %3228 = vmatprep.mubr.bf16.mxu0 0
        %3229 = vmatmul.mubr.bf16.gmra.mrb[0].mxu0 %v3111
        %v3230 = vpop.f32.mrb[0].mxu0
        %v3231 = vadd.f32 0.0, %v3230
        %v3232 = vpop.f32.mrb[0].mxu0
        %v3233 = vadd.f32 0.0, %v3232
        %v3234 = vpop.f32.mrb[0].mxu0
        %v3235 = vadd.f32 0.0, %v3234
        %v3236 = vpop.f32.mrb[0].mxu0
        %v3237 = vadd.f32 0.0, %v3236
        %3238 = vmatprep.mubr.bf16.mxu0 0
        %3239 = vmatmul.mubr.bf16.gmra.mrb[0].mxu0 %v3114
        %v3240 = vpop.f32.mrb[0].mxu0
        %v3241 = vadd.f32 0.0, %v3240
        %v3242 = vpop.f32.mrb[0].mxu0
        %v3243 = vadd.f32 0.0, %v3242
        %v3244 = vpop.f32.mrb[0].mxu0
        %v3245 = vadd.f32 0.0, %v3244
        %v3246 = vpop.f32.mrb[0].mxu0
        %v3247 = vadd.f32 0.0, %v3246
        %3248 = vmatprep.mubr.bf16.mxu0 0
        %3249 = vmatmul.mubr.bf16.gmra.mrb[0].mxu0 %v3117
        %v3250 = vpop.f32.mrb[0].mxu0
        %v3251 = vadd.f32 0.0, %v3250
        %v3252 = vpop.f32.mrb[0].mxu0
        %v3253 = vadd.f32 0.0, %v3252
        %v3254 = vpop.f32.mrb[0].mxu0
        %v3255 = vadd.f32 0.0, %v3254
        %v3256 = vpop.f32.mrb[0].mxu0
        %v3257 = vadd.f32 0.0, %v3256
        %3258 = vmatprep.mubr.bf16.mxu0 0
        %3259 = vmatmul.mubr.bf16.gmra.mrb[0].mxu0 %v3120
        %v3260 = vpop.f32.mrb[0].mxu0
        %v3261 = vadd.f32 0.0, %v3260
        %v3262 = vpop.f32.mrb[0].mxu0
        %v3263 = vadd.f32 0.0, %v3262
        %v3264 = vpop.f32.mrb[0].mxu0
        %v3265 = vadd.f32 0.0, %v3264
        %v3266 = vpop.f32.mrb[0].mxu0
        %v3267 = vadd.f32 0.0, %v3266
        %3268 = vmatprep.mubr.bf16.mxu0 0
        %3269 = vmatmul.mubr.bf16.gmra.mrb[0].mxu0 %v3123
        %v3270 = vpop.f32.mrb[0].mxu0
        %v3271 = vadd.f32 0.0, %v3270
        %v3272 = vpop.f32.mrb[0].mxu0
        %v3273 = vadd.f32 0.0, %v3272
        %v3274 = vpop.f32.mrb[0].mxu0
        %v3275 = vadd.f32 0.0, %v3274
        %v3276 = vpop.f32.mrb[0].mxu0
        %v3277 = vadd.f32 0.0, %v3276
        %3278 = vmatprep.mubr.bf16.mxu0 0
        %3279 = vmatmul.mubr.bf16.gmra.mrb[0].mxu0 %v3126
        %v3280 = vpop.f32.mrb[0].mxu0
        %v3281 = vadd.f32 0.0, %v3280
        %v3282 = vpop.f32.mrb[0].mxu0
        %v3283 = vadd.f32 0.0, %v3282
        %v3284 = vpop.f32.mrb[0].mxu0
        %v3285 = vadd.f32 0.0, %v3284
        %v3286 = vpop.f32.mrb[0].mxu0
        %v3287 = vadd.f32 0.0, %v3286
        %3288 = vdwg.mxu0
        %v3290 = vsel %vm2733, %v1957, 0
        %v3293 = vsel %vm2733, %v1958, 0
        %v3296 = vsel %vm2733, %v1959, 0
        %v3299 = vsel %vm2733, %v1960, 0
        %v3302 = vsel %vm2733, %v1961, 0
        %v3305 = vsel %vm2733, %v1962, 0
        %v3308 = vsel %vm2733, %v1963, 0
        %v3311 = vsel %vm2733, %v1964, 0
        %v3314 = vsel %vm2733, %v2333, 0
        %v3317 = vsel %vm2733, %v2334, 0
        %v3320 = vsel %vm2733, %v2335, 0
        %v3323 = vsel %vm2733, %v2336, 0
        %v3326 = vsel %vm2733, %v2337, 0
        %v3329 = vsel %vm2733, %v2338, 0
        %v3332 = vsel %vm2733, %v2339, 0
        %v3335 = vsel %vm2733, %v2340, 0
        %v3338 = vsel %vm2733, %v2341, 0
        %v3341 = vsel %vm2733, %v2342, 0
        %v3344 = vsel %vm2733, %v2343, 0
        %v3347 = vsel %vm2733, %v2344, 0
        %v3350 = vsel %vm2733, %v2345, 0
        %v3353 = vsel %vm2733, %v2346, 0
        %v3356 = vsel %vm2733, %v2347, 0
        %v3359 = vsel %vm2733, %v2348, 0
        %3361 = vmatprep.subr.bf16.mxu0 0
        %3362 = vmatpush1.bf16.xpose.msra.mxu0 %v3314
        %3363 = vmatprep.subr.bf16.mxu0 0
        %3364 = vmatpush1.bf16.xpose.msra.mxu0 %v3317
        %3365 = vmatprep.subr.bf16.mxu0 0
        %3366 = vmatpush1.bf16.xpose.msra.mxu0 %v3320
        %3367 = vmatprep.subr.bf16.mxu0 0
        %3368 = vmatpush1.bf16.xpose.msra.mxu0 %v3323
        %3369 = vmatprep.subr.bf16.mxu0 0
        %3370 = vmatpush1.bf16.xpose.msra.mxu0 %v3326
        %3371 = vmatprep.subr.bf16.mxu0 0
        %3372 = vmatpush1.bf16.xpose.msra.mxu0 %v3329
        %3373 = vmatprep.subr.bf16.mxu0 0
        %3374 = vmatpush1.bf16.xpose.msra.mxu0 %v3332
        %3375 = vmatprep.subr.bf16.mxu0 0
        %3376 = vmatpush1.bf16.xpose.msra.mxu0 %v3335
        %3377 = vmatprep.subr.bf16.mxu0 0
        %3378 = vmatpush1.bf16.xpose.msra.mxu0 %v3338
        %3379 = vmatprep.subr.bf16.mxu0 0
        %3380 = vmatpush1.bf16.xpose.msra.mxu0 %v3341
        %3381 = vmatprep.subr.bf16.mxu0 0
        %3382 = vmatpush1.bf16.xpose.msra.mxu0 %v3344
        %3383 = vmatprep.subr.bf16.mxu0 0
        %3384 = vmatpush1.bf16.xpose.msra.mxu0 %v3347
        %3385 = vmatprep.subr.bf16.mxu0 0
        %3386 = vmatpush1.bf16.xpose.msra.mxu0 %v3350
        %3387 = vmatprep.subr.bf16.mxu0 0
        %3388 = vmatpush1.bf16.xpose.msra.mxu0 %v3353
        %3389 = vmatprep.subr.bf16.mxu0 0
        %3390 = vmatpush1.bf16.xpose.msra.mxu0 %v3356
        %3391 = vmatprep.subr.bf16.mxu0 0
        %3392 = vmatpush1.bf16.xpose.msra.mxu0 %v3359
        %3393 = vmatprep.mubr.bf16.mxu0 0
        %3394 = vmatmul.mubr.bf16.gmra.mrb[0].mxu0 %v3290
        %v3395 = vpop.f32.mrb[0].mxu0
        %v3396 = vadd.f32 0.0, %v3395
        %v3397 = vpop.f32.mrb[0].mxu0
        %v3398 = vadd.f32 0.0, %v3397
        %v3399 = vpop.f32.mrb[0].mxu0
        %v3400 = vadd.f32 0.0, %v3399
        %v3401 = vpop.f32.mrb[0].mxu0
        %v3402 = vadd.f32 0.0, %v3401
        %3403 = vmatprep.mubr.bf16.mxu0 0
        %3404 = vmatmul.mubr.bf16.gmra.mrb[0].mxu0 %v3293
        %v3405 = vpop.f32.mrb[0].mxu0
        %v3406 = vadd.f32 0.0, %v3405
        %v3407 = vpop.f32.mrb[0].mxu0
        %v3408 = vadd.f32 0.0, %v3407
        %v3409 = vpop.f32.mrb[0].mxu0
        %v3410 = vadd.f32 0.0, %v3409
        %v3411 = vpop.f32.mrb[0].mxu0
        %v3412 = vadd.f32 0.0, %v3411
        %3413 = vmatprep.mubr.bf16.mxu0 0
        %3414 = vmatmul.mubr.bf16.gmra.mrb[0].mxu0 %v3296
        %v3415 = vpop.f32.mrb[0].mxu0
        %v3416 = vadd.f32 0.0, %v3415
        %v3417 = vpop.f32.mrb[0].mxu0
        %v3418 = vadd.f32 0.0, %v3417
        %v3419 = vpop.f32.mrb[0].mxu0
        %v3420 = vadd.f32 0.0, %v3419
        %v3421 = vpop.f32.mrb[0].mxu0
        %v3422 = vadd.f32 0.0, %v3421
        %3423 = vmatprep.mubr.bf16.mxu0 0
        %3424 = vmatmul.mubr.bf16.gmra.mrb[0].mxu0 %v3299
        %v3425 = vpop.f32.mrb[0].mxu0
        %v3426 = vadd.f32 0.0, %v3425
        %v3427 = vpop.f32.mrb[0].mxu0
        %v3428 = vadd.f32 0.0, %v3427
        %v3429 = vpop.f32.mrb[0].mxu0
        %v3430 = vadd.f32 0.0, %v3429
        %v3431 = vpop.f32.mrb[0].mxu0
        %v3432 = vadd.f32 0.0, %v3431
        %3433 = vmatprep.mubr.bf16.mxu0 0
        %3434 = vmatmul.mubr.bf16.gmra.mrb[0].mxu0 %v3302
        %v3435 = vpop.f32.mrb[0].mxu0
        %v3436 = vadd.f32 0.0, %v3435
        %v3437 = vpop.f32.mrb[0].mxu0
        %v3438 = vadd.f32 0.0, %v3437
        %v3439 = vpop.f32.mrb[0].mxu0
        %v3440 = vadd.f32 0.0, %v3439
        %v3441 = vpop.f32.mrb[0].mxu0
        %v3442 = vadd.f32 0.0, %v3441
        %3443 = vmatprep.mubr.bf16.mxu0 0
        %3444 = vmatmul.mubr.bf16.gmra.mrb[0].mxu0 %v3305
        %v3445 = vpop.f32.mrb[0].mxu0
        %v3446 = vadd.f32 0.0, %v3445
        %v3447 = vpop.f32.mrb[0].mxu0
        %v3448 = vadd.f32 0.0, %v3447
        %v3449 = vpop.f32.mrb[0].mxu0
        %v3450 = vadd.f32 0.0, %v3449
        %v3451 = vpop.f32.mrb[0].mxu0
        %v3452 = vadd.f32 0.0, %v3451
        %3453 = vmatprep.mubr.bf16.mxu0 0
        %3454 = vmatmul.mubr.bf16.gmra.mrb[0].mxu0 %v3308
        %v3455 = vpop.f32.mrb[0].mxu0
        %v3456 = vadd.f32 0.0, %v3455
        %v3457 = vpop.f32.mrb[0].mxu0
        %v3458 = vadd.f32 0.0, %v3457
        %v3459 = vpop.f32.mrb[0].mxu0
        %v3460 = vadd.f32 0.0, %v3459
        %v3461 = vpop.f32.mrb[0].mxu0
        %v3462 = vadd.f32 0.0, %v3461
        %3463 = vmatprep.mubr.bf16.mxu0 0
        %3464 = vmatmul.mubr.bf16.gmra.mrb[0].mxu0 %v3311
        %v3465 = vpop.f32.mrb[0].mxu0
        %v3466 = vadd.f32 0.0, %v3465
        %v3467 = vpop.f32.mrb[0].mxu0
        %v3468 = vadd.f32 0.0, %v3467
        %v3469 = vpop.f32.mrb[0].mxu0
        %v3470 = vadd.f32 0.0, %v3469
        %v3471 = vpop.f32.mrb[0].mxu0
        %v3472 = vadd.f32 0.0, %v3471
        %3473 = vdwg.mxu0
        %v3474 = vlaneseq
        %v3475 = vshrl.u32 %v3474, 7
        %v3476 = vadd.s32 %v3475, 8
        %v3477 = vadd.s32 %v3475, 16
        %v3478 = vadd.s32 %v3475, 24
        %v3479 = vadd.s32 %v3475, 32
        %v3480 = vadd.s32 %v3475, 40
        %v3481 = vadd.s32 %v3475, 48
        %v3482 = vadd.s32 %v3475, 56
        %v3483 = vadd.s32 %v3475, 64
        %v3484 = vadd.s32 %v3475, 72
        %v3485 = vadd.s32 %v3475, 80
        %v3486 = vadd.s32 %v3475, 88
        %v3487 = vadd.s32 %v3475, 96
        %v3488 = vadd.s32 %v3475, 104
        %v3489 = vadd.s32 %v3475, 112
        %v3490 = vadd.s32 %v3475, 120
        %v3491 = vstv %s575
        %v3492 = vadd.s32 %v3491, %v3475
        %v3493 = vadd.s32 %v3491, %v3476
        %v3494 = vadd.s32 %v3491, %v3477
        %v3495 = vadd.s32 %v3491, %v3478
        %v3496 = vadd.s32 %v3491, %v3479
        %v3497 = vadd.s32 %v3491, %v3480
        %v3498 = vadd.s32 %v3491, %v3481
        %v3499 = vadd.s32 %v3491, %v3482
        %v3500 = vadd.s32 %v3491, %v3483
        %v3501 = vadd.s32 %v3491, %v3484
        %v3502 = vadd.s32 %v3491, %v3485
        %v3503 = vadd.s32 %v3491, %v3486
        %v3504 = vadd.s32 %v3491, %v3487
        %v3505 = vadd.s32 %v3491, %v3488
        %v3506 = vadd.s32 %v3491, %v3489
        %v3507 = vadd.s32 %v3491, %v3490
        %v3508 = vlaneseq
        %v3509 = vand.u32 %v3508, 127
        %v3510 = vadd.s32 %v3509, 128
        %vm3511 = vcmp.ge.s32.totalorder %v3492, %v3509
        %vm3512 = vcmp.ge.s32.totalorder %v3492, %v3510
        %vm3513 = vcmp.ge.s32.totalorder %v3493, %v3509
        %vm3514 = vcmp.ge.s32.totalorder %v3493, %v3510
        %vm3515 = vcmp.ge.s32.totalorder %v3494, %v3509
        %vm3516 = vcmp.ge.s32.totalorder %v3494, %v3510
        %vm3517 = vcmp.ge.s32.totalorder %v3495, %v3509
        %vm3518 = vcmp.ge.s32.totalorder %v3495, %v3510
        %vm3519 = vcmp.ge.s32.totalorder %v3496, %v3509
        %vm3520 = vcmp.ge.s32.totalorder %v3496, %v3510
        %vm3521 = vcmp.ge.s32.totalorder %v3497, %v3509
        %vm3522 = vcmp.ge.s32.totalorder %v3497, %v3510
        %vm3523 = vcmp.ge.s32.totalorder %v3498, %v3509
        %vm3524 = vcmp.ge.s32.totalorder %v3498, %v3510
        %vm3525 = vcmp.ge.s32.totalorder %v3499, %v3509
        %vm3526 = vcmp.ge.s32.totalorder %v3499, %v3510
        %vm3527 = vcmp.ge.s32.totalorder %v3500, %v3509
        %vm3528 = vcmp.ge.s32.totalorder %v3500, %v3510
        %vm3529 = vcmp.ge.s32.totalorder %v3501, %v3509
        %vm3530 = vcmp.ge.s32.totalorder %v3501, %v3510
        %vm3531 = vcmp.ge.s32.totalorder %v3502, %v3509
        %vm3532 = vcmp.ge.s32.totalorder %v3502, %v3510
        %vm3533 = vcmp.ge.s32.totalorder %v3503, %v3509
        %vm3534 = vcmp.ge.s32.totalorder %v3503, %v3510
        %vm3535 = vcmp.ge.s32.totalorder %v3504, %v3509
        %vm3536 = vcmp.ge.s32.totalorder %v3504, %v3510
        %vm3537 = vcmp.ge.s32.totalorder %v3505, %v3509
        %vm3538 = vcmp.ge.s32.totalorder %v3505, %v3510
        %vm3539 = vcmp.ge.s32.totalorder %v3506, %v3509
        %vm3540 = vcmp.ge.s32.totalorder %v3506, %v3510
        %vm3541 = vcmp.ge.s32.totalorder %v3507, %v3509
        %vm3542 = vcmp.ge.s32.totalorder %v3507, %v3510
        %v3543 = vsel %vm3511, %v2841, -1e+30
        %v3544 = vsel %vm3512, %v2843, -1e+30
        %v3545 = vsel %vm3513, %v2845, -1e+30
        %v3546 = vsel %vm3514, %v2847, -1e+30
        %v3547 = vsel %vm3515, %v2851, -1e+30
        %v3548 = vsel %vm3516, %v2853, -1e+30
        %v3549 = vsel %vm3517, %v2855, -1e+30
        %v3550 = vsel %vm3518, %v2857, -1e+30
        %v3551 = vsel %vm3519, %v2861, -1e+30
        %v3552 = vsel %vm3520, %v2863, -1e+30
        %v3553 = vsel %vm3521, %v2865, -1e+30
        %v3554 = vsel %vm3522, %v2867, -1e+30
        %v3555 = vsel %vm3523, %v2871, -1e+30
        %v3556 = vsel %vm3524, %v2873, -1e+30
        %v3557 = vsel %vm3525, %v2875, -1e+30
        %v3558 = vsel %vm3526, %v2877, -1e+30
        %v3559 = vsel %vm3527, %v2881, -1e+30
        %v3560 = vsel %vm3528, %v2883, -1e+30
        %v3561 = vsel %vm3529, %v2885, -1e+30
        %v3562 = vsel %vm3530, %v2887, -1e+30
        %v3563 = vsel %vm3531, %v2891, -1e+30
        %v3564 = vsel %vm3532, %v2893, -1e+30
        %v3565 = vsel %vm3533, %v2895, -1e+30
        %v3566 = vsel %vm3534, %v2897, -1e+30
        %v3567 = vsel %vm3535, %v2901, -1e+30
        %v3568 = vsel %vm3536, %v2903, -1e+30
        %v3569 = vsel %vm3537, %v2905, -1e+30
        %v3570 = vsel %vm3538, %v2907, -1e+30
        %v3571 = vsel %vm3539, %v2911, -1e+30
        %v3572 = vsel %vm3540, %v2913, -1e+30
        %v3573 = vsel %vm3541, %v2915, -1e+30
        %v3574 = vsel %vm3542, %v2917, -1e+30
        %v3575 = vsel %vm3511, %v3026, -1e+30
        %v3576 = vsel %vm3512, %v3028, -1e+30
        %v3577 = vsel %vm3513, %v3030, -1e+30
        %v3578 = vsel %vm3514, %v3032, -1e+30
        %v3579 = vsel %vm3515, %v3036, -1e+30
        %v3580 = vsel %vm3516, %v3038, -1e+30
        %v3581 = vsel %vm3517, %v3040, -1e+30
        %v3582 = vsel %vm3518, %v3042, -1e+30
        %v3583 = vsel %vm3519, %v3046, -1e+30
        %v3584 = vsel %vm3520, %v3048, -1e+30
        %v3585 = vsel %vm3521, %v3050, -1e+30
        %v3586 = vsel %vm3522, %v3052, -1e+30
        %v3587 = vsel %vm3523, %v3056, -1e+30
        %v3588 = vsel %vm3524, %v3058, -1e+30
        %v3589 = vsel %vm3525, %v3060, -1e+30
        %v3590 = vsel %vm3526, %v3062, -1e+30
        %v3591 = vsel %vm3527, %v3066, -1e+30
        %v3592 = vsel %vm3528, %v3068, -1e+30
        %v3593 = vsel %vm3529, %v3070, -1e+30
        %v3594 = vsel %vm3530, %v3072, -1e+30
        %v3595 = vsel %vm3531, %v3076, -1e+30
        %v3596 = vsel %vm3532, %v3078, -1e+30
        %v3597 = vsel %vm3533, %v3080, -1e+30
        %v3598 = vsel %vm3534, %v3082, -1e+30
        %v3599 = vsel %vm3535, %v3086, -1e+30
        %v3600 = vsel %vm3536, %v3088, -1e+30
        %v3601 = vsel %vm3537, %v3090, -1e+30
        %v3602 = vsel %vm3538, %v3092, -1e+30
        %v3603 = vsel %vm3539, %v3096, -1e+30
        %v3604 = vsel %vm3540, %v3098, -1e+30
        %v3605 = vsel %vm3541, %v3100, -1e+30
        %v3606 = vsel %vm3542, %v3102, -1e+30
        %v3607 = vsel %vm3511, %v3211, -1e+30
        %v3608 = vsel %vm3512, %v3213, -1e+30
        %v3609 = vsel %vm3513, %v3215, -1e+30
        %v3610 = vsel %vm3514, %v3217, -1e+30
        %v3611 = vsel %vm3515, %v3221, -1e+30
        %v3612 = vsel %vm3516, %v3223, -1e+30
        %v3613 = vsel %vm3517, %v3225, -1e+30
        %v3614 = vsel %vm3518, %v3227, -1e+30
        %v3615 = vsel %vm3519, %v3231, -1e+30
        %v3616 = vsel %vm3520, %v3233, -1e+30
        %v3617 = vsel %vm3521, %v3235, -1e+30
        %v3618 = vsel %vm3522, %v3237, -1e+30
        %v3619 = vsel %vm3523, %v3241, -1e+30
        %v3620 = vsel %vm3524, %v3243, -1e+30
        %v3621 = vsel %vm3525, %v3245, -1e+30
        %v3622 = vsel %vm3526, %v3247, -1e+30
        %v3623 = vsel %vm3527, %v3251, -1e+30
        %v3624 = vsel %vm3528, %v3253, -1e+30
        %v3625 = vsel %vm3529, %v3255, -1e+30
        %v3626 = vsel %vm3530, %v3257, -1e+30
        %v3627 = vsel %vm3531, %v3261, -1e+30
        %v3628 = vsel %vm3532, %v3263, -1e+30
        %v3629 = vsel %vm3533, %v3265, -1e+30
        %v3630 = vsel %vm3534, %v3267, -1e+30
        %v3631 = vsel %vm3535, %v3271, -1e+30
        %v3632 = vsel %vm3536, %v3273, -1e+30
        %v3633 = vsel %vm3537, %v3275, -1e+30
        %v3634 = vsel %vm3538, %v3277, -1e+30
        %v3635 = vsel %vm3539, %v3281, -1e+30
        %v3636 = vsel %vm3540, %v3283, -1e+30
        %v3637 = vsel %vm3541, %v3285, -1e+30
        %v3638 = vsel %vm3542, %v3287, -1e+30
        %v3639 = vsel %vm3511, %v3396, -1e+30
        %v3640 = vsel %vm3512, %v3398, -1e+30
        %v3641 = vsel %vm3513, %v3400, -1e+30
        %v3642 = vsel %vm3514, %v3402, -1e+30
        %v3643 = vsel %vm3515, %v3406, -1e+30
        %v3644 = vsel %vm3516, %v3408, -1e+30
        %v3645 = vsel %vm3517, %v3410, -1e+30
        %v3646 = vsel %vm3518, %v3412, -1e+30
        %v3647 = vsel %vm3519, %v3416, -1e+30
        %v3648 = vsel %vm3520, %v3418, -1e+30
        %v3649 = vsel %vm3521, %v3420, -1e+30
        %v3650 = vsel %vm3522, %v3422, -1e+30
        %v3651 = vsel %vm3523, %v3426, -1e+30
        %v3652 = vsel %vm3524, %v3428, -1e+30
        %v3653 = vsel %vm3525, %v3430, -1e+30
        %v3654 = vsel %vm3526, %v3432, -1e+30
        %v3655 = vsel %vm3527, %v3436, -1e+30
        %v3656 = vsel %vm3528, %v3438, -1e+30
        %v3657 = vsel %vm3529, %v3440, -1e+30
        %v3658 = vsel %vm3530, %v3442, -1e+30
        %v3659 = vsel %vm3531, %v3446, -1e+30
        %v3660 = vsel %vm3532, %v3448, -1e+30
        %v3661 = vsel %vm3533, %v3450, -1e+30
        %v3662 = vsel %vm3534, %v3452, -1e+30
        %v3663 = vsel %vm3535, %v3456, -1e+30
        %v3664 = vsel %vm3536, %v3458, -1e+30
        %v3665 = vsel %vm3537, %v3460, -1e+30
        %v3666 = vsel %vm3538, %v3462, -1e+30
        %v3667 = vsel %vm3539, %v3466, -1e+30
        %v3668 = vsel %vm3540, %v3468, -1e+30
        %v3669 = vsel %vm3541, %v3470, -1e+30
        %v3670 = vsel %vm3542, %v3472, -1e+30
        %v3671 = vmax.f32 %v3543, %v3544
        %3672 = vmax.xlane.f32.xlu0 %v3671
        %v3673 = vpop.xlane.xlu0 %3672
        %v3674 = vmax.f32 %v3545, %v3546
        %3675 = vmax.xlane.f32.xlu0 %v3674
        %v3676 = vpop.xlane.xlu0 %3675
        %v3677 = vmax.f32 %v3547, %v3548
        %3678 = vmax.xlane.f32.xlu0 %v3677
        %v3679 = vpop.xlane.xlu0 %3678
        %v3680 = vmax.f32 %v3549, %v3550
        %3681 = vmax.xlane.f32.xlu0 %v3680
        %v3682 = vpop.xlane.xlu0 %3681
        %v3683 = vmax.f32 %v3551, %v3552
        %3684 = vmax.xlane.f32.xlu0 %v3683
        %v3685 = vpop.xlane.xlu0 %3684
        %v3686 = vmax.f32 %v3553, %v3554
        %3687 = vmax.xlane.f32.xlu0 %v3686
        %v3688 = vpop.xlane.xlu0 %3687
        %v3689 = vmax.f32 %v3555, %v3556
        %3690 = vmax.xlane.f32.xlu0 %v3689
        %v3691 = vpop.xlane.xlu0 %3690
        %v3692 = vmax.f32 %v3557, %v3558
        %3693 = vmax.xlane.f32.xlu0 %v3692
        %v3694 = vpop.xlane.xlu0 %3693
        %v3695 = vmax.f32 %v3559, %v3560
        %3696 = vmax.xlane.f32.xlu0 %v3695
        %v3697 = vpop.xlane.xlu0 %3696
        %v3698 = vmax.f32 %v3561, %v3562
        %3699 = vmax.xlane.f32.xlu0 %v3698
        %v3700 = vpop.xlane.xlu0 %3699
        %v3701 = vmax.f32 %v3563, %v3564
        %3702 = vmax.xlane.f32.xlu0 %v3701
        %v3703 = vpop.xlane.xlu0 %3702
        %v3704 = vmax.f32 %v3565, %v3566
        %3705 = vmax.xlane.f32.xlu0 %v3704
        %v3706 = vpop.xlane.xlu0 %3705
        %v3707 = vmax.f32 %v3567, %v3568
        %3708 = vmax.xlane.f32.xlu0 %v3707
        %v3709 = vpop.xlane.xlu0 %3708
        %v3710 = vmax.f32 %v3569, %v3570
        %3711 = vmax.xlane.f32.xlu0 %v3710
        %v3712 = vpop.xlane.xlu0 %3711
        %v3713 = vmax.f32 %v3571, %v3572
        %3714 = vmax.xlane.f32.xlu0 %v3713
        %v3715 = vpop.xlane.xlu0 %3714
        %v3716 = vmax.f32 %v3573, %v3574
        %3717 = vmax.xlane.f32.xlu0 %v3716
        %v3718 = vpop.xlane.xlu0 %3717
        %v3719 = vmax.f32 %v3575, %v3576
        %3720 = vmax.xlane.f32.xlu0 %v3719
        %v3721 = vpop.xlane.xlu0 %3720
        %v3722 = vmax.f32 %v3577, %v3578
        %3723 = vmax.xlane.f32.xlu0 %v3722
        %v3724 = vpop.xlane.xlu0 %3723
        %v3725 = vmax.f32 %v3579, %v3580
        %3726 = vmax.xlane.f32.xlu0 %v3725
        %v3727 = vpop.xlane.xlu0 %3726
        %v3728 = vmax.f32 %v3581, %v3582
        %3729 = vmax.xlane.f32.xlu0 %v3728
        %v3730 = vpop.xlane.xlu0 %3729
        %v3731 = vmax.f32 %v3583, %v3584
        %3732 = vmax.xlane.f32.xlu0 %v3731
        %v3733 = vpop.xlane.xlu0 %3732
        %v3734 = vmax.f32 %v3585, %v3586
        %3735 = vmax.xlane.f32.xlu0 %v3734
        %v3736 = vpop.xlane.xlu0 %3735
        %v3737 = vmax.f32 %v3587, %v3588
        %3738 = vmax.xlane.f32.xlu0 %v3737
        %v3739 = vpop.xlane.xlu0 %3738
        %v3740 = vmax.f32 %v3589, %v3590
        %3741 = vmax.xlane.f32.xlu0 %v3740
        %v3742 = vpop.xlane.xlu0 %3741
        %v3743 = vmax.f32 %v3591, %v3592
        %3744 = vmax.xlane.f32.xlu0 %v3743
        %v3745 = vpop.xlane.xlu0 %3744
        %v3746 = vmax.f32 %v3593, %v3594
        %3747 = vmax.xlane.f32.xlu0 %v3746
        %v3748 = vpop.xlane.xlu0 %3747
        %v3749 = vmax.f32 %v3595, %v3596
        %3750 = vmax.xlane.f32.xlu0 %v3749
        %v3751 = vpop.xlane.xlu0 %3750
        %v3752 = vmax.f32 %v3597, %v3598
        %3753 = vmax.xlane.f32.xlu0 %v3752
        %v3754 = vpop.xlane.xlu0 %3753
        %v3755 = vmax.f32 %v3599, %v3600
        %3756 = vmax.xlane.f32.xlu0 %v3755
        %v3757 = vpop.xlane.xlu0 %3756
        %v3758 = vmax.f32 %v3601, %v3602
        %3759 = vmax.xlane.f32.xlu0 %v3758
        %v3760 = vpop.xlane.xlu0 %3759
        %v3761 = vmax.f32 %v3603, %v3604
        %3762 = vmax.xlane.f32.xlu0 %v3761
        %v3763 = vpop.xlane.xlu0 %3762
        %v3764 = vmax.f32 %v3605, %v3606
        %3765 = vmax.xlane.f32.xlu0 %v3764
        %v3766 = vpop.xlane.xlu0 %3765
        %v3767 = vmax.f32 %v3607, %v3608
        %3768 = vmax.xlane.f32.xlu0 %v3767
        %v3769 = vpop.xlane.xlu0 %3768
        %v3770 = vmax.f32 %v3609, %v3610
        %3771 = vmax.xlane.f32.xlu0 %v3770
        %v3772 = vpop.xlane.xlu0 %3771
        %v3773 = vmax.f32 %v3611, %v3612
        %3774 = vmax.xlane.f32.xlu0 %v3773
        %v3775 = vpop.xlane.xlu0 %3774
        %v3776 = vmax.f32 %v3613, %v3614
        %3777 = vmax.xlane.f32.xlu0 %v3776
        %v3778 = vpop.xlane.xlu0 %3777
        %v3779 = vmax.f32 %v3615, %v3616
        %3780 = vmax.xlane.f32.xlu0 %v3779
        %v3781 = vpop.xlane.xlu0 %3780
        %v3782 = vmax.f32 %v3617, %v3618
        %3783 = vmax.xlane.f32.xlu0 %v3782
        %v3784 = vpop.xlane.xlu0 %3783
        %v3785 = vmax.f32 %v3619, %v3620
        %3786 = vmax.xlane.f32.xlu0 %v3785
        %v3787 = vpop.xlane.xlu0 %3786
        %v3788 = vmax.f32 %v3621, %v3622
        %3789 = vmax.xlane.f32.xlu0 %v3788
        %v3790 = vpop.xlane.xlu0 %3789
        %v3791 = vmax.f32 %v3623, %v3624
        %3792 = vmax.xlane.f32.xlu0 %v3791
        %v3793 = vpop.xlane.xlu0 %3792
        %v3794 = vmax.f32 %v3625, %v3626
        %3795 = vmax.xlane.f32.xlu0 %v3794
        %v3796 = vpop.xlane.xlu0 %3795
        %v3797 = vmax.f32 %v3627, %v3628
        %3798 = vmax.xlane.f32.xlu0 %v3797
        %v3799 = vpop.xlane.xlu0 %3798
        %v3800 = vmax.f32 %v3629, %v3630
        %3801 = vmax.xlane.f32.xlu0 %v3800
        %v3802 = vpop.xlane.xlu0 %3801
        %v3803 = vmax.f32 %v3631, %v3632
        %3804 = vmax.xlane.f32.xlu0 %v3803
        %v3805 = vpop.xlane.xlu0 %3804
        %v3806 = vmax.f32 %v3633, %v3634
        %3807 = vmax.xlane.f32.xlu0 %v3806
        %v3808 = vpop.xlane.xlu0 %3807
        %v3809 = vmax.f32 %v3635, %v3636
        %3810 = vmax.xlane.f32.xlu0 %v3809
        %v3811 = vpop.xlane.xlu0 %3810
        %v3812 = vmax.f32 %v3637, %v3638
        %3813 = vmax.xlane.f32.xlu0 %v3812
        %v3814 = vpop.xlane.xlu0 %3813
        %v3815 = vmax.f32 %v3639, %v3640
        %3816 = vmax.xlane.f32.xlu0 %v3815
        %v3817 = vpop.xlane.xlu0 %3816
        %v3818 = vmax.f32 %v3641, %v3642
        %3819 = vmax.xlane.f32.xlu0 %v3818
        %v3820 = vpop.xlane.xlu0 %3819
        %v3821 = vmax.f32 %v3643, %v3644
        %3822 = vmax.xlane.f32.xlu0 %v3821
        %v3823 = vpop.xlane.xlu0 %3822
        %v3824 = vmax.f32 %v3645, %v3646
        %3825 = vmax.xlane.f32.xlu0 %v3824
        %v3826 = vpop.xlane.xlu0 %3825
        %v3827 = vmax.f32 %v3647, %v3648
        %3828 = vmax.xlane.f32.xlu0 %v3827
        %v3829 = vpop.xlane.xlu0 %3828
        %v3830 = vmax.f32 %v3649, %v3650
        %3831 = vmax.xlane.f32.xlu0 %v3830
        %v3832 = vpop.xlane.xlu0 %3831
        %v3833 = vmax.f32 %v3651, %v3652
        %3834 = vmax.xlane.f32.xlu0 %v3833
        %v3835 = vpop.xlane.xlu0 %3834
        %v3836 = vmax.f32 %v3653, %v3654
        %3837 = vmax.xlane.f32.xlu0 %v3836
        %v3838 = vpop.xlane.xlu0 %3837
        %v3839 = vmax.f32 %v3655, %v3656
        %3840 = vmax.xlane.f32.xlu0 %v3839
        %v3841 = vpop.xlane.xlu0 %3840
        %v3842 = vmax.f32 %v3657, %v3658
        %3843 = vmax.xlane.f32.xlu0 %v3842
        %v3844 = vpop.xlane.xlu0 %3843
        %v3845 = vmax.f32 %v3659, %v3660
        %3846 = vmax.xlane.f32.xlu0 %v3845
        %v3847 = vpop.xlane.xlu0 %3846
        %v3848 = vmax.f32 %v3661, %v3662
        %3849 = vmax.xlane.f32.xlu0 %v3848
        %v3850 = vpop.xlane.xlu0 %3849
        %v3851 = vmax.f32 %v3663, %v3664
        %3852 = vmax.xlane.f32.xlu0 %v3851
        %v3853 = vpop.xlane.xlu0 %3852
        %v3854 = vmax.f32 %v3665, %v3666
        %3855 = vmax.xlane.f32.xlu0 %v3854
        %v3856 = vpop.xlane.xlu0 %3855
        %v3857 = vmax.f32 %v3667, %v3668
        %3858 = vmax.xlane.f32.xlu0 %v3857
        %v3859 = vpop.xlane.xlu0 %3858
        %v3860 = vmax.f32 %v3669, %v3670
        %3861 = vmax.xlane.f32.xlu0 %v3860
        %v3862 = vpop.xlane.xlu0 %3861
        %v3863 = vsub.f32 %v3543, %v3673
        %v3864 = vsub.f32 %v3544, %v3673
        %v3865 = vsub.f32 %v3545, %v3676
        %v3866 = vsub.f32 %v3546, %v3676
        %v3867 = vsub.f32 %v3547, %v3679
        %v3868 = vsub.f32 %v3548, %v3679
        %v3869 = vsub.f32 %v3549, %v3682
        %v3870 = vsub.f32 %v3550, %v3682
        %v3871 = vsub.f32 %v3551, %v3685
        %v3872 = vsub.f32 %v3552, %v3685
        %v3873 = vsub.f32 %v3553, %v3688
        %v3874 = vsub.f32 %v3554, %v3688
        %v3875 = vsub.f32 %v3555, %v3691
        %v3876 = vsub.f32 %v3556, %v3691
        %v3877 = vsub.f32 %v3557, %v3694
        %v3878 = vsub.f32 %v3558, %v3694
        %v3879 = vsub.f32 %v3559, %v3697
        %v3880 = vsub.f32 %v3560, %v3697
        %v3881 = vsub.f32 %v3561, %v3700
        %v3882 = vsub.f32 %v3562, %v3700
        %v3883 = vsub.f32 %v3563, %v3703
        %v3884 = vsub.f32 %v3564, %v3703
        %v3885 = vsub.f32 %v3565, %v3706
        %v3886 = vsub.f32 %v3566, %v3706
        %v3887 = vsub.f32 %v3567, %v3709
        %v3888 = vsub.f32 %v3568, %v3709
        %v3889 = vsub.f32 %v3569, %v3712
        %v3890 = vsub.f32 %v3570, %v3712
        %v3891 = vsub.f32 %v3571, %v3715
        %v3892 = vsub.f32 %v3572, %v3715
        %v3893 = vsub.f32 %v3573, %v3718
        %v3894 = vsub.f32 %v3574, %v3718
        %v3895 = vsub.f32 %v3575, %v3721
        %v3896 = vsub.f32 %v3576, %v3721
        %v3897 = vsub.f32 %v3577, %v3724
        %v3898 = vsub.f32 %v3578, %v3724
        %v3899 = vsub.f32 %v3579, %v3727
        %v3900 = vsub.f32 %v3580, %v3727
        %v3901 = vsub.f32 %v3581, %v3730
        %v3902 = vsub.f32 %v3582, %v3730
        %v3903 = vsub.f32 %v3583, %v3733
        %v3904 = vsub.f32 %v3584, %v3733
        %v3905 = vsub.f32 %v3585, %v3736
        %v3906 = vsub.f32 %v3586, %v3736
        %v3907 = vsub.f32 %v3587, %v3739
        %v3908 = vsub.f32 %v3588, %v3739
        %v3909 = vsub.f32 %v3589, %v3742
        %v3910 = vsub.f32 %v3590, %v3742
        %v3911 = vsub.f32 %v3591, %v3745
        %v3912 = vsub.f32 %v3592, %v3745
        %v3913 = vsub.f32 %v3593, %v3748
        %v3914 = vsub.f32 %v3594, %v3748
        %v3915 = vsub.f32 %v3595, %v3751
        %v3916 = vsub.f32 %v3596, %v3751
        %v3917 = vsub.f32 %v3597, %v3754
        %v3918 = vsub.f32 %v3598, %v3754
        %v3919 = vsub.f32 %v3599, %v3757
        %v3920 = vsub.f32 %v3600, %v3757
        %v3921 = vsub.f32 %v3601, %v3760
        %v3922 = vsub.f32 %v3602, %v3760
        %v3923 = vsub.f32 %v3603, %v3763
        %v3924 = vsub.f32 %v3604, %v3763
        %v3925 = vsub.f32 %v3605, %v3766
        %v3926 = vsub.f32 %v3606, %v3766
        %v3927 = vsub.f32 %v3607, %v3769
        %v3928 = vsub.f32 %v3608, %v3769
        %v3929 = vsub.f32 %v3609, %v3772
        %v3930 = vsub.f32 %v3610, %v3772
        %v3931 = vsub.f32 %v3611, %v3775
        %v3932 = vsub.f32 %v3612, %v3775
        %v3933 = vsub.f32 %v3613, %v3778
        %v3934 = vsub.f32 %v3614, %v3778
        %v3935 = vsub.f32 %v3615, %v3781
        %v3936 = vsub.f32 %v3616, %v3781
        %v3937 = vsub.f32 %v3617, %v3784
        %v3938 = vsub.f32 %v3618, %v3784
        %v3939 = vsub.f32 %v3619, %v3787
        %v3940 = vsub.f32 %v3620, %v3787
        %v3941 = vsub.f32 %v3621, %v3790
        %v3942 = vsub.f32 %v3622, %v3790
        %v3943 = vsub.f32 %v3623, %v3793
        %v3944 = vsub.f32 %v3624, %v3793
        %v3945 = vsub.f32 %v3625, %v3796
        %v3946 = vsub.f32 %v3626, %v3796
        %v3947 = vsub.f32 %v3627, %v3799
        %v3948 = vsub.f32 %v3628, %v3799
        %v3949 = vsub.f32 %v3629, %v3802
        %v3950 = vsub.f32 %v3630, %v3802
        %v3951 = vsub.f32 %v3631, %v3805
        %v3952 = vsub.f32 %v3632, %v3805
        %v3953 = vsub.f32 %v3633, %v3808
        %v3954 = vsub.f32 %v3634, %v3808
        %v3955 = vsub.f32 %v3635, %v3811
        %v3956 = vsub.f32 %v3636, %v3811
        %v3957 = vsub.f32 %v3637, %v3814
        %v3958 = vsub.f32 %v3638, %v3814
        %v3959 = vsub.f32 %v3639, %v3817
        %v3960 = vsub.f32 %v3640, %v3817
        %v3961 = vsub.f32 %v3641, %v3820
        %v3962 = vsub.f32 %v3642, %v3820
        %v3963 = vsub.f32 %v3643, %v3823
        %v3964 = vsub.f32 %v3644, %v3823
        %v3965 = vsub.f32 %v3645, %v3826
        %v3966 = vsub.f32 %v3646, %v3826
        %v3967 = vsub.f32 %v3647, %v3829
        %v3968 = vsub.f32 %v3648, %v3829
        %v3969 = vsub.f32 %v3649, %v3832
        %v3970 = vsub.f32 %v3650, %v3832
        %v3971 = vsub.f32 %v3651, %v3835
        %v3972 = vsub.f32 %v3652, %v3835
        %v3973 = vsub.f32 %v3653, %v3838
        %v3974 = vsub.f32 %v3654, %v3838
        %v3975 = vsub.f32 %v3655, %v3841
        %v3976 = vsub.f32 %v3656, %v3841
        %v3977 = vsub.f32 %v3657, %v3844
        %v3978 = vsub.f32 %v3658, %v3844
        %v3979 = vsub.f32 %v3659, %v3847
        %v3980 = vsub.f32 %v3660, %v3847
        %v3981 = vsub.f32 %v3661, %v3850
        %v3982 = vsub.f32 %v3662, %v3850
        %v3983 = vsub.f32 %v3663, %v3853
        %v3984 = vsub.f32 %v3664, %v3853
        %v3985 = vsub.f32 %v3665, %v3856
        %v3986 = vsub.f32 %v3666, %v3856
        %v3987 = vsub.f32 %v3667, %v3859
        %v3988 = vsub.f32 %v3668, %v3859
        %v3989 = vsub.f32 %v3669, %v3862
        %v3990 = vsub.f32 %v3670, %v3862
        %v3991 = vmul.f32 %v3863, 1.442695
        %v3992 = vpow.pop %v3991
        %v3993 = vmul.f32 %v3864, 1.442695
        %v3994 = vpow.pop %v3993
        %v3995 = vmul.f32 %v3865, 1.442695
        %v3996 = vpow.pop %v3995
        %v3997 = vmul.f32 %v3866, 1.442695
        %v3998 = vpow.pop %v3997
        %v3999 = vmul.f32 %v3867, 1.442695
        %v4000 = vpow.pop %v3999
        %v4001 = vmul.f32 %v3868, 1.442695
        %v4002 = vpow.pop %v4001
        %v4003 = vmul.f32 %v3869, 1.442695
        %v4004 = vpow.pop %v4003
        %v4005 = vmul.f32 %v3870, 1.442695
        %v4006 = vpow.pop %v4005
        %v4007 = vmul.f32 %v3871, 1.442695
        %v4008 = vpow.pop %v4007
        %v4009 = vmul.f32 %v3872, 1.442695
        %v4010 = vpow.pop %v4009
        %v4011 = vmul.f32 %v3873, 1.442695
        %v4012 = vpow.pop %v4011
        %v4013 = vmul.f32 %v3874, 1.442695
        %v4014 = vpow.pop %v4013
        %v4015 = vmul.f32 %v3875, 1.442695
        %v4016 = vpow.pop %v4015
        %v4017 = vmul.f32 %v3876, 1.442695
        %v4018 = vpow.pop %v4017
        %v4019 = vmul.f32 %v3877, 1.442695
        %v4020 = vpow.pop %v4019
        %v4021 = vmul.f32 %v3878, 1.442695
        %v4022 = vpow.pop %v4021
        %v4023 = vmul.f32 %v3879, 1.442695
        %v4024 = vpow.pop %v4023
        %v4025 = vmul.f32 %v3880, 1.442695
        %v4026 = vpow.pop %v4025
        %v4027 = vmul.f32 %v3881, 1.442695
        %v4028 = vpow.pop %v4027
        %v4029 = vmul.f32 %v3882, 1.442695
        %v4030 = vpow.pop %v4029
        %v4031 = vmul.f32 %v3883, 1.442695
        %v4032 = vpow.pop %v4031
        %v4033 = vmul.f32 %v3884, 1.442695
        %v4034 = vpow.pop %v4033
        %v4035 = vmul.f32 %v3885, 1.442695
        %v4036 = vpow.pop %v4035
        %v4037 = vmul.f32 %v3886, 1.442695
        %v4038 = vpow.pop %v4037
        %v4039 = vmul.f32 %v3887, 1.442695
        %v4040 = vpow.pop %v4039
        %v4041 = vmul.f32 %v3888, 1.442695
        %v4042 = vpow.pop %v4041
        %v4043 = vmul.f32 %v3889, 1.442695
        %v4044 = vpow.pop %v4043
        %v4045 = vmul.f32 %v3890, 1.442695
        %v4046 = vpow.pop %v4045
        %v4047 = vmul.f32 %v3891, 1.442695
        %v4048 = vpow.pop %v4047
        %v4049 = vmul.f32 %v3892, 1.442695
        %v4050 = vpow.pop %v4049
        %v4051 = vmul.f32 %v3893, 1.442695
        %v4052 = vpow.pop %v4051
        %v4053 = vmul.f32 %v3894, 1.442695
        %v4054 = vpow.pop %v4053
        %v4055 = vmul.f32 %v3895, 1.442695
        %v4056 = vpow.pop %v4055
        %v4057 = vmul.f32 %v3896, 1.442695
        %v4058 = vpow.pop %v4057
        %v4059 = vmul.f32 %v3897, 1.442695
        %v4060 = vpow.pop %v4059
        %v4061 = vmul.f32 %v3898, 1.442695
        %v4062 = vpow.pop %v4061
        %v4063 = vmul.f32 %v3899, 1.442695
        %v4064 = vpow.pop %v4063
        %v4065 = vmul.f32 %v3900, 1.442695
        %v4066 = vpow.pop %v4065
        %v4067 = vmul.f32 %v3901, 1.442695
        %v4068 = vpow.pop %v4067
        %v4069 = vmul.f32 %v3902, 1.442695
        %v4070 = vpow.pop %v4069
        %v4071 = vmul.f32 %v3903, 1.442695
        %v4072 = vpow.pop %v4071
        %v4073 = vmul.f32 %v3904, 1.442695
        %v4074 = vpow.pop %v4073
        %v4075 = vmul.f32 %v3905, 1.442695
        %v4076 = vpow.pop %v4075
        %v4077 = vmul.f32 %v3906, 1.442695
        %v4078 = vpow.pop %v4077
        %v4079 = vmul.f32 %v3907, 1.442695
        %v4080 = vpow.pop %v4079
        %v4081 = vmul.f32 %v3908, 1.442695
        %v4082 = vpow.pop %v4081
        %v4083 = vmul.f32 %v3909, 1.442695
        %v4084 = vpow.pop %v4083
        %v4085 = vmul.f32 %v3910, 1.442695
        %v4086 = vpow.pop %v4085
        %v4087 = vmul.f32 %v3911, 1.442695
        %v4088 = vpow.pop %v4087
        %v4089 = vmul.f32 %v3912, 1.442695
        %v4090 = vpow.pop %v4089
        %v4091 = vmul.f32 %v3913, 1.442695
        %v4092 = vpow.pop %v4091
        %v4093 = vmul.f32 %v3914, 1.442695
        %v4094 = vpow.pop %v4093
        %v4095 = vmul.f32 %v3915, 1.442695
        %v4096 = vpow.pop %v4095
        %v4097 = vmul.f32 %v3916, 1.442695
        %v4098 = vpow.pop %v4097
        %v4099 = vmul.f32 %v3917, 1.442695
        %v4100 = vpow.pop %v4099
        %v4101 = vmul.f32 %v3918, 1.442695
        %v4102 = vpow.pop %v4101
        %v4103 = vmul.f32 %v3919, 1.442695
        %v4104 = vpow.pop %v4103
        %v4105 = vmul.f32 %v3920, 1.442695
        %v4106 = vpow.pop %v4105
        %v4107 = vmul.f32 %v3921, 1.442695
        %v4108 = vpow.pop %v4107
        %v4109 = vmul.f32 %v3922, 1.442695
        %v4110 = vpow.pop %v4109
        %v4111 = vmul.f32 %v3923, 1.442695
        %v4112 = vpow.pop %v4111
        %v4113 = vmul.f32 %v3924, 1.442695
        %v4114 = vpow.pop %v4113
        %v4115 = vmul.f32 %v3925, 1.442695
        %v4116 = vpow.pop %v4115
        %v4117 = vmul.f32 %v3926, 1.442695
        %v4118 = vpow.pop %v4117
        %v4119 = vmul.f32 %v3927, 1.442695
        %v4120 = vpow.pop %v4119
        %v4121 = vmul.f32 %v3928, 1.442695
        %v4122 = vpow.pop %v4121
        %v4123 = vmul.f32 %v3929, 1.442695
        %v4124 = vpow.pop %v4123
        %v4125 = vmul.f32 %v3930, 1.442695
        %v4126 = vpow.pop %v4125
        %v4127 = vmul.f32 %v3931, 1.442695
        %v4128 = vpow.pop %v4127
        %v4129 = vmul.f32 %v3932, 1.442695
        %v4130 = vpow.pop %v4129
        %v4131 = vmul.f32 %v3933, 1.442695
        %v4132 = vpow.pop %v4131
        %v4133 = vmul.f32 %v3934, 1.442695
        %v4134 = vpow.pop %v4133
        %v4135 = vmul.f32 %v3935, 1.442695
        %v4136 = vpow.pop %v4135
        %v4137 = vmul.f32 %v3936, 1.442695
        %v4138 = vpow.pop %v4137
        %v4139 = vmul.f32 %v3937, 1.442695
        %v4140 = vpow.pop %v4139
        %v4141 = vmul.f32 %v3938, 1.442695
        %v4142 = vpow.pop %v4141
        %v4143 = vmul.f32 %v3939, 1.442695
        %v4144 = vpow.pop %v4143
        %v4145 = vmul.f32 %v3940, 1.442695
        %v4146 = vpow.pop %v4145
        %v4147 = vmul.f32 %v3941, 1.442695
        %v4148 = vpow.pop %v4147
        %v4149 = vmul.f32 %v3942, 1.442695
        %v4150 = vpow.pop %v4149
        %v4151 = vmul.f32 %v3943, 1.442695
        %v4152 = vpow.pop %v4151
        %v4153 = vmul.f32 %v3944, 1.442695
        %v4154 = vpow.pop %v4153
        %v4155 = vmul.f32 %v3945, 1.442695
        %v4156 = vpow.pop %v4155
        %v4157 = vmul.f32 %v3946, 1.442695
        %v4158 = vpow.pop %v4157
        %v4159 = vmul.f32 %v3947, 1.442695
        %v4160 = vpow.pop %v4159
        %v4161 = vmul.f32 %v3948, 1.442695
        %v4162 = vpow.pop %v4161
        %v4163 = vmul.f32 %v3949, 1.442695
        %v4164 = vpow.pop %v4163
        %v4165 = vmul.f32 %v3950, 1.442695
        %v4166 = vpow.pop %v4165
        %v4167 = vmul.f32 %v3951, 1.442695
        %v4168 = vpow.pop %v4167
        %v4169 = vmul.f32 %v3952, 1.442695
        %v4170 = vpow.pop %v4169
        %v4171 = vmul.f32 %v3953, 1.442695
        %v4172 = vpow.pop %v4171
        %v4173 = vmul.f32 %v3954, 1.442695
        %v4174 = vpow.pop %v4173
        %v4175 = vmul.f32 %v3955, 1.442695
        %v4176 = vpow.pop %v4175
        %v4177 = vmul.f32 %v3956, 1.442695
        %v4178 = vpow.pop %v4177
        %v4179 = vmul.f32 %v3957, 1.442695
        %v4180 = vpow.pop %v4179
        %v4181 = vmul.f32 %v3958, 1.442695
        %v4182 = vpow.pop %v4181
        %v4183 = vmul.f32 %v3959, 1.442695
        %v4184 = vpow.pop %v4183
        %v4185 = vmul.f32 %v3960, 1.442695
        %v4186 = vpow.pop %v4185
        %v4187 = vmul.f32 %v3961, 1.442695
        %v4188 = vpow.pop %v4187
        %v4189 = vmul.f32 %v3962, 1.442695
        %v4190 = vpow.pop %v4189
        %v4191 = vmul.f32 %v3963, 1.442695
        %v4192 = vpow.pop %v4191
        %v4193 = vmul.f32 %v3964, 1.442695
        %v4194 = vpow.pop %v4193
        %v4195 = vmul.f32 %v3965, 1.442695
        %v4196 = vpow.pop %v4195
        %v4197 = vmul.f32 %v3966, 1.442695
        %v4198 = vpow.pop %v4197
        %v4199 = vmul.f32 %v3967, 1.442695
        %v4200 = vpow.pop %v4199
        %v4201 = vmul.f32 %v3968, 1.442695
        %v4202 = vpow.pop %v4201
        %v4203 = vmul.f32 %v3969, 1.442695
        %v4204 = vpow.pop %v4203
        %v4205 = vmul.f32 %v3970, 1.442695
        %v4206 = vpow.pop %v4205
        %v4207 = vmul.f32 %v3971, 1.442695
        %v4208 = vpow.pop %v4207
        %v4209 = vmul.f32 %v3972, 1.442695
        %v4210 = vpow.pop %v4209
        %v4211 = vmul.f32 %v3973, 1.442695
        %v4212 = vpow.pop %v4211
        %v4213 = vmul.f32 %v3974, 1.442695
        %v4214 = vpow.pop %v4213
        %v4215 = vmul.f32 %v3975, 1.442695
        %v4216 = vpow.pop %v4215
        %v4217 = vmul.f32 %v3976, 1.442695
        %v4218 = vpow.pop %v4217
        %v4219 = vmul.f32 %v3977, 1.442695
        %v4220 = vpow.pop %v4219
        %v4221 = vmul.f32 %v3978, 1.442695
        %v4222 = vpow.pop %v4221
        %v4223 = vmul.f32 %v3979, 1.442695
        %v4224 = vpow.pop %v4223
        %v4225 = vmul.f32 %v3980, 1.442695
        %v4226 = vpow.pop %v4225
        %v4227 = vmul.f32 %v3981, 1.442695
        %v4228 = vpow.pop %v4227
        %v4229 = vmul.f32 %v3982, 1.442695
        %v4230 = vpow.pop %v4229
        %v4231 = vmul.f32 %v3983, 1.442695
        %v4232 = vpow.pop %v4231
        %v4233 = vmul.f32 %v3984, 1.442695
        %v4234 = vpow.pop %v4233
        %v4235 = vmul.f32 %v3985, 1.442695
        %v4236 = vpow.pop %v4235
        %v4237 = vmul.f32 %v3986, 1.442695
        %v4238 = vpow.pop %v4237
        %v4239 = vmul.f32 %v3987, 1.442695
        %v4240 = vpow.pop %v4239
        %v4241 = vmul.f32 %v3988, 1.442695
        %v4242 = vpow.pop %v4241
        %v4243 = vmul.f32 %v3989, 1.442695
        %v4244 = vpow.pop %v4243
        %v4245 = vmul.f32 %v3990, 1.442695
        %v4246 = vpow.pop %v4245
        %v4247 = vadd.f32 %v3992, %v3994
        %4248 = vadd.xlane.f32.xlu0 %v4247
        %v4249 = vpop.xlane.xlu0 %4248
        %v4250 = vadd.f32 %v3996, %v3998
        %4251 = vadd.xlane.f32.xlu0 %v4250
        %v4252 = vpop.xlane.xlu0 %4251
        %v4253 = vadd.f32 %v4000, %v4002
        %4254 = vadd.xlane.f32.xlu0 %v4253
        %v4255 = vpop.xlane.xlu0 %4254
        %v4256 = vadd.f32 %v4004, %v4006
        %4257 = vadd.xlane.f32.xlu0 %v4256
        %v4258 = vpop.xlane.xlu0 %4257
        %v4259 = vadd.f32 %v4008, %v4010
        %4260 = vadd.xlane.f32.xlu0 %v4259
        %v4261 = vpop.xlane.xlu0 %4260
        %v4262 = vadd.f32 %v4012, %v4014
        %4263 = vadd.xlane.f32.xlu0 %v4262
        %v4264 = vpop.xlane.xlu0 %4263
        %v4265 = vadd.f32 %v4016, %v4018
        %4266 = vadd.xlane.f32.xlu0 %v4265
        %v4267 = vpop.xlane.xlu0 %4266
        %v4268 = vadd.f32 %v4020, %v4022
        %4269 = vadd.xlane.f32.xlu0 %v4268
        %v4270 = vpop.xlane.xlu0 %4269
        %v4271 = vadd.f32 %v4024, %v4026
        %4272 = vadd.xlane.f32.xlu0 %v4271
        %v4273 = vpop.xlane.xlu0 %4272
        %v4274 = vadd.f32 %v4028, %v4030
        %4275 = vadd.xlane.f32.xlu0 %v4274
        %v4276 = vpop.xlane.xlu0 %4275
        %v4277 = vadd.f32 %v4032, %v4034
        %4278 = vadd.xlane.f32.xlu0 %v4277
        %v4279 = vpop.xlane.xlu0 %4278
        %v4280 = vadd.f32 %v4036, %v4038
        %4281 = vadd.xlane.f32.xlu0 %v4280
        %v4282 = vpop.xlane.xlu0 %4281
        %v4283 = vadd.f32 %v4040, %v4042
        %4284 = vadd.xlane.f32.xlu0 %v4283
        %v4285 = vpop.xlane.xlu0 %4284
        %v4286 = vadd.f32 %v4044, %v4046
        %4287 = vadd.xlane.f32.xlu0 %v4286
        %v4288 = vpop.xlane.xlu0 %4287
        %v4289 = vadd.f32 %v4048, %v4050
        %4290 = vadd.xlane.f32.xlu0 %v4289
        %v4291 = vpop.xlane.xlu0 %4290
        %v4292 = vadd.f32 %v4052, %v4054
        %4293 = vadd.xlane.f32.xlu0 %v4292
        %v4294 = vpop.xlane.xlu0 %4293
        %v4295 = vadd.f32 %v4056, %v4058
        %4296 = vadd.xlane.f32.xlu0 %v4295
        %v4297 = vpop.xlane.xlu0 %4296
        %v4298 = vadd.f32 %v4060, %v4062
        %4299 = vadd.xlane.f32.xlu0 %v4298
        %v4300 = vpop.xlane.xlu0 %4299
        %v4301 = vadd.f32 %v4064, %v4066
        %4302 = vadd.xlane.f32.xlu0 %v4301
        %v4303 = vpop.xlane.xlu0 %4302
        %v4304 = vadd.f32 %v4068, %v4070
        %4305 = vadd.xlane.f32.xlu0 %v4304
        %v4306 = vpop.xlane.xlu0 %4305
        %v4307 = vadd.f32 %v4072, %v4074
        %4308 = vadd.xlane.f32.xlu0 %v4307
        %v4309 = vpop.xlane.xlu0 %4308
        %v4310 = vadd.f32 %v4076, %v4078
        %4311 = vadd.xlane.f32.xlu0 %v4310
        %v4312 = vpop.xlane.xlu0 %4311
        %v4313 = vadd.f32 %v4080, %v4082
        %4314 = vadd.xlane.f32.xlu0 %v4313
        %v4315 = vpop.xlane.xlu0 %4314
        %v4316 = vadd.f32 %v4084, %v4086
        %4317 = vadd.xlane.f32.xlu0 %v4316
        %v4318 = vpop.xlane.xlu0 %4317
        %v4319 = vadd.f32 %v4088, %v4090
        %4320 = vadd.xlane.f32.xlu0 %v4319
        %v4321 = vpop.xlane.xlu0 %4320
        %v4322 = vadd.f32 %v4092, %v4094
        %4323 = vadd.xlane.f32.xlu0 %v4322
        %v4324 = vpop.xlane.xlu0 %4323
        %v4325 = vadd.f32 %v4096, %v4098
        %4326 = vadd.xlane.f32.xlu0 %v4325
        %v4327 = vpop.xlane.xlu0 %4326
        %v4328 = vadd.f32 %v4100, %v4102
        %4329 = vadd.xlane.f32.xlu0 %v4328
        %v4330 = vpop.xlane.xlu0 %4329
        %v4331 = vadd.f32 %v4104, %v4106
        %4332 = vadd.xlane.f32.xlu0 %v4331
        %v4333 = vpop.xlane.xlu0 %4332
        %v4334 = vadd.f32 %v4108, %v4110
        %4335 = vadd.xlane.f32.xlu0 %v4334
        %v4336 = vpop.xlane.xlu0 %4335
        %v4337 = vadd.f32 %v4112, %v4114
        %4338 = vadd.xlane.f32.xlu0 %v4337
        %v4339 = vpop.xlane.xlu0 %4338
        %v4340 = vadd.f32 %v4116, %v4118
        %4341 = vadd.xlane.f32.xlu0 %v4340
        %v4342 = vpop.xlane.xlu0 %4341
        %v4343 = vadd.f32 %v4120, %v4122
        %4344 = vadd.xlane.f32.xlu0 %v4343
        %v4345 = vpop.xlane.xlu0 %4344
        %v4346 = vadd.f32 %v4124, %v4126
        %4347 = vadd.xlane.f32.xlu0 %v4346
        %v4348 = vpop.xlane.xlu0 %4347
        %v4349 = vadd.f32 %v4128, %v4130
        %4350 = vadd.xlane.f32.xlu0 %v4349
        %v4351 = vpop.xlane.xlu0 %4350
        %v4352 = vadd.f32 %v4132, %v4134
        %4353 = vadd.xlane.f32.xlu0 %v4352
        %v4354 = vpop.xlane.xlu0 %4353
        %v4355 = vadd.f32 %v4136, %v4138
        %4356 = vadd.xlane.f32.xlu0 %v4355
        %v4357 = vpop.xlane.xlu0 %4356
        %v4358 = vadd.f32 %v4140, %v4142
        %4359 = vadd.xlane.f32.xlu0 %v4358
        %v4360 = vpop.xlane.xlu0 %4359
        %v4361 = vadd.f32 %v4144, %v4146
        %4362 = vadd.xlane.f32.xlu0 %v4361
        %v4363 = vpop.xlane.xlu0 %4362
        %v4364 = vadd.f32 %v4148, %v4150
        %4365 = vadd.xlane.f32.xlu0 %v4364
        %v4366 = vpop.xlane.xlu0 %4365
        %v4367 = vadd.f32 %v4152, %v4154
        %4368 = vadd.xlane.f32.xlu0 %v4367
        %v4369 = vpop.xlane.xlu0 %4368
        %v4370 = vadd.f32 %v4156, %v4158
        %4371 = vadd.xlane.f32.xlu0 %v4370
        %v4372 = vpop.xlane.xlu0 %4371
        %v4373 = vadd.f32 %v4160, %v4162
        %4374 = vadd.xlane.f32.xlu0 %v4373
        %v4375 = vpop.xlane.xlu0 %4374
        %v4376 = vadd.f32 %v4164, %v4166
        %4377 = vadd.xlane.f32.xlu0 %v4376
        %v4378 = vpop.xlane.xlu0 %4377
        %v4379 = vadd.f32 %v4168, %v4170
        %4380 = vadd.xlane.f32.xlu0 %v4379
        %v4381 = vpop.xlane.xlu0 %4380
        %v4382 = vadd.f32 %v4172, %v4174
        %4383 = vadd.xlane.f32.xlu0 %v4382
        %v4384 = vpop.xlane.xlu0 %4383
        %v4385 = vadd.f32 %v4176, %v4178
        %4386 = vadd.xlane.f32.xlu0 %v4385
        %v4387 = vpop.xlane.xlu0 %4386
        %v4388 = vadd.f32 %v4180, %v4182
        %4389 = vadd.xlane.f32.xlu0 %v4388
        %v4390 = vpop.xlane.xlu0 %4389
        %v4391 = vadd.f32 %v4184, %v4186
        %4392 = vadd.xlane.f32.xlu0 %v4391
        %v4393 = vpop.xlane.xlu0 %4392
        %v4394 = vadd.f32 %v4188, %v4190
        %4395 = vadd.xlane.f32.xlu0 %v4394
        %v4396 = vpop.xlane.xlu0 %4395
        %v4397 = vadd.f32 %v4192, %v4194
        %4398 = vadd.xlane.f32.xlu0 %v4397
        %v4399 = vpop.xlane.xlu0 %4398
        %v4400 = vadd.f32 %v4196, %v4198
        %4401 = vadd.xlane.f32.xlu0 %v4400
        %v4402 = vpop.xlane.xlu0 %4401
        %v4403 = vadd.f32 %v4200, %v4202
        %4404 = vadd.xlane.f32.xlu0 %v4403
        %v4405 = vpop.xlane.xlu0 %4404
        %v4406 = vadd.f32 %v4204, %v4206
        %4407 = vadd.xlane.f32.xlu0 %v4406
        %v4408 = vpop.xlane.xlu0 %4407
        %v4409 = vadd.f32 %v4208, %v4210
        %4410 = vadd.xlane.f32.xlu0 %v4409
        %v4411 = vpop.xlane.xlu0 %4410
        %v4412 = vadd.f32 %v4212, %v4214
        %4413 = vadd.xlane.f32.xlu0 %v4412
        %v4414 = vpop.xlane.xlu0 %4413
        %v4415 = vadd.f32 %v4216, %v4218
        %4416 = vadd.xlane.f32.xlu0 %v4415
        %v4417 = vpop.xlane.xlu0 %4416
        %v4418 = vadd.f32 %v4220, %v4222
        %4419 = vadd.xlane.f32.xlu0 %v4418
        %v4420 = vpop.xlane.xlu0 %4419
        %v4421 = vadd.f32 %v4224, %v4226
        %4422 = vadd.xlane.f32.xlu0 %v4421
        %v4423 = vpop.xlane.xlu0 %4422
        %v4424 = vadd.f32 %v4228, %v4230
        %4425 = vadd.xlane.f32.xlu0 %v4424
        %v4426 = vpop.xlane.xlu0 %4425
        %v4427 = vadd.f32 %v4232, %v4234
        %4428 = vadd.xlane.f32.xlu0 %v4427
        %v4429 = vpop.xlane.xlu0 %4428
        %v4430 = vadd.f32 %v4236, %v4238
        %4431 = vadd.xlane.f32.xlu0 %v4430
        %v4432 = vpop.xlane.xlu0 %4431
        %v4433 = vadd.f32 %v4240, %v4242
        %4434 = vadd.xlane.f32.xlu0 %v4433
        %v4435 = vpop.xlane.xlu0 %4434
        %v4436 = vadd.f32 %v4244, %v4246
        %4437 = vadd.xlane.f32.xlu0 %v4436
        %v4438 = vpop.xlane.xlu0 %4437
        %v4439 = vrcp.pop %v4249
        %v4440 = vrcp.pop %v4252
        %v4441 = vrcp.pop %v4255
        %v4442 = vrcp.pop %v4258
        %v4443 = vrcp.pop %v4261
        %v4444 = vrcp.pop %v4264
        %v4445 = vrcp.pop %v4267
        %v4446 = vrcp.pop %v4270
        %v4447 = vrcp.pop %v4273
        %v4448 = vrcp.pop %v4276
        %v4449 = vrcp.pop %v4279
        %v4450 = vrcp.pop %v4282
        %v4451 = vrcp.pop %v4285
        %v4452 = vrcp.pop %v4288
        %v4453 = vrcp.pop %v4291
        %v4454 = vrcp.pop %v4294
        %v4455 = vrcp.pop %v4297
        %v4456 = vrcp.pop %v4300
        %v4457 = vrcp.pop %v4303
        %v4458 = vrcp.pop %v4306
        %v4459 = vrcp.pop %v4309
        %v4460 = vrcp.pop %v4312
        %v4461 = vrcp.pop %v4315
        %v4462 = vrcp.pop %v4318
        %v4463 = vrcp.pop %v4321
        %v4464 = vrcp.pop %v4324
        %v4465 = vrcp.pop %v4327
        %v4466 = vrcp.pop %v4330
        %v4467 = vrcp.pop %v4333
        %v4468 = vrcp.pop %v4336
        %v4469 = vrcp.pop %v4339
        %v4470 = vrcp.pop %v4342
        %v4471 = vrcp.pop %v4345
        %v4472 = vrcp.pop %v4348
        %v4473 = vrcp.pop %v4351
        %v4474 = vrcp.pop %v4354
        %v4475 = vrcp.pop %v4357
        %v4476 = vrcp.pop %v4360
        %v4477 = vrcp.pop %v4363
        %v4478 = vrcp.pop %v4366
        %v4479 = vrcp.pop %v4369
        %v4480 = vrcp.pop %v4372
        %v4481 = vrcp.pop %v4375
        %v4482 = vrcp.pop %v4378
        %v4483 = vrcp.pop %v4381
        %v4484 = vrcp.pop %v4384
        %v4485 = vrcp.pop %v4387
        %v4486 = vrcp.pop %v4390
        %v4487 = vrcp.pop %v4393
        %v4488 = vrcp.pop %v4396
        %v4489 = vrcp.pop %v4399
        %v4490 = vrcp.pop %v4402
        %v4491 = vrcp.pop %v4405
        %v4492 = vrcp.pop %v4408
        %v4493 = vrcp.pop %v4411
        %v4494 = vrcp.pop %v4414
        %v4495 = vrcp.pop %v4417
        %v4496 = vrcp.pop %v4420
        %v4497 = vrcp.pop %v4423
        %v4498 = vrcp.pop %v4426
        %v4499 = vrcp.pop %v4429
        %v4500 = vrcp.pop %v4432
        %v4501 = vrcp.pop %v4435
        %v4502 = vrcp.pop %v4438
        %v4503 = vmul.f32 %v3992, %v4439
        %v4504 = vmul.f32 %v3994, %v4439
        %v4505 = vmul.f32 %v3996, %v4440
        %v4506 = vmul.f32 %v3998, %v4440
        %v4507 = vmul.f32 %v4000, %v4441
        %v4508 = vmul.f32 %v4002, %v4441
        %v4509 = vmul.f32 %v4004, %v4442
        %v4510 = vmul.f32 %v4006, %v4442
        %v4511 = vmul.f32 %v4008, %v4443
        %v4512 = vmul.f32 %v4010, %v4443
        %v4513 = vmul.f32 %v4012, %v4444
        %v4514 = vmul.f32 %v4014, %v4444
        %v4515 = vmul.f32 %v4016, %v4445
        %v4516 = vmul.f32 %v4018, %v4445
        %v4517 = vmul.f32 %v4020, %v4446
        %v4518 = vmul.f32 %v4022, %v4446
        %v4519 = vmul.f32 %v4024, %v4447
        %v4520 = vmul.f32 %v4026, %v4447
        %v4521 = vmul.f32 %v4028, %v4448
        %v4522 = vmul.f32 %v4030, %v4448
        %v4523 = vmul.f32 %v4032, %v4449
        %v4524 = vmul.f32 %v4034, %v4449
        %v4525 = vmul.f32 %v4036, %v4450
        %v4526 = vmul.f32 %v4038, %v4450
        %v4527 = vmul.f32 %v4040, %v4451
        %v4528 = vmul.f32 %v4042, %v4451
        %v4529 = vmul.f32 %v4044, %v4452
        %v4530 = vmul.f32 %v4046, %v4452
        %v4531 = vmul.f32 %v4048, %v4453
        %v4532 = vmul.f32 %v4050, %v4453
        %v4533 = vmul.f32 %v4052, %v4454
        %v4534 = vmul.f32 %v4054, %v4454
        %v4535 = vmul.f32 %v4056, %v4455
        %v4536 = vmul.f32 %v4058, %v4455
        %v4537 = vmul.f32 %v4060, %v4456
        %v4538 = vmul.f32 %v4062, %v4456
        %v4539 = vmul.f32 %v4064, %v4457
        %v4540 = vmul.f32 %v4066, %v4457
        %v4541 = vmul.f32 %v4068, %v4458
        %v4542 = vmul.f32 %v4070, %v4458
        %v4543 = vmul.f32 %v4072, %v4459
        %v4544 = vmul.f32 %v4074, %v4459
        %v4545 = vmul.f32 %v4076, %v4460
        %v4546 = vmul.f32 %v4078, %v4460
        %v4547 = vmul.f32 %v4080, %v4461
        %v4548 = vmul.f32 %v4082, %v4461
        %v4549 = vmul.f32 %v4084, %v4462
        %v4550 = vmul.f32 %v4086, %v4462
        %v4551 = vmul.f32 %v4088, %v4463
        %v4552 = vmul.f32 %v4090, %v4463
        %v4553 = vmul.f32 %v4092, %v4464
        %v4554 = vmul.f32 %v4094, %v4464
        %v4555 = vmul.f32 %v4096, %v4465
        %v4556 = vmul.f32 %v4098, %v4465
        %v4557 = vmul.f32 %v4100, %v4466
        %v4558 = vmul.f32 %v4102, %v4466
        %v4559 = vmul.f32 %v4104, %v4467
        %v4560 = vmul.f32 %v4106, %v4467
        %v4561 = vmul.f32 %v4108, %v4468
        %v4562 = vmul.f32 %v4110, %v4468
        %v4563 = vmul.f32 %v4112, %v4469
        %v4564 = vmul.f32 %v4114, %v4469
        %v4565 = vmul.f32 %v4116, %v4470
        %v4566 = vmul.f32 %v4118, %v4470
        %v4567 = vmul.f32 %v4120, %v4471
        %v4568 = vmul.f32 %v4122, %v4471
        %v4569 = vmul.f32 %v4124, %v4472
        %v4570 = vmul.f32 %v4126, %v4472
        %v4571 = vmul.f32 %v4128, %v4473
        %v4572 = vmul.f32 %v4130, %v4473
        %v4573 = vmul.f32 %v4132, %v4474
        %v4574 = vmul.f32 %v4134, %v4474
        %v4575 = vmul.f32 %v4136, %v4475
        %v4576 = vmul.f32 %v4138, %v4475
        %v4577 = vmul.f32 %v4140, %v4476
        %v4578 = vmul.f32 %v4142, %v4476
        %v4579 = vmul.f32 %v4144, %v4477
        %v4580 = vmul.f32 %v4146, %v4477
        %v4581 = vmul.f32 %v4148, %v4478
        %v4582 = vmul.f32 %v4150, %v4478
        %v4583 = vmul.f32 %v4152, %v4479
        %v4584 = vmul.f32 %v4154, %v4479
        %v4585 = vmul.f32 %v4156, %v4480
        %v4586 = vmul.f32 %v4158, %v4480
        %v4587 = vmul.f32 %v4160, %v4481
        %v4588 = vmul.f32 %v4162, %v4481
        %v4589 = vmul.f32 %v4164, %v4482
        %v4590 = vmul.f32 %v4166, %v4482
        %v4591 = vmul.f32 %v4168, %v4483
        %v4592 = vmul.f32 %v4170, %v4483
        %v4593 = vmul.f32 %v4172, %v4484
        %v4594 = vmul.f32 %v4174, %v4484
        %v4595 = vmul.f32 %v4176, %v4485
        %v4596 = vmul.f32 %v4178, %v4485
        %v4597 = vmul.f32 %v4180, %v4486
        %v4598 = vmul.f32 %v4182, %v4486
        %v4599 = vmul.f32 %v4184, %v4487
        %v4600 = vmul.f32 %v4186, %v4487
        %v4601 = vmul.f32 %v4188, %v4488
        %v4602 = vmul.f32 %v4190, %v4488
        %v4603 = vmul.f32 %v4192, %v4489
        %v4604 = vmul.f32 %v4194, %v4489
        %v4605 = vmul.f32 %v4196, %v4490
        %v4606 = vmul.f32 %v4198, %v4490
        %v4607 = vmul.f32 %v4200, %v4491
        %v4608 = vmul.f32 %v4202, %v4491
        %v4609 = vmul.f32 %v4204, %v4492
        %v4610 = vmul.f32 %v4206, %v4492
        %v4611 = vmul.f32 %v4208, %v4493
        %v4612 = vmul.f32 %v4210, %v4493
        %v4613 = vmul.f32 %v4212, %v4494
        %v4614 = vmul.f32 %v4214, %v4494
        %v4615 = vmul.f32 %v4216, %v4495
        %v4616 = vmul.f32 %v4218, %v4495
        %v4617 = vmul.f32 %v4220, %v4496
        %v4618 = vmul.f32 %v4222, %v4496
        %v4619 = vmul.f32 %v4224, %v4497
        %v4620 = vmul.f32 %v4226, %v4497
        %v4621 = vmul.f32 %v4228, %v4498
        %v4622 = vmul.f32 %v4230, %v4498
        %v4623 = vmul.f32 %v4232, %v4499
        %v4624 = vmul.f32 %v4234, %v4499
        %v4625 = vmul.f32 %v4236, %v4500
        %v4626 = vmul.f32 %v4238, %v4500
        %v4627 = vmul.f32 %v4240, %v4501
        %v4628 = vmul.f32 %v4242, %v4501
        %v4629 = vmul.f32 %v4244, %v4502
        %v4630 = vmul.f32 %v4246, %v4502
        %v4631 = vpack.c.bf16 %v4505, %v4503
        %v4632 = vpack.c.bf16 %v4506, %v4504
        %v4633 = vpack.c.bf16 %v4509, %v4507
        %v4634 = vpack.c.bf16 %v4510, %v4508
        %v4635 = vpack.c.bf16 %v4513, %v4511
        %v4636 = vpack.c.bf16 %v4514, %v4512
        %v4637 = vpack.c.bf16 %v4517, %v4515
        %v4638 = vpack.c.bf16 %v4518, %v4516
        %v4639 = vpack.c.bf16 %v4521, %v4519
        %v4640 = vpack.c.bf16 %v4522, %v4520
        %v4641 = vpack.c.bf16 %v4525, %v4523
        %v4642 = vpack.c.bf16 %v4526, %v4524
        %v4643 = vpack.c.bf16 %v4529, %v4527
        %v4644 = vpack.c.bf16 %v4530, %v4528
        %v4645 = vpack.c.bf16 %v4533, %v4531
        %v4646 = vpack.c.bf16 %v4534, %v4532
        %v4647 = vpack.c.bf16 %v4537, %v4535
        %v4648 = vpack.c.bf16 %v4538, %v4536
        %v4649 = vpack.c.bf16 %v4541, %v4539
        %v4650 = vpack.c.bf16 %v4542, %v4540
        %v4651 = vpack.c.bf16 %v4545, %v4543
        %v4652 = vpack.c.bf16 %v4546, %v4544
        %v4653 = vpack.c.bf16 %v4549, %v4547
        %v4654 = vpack.c.bf16 %v4550, %v4548
        %v4655 = vpack.c.bf16 %v4553, %v4551
        %v4656 = vpack.c.bf16 %v4554, %v4552
        %v4657 = vpack.c.bf16 %v4557, %v4555
        %v4658 = vpack.c.bf16 %v4558, %v4556
        %v4659 = vpack.c.bf16 %v4561, %v4559
        %v4660 = vpack.c.bf16 %v4562, %v4560
        %v4661 = vpack.c.bf16 %v4565, %v4563
        %v4662 = vpack.c.bf16 %v4566, %v4564
        %v4663 = vpack.c.bf16 %v4569, %v4567
        %v4664 = vpack.c.bf16 %v4570, %v4568
        %v4665 = vpack.c.bf16 %v4573, %v4571
        %v4666 = vpack.c.bf16 %v4574, %v4572
        %v4667 = vpack.c.bf16 %v4577, %v4575
        %v4668 = vpack.c.bf16 %v4578, %v4576
        %v4669 = vpack.c.bf16 %v4581, %v4579
        %v4670 = vpack.c.bf16 %v4582, %v4580
        %v4671 = vpack.c.bf16 %v4585, %v4583
        %v4672 = vpack.c.bf16 %v4586, %v4584
        %v4673 = vpack.c.bf16 %v4589, %v4587
        %v4674 = vpack.c.bf16 %v4590, %v4588
        %v4675 = vpack.c.bf16 %v4593, %v4591
        %v4676 = vpack.c.bf16 %v4594, %v4592
        %v4677 = vpack.c.bf16 %v4597, %v4595
        %v4678 = vpack.c.bf16 %v4598, %v4596
        %v4679 = vpack.c.bf16 %v4601, %v4599
        %v4680 = vpack.c.bf16 %v4602, %v4600
        %v4681 = vpack.c.bf16 %v4605, %v4603
        %v4682 = vpack.c.bf16 %v4606, %v4604
        %v4683 = vpack.c.bf16 %v4609, %v4607
        %v4684 = vpack.c.bf16 %v4610, %v4608
        %v4685 = vpack.c.bf16 %v4613, %v4611
        %v4686 = vpack.c.bf16 %v4614, %v4612
        %v4687 = vpack.c.bf16 %v4617, %v4615
        %v4688 = vpack.c.bf16 %v4618, %v4616
        %v4689 = vpack.c.bf16 %v4621, %v4619
        %v4690 = vpack.c.bf16 %v4622, %v4620
        %v4691 = vpack.c.bf16 %v4625, %v4623
        %v4692 = vpack.c.bf16 %v4626, %v4624
        %v4693 = vpack.c.bf16 %v4629, %v4627
        %v4694 = vpack.c.bf16 %v4630, %v4628
        %4695 = vmatprep.subr.bf16.mxu0 0
        %4696 = vmatpush1.bf16.msra.mxu0 %v2669
        %4697 = vmatprep.subr.bf16.mxu0 0
        %4698 = vmatpush1.bf16.msra.mxu0 %v2670
        %4699 = vmatprep.subr.bf16.mxu0 0
        %4700 = vmatpush1.bf16.msra.mxu0 %v2671
        %4701 = vmatprep.subr.bf16.mxu0 0
        %4702 = vmatpush1.bf16.msra.mxu0 %v2672
        %4703 = vmatprep.subr.bf16.mxu0 0
        %4704 = vmatpush1.bf16.msra.mxu0 %v2673
        %4705 = vmatprep.subr.bf16.mxu0 0
        %4706 = vmatpush1.bf16.msra.mxu0 %v2674
        %4707 = vmatprep.subr.bf16.mxu0 0
        %4708 = vmatpush1.bf16.msra.mxu0 %v2675
        %4709 = vmatprep.subr.bf16.mxu0 0
        %4710 = vmatpush1.bf16.msra.mxu0 %v2676
        %4711 = vmatprep.subr.bf16.mxu0 0
        %4712 = vmatpush1.bf16.msra.mxu0 %v2677
        %4713 = vmatprep.subr.bf16.mxu0 0
        %4714 = vmatpush1.bf16.msra.mxu0 %v2678
        %4715 = vmatprep.subr.bf16.mxu0 0
        %4716 = vmatpush1.bf16.msra.mxu0 %v2679
        %4717 = vmatprep.subr.bf16.mxu0 0
        %4718 = vmatpush1.bf16.msra.mxu0 %v2680
        %4719 = vmatprep.subr.bf16.mxu0 0
        %4720 = vmatpush1.bf16.msra.mxu0 %v2681
        %4721 = vmatprep.subr.bf16.mxu0 0
        %4722 = vmatpush1.bf16.msra.mxu0 %v2682
        %4723 = vmatprep.subr.bf16.mxu0 0
        %4724 = vmatpush1.bf16.msra.mxu0 %v2683
        %4725 = vmatprep.subr.bf16.mxu0 0
        %4726 = vmatpush1.bf16.msra.mxu0 %v2684
        %4727 = vmatprep.mubr.bf16.mxu0 %v4632
        %4728 = vmatmul.mubr.bf16.gmra.mrb[0].mxu0 %v4631
        %v4729 = vpop.f32.mrb[0].mxu0
        %v4730 = vadd.f32 0.0, %v4729
        %v4731 = vpop.f32.mrb[0].mxu0
        %v4732 = vpop.f32.mrb[0].mxu0
        %v4733 = vadd.f32 0.0, %v4732
        %v4734 = vpop.f32.mrb[0].mxu0
        %4735 = vmatprep.mubr.bf16.mxu0 %v4634
        %4736 = vmatmul.mubr.bf16.gmra.mrb[0].mxu0 %v4633
        %v4737 = vpop.f32.mrb[0].mxu0
        %v4738 = vadd.f32 0.0, %v4737
        %v4739 = vpop.f32.mrb[0].mxu0
        %v4740 = vpop.f32.mrb[0].mxu0
        %v4741 = vadd.f32 0.0, %v4740
        %v4742 = vpop.f32.mrb[0].mxu0
        %4743 = vmatprep.mubr.bf16.mxu0 %v4636
        %4744 = vmatmul.mubr.bf16.gmra.mrb[0].mxu0 %v4635
        %v4745 = vpop.f32.mrb[0].mxu0
        %v4746 = vadd.f32 0.0, %v4745
        %v4747 = vpop.f32.mrb[0].mxu0
        %v4748 = vpop.f32.mrb[0].mxu0
        %v4749 = vadd.f32 0.0, %v4748
        %v4750 = vpop.f32.mrb[0].mxu0
        %4751 = vmatprep.mubr.bf16.mxu0 %v4638
        %4752 = vmatmul.mubr.bf16.gmra.mrb[0].mxu0 %v4637
        %v4753 = vpop.f32.mrb[0].mxu0
        %v4754 = vadd.f32 0.0, %v4753
        %v4755 = vpop.f32.mrb[0].mxu0
        %v4756 = vpop.f32.mrb[0].mxu0
        %v4757 = vadd.f32 0.0, %v4756
        %v4758 = vpop.f32.mrb[0].mxu0
        %4759 = vmatprep.mubr.bf16.mxu0 %v4640
        %4760 = vmatmul.mubr.bf16.gmra.mrb[0].mxu0 %v4639
        %v4761 = vpop.f32.mrb[0].mxu0
        %v4762 = vadd.f32 0.0, %v4761
        %v4763 = vpop.f32.mrb[0].mxu0
        %v4764 = vpop.f32.mrb[0].mxu0
        %v4765 = vadd.f32 0.0, %v4764
        %v4766 = vpop.f32.mrb[0].mxu0
        %4767 = vmatprep.mubr.bf16.mxu0 %v4642
        %4768 = vmatmul.mubr.bf16.gmra.mrb[0].mxu0 %v4641
        %v4769 = vpop.f32.mrb[0].mxu0
        %v4770 = vadd.f32 0.0, %v4769
        %v4771 = vpop.f32.mrb[0].mxu0
        %v4772 = vpop.f32.mrb[0].mxu0
        %v4773 = vadd.f32 0.0, %v4772
        %v4774 = vpop.f32.mrb[0].mxu0
        %4775 = vmatprep.mubr.bf16.mxu0 %v4644
        %4776 = vmatmul.mubr.bf16.gmra.mrb[0].mxu0 %v4643
        %v4777 = vpop.f32.mrb[0].mxu0
        %v4778 = vadd.f32 0.0, %v4777
        %v4779 = vpop.f32.mrb[0].mxu0
        %v4780 = vpop.f32.mrb[0].mxu0
        %v4781 = vadd.f32 0.0, %v4780
        %v4782 = vpop.f32.mrb[0].mxu0
        %4783 = vmatprep.mubr.bf16.mxu0 %v4646
        %4784 = vmatmul.mubr.bf16.gmra.mrb[0].mxu0 %v4645
        %v4785 = vpop.f32.mrb[0].mxu0
        %v4786 = vadd.f32 0.0, %v4785
        %v4787 = vpop.f32.mrb[0].mxu0
        %v4788 = vpop.f32.mrb[0].mxu0
        %v4789 = vadd.f32 0.0, %v4788
        %v4790 = vpop.f32.mrb[0].mxu0
        %4791 = vdwg.mxu0
        %4792 = vmatprep.subr.bf16.mxu0 0
        %4793 = vmatpush1.bf16.msra.mxu0 %v2685
        %4794 = vmatprep.subr.bf16.mxu0 0
        %4795 = vmatpush1.bf16.msra.mxu0 %v2686
        %4796 = vmatprep.subr.bf16.mxu0 0
        %4797 = vmatpush1.bf16.msra.mxu0 %v2687
        %4798 = vmatprep.subr.bf16.mxu0 0
        %4799 = vmatpush1.bf16.msra.mxu0 %v2688
        %4800 = vmatprep.subr.bf16.mxu0 0
        %4801 = vmatpush1.bf16.msra.mxu0 %v2689
        %4802 = vmatprep.subr.bf16.mxu0 0
        %4803 = vmatpush1.bf16.msra.mxu0 %v2690
        %4804 = vmatprep.subr.bf16.mxu0 0
        %4805 = vmatpush1.bf16.msra.mxu0 %v2691
        %4806 = vmatprep.subr.bf16.mxu0 0
        %4807 = vmatpush1.bf16.msra.mxu0 %v2692
        %4808 = vmatprep.subr.bf16.mxu0 0
        %4809 = vmatpush1.bf16.msra.mxu0 %v2693
        %4810 = vmatprep.subr.bf16.mxu0 0
        %4811 = vmatpush1.bf16.msra.mxu0 %v2694
        %4812 = vmatprep.subr.bf16.mxu0 0
        %4813 = vmatpush1.bf16.msra.mxu0 %v2695
        %4814 = vmatprep.subr.bf16.mxu0 0
        %4815 = vmatpush1.bf16.msra.mxu0 %v2696
        %4816 = vmatprep.subr.bf16.mxu0 0
        %4817 = vmatpush1.bf16.msra.mxu0 %v2697
        %4818 = vmatprep.subr.bf16.mxu0 0
        %4819 = vmatpush1.bf16.msra.mxu0 %v2698
        %4820 = vmatprep.subr.bf16.mxu0 0
        %4821 = vmatpush1.bf16.msra.mxu0 %v2699
        %4822 = vmatprep.subr.bf16.mxu0 0
        %4823 = vmatpush1.bf16.msra.mxu0 %v2700
        %4824 = vmatprep.mubr.bf16.mxu0 %v4648
        %4825 = vmatmul.mubr.bf16.gmra.mrb[0].mxu0 %v4647
        %v4826 = vpop.f32.mrb[0].mxu0
        %v4827 = vadd.f32 0.0, %v4826
        %v4828 = vpop.f32.mrb[0].mxu0
        %v4829 = vpop.f32.mrb[0].mxu0
        %v4830 = vadd.f32 0.0, %v4829
        %v4831 = vpop.f32.mrb[0].mxu0
        %4832 = vmatprep.mubr.bf16.mxu0 %v4650
        %4833 = vmatmul.mubr.bf16.gmra.mrb[0].mxu0 %v4649
        %v4834 = vpop.f32.mrb[0].mxu0
        %v4835 = vadd.f32 0.0, %v4834
        %v4836 = vpop.f32.mrb[0].mxu0
        %v4837 = vpop.f32.mrb[0].mxu0
        %v4838 = vadd.f32 0.0, %v4837
        %v4839 = vpop.f32.mrb[0].mxu0
        %4840 = vmatprep.mubr.bf16.mxu0 %v4652
        %4841 = vmatmul.mubr.bf16.gmra.mrb[0].mxu0 %v4651
        %v4842 = vpop.f32.mrb[0].mxu0
        %v4843 = vadd.f32 0.0, %v4842
        %v4844 = vpop.f32.mrb[0].mxu0
        %v4845 = vpop.f32.mrb[0].mxu0
        %v4846 = vadd.f32 0.0, %v4845
        %v4847 = vpop.f32.mrb[0].mxu0
        %4848 = vmatprep.mubr.bf16.mxu0 %v4654
        %4849 = vmatmul.mubr.bf16.gmra.mrb[0].mxu0 %v4653
        %v4850 = vpop.f32.mrb[0].mxu0
        %v4851 = vadd.f32 0.0, %v4850
        %v4852 = vpop.f32.mrb[0].mxu0
        %v4853 = vpop.f32.mrb[0].mxu0
        %v4854 = vadd.f32 0.0, %v4853
        %v4855 = vpop.f32.mrb[0].mxu0
        %4856 = vmatprep.mubr.bf16.mxu0 %v4656
        %4857 = vmatmul.mubr.bf16.gmra.mrb[0].mxu0 %v4655
        %v4858 = vpop.f32.mrb[0].mxu0
        %v4859 = vadd.f32 0.0, %v4858
        %v4860 = vpop.f32.mrb[0].mxu0
        %v4861 = vpop.f32.mrb[0].mxu0
        %v4862 = vadd.f32 0.0, %v4861
        %v4863 = vpop.f32.mrb[0].mxu0
        %4864 = vmatprep.mubr.bf16.mxu0 %v4658
        %4865 = vmatmul.mubr.bf16.gmra.mrb[0].mxu0 %v4657
        %v4866 = vpop.f32.mrb[0].mxu0
        %v4867 = vadd.f32 0.0, %v4866
        %v4868 = vpop.f32.mrb[0].mxu0
        %v4869 = vpop.f32.mrb[0].mxu0
        %v4870 = vadd.f32 0.0, %v4869
        %v4871 = vpop.f32.mrb[0].mxu0
        %4872 = vmatprep.mubr.bf16.mxu0 %v4660
        %4873 = vmatmul.mubr.bf16.gmra.mrb[0].mxu0 %v4659
        %v4874 = vpop.f32.mrb[0].mxu0
        %v4875 = vadd.f32 0.0, %v4874
        %v4876 = vpop.f32.mrb[0].mxu0
        %v4877 = vpop.f32.mrb[0].mxu0
        %v4878 = vadd.f32 0.0, %v4877
        %v4879 = vpop.f32.mrb[0].mxu0
        %4880 = vmatprep.mubr.bf16.mxu0 %v4662
        %4881 = vmatmul.mubr.bf16.gmra.mrb[0].mxu0 %v4661
        %v4882 = vpop.f32.mrb[0].mxu0
        %v4883 = vadd.f32 0.0, %v4882
        %v4884 = vpop.f32.mrb[0].mxu0
        %v4885 = vpop.f32.mrb[0].mxu0
        %v4886 = vadd.f32 0.0, %v4885
        %v4887 = vpop.f32.mrb[0].mxu0
        %4888 = vdwg.mxu0
        %4889 = vmatprep.subr.bf16.mxu0 0
        %4890 = vmatpush1.bf16.msra.mxu0 %v2701
        %4891 = vmatprep.subr.bf16.mxu0 0
        %4892 = vmatpush1.bf16.msra.mxu0 %v2702
        %4893 = vmatprep.subr.bf16.mxu0 0
        %4894 = vmatpush1.bf16.msra.mxu0 %v2703
        %4895 = vmatprep.subr.bf16.mxu0 0
        %4896 = vmatpush1.bf16.msra.mxu0 %v2704
        %4897 = vmatprep.subr.bf16.mxu0 0
        %4898 = vmatpush1.bf16.msra.mxu0 %v2705
        %4899 = vmatprep.subr.bf16.mxu0 0
        %4900 = vmatpush1.bf16.msra.mxu0 %v2706
        %4901 = vmatprep.subr.bf16.mxu0 0
        %4902 = vmatpush1.bf16.msra.mxu0 %v2707
        %4903 = vmatprep.subr.bf16.mxu0 0
        %4904 = vmatpush1.bf16.msra.mxu0 %v2708
        %4905 = vmatprep.subr.bf16.mxu0 0
        %4906 = vmatpush1.bf16.msra.mxu0 %v2709
        %4907 = vmatprep.subr.bf16.mxu0 0
        %4908 = vmatpush1.bf16.msra.mxu0 %v2710
        %4909 = vmatprep.subr.bf16.mxu0 0
        %4910 = vmatpush1.bf16.msra.mxu0 %v2711
        %4911 = vmatprep.subr.bf16.mxu0 0
        %4912 = vmatpush1.bf16.msra.mxu0 %v2712
        %4913 = vmatprep.subr.bf16.mxu0 0
        %4914 = vmatpush1.bf16.msra.mxu0 %v2713
        %4915 = vmatprep.subr.bf16.mxu0 0
        %4916 = vmatpush1.bf16.msra.mxu0 %v2714
        %4917 = vmatprep.subr.bf16.mxu0 0
        %4918 = vmatpush1.bf16.msra.mxu0 %v2715
        %4919 = vmatprep.subr.bf16.mxu0 0
        %4920 = vmatpush1.bf16.msra.mxu0 %v2716
        %4921 = vmatprep.mubr.bf16.mxu0 %v4664
        %4922 = vmatmul.mubr.bf16.gmra.mrb[0].mxu0 %v4663
        %v4923 = vpop.f32.mrb[0].mxu0
        %v4924 = vadd.f32 0.0, %v4923
        %v4925 = vpop.f32.mrb[0].mxu0
        %v4926 = vpop.f32.mrb[0].mxu0
        %v4927 = vadd.f32 0.0, %v4926
        %v4928 = vpop.f32.mrb[0].mxu0
        %4929 = vmatprep.mubr.bf16.mxu0 %v4666
        %4930 = vmatmul.mubr.bf16.gmra.mrb[0].mxu0 %v4665
        %v4931 = vpop.f32.mrb[0].mxu0
        %v4932 = vadd.f32 0.0, %v4931
        %v4933 = vpop.f32.mrb[0].mxu0
        %v4934 = vpop.f32.mrb[0].mxu0
        %v4935 = vadd.f32 0.0, %v4934
        %v4936 = vpop.f32.mrb[0].mxu0
        %4937 = vmatprep.mubr.bf16.mxu0 %v4668
        %4938 = vmatmul.mubr.bf16.gmra.mrb[0].mxu0 %v4667
        %v4939 = vpop.f32.mrb[0].mxu0
        %v4940 = vadd.f32 0.0, %v4939
        %v4941 = vpop.f32.mrb[0].mxu0
        %v4942 = vpop.f32.mrb[0].mxu0
        %v4943 = vadd.f32 0.0, %v4942
        %v4944 = vpop.f32.mrb[0].mxu0
        %4945 = vmatprep.mubr.bf16.mxu0 %v4670
        %4946 = vmatmul.mubr.bf16.gmra.mrb[0].mxu0 %v4669
        %v4947 = vpop.f32.mrb[0].mxu0
        %v4948 = vadd.f32 0.0, %v4947
        %v4949 = vpop.f32.mrb[0].mxu0
        %v4950 = vpop.f32.mrb[0].mxu0
        %v4951 = vadd.f32 0.0, %v4950
        %v4952 = vpop.f32.mrb[0].mxu0
        %4953 = vmatprep.mubr.bf16.mxu0 %v4672
        %4954 = vmatmul.mubr.bf16.gmra.mrb[0].mxu0 %v4671
        %v4955 = vpop.f32.mrb[0].mxu0
        %v4956 = vadd.f32 0.0, %v4955
        %v4957 = vpop.f32.mrb[0].mxu0
        %v4958 = vpop.f32.mrb[0].mxu0
        %v4959 = vadd.f32 0.0, %v4958
        %v4960 = vpop.f32.mrb[0].mxu0
        %4961 = vmatprep.mubr.bf16.mxu0 %v4674
        %4962 = vmatmul.mubr.bf16.gmra.mrb[0].mxu0 %v4673
        %v4963 = vpop.f32.mrb[0].mxu0
        %v4964 = vadd.f32 0.0, %v4963
        %v4965 = vpop.f32.mrb[0].mxu0
        %v4966 = vpop.f32.mrb[0].mxu0
        %v4967 = vadd.f32 0.0, %v4966
        %v4968 = vpop.f32.mrb[0].mxu0
        %4969 = vmatprep.mubr.bf16.mxu0 %v4676
        %4970 = vmatmul.mubr.bf16.gmra.mrb[0].mxu0 %v4675
        %v4971 = vpop.f32.mrb[0].mxu0
        %v4972 = vadd.f32 0.0, %v4971
        %v4973 = vpop.f32.mrb[0].mxu0
        %v4974 = vpop.f32.mrb[0].mxu0
        %v4975 = vadd.f32 0.0, %v4974
        %v4976 = vpop.f32.mrb[0].mxu0
        %4977 = vmatprep.mubr.bf16.mxu0 %v4678
        %4978 = vmatmul.mubr.bf16.gmra.mrb[0].mxu0 %v4677
        %v4979 = vpop.f32.mrb[0].mxu0
        %v4980 = vadd.f32 0.0, %v4979
        %v4981 = vpop.f32.mrb[0].mxu0
        %v4982 = vpop.f32.mrb[0].mxu0
        %v4983 = vadd.f32 0.0, %v4982
        %v4984 = vpop.f32.mrb[0].mxu0
        %4985 = vdwg.mxu0
        %4986 = vmatprep.subr.bf16.mxu0 0
        %4987 = vmatpush1.bf16.msra.mxu0 %v2717
        %4988 = vmatprep.subr.bf16.mxu0 0
        %4989 = vmatpush1.bf16.msra.mxu0 %v2718
        %4990 = vmatprep.subr.bf16.mxu0 0
        %4991 = vmatpush1.bf16.msra.mxu0 %v2719
        %4992 = vmatprep.subr.bf16.mxu0 0
        %4993 = vmatpush1.bf16.msra.mxu0 %v2720
        %4994 = vmatprep.subr.bf16.mxu0 0
        %4995 = vmatpush1.bf16.msra.mxu0 %v2721
        %4996 = vmatprep.subr.bf16.mxu0 0
        %4997 = vmatpush1.bf16.msra.mxu0 %v2722
        %4998 = vmatprep.subr.bf16.mxu0 0
        %4999 = vmatpush1.bf16.msra.mxu0 %v2723
        %5000 = vmatprep.subr.bf16.mxu0 0
        %5001 = vmatpush1.bf16.msra.mxu0 %v2724
        %5002 = vmatprep.subr.bf16.mxu0 0
        %5003 = vmatpush1.bf16.msra.mxu0 %v2725
        %5004 = vmatprep.subr.bf16.mxu0 0
        %5005 = vmatpush1.bf16.msra.mxu0 %v2726
        %5006 = vmatprep.subr.bf16.mxu0 0
        %5007 = vmatpush1.bf16.msra.mxu0 %v2727
        %5008 = vmatprep.subr.bf16.mxu0 0
        %5009 = vmatpush1.bf16.msra.mxu0 %v2728
        %5010 = vmatprep.subr.bf16.mxu0 0
        %5011 = vmatpush1.bf16.msra.mxu0 %v2729
        %5012 = vmatprep.subr.bf16.mxu0 0
        %5013 = vmatpush1.bf16.msra.mxu0 %v2730
        %5014 = vmatprep.subr.bf16.mxu0 0
        %5015 = vmatpush1.bf16.msra.mxu0 %v2731
        %5016 = vmatprep.subr.bf16.mxu0 0
        %5017 = vmatpush1.bf16.msra.mxu0 %v2732
        %5018 = vmatprep.mubr.bf16.mxu0 %v4680
        %5019 = vmatmul.mubr.bf16.gmra.mrb[0].mxu0 %v4679
        %v5020 = vpop.f32.mrb[0].mxu0
        %v5021 = vadd.f32 0.0, %v5020
        %v5022 = vpop.f32.mrb[0].mxu0
        %v5023 = vpop.f32.mrb[0].mxu0
        %v5024 = vadd.f32 0.0, %v5023
        %v5025 = vpop.f32.mrb[0].mxu0
        %5026 = vmatprep.mubr.bf16.mxu0 %v4682
        %5027 = vmatmul.mubr.bf16.gmra.mrb[0].mxu0 %v4681
        %v5028 = vpop.f32.mrb[0].mxu0
        %v5029 = vadd.f32 0.0, %v5028
        %v5030 = vpop.f32.mrb[0].mxu0
        %v5031 = vpop.f32.mrb[0].mxu0
        %v5032 = vadd.f32 0.0, %v5031
        %v5033 = vpop.f32.mrb[0].mxu0
        %5034 = vmatprep.mubr.bf16.mxu0 %v4684
        %5035 = vmatmul.mubr.bf16.gmra.mrb[0].mxu0 %v4683
        %v5036 = vpop.f32.mrb[0].mxu0
        %v5037 = vadd.f32 0.0, %v5036
        %v5038 = vpop.f32.mrb[0].mxu0
        %v5039 = vpop.f32.mrb[0].mxu0
        %v5040 = vadd.f32 0.0, %v5039
        %v5041 = vpop.f32.mrb[0].mxu0
        %5042 = vmatprep.mubr.bf16.mxu0 %v4686
        %5043 = vmatmul.mubr.bf16.gmra.mrb[0].mxu0 %v4685
        %v5044 = vpop.f32.mrb[0].mxu0
        %v5045 = vadd.f32 0.0, %v5044
        %v5046 = vpop.f32.mrb[0].mxu0
        %v5047 = vpop.f32.mrb[0].mxu0
        %v5048 = vadd.f32 0.0, %v5047
        %v5049 = vpop.f32.mrb[0].mxu0
        %5050 = vmatprep.mubr.bf16.mxu0 %v4688
        %5051 = vmatmul.mubr.bf16.gmra.mrb[0].mxu0 %v4687
        %v5052 = vpop.f32.mrb[0].mxu0
        %v5053 = vadd.f32 0.0, %v5052
        %v5054 = vpop.f32.mrb[0].mxu0
        %v5055 = vpop.f32.mrb[0].mxu0
        %v5056 = vadd.f32 0.0, %v5055
        %v5057 = vpop.f32.mrb[0].mxu0
        %5058 = vmatprep.mubr.bf16.mxu0 %v4690
        %5059 = vmatmul.mubr.bf16.gmra.mrb[0].mxu0 %v4689
        %v5060 = vpop.f32.mrb[0].mxu0
        %v5061 = vadd.f32 0.0, %v5060
        %v5062 = vpop.f32.mrb[0].mxu0
        %v5063 = vpop.f32.mrb[0].mxu0
        %v5064 = vadd.f32 0.0, %v5063
        %v5065 = vpop.f32.mrb[0].mxu0
        %5066 = vmatprep.mubr.bf16.mxu0 %v4692
        %5067 = vmatmul.mubr.bf16.gmra.mrb[0].mxu0 %v4691
        %v5068 = vpop.f32.mrb[0].mxu0
        %v5069 = vadd.f32 0.0, %v5068
        %v5070 = vpop.f32.mrb[0].mxu0
        %v5071 = vpop.f32.mrb[0].mxu0
        %v5072 = vadd.f32 0.0, %v5071
        %v5073 = vpop.f32.mrb[0].mxu0
        %5074 = vmatprep.mubr.bf16.mxu0 %v4694
        %5075 = vmatmul.mubr.bf16.gmra.mrb[0].mxu0 %v4693
        %v5076 = vpop.f32.mrb[0].mxu0
        %v5077 = vadd.f32 0.0, %v5076
        %v5078 = vpop.f32.mrb[0].mxu0
        %v5079 = vpop.f32.mrb[0].mxu0
        %v5080 = vadd.f32 0.0, %v5079
        %v5081 = vpop.f32.mrb[0].mxu0
        %5082 = vdwg.mxu0
        %v5083 = vpack.c.bf16 %v4733, %v4730
        %v5084 = vpack.c.bf16 %v4741, %v4738
        %v5085 = vpack.c.bf16 %v4749, %v4746
        %v5086 = vpack.c.bf16 %v4757, %v4754
        %v5087 = vpack.c.bf16 %v4765, %v4762
        %v5088 = vpack.c.bf16 %v4773, %v4770
        %v5089 = vpack.c.bf16 %v4781, %v4778
        %v5090 = vpack.c.bf16 %v4789, %v4786
        %v5091 = vpack.c.bf16 %v4830, %v4827
        %v5092 = vpack.c.bf16 %v4838, %v4835
        %v5093 = vpack.c.bf16 %v4846, %v4843
        %v5094 = vpack.c.bf16 %v4854, %v4851
        %v5095 = vpack.c.bf16 %v4862, %v4859
        %v5096 = vpack.c.bf16 %v4870, %v4867
        %v5097 = vpack.c.bf16 %v4878, %v4875
        %v5098 = vpack.c.bf16 %v4886, %v4883
        %v5099 = vpack.c.bf16 %v4927, %v4924
        %v5100 = vpack.c.bf16 %v4935, %v4932
        %v5101 = vpack.c.bf16 %v4943, %v4940
        %v5102 = vpack.c.bf16 %v4951, %v4948
        %v5103 = vpack.c.bf16 %v4959, %v4956
        %v5104 = vpack.c.bf16 %v4967, %v4964
        %v5105 = vpack.c.bf16 %v4975, %v4972
        %v5106 = vpack.c.bf16 %v4983, %v4980
        %v5107 = vpack.c.bf16 %v5024, %v5021
        %v5108 = vpack.c.bf16 %v5032, %v5029
        %v5109 = vpack.c.bf16 %v5040, %v5037
        %v5110 = vpack.c.bf16 %v5048, %v5045
        %v5111 = vpack.c.bf16 %v5056, %v5053
        %v5112 = vpack.c.bf16 %v5064, %v5061
        %v5113 = vpack.c.bf16 %v5072, %v5069
        %v5114 = vpack.c.bf16 %v5080, %v5077
        %v5115 = vld [vmem:[#allocation10] sm:$0xf]
        %v5116 = vld [vmem:[#allocation10 + $0x4] sm:$0xf]
        %v5117 = vld [vmem:[#allocation10 + $0x8] sm:$0xf]
        %v5118 = vld [vmem:[#allocation10 + $0xc] sm:$0xf]
        %v5119 = vld [vmem:[#allocation10 + $0x10] sm:$0xf]
        %v5120 = vld [vmem:[#allocation10 + $0x14] sm:$0xf]
        %v5121 = vld [vmem:[#allocation10 + $0x18] sm:$0xf]
        %v5122 = vld [vmem:[#allocation10 + $0x1c] sm:$0xf]
        %v5123 = vld [vmem:[#allocation10 + $0x20] sm:$0xf]
        %v5124 = vld [vmem:[#allocation10 + $0x24] sm:$0xf]
        %v5125 = vld [vmem:[#allocation10 + $0x28] sm:$0xf]
        %v5126 = vld [vmem:[#allocation10 + $0x2c] sm:$0xf]
        %v5127 = vld [vmem:[#allocation10 + $0x30] sm:$0xf]
        %v5128 = vld [vmem:[#allocation10 + $0x34] sm:$0xf]
        %v5129 = vld [vmem:[#allocation10 + $0x38] sm:$0xf]
        %v5130 = vld [vmem:[#allocation10 + $0x3c] sm:$0xf]
        %v5135 = vunpack.c.l.b16 %v5115
        %v5136 = vunpack.c.l.b16 %v5116
        %v5137 = vunpack.c.l.b16 %v5117
        %v5138 = vunpack.c.l.b16 %v5118
        %v5139 = vpack.c.b16 %v5136, %v5135
        %v5140 = vpack.c.b16 %v5138, %v5137
        %v5144 = vsel %vm2733, %v5083, 0
        %v5147 = vsel %vm2733, %v5084, 0
        %v5150 = vsel %vm2733, %v5085, 0
        %v5153 = vsel %vm2733, %v5086, 0
        %v5156 = vsel %vm2733, %v5087, 0
        %v5159 = vsel %vm2733, %v5088, 0
        %v5162 = vsel %vm2733, %v5089, 0
        %v5165 = vsel %vm2733, %v5090, 0
        %5167 = vmatprep.subr.bf16.mxu0 0
        %5168 = vmatpush1.bf16.msra.mxu0 %v5139
        %5169 = vmatprep.subr.bf16.mxu0 0
        %5170 = vmatpush1.bf16.msra.mxu0 %v5140
        %5171 = vmatprep.subr.bf16.mxu0 0
        %5172 = vmatpush1.bf16.msra.mxu0 0
        %5173 = vmatprep.subr.bf16.mxu0 0
        %5174 = vmatpush1.bf16.msra.mxu0 0
        %5175 = vmatprep.subr.bf16.mxu0 0
        %5176 = vmatpush1.bf16.msra.mxu0 0
        %5177 = vmatprep.subr.bf16.mxu0 0
        %5178 = vmatpush1.bf16.msra.mxu0 0
        %5179 = vmatprep.subr.bf16.mxu0 0
        %5180 = vmatpush1.bf16.msra.mxu0 0
        %5181 = vmatprep.subr.bf16.mxu0 0
        %5182 = vmatpush1.bf16.msra.mxu0 0
        %5183 = vmatprep.subr.bf16.mxu0 0
        %5184 = vmatpush1.bf16.msra.mxu0 0
        %5185 = vmatprep.subr.bf16.mxu0 0
        %5186 = vmatpush1.bf16.msra.mxu0 0
        %5187 = vmatprep.subr.bf16.mxu0 0
        %5188 = vmatpush1.bf16.msra.mxu0 0
        %5189 = vmatprep.subr.bf16.mxu0 0
        %5190 = vmatpush1.bf16.msra.mxu0 0
        %5191 = vmatprep.subr.bf16.mxu0 0
        %5192 = vmatpush1.bf16.msra.mxu0 0
        %5193 = vmatprep.subr.bf16.mxu0 0
        %5194 = vmatpush1.bf16.msra.mxu0 0
        %5195 = vmatprep.subr.bf16.mxu0 0
        %5196 = vmatpush1.bf16.msra.mxu0 0
        %5197 = vmatprep.subr.bf16.mxu0 0
        %5198 = vmatpush1.bf16.msra.mxu0 0
        %5199 = vmatprep.mubr.bf16.mxu0 0
        %5200 = vmatmul.mubr.bf16.gmra.mrb[0].mxu0 %v5144
        %v5201 = vpop.f32.mrb[0].mxu0
        %v5202 = vadd.f32 0.0, %v5201
        %v5203 = vpop.f32.mrb[0].mxu0
        %v5204 = vpop.f32.mrb[0].mxu0
        %v5205 = vadd.f32 0.0, %v5204
        %v5206 = vpop.f32.mrb[0].mxu0
        %5207 = vmatprep.mubr.bf16.mxu0 0
        %5208 = vmatmul.mubr.bf16.gmra.mrb[0].mxu0 %v5147
        %v5209 = vpop.f32.mrb[0].mxu0
        %v5210 = vadd.f32 0.0, %v5209
        %v5211 = vpop.f32.mrb[0].mxu0
        %v5212 = vpop.f32.mrb[0].mxu0
        %v5213 = vadd.f32 0.0, %v5212
        %v5214 = vpop.f32.mrb[0].mxu0
        %5215 = vmatprep.mubr.bf16.mxu0 0
        %5216 = vmatmul.mubr.bf16.gmra.mrb[0].mxu0 %v5150
        %v5217 = vpop.f32.mrb[0].mxu0
        %v5218 = vadd.f32 0.0, %v5217
        %v5219 = vpop.f32.mrb[0].mxu0
        %v5220 = vpop.f32.mrb[0].mxu0
        %v5221 = vadd.f32 0.0, %v5220
        %v5222 = vpop.f32.mrb[0].mxu0
        %5223 = vmatprep.mubr.bf16.mxu0 0
        %5224 = vmatmul.mubr.bf16.gmra.mrb[0].mxu0 %v5153
        %v5225 = vpop.f32.mrb[0].mxu0
        %v5226 = vadd.f32 0.0, %v5225
        %v5227 = vpop.f32.mrb[0].mxu0
        %v5228 = vpop.f32.mrb[0].mxu0
        %v5229 = vadd.f32 0.0, %v5228
        %v5230 = vpop.f32.mrb[0].mxu0
        %5231 = vmatprep.mubr.bf16.mxu0 0
        %5232 = vmatmul.mubr.bf16.gmra.mrb[0].mxu0 %v5156
        %v5233 = vpop.f32.mrb[0].mxu0
        %v5234 = vadd.f32 0.0, %v5233
        %v5235 = vpop.f32.mrb[0].mxu0
        %v5236 = vpop.f32.mrb[0].mxu0
        %v5237 = vadd.f32 0.0, %v5236
        %v5238 = vpop.f32.mrb[0].mxu0
        %5239 = vmatprep.mubr.bf16.mxu0 0
        %5240 = vmatmul.mubr.bf16.gmra.mrb[0].mxu0 %v5159
        %v5241 = vpop.f32.mrb[0].mxu0
        %v5242 = vadd.f32 0.0, %v5241
        %v5243 = vpop.f32.mrb[0].mxu0
        %v5244 = vpop.f32.mrb[0].mxu0
        %v5245 = vadd.f32 0.0, %v5244
        %v5246 = vpop.f32.mrb[0].mxu0
        %5247 = vmatprep.mubr.bf16.mxu0 0
        %5248 = vmatmul.mubr.bf16.gmra.mrb[0].mxu0 %v5162
        %v5249 = vpop.f32.mrb[0].mxu0
        %v5250 = vadd.f32 0.0, %v5249
        %v5251 = vpop.f32.mrb[0].mxu0
        %v5252 = vpop.f32.mrb[0].mxu0
        %v5253 = vadd.f32 0.0, %v5252
        %v5254 = vpop.f32.mrb[0].mxu0
        %5255 = vmatprep.mubr.bf16.mxu0 0
        %5256 = vmatmul.mubr.bf16.gmra.mrb[0].mxu0 %v5165
        %v5257 = vpop.f32.mrb[0].mxu0
        %v5258 = vadd.f32 0.0, %v5257
        %v5259 = vpop.f32.mrb[0].mxu0
        %v5260 = vpop.f32.mrb[0].mxu0
        %v5261 = vadd.f32 0.0, %v5260
        %v5262 = vpop.f32.mrb[0].mxu0
        %5263 = vdwg.mxu0
        %v5268 = vunpack.c.l.b16 %v5119
        %v5269 = vunpack.c.l.b16 %v5120
        %v5270 = vunpack.c.l.b16 %v5121
        %v5271 = vunpack.c.l.b16 %v5122
        %v5272 = vpack.c.b16 %v5269, %v5268
        %v5273 = vpack.c.b16 %v5271, %v5270
        %v5277 = vsel %vm2733, %v5091, 0
        %v5280 = vsel %vm2733, %v5092, 0
        %v5283 = vsel %vm2733, %v5093, 0
        %v5286 = vsel %vm2733, %v5094, 0
        %v5289 = vsel %vm2733, %v5095, 0
        %v5292 = vsel %vm2733, %v5096, 0
        %v5295 = vsel %vm2733, %v5097, 0
        %v5298 = vsel %vm2733, %v5098, 0
        %5300 = vmatprep.subr.bf16.mxu0 0
        %5301 = vmatpush1.bf16.msra.mxu0 %v5272
        %5302 = vmatprep.subr.bf16.mxu0 0
        %5303 = vmatpush1.bf16.msra.mxu0 %v5273
        %5304 = vmatprep.subr.bf16.mxu0 0
        %5305 = vmatpush1.bf16.msra.mxu0 0
        %5306 = vmatprep.subr.bf16.mxu0 0
        %5307 = vmatpush1.bf16.msra.mxu0 0
        %5308 = vmatprep.subr.bf16.mxu0 0
        %5309 = vmatpush1.bf16.msra.mxu0 0
        %5310 = vmatprep.subr.bf16.mxu0 0
        %5311 = vmatpush1.bf16.msra.mxu0 0
        %5312 = vmatprep.subr.bf16.mxu0 0
        %5313 = vmatpush1.bf16.msra.mxu0 0
        %5314 = vmatprep.subr.bf16.mxu0 0
        %5315 = vmatpush1.bf16.msra.mxu0 0
        %5316 = vmatprep.subr.bf16.mxu0 0
        %5317 = vmatpush1.bf16.msra.mxu0 0
        %5318 = vmatprep.subr.bf16.mxu0 0
        %5319 = vmatpush1.bf16.msra.mxu0 0
        %5320 = vmatprep.subr.bf16.mxu0 0
        %5321 = vmatpush1.bf16.msra.mxu0 0
        %5322 = vmatprep.subr.bf16.mxu0 0
        %5323 = vmatpush1.bf16.msra.mxu0 0
        %5324 = vmatprep.subr.bf16.mxu0 0
        %5325 = vmatpush1.bf16.msra.mxu0 0
        %5326 = vmatprep.subr.bf16.mxu0 0
        %5327 = vmatpush1.bf16.msra.mxu0 0
        %5328 = vmatprep.subr.bf16.mxu0 0
        %5329 = vmatpush1.bf16.msra.mxu0 0
        %5330 = vmatprep.subr.bf16.mxu0 0
        %5331 = vmatpush1.bf16.msra.mxu0 0
        %5332 = vmatprep.mubr.bf16.mxu0 0
        %5333 = vmatmul.mubr.bf16.gmra.mrb[0].mxu0 %v5277
        %v5334 = vpop.f32.mrb[0].mxu0
        %v5335 = vadd.f32 0.0, %v5334
        %v5336 = vpop.f32.mrb[0].mxu0
        %v5337 = vpop.f32.mrb[0].mxu0
        %v5338 = vadd.f32 0.0, %v5337
        %v5339 = vpop.f32.mrb[0].mxu0
        %5340 = vmatprep.mubr.bf16.mxu0 0
        %5341 = vmatmul.mubr.bf16.gmra.mrb[0].mxu0 %v5280
        %v5342 = vpop.f32.mrb[0].mxu0
        %v5343 = vadd.f32 0.0, %v5342
        %v5344 = vpop.f32.mrb[0].mxu0
        %v5345 = vpop.f32.mrb[0].mxu0
        %v5346 = vadd.f32 0.0, %v5345
        %v5347 = vpop.f32.mrb[0].mxu0
        %5348 = vmatprep.mubr.bf16.mxu0 0
        %5349 = vmatmul.mubr.bf16.gmra.mrb[0].mxu0 %v5283
        %v5350 = vpop.f32.mrb[0].mxu0
        %v5351 = vadd.f32 0.0, %v5350
        %v5352 = vpop.f32.mrb[0].mxu0
        %v5353 = vpop.f32.mrb[0].mxu0
        %v5354 = vadd.f32 0.0, %v5353
        %v5355 = vpop.f32.mrb[0].mxu0
        %5356 = vmatprep.mubr.bf16.mxu0 0
        %5357 = vmatmul.mubr.bf16.gmra.mrb[0].mxu0 %v5286
        %v5358 = vpop.f32.mrb[0].mxu0
        %v5359 = vadd.f32 0.0, %v5358
        %v5360 = vpop.f32.mrb[0].mxu0
        %v5361 = vpop.f32.mrb[0].mxu0
        %v5362 = vadd.f32 0.0, %v5361
        %v5363 = vpop.f32.mrb[0].mxu0
        %5364 = vmatprep.mubr.bf16.mxu0 0
        %5365 = vmatmul.mubr.bf16.gmra.mrb[0].mxu0 %v5289
        %v5366 = vpop.f32.mrb[0].mxu0
        %v5367 = vadd.f32 0.0, %v5366
        %v5368 = vpop.f32.mrb[0].mxu0
        %v5369 = vpop.f32.mrb[0].mxu0
        %v5370 = vadd.f32 0.0, %v5369
        %v5371 = vpop.f32.mrb[0].mxu0
        %5372 = vmatprep.mubr.bf16.mxu0 0
        %5373 = vmatmul.mubr.bf16.gmra.mrb[0].mxu0 %v5292
        %v5374 = vpop.f32.mrb[0].mxu0
        %v5375 = vadd.f32 0.0, %v5374
        %v5376 = vpop.f32.mrb[0].mxu0
        %v5377 = vpop.f32.mrb[0].mxu0
        %v5378 = vadd.f32 0.0, %v5377
        %v5379 = vpop.f32.mrb[0].mxu0
        %5380 = vmatprep.mubr.bf16.mxu0 0
        %5381 = vmatmul.mubr.bf16.gmra.mrb[0].mxu0 %v5295
        %v5382 = vpop.f32.mrb[0].mxu0
        %v5383 = vadd.f32 0.0, %v5382
        %v5384 = vpop.f32.mrb[0].mxu0
        %v5385 = vpop.f32.mrb[0].mxu0
        %v5386 = vadd.f32 0.0, %v5385
        %v5387 = vpop.f32.mrb[0].mxu0
        %5388 = vmatprep.mubr.bf16.mxu0 0
        %5389 = vmatmul.mubr.bf16.gmra.mrb[0].mxu0 %v5298
        %v5390 = vpop.f32.mrb[0].mxu0
        %v5391 = vadd.f32 0.0, %v5390
        %v5392 = vpop.f32.mrb[0].mxu0
        %v5393 = vpop.f32.mrb[0].mxu0
        %v5394 = vadd.f32 0.0, %v5393
        %v5395 = vpop.f32.mrb[0].mxu0
        %5396 = vdwg.mxu0
        %v5401 = vunpack.c.l.b16 %v5123
        %v5402 = vunpack.c.l.b16 %v5124
        %v5403 = vunpack.c.l.b16 %v5125
        %v5404 = vunpack.c.l.b16 %v5126
        %v5405 = vpack.c.b16 %v5402, %v5401
        %v5406 = vpack.c.b16 %v5404, %v5403
        %v5410 = vsel %vm2733, %v5099, 0
        %v5413 = vsel %vm2733, %v5100, 0
        %v5416 = vsel %vm2733, %v5101, 0
        %v5419 = vsel %vm2733, %v5102, 0
        %v5422 = vsel %vm2733, %v5103, 0
        %v5425 = vsel %vm2733, %v5104, 0
        %v5428 = vsel %vm2733, %v5105, 0
        %v5431 = vsel %vm2733, %v5106, 0
        %5433 = vmatprep.subr.bf16.mxu0 0
        %5434 = vmatpush1.bf16.msra.mxu0 %v5405
        %5435 = vmatprep.subr.bf16.mxu0 0
        %5436 = vmatpush1.bf16.msra.mxu0 %v5406
        %5437 = vmatprep.subr.bf16.mxu0 0
        %5438 = vmatpush1.bf16.msra.mxu0 0
        %5439 = vmatprep.subr.bf16.mxu0 0
        %5440 = vmatpush1.bf16.msra.mxu0 0
        %5441 = vmatprep.subr.bf16.mxu0 0
        %5442 = vmatpush1.bf16.msra.mxu0 0
        %5443 = vmatprep.subr.bf16.mxu0 0
        %5444 = vmatpush1.bf16.msra.mxu0 0
        %5445 = vmatprep.subr.bf16.mxu0 0
        %5446 = vmatpush1.bf16.msra.mxu0 0
        %5447 = vmatprep.subr.bf16.mxu0 0
        %5448 = vmatpush1.bf16.msra.mxu0 0
        %5449 = vmatprep.subr.bf16.mxu0 0
        %5450 = vmatpush1.bf16.msra.mxu0 0
        %5451 = vmatprep.subr.bf16.mxu0 0
        %5452 = vmatpush1.bf16.msra.mxu0 0
        %5453 = vmatprep.subr.bf16.mxu0 0
        %5454 = vmatpush1.bf16.msra.mxu0 0
        %5455 = vmatprep.subr.bf16.mxu0 0
        %5456 = vmatpush1.bf16.msra.mxu0 0
        %5457 = vmatprep.subr.bf16.mxu0 0
        %5458 = vmatpush1.bf16.msra.mxu0 0
        %5459 = vmatprep.subr.bf16.mxu0 0
        %5460 = vmatpush1.bf16.msra.mxu0 0
        %5461 = vmatprep.subr.bf16.mxu0 0
        %5462 = vmatpush1.bf16.msra.mxu0 0
        %5463 = vmatprep.subr.bf16.mxu0 0
        %5464 = vmatpush1.bf16.msra.mxu0 0
        %5465 = vmatprep.mubr.bf16.mxu0 0
        %5466 = vmatmul.mubr.bf16.gmra.mrb[0].mxu0 %v5410
        %v5467 = vpop.f32.mrb[0].mxu0
        %v5468 = vadd.f32 0.0, %v5467
        %v5469 = vpop.f32.mrb[0].mxu0
        %v5470 = vpop.f32.mrb[0].mxu0
        %v5471 = vadd.f32 0.0, %v5470
        %v5472 = vpop.f32.mrb[0].mxu0
        %5473 = vmatprep.mubr.bf16.mxu0 0
        %5474 = vmatmul.mubr.bf16.gmra.mrb[0].mxu0 %v5413
        %v5475 = vpop.f32.mrb[0].mxu0
        %v5476 = vadd.f32 0.0, %v5475
        %v5477 = vpop.f32.mrb[0].mxu0
        %v5478 = vpop.f32.mrb[0].mxu0
        %v5479 = vadd.f32 0.0, %v5478
        %v5480 = vpop.f32.mrb[0].mxu0
        %5481 = vmatprep.mubr.bf16.mxu0 0
        %5482 = vmatmul.mubr.bf16.gmra.mrb[0].mxu0 %v5416
        %v5483 = vpop.f32.mrb[0].mxu0
        %v5484 = vadd.f32 0.0, %v5483
        %v5485 = vpop.f32.mrb[0].mxu0
        %v5486 = vpop.f32.mrb[0].mxu0
        %v5487 = vadd.f32 0.0, %v5486
        %v5488 = vpop.f32.mrb[0].mxu0
        %5489 = vmatprep.mubr.bf16.mxu0 0
        %5490 = vmatmul.mubr.bf16.gmra.mrb[0].mxu0 %v5419
        %v5491 = vpop.f32.mrb[0].mxu0
        %v5492 = vadd.f32 0.0, %v5491
        %v5493 = vpop.f32.mrb[0].mxu0
        %v5494 = vpop.f32.mrb[0].mxu0
        %v5495 = vadd.f32 0.0, %v5494
        %v5496 = vpop.f32.mrb[0].mxu0
        %5497 = vmatprep.mubr.bf16.mxu0 0
        %5498 = vmatmul.mubr.bf16.gmra.mrb[0].mxu0 %v5422
        %v5499 = vpop.f32.mrb[0].mxu0
        %v5500 = vadd.f32 0.0, %v5499
        %v5501 = vpop.f32.mrb[0].mxu0
        %v5502 = vpop.f32.mrb[0].mxu0
        %v5503 = vadd.f32 0.0, %v5502
        %v5504 = vpop.f32.mrb[0].mxu0
        %5505 = vmatprep.mubr.bf16.mxu0 0
        %5506 = vmatmul.mubr.bf16.gmra.mrb[0].mxu0 %v5425
        %v5507 = vpop.f32.mrb[0].mxu0
        %v5508 = vadd.f32 0.0, %v5507
        %v5509 = vpop.f32.mrb[0].mxu0
        %v5510 = vpop.f32.mrb[0].mxu0
        %v5511 = vadd.f32 0.0, %v5510
        %v5512 = vpop.f32.mrb[0].mxu0
        %5513 = vmatprep.mubr.bf16.mxu0 0
        %5514 = vmatmul.mubr.bf16.gmra.mrb[0].mxu0 %v5428
        %v5515 = vpop.f32.mrb[0].mxu0
        %v5516 = vadd.f32 0.0, %v5515
        %v5517 = vpop.f32.mrb[0].mxu0
        %v5518 = vpop.f32.mrb[0].mxu0
        %v5519 = vadd.f32 0.0, %v5518
        %v5520 = vpop.f32.mrb[0].mxu0
        %5521 = vmatprep.mubr.bf16.mxu0 0
        %5522 = vmatmul.mubr.bf16.gmra.mrb[0].mxu0 %v5431
        %v5523 = vpop.f32.mrb[0].mxu0
        %v5524 = vadd.f32 0.0, %v5523
        %v5525 = vpop.f32.mrb[0].mxu0
        %v5526 = vpop.f32.mrb[0].mxu0
        %v5527 = vadd.f32 0.0, %v5526
        %v5528 = vpop.f32.mrb[0].mxu0
        %5529 = vdwg.mxu0
        %v5534 = vunpack.c.l.b16 %v5127
        %v5535 = vunpack.c.l.b16 %v5128
        %v5536 = vunpack.c.l.b16 %v5129
        %v5537 = vunpack.c.l.b16 %v5130
        %v5538 = vpack.c.b16 %v5535, %v5534
        %v5539 = vpack.c.b16 %v5537, %v5536
        %v5543 = vsel %vm2733, %v5107, 0
        %v5546 = vsel %vm2733, %v5108, 0
        %v5549 = vsel %vm2733, %v5109, 0
        %v5552 = vsel %vm2733, %v5110, 0
        %v5555 = vsel %vm2733, %v5111, 0
        %v5558 = vsel %vm2733, %v5112, 0
        %v5561 = vsel %vm2733, %v5113, 0
        %v5564 = vsel %vm2733, %v5114, 0
        %5566 = vmatprep.subr.bf16.mxu0 0
        %5567 = vmatpush1.bf16.msra.mxu0 %v5538
        %5568 = vmatprep.subr.bf16.mxu0 0
        %5569 = vmatpush1.bf16.msra.mxu0 %v5539
        %5570 = vmatprep.subr.bf16.mxu0 0
        %5571 = vmatpush1.bf16.msra.mxu0 0
        %5572 = vmatprep.subr.bf16.mxu0 0
        %5573 = vmatpush1.bf16.msra.mxu0 0
        %5574 = vmatprep.subr.bf16.mxu0 0
        %5575 = vmatpush1.bf16.msra.mxu0 0
        %5576 = vmatprep.subr.bf16.mxu0 0
        %5577 = vmatpush1.bf16.msra.mxu0 0
        %5578 = vmatprep.subr.bf16.mxu0 0
        %5579 = vmatpush1.bf16.msra.mxu0 0
        %5580 = vmatprep.subr.bf16.mxu0 0
        %5581 = vmatpush1.bf16.msra.mxu0 0
        %5582 = vmatprep.subr.bf16.mxu0 0
        %5583 = vmatpush1.bf16.msra.mxu0 0
        %5584 = vmatprep.subr.bf16.mxu0 0
        %5585 = vmatpush1.bf16.msra.mxu0 0
        %5586 = vmatprep.subr.bf16.mxu0 0
        %5587 = vmatpush1.bf16.msra.mxu0 0
        %5588 = vmatprep.subr.bf16.mxu0 0
        %5589 = vmatpush1.bf16.msra.mxu0 0
        %5590 = vmatprep.subr.bf16.mxu0 0
        %5591 = vmatpush1.bf16.msra.mxu0 0
        %5592 = vmatprep.subr.bf16.mxu0 0
        %5593 = vmatpush1.bf16.msra.mxu0 0
        %5594 = vmatprep.subr.bf16.mxu0 0
        %5595 = vmatpush1.bf16.msra.mxu0 0
        %5596 = vmatprep.subr.bf16.mxu0 0
        %5597 = vmatpush1.bf16.msra.mxu0 0
        %5598 = vmatprep.mubr.bf16.mxu0 0
        %5599 = vmatmul.mubr.bf16.gmra.mrb[0].mxu0 %v5543
        %v5600 = vpop.f32.mrb[0].mxu0
        %v5601 = vadd.f32 0.0, %v5600
        %v5602 = vpop.f32.mrb[0].mxu0
        %v5603 = vpop.f32.mrb[0].mxu0
        %v5604 = vadd.f32 0.0, %v5603
        %v5605 = vpop.f32.mrb[0].mxu0
        %5606 = vmatprep.mubr.bf16.mxu0 0
        %5607 = vmatmul.mubr.bf16.gmra.mrb[0].mxu0 %v5546
        %v5608 = vpop.f32.mrb[0].mxu0
        %v5609 = vadd.f32 0.0, %v5608
        %v5610 = vpop.f32.mrb[0].mxu0
        %v5611 = vpop.f32.mrb[0].mxu0
        %v5612 = vadd.f32 0.0, %v5611
        %v5613 = vpop.f32.mrb[0].mxu0
        %5614 = vmatprep.mubr.bf16.mxu0 0
        %5615 = vmatmul.mubr.bf16.gmra.mrb[0].mxu0 %v5549
        %v5616 = vpop.f32.mrb[0].mxu0
        %v5617 = vadd.f32 0.0, %v5616
        %v5618 = vpop.f32.mrb[0].mxu0
        %v5619 = vpop.f32.mrb[0].mxu0
        %v5620 = vadd.f32 0.0, %v5619
        %v5621 = vpop.f32.mrb[0].mxu0
        %5622 = vmatprep.mubr.bf16.mxu0 0
        %5623 = vmatmul.mubr.bf16.gmra.mrb[0].mxu0 %v5552
        %v5624 = vpop.f32.mrb[0].mxu0
        %v5625 = vadd.f32 0.0, %v5624
        %v5626 = vpop.f32.mrb[0].mxu0
        %v5627 = vpop.f32.mrb[0].mxu0
        %v5628 = vadd.f32 0.0, %v5627
        %v5629 = vpop.f32.mrb[0].mxu0
        %5630 = vmatprep.mubr.bf16.mxu0 0
        %5631 = vmatmul.mubr.bf16.gmra.mrb[0].mxu0 %v5555
        %v5632 = vpop.f32.mrb[0].mxu0
        %v5633 = vadd.f32 0.0, %v5632
        %v5634 = vpop.f32.mrb[0].mxu0
        %v5635 = vpop.f32.mrb[0].mxu0
        %v5636 = vadd.f32 0.0, %v5635
        %v5637 = vpop.f32.mrb[0].mxu0
        %5638 = vmatprep.mubr.bf16.mxu0 0
        %5639 = vmatmul.mubr.bf16.gmra.mrb[0].mxu0 %v5558
        %v5640 = vpop.f32.mrb[0].mxu0
        %v5641 = vadd.f32 0.0, %v5640
        %v5642 = vpop.f32.mrb[0].mxu0
        %v5643 = vpop.f32.mrb[0].mxu0
        %v5644 = vadd.f32 0.0, %v5643
        %v5645 = vpop.f32.mrb[0].mxu0
        %5646 = vmatprep.mubr.bf16.mxu0 0
        %5647 = vmatmul.mubr.bf16.gmra.mrb[0].mxu0 %v5561
        %v5648 = vpop.f32.mrb[0].mxu0
        %v5649 = vadd.f32 0.0, %v5648
        %v5650 = vpop.f32.mrb[0].mxu0
        %v5651 = vpop.f32.mrb[0].mxu0
        %v5652 = vadd.f32 0.0, %v5651
        %v5653 = vpop.f32.mrb[0].mxu0
        %5654 = vmatprep.mubr.bf16.mxu0 0
        %5655 = vmatmul.mubr.bf16.gmra.mrb[0].mxu0 %v5564
        %v5656 = vpop.f32.mrb[0].mxu0
        %v5657 = vadd.f32 0.0, %v5656
        %v5658 = vpop.f32.mrb[0].mxu0
        %v5659 = vpop.f32.mrb[0].mxu0
        %v5660 = vadd.f32 0.0, %v5659
        %v5661 = vpop.f32.mrb[0].mxu0
        %5662 = vdwg.mxu0
        %v5663 = vadd.f32 %v5202, %v5335
        %v5664 = vadd.f32 %v5663, %v5468
        %v5665 = vadd.f32 %v5664, %v5601
        %v5666 = vadd.f32 %v5205, %v5338
        %v5667 = vadd.f32 %v5666, %v5471
        %v5668 = vadd.f32 %v5667, %v5604
        %v5669 = vadd.f32 %v5210, %v5343
        %v5670 = vadd.f32 %v5669, %v5476
        %v5671 = vadd.f32 %v5670, %v5609
        %v5672 = vadd.f32 %v5213, %v5346
        %v5673 = vadd.f32 %v5672, %v5479
        %v5674 = vadd.f32 %v5673, %v5612
        %v5675 = vadd.f32 %v5218, %v5351
        %v5676 = vadd.f32 %v5675, %v5484
        %v5677 = vadd.f32 %v5676, %v5617
        %v5678 = vadd.f32 %v5221, %v5354
        %v5679 = vadd.f32 %v5678, %v5487
        %v5680 = vadd.f32 %v5679, %v5620
        %v5681 = vadd.f32 %v5226, %v5359
        %v5682 = vadd.f32 %v5681, %v5492
        %v5683 = vadd.f32 %v5682, %v5625
        %v5684 = vadd.f32 %v5229, %v5362
        %v5685 = vadd.f32 %v5684, %v5495
        %v5686 = vadd.f32 %v5685, %v5628
        %v5687 = vadd.f32 %v5234, %v5367
        %v5688 = vadd.f32 %v5687, %v5500
        %v5689 = vadd.f32 %v5688, %v5633
        %v5690 = vadd.f32 %v5237, %v5370
        %v5691 = vadd.f32 %v5690, %v5503
        %v5692 = vadd.f32 %v5691, %v5636
        %v5693 = vadd.f32 %v5242, %v5375
        %v5694 = vadd.f32 %v5693, %v5508
        %v5695 = vadd.f32 %v5694, %v5641
        %v5696 = vadd.f32 %v5245, %v5378
        %v5697 = vadd.f32 %v5696, %v5511
        %v5698 = vadd.f32 %v5697, %v5644
        %v5699 = vadd.f32 %v5250, %v5383
        %v5700 = vadd.f32 %v5699, %v5516
        %v5701 = vadd.f32 %v5700, %v5649
        %v5702 = vadd.f32 %v5253, %v5386
        %v5703 = vadd.f32 %v5702, %v5519
        %v5704 = vadd.f32 %v5703, %v5652
        %v5705 = vadd.f32 %v5258, %v5391
        %v5706 = vadd.f32 %v5705, %v5524
        %v5707 = vadd.f32 %v5706, %v5657
        %v5708 = vadd.f32 %v5261, %v5394
        %v5709 = vadd.f32 %v5708, %v5527
        %v5710 = vadd.f32 %v5709, %v5660
        %v5711 = vld [vmem:[%s8] sm:$0x1]
        %v5713 = vlaneseq
        %v5714 = vshrl.u32 %v5713, 7
        %v5715 = vsub.s32 0, %v5714
        %v5716 = vrot.slane %v5711, %v5715
        %v5718 = vadd.f32 %v5665, %v5716
        %v5719 = vadd.f32 %v5668, %v5716
        %v5720 = vadd.f32 %v5671, %v5716
        %v5721 = vadd.f32 %v5674, %v5716
        %v5722 = vadd.f32 %v5677, %v5716
        %v5723 = vadd.f32 %v5680, %v5716
        %v5724 = vadd.f32 %v5683, %v5716
        %v5725 = vadd.f32 %v5686, %v5716
        %v5726 = vadd.f32 %v5689, %v5716
        %v5727 = vadd.f32 %v5692, %v5716
        %v5728 = vadd.f32 %v5695, %v5716
        %v5729 = vadd.f32 %v5698, %v5716
        %v5730 = vadd.f32 %v5701, %v5716
        %v5731 = vadd.f32 %v5704, %v5716
        %v5732 = vadd.f32 %v5707, %v5716
        %v5733 = vadd.f32 %v5710, %v5716
        %v5734 = vadd.f32 %v609, %v5718
        %v5735 = vadd.f32 %v610, %v5719
        %v5736 = vadd.f32 %v611, %v5720
        %v5737 = vadd.f32 %v612, %v5721
        %v5738 = vadd.f32 %v613, %v5722
        %v5739 = vadd.f32 %v614, %v5723
        %v5740 = vadd.f32 %v615, %v5724
        %v5741 = vadd.f32 %v616, %v5725
        %v5742 = vadd.f32 %v617, %v5726
        %v5743 = vadd.f32 %v618, %v5727
        %v5744 = vadd.f32 %v619, %v5728
        %v5745 = vadd.f32 %v620, %v5729
        %v5746 = vadd.f32 %v621, %v5730
        %v5747 = vadd.f32 %v622, %v5731
        %v5748 = vadd.f32 %v623, %v5732
        %v5749 = vadd.f32 %v624, %v5733
        %v5750 = vld [vmem:[%s9] sm:$0x1]
        %v5751 = vld [vmem:[%s10] sm:$0x1]
        %5752 = vadd.xlane.f32.xlu0 %v5734
        %v5753 = vpop.xlane.xlu0 %5752
        %5754 = vadd.xlane.f32.xlu0 %v5735
        %v5755 = vpop.xlane.xlu0 %5754
        %5756 = vadd.xlane.f32.xlu0 %v5736
        %v5757 = vpop.xlane.xlu0 %5756
        %5758 = vadd.xlane.f32.xlu0 %v5737
        %v5759 = vpop.xlane.xlu0 %5758
        %5760 = vadd.xlane.f32.xlu0 %v5738
        %v5761 = vpop.xlane.xlu0 %5760
        %5762 = vadd.xlane.f32.xlu0 %v5739
        %v5763 = vpop.xlane.xlu0 %5762
        %5764 = vadd.xlane.f32.xlu0 %v5740
        %v5765 = vpop.xlane.xlu0 %5764
        %5766 = vadd.xlane.f32.xlu0 %v5741
        %v5767 = vpop.xlane.xlu0 %5766
        %5768 = vadd.xlane.f32.xlu0 %v5742
        %v5769 = vpop.xlane.xlu0 %5768
        %5770 = vadd.xlane.f32.xlu0 %v5743
        %v5771 = vpop.xlane.xlu0 %5770
        %5772 = vadd.xlane.f32.xlu0 %v5744
        %v5773 = vpop.xlane.xlu0 %5772
        %5774 = vadd.xlane.f32.xlu0 %v5745
        %v5775 = vpop.xlane.xlu0 %5774
        %5776 = vadd.xlane.f32.xlu0 %v5746
        %v5777 = vpop.xlane.xlu0 %5776
        %5778 = vadd.xlane.f32.xlu0 %v5747
        %v5779 = vpop.xlane.xlu0 %5778
        %5780 = vadd.xlane.f32.xlu0 %v5748
        %v5781 = vpop.xlane.xlu0 %5780
        %5782 = vadd.xlane.f32.xlu0 %v5749
        %v5783 = vpop.xlane.xlu0 %5782
        %v5784 = vmul.f32 %v5753, %v691
        %v5785 = vmul.f32 %v5755, %v691
        %v5786 = vmul.f32 %v5757, %v691
        %v5787 = vmul.f32 %v5759, %v691
        %v5788 = vmul.f32 %v5761, %v691
        %v5789 = vmul.f32 %v5763, %v691
        %v5790 = vmul.f32 %v5765, %v691
        %v5791 = vmul.f32 %v5767, %v691
        %v5792 = vmul.f32 %v5769, %v691
        %v5793 = vmul.f32 %v5771, %v691
        %v5794 = vmul.f32 %v5773, %v691
        %v5795 = vmul.f32 %v5775, %v691
        %v5796 = vmul.f32 %v5777, %v691
        %v5797 = vmul.f32 %v5779, %v691
        %v5798 = vmul.f32 %v5781, %v691
        %v5799 = vmul.f32 %v5783, %v691
        %v5800 = vsub.f32 %v5734, %v5784
        %v5801 = vsub.f32 %v5735, %v5785
        %v5802 = vsub.f32 %v5736, %v5786
        %v5803 = vsub.f32 %v5737, %v5787
        %v5804 = vsub.f32 %v5738, %v5788
        %v5805 = vsub.f32 %v5739, %v5789
        %v5806 = vsub.f32 %v5740, %v5790
        %v5807 = vsub.f32 %v5741, %v5791
        %v5808 = vsub.f32 %v5742, %v5792
        %v5809 = vsub.f32 %v5743, %v5793
        %v5810 = vsub.f32 %v5744, %v5794
        %v5811 = vsub.f32 %v5745, %v5795
        %v5812 = vsub.f32 %v5746, %v5796
        %v5813 = vsub.f32 %v5747, %v5797
        %v5814 = vsub.f32 %v5748, %v5798
        %v5815 = vsub.f32 %v5749, %v5799
        %v5816 = vmul.f32 %v5800, %v5800
        %v5817 = vmul.f32 %v5801, %v5801
        %v5818 = vmul.f32 %v5802, %v5802
        %v5819 = vmul.f32 %v5803, %v5803
        %v5820 = vmul.f32 %v5804, %v5804
        %v5821 = vmul.f32 %v5805, %v5805
        %v5822 = vmul.f32 %v5806, %v5806
        %v5823 = vmul.f32 %v5807, %v5807
        %v5824 = vmul.f32 %v5808, %v5808
        %v5825 = vmul.f32 %v5809, %v5809
        %v5826 = vmul.f32 %v5810, %v5810
        %v5827 = vmul.f32 %v5811, %v5811
        %v5828 = vmul.f32 %v5812, %v5812
        %v5829 = vmul.f32 %v5813, %v5813
        %v5830 = vmul.f32 %v5814, %v5814
        %v5831 = vmul.f32 %v5815, %v5815
        %5832 = vadd.xlane.f32.xlu0 %v5816
        %v5833 = vpop.xlane.xlu0 %5832
        %5834 = vadd.xlane.f32.xlu0 %v5817
        %v5835 = vpop.xlane.xlu0 %5834
        %5836 = vadd.xlane.f32.xlu0 %v5818
        %v5837 = vpop.xlane.xlu0 %5836
        %5838 = vadd.xlane.f32.xlu0 %v5819
        %v5839 = vpop.xlane.xlu0 %5838
        %5840 = vadd.xlane.f32.xlu0 %v5820
        %v5841 = vpop.xlane.xlu0 %5840
        %5842 = vadd.xlane.f32.xlu0 %v5821
        %v5843 = vpop.xlane.xlu0 %5842
        %5844 = vadd.xlane.f32.xlu0 %v5822
        %v5845 = vpop.xlane.xlu0 %5844
        %5846 = vadd.xlane.f32.xlu0 %v5823
        %v5847 = vpop.xlane.xlu0 %5846
        %5848 = vadd.xlane.f32.xlu0 %v5824
        %v5849 = vpop.xlane.xlu0 %5848
        %5850 = vadd.xlane.f32.xlu0 %v5825
        %v5851 = vpop.xlane.xlu0 %5850
        %5852 = vadd.xlane.f32.xlu0 %v5826
        %v5853 = vpop.xlane.xlu0 %5852
        %5854 = vadd.xlane.f32.xlu0 %v5827
        %v5855 = vpop.xlane.xlu0 %5854
        %5856 = vadd.xlane.f32.xlu0 %v5828
        %v5857 = vpop.xlane.xlu0 %5856
        %5858 = vadd.xlane.f32.xlu0 %v5829
        %v5859 = vpop.xlane.xlu0 %5858
        %5860 = vadd.xlane.f32.xlu0 %v5830
        %v5861 = vpop.xlane.xlu0 %5860
        %5862 = vadd.xlane.f32.xlu0 %v5831
        %v5863 = vpop.xlane.xlu0 %5862
        %v5864 = vmul.f32 %v5833, %v691
        %v5865 = vmul.f32 %v5835, %v691
        %v5866 = vmul.f32 %v5837, %v691
        %v5867 = vmul.f32 %v5839, %v691
        %v5868 = vmul.f32 %v5841, %v691
        %v5869 = vmul.f32 %v5843, %v691
        %v5870 = vmul.f32 %v5845, %v691
        %v5871 = vmul.f32 %v5847, %v691
        %v5872 = vmul.f32 %v5849, %v691
        %v5873 = vmul.f32 %v5851, %v691
        %v5874 = vmul.f32 %v5853, %v691
        %v5875 = vmul.f32 %v5855, %v691
        %v5876 = vmul.f32 %v5857, %v691
        %v5877 = vmul.f32 %v5859, %v691
        %v5878 = vmul.f32 %v5861, %v691
        %v5879 = vmul.f32 %v5863, %v691
        %v5880 = vadd.f32 %v5864, 1e-05
        %v5881 = vadd.f32 %v5865, 1e-05
        %v5882 = vadd.f32 %v5866, 1e-05
        %v5883 = vadd.f32 %v5867, 1e-05
        %v5884 = vadd.f32 %v5868, 1e-05
        %v5885 = vadd.f32 %v5869, 1e-05
        %v5886 = vadd.f32 %v5870, 1e-05
        %v5887 = vadd.f32 %v5871, 1e-05
        %v5888 = vadd.f32 %v5872, 1e-05
        %v5889 = vadd.f32 %v5873, 1e-05
        %v5890 = vadd.f32 %v5874, 1e-05
        %v5891 = vadd.f32 %v5875, 1e-05
        %v5892 = vadd.f32 %v5876, 1e-05
        %v5893 = vadd.f32 %v5877, 1e-05
        %v5894 = vadd.f32 %v5878, 1e-05
        %v5895 = vadd.f32 %v5879, 1e-05
        %v5896 = vrsqrt.pop %v5880
        %v5897 = vrsqrt.pop %v5881
        %v5898 = vrsqrt.pop %v5882
        %v5899 = vrsqrt.pop %v5883
        %v5900 = vrsqrt.pop %v5884
        %v5901 = vrsqrt.pop %v5885
        %v5902 = vrsqrt.pop %v5886
        %v5903 = vrsqrt.pop %v5887
        %v5904 = vrsqrt.pop %v5888
        %v5905 = vrsqrt.pop %v5889
        %v5906 = vrsqrt.pop %v5890
        %v5907 = vrsqrt.pop %v5891
        %v5908 = vrsqrt.pop %v5892
        %v5909 = vrsqrt.pop %v5893
        %v5910 = vrsqrt.pop %v5894
        %v5911 = vrsqrt.pop %v5895
        %v5912 = vmul.f32 %v5800, %v5896
        %v5913 = vmul.f32 %v5801, %v5897
        %v5914 = vmul.f32 %v5802, %v5898
        %v5915 = vmul.f32 %v5803, %v5899
        %v5916 = vmul.f32 %v5804, %v5900
        %v5917 = vmul.f32 %v5805, %v5901
        %v5918 = vmul.f32 %v5806, %v5902
        %v5919 = vmul.f32 %v5807, %v5903
        %v5920 = vmul.f32 %v5808, %v5904
        %v5921 = vmul.f32 %v5809, %v5905
        %v5922 = vmul.f32 %v5810, %v5906
        %v5923 = vmul.f32 %v5811, %v5907
        %v5924 = vmul.f32 %v5812, %v5908
        %v5925 = vmul.f32 %v5813, %v5909
        %v5926 = vmul.f32 %v5814, %v5910
        %v5927 = vmul.f32 %v5815, %v5911
        %v5929 = vlaneseq
        %v5930 = vshrl.u32 %v5929, 7
        %v5931 = vsub.s32 0, %v5930
        %v5932 = vrot.slane %v5750, %v5931
        %v5934 = vmul.f32 %v5912, %v5932
        %v5935 = vmul.f32 %v5913, %v5932
        %v5936 = vmul.f32 %v5914, %v5932
        %v5937 = vmul.f32 %v5915, %v5932
        %v5938 = vmul.f32 %v5916, %v5932
        %v5939 = vmul.f32 %v5917, %v5932
        %v5940 = vmul.f32 %v5918, %v5932
        %v5941 = vmul.f32 %v5919, %v5932
        %v5942 = vmul.f32 %v5920, %v5932
        %v5943 = vmul.f32 %v5921, %v5932
        %v5944 = vmul.f32 %v5922, %v5932
        %v5945 = vmul.f32 %v5923, %v5932
        %v5946 = vmul.f32 %v5924, %v5932
        %v5947 = vmul.f32 %v5925, %v5932
        %v5948 = vmul.f32 %v5926, %v5932
        %v5949 = vmul.f32 %v5927, %v5932
        %v5951 = vlaneseq
        %v5952 = vshrl.u32 %v5951, 7
        %v5953 = vsub.s32 0, %v5952
        %v5954 = vrot.slane %v5751, %v5953
        %v5956 = vadd.f32 %v5934, %v5954
        %v5957 = vadd.f32 %v5935, %v5954
        %v5958 = vadd.f32 %v5936, %v5954
        %v5959 = vadd.f32 %v5937, %v5954
        %v5960 = vadd.f32 %v5938, %v5954
        %v5961 = vadd.f32 %v5939, %v5954
        %v5962 = vadd.f32 %v5940, %v5954
        %v5963 = vadd.f32 %v5941, %v5954
        %v5964 = vadd.f32 %v5942, %v5954
        %v5965 = vadd.f32 %v5943, %v5954
        %v5966 = vadd.f32 %v5944, %v5954
        %v5967 = vadd.f32 %v5945, %v5954
        %v5968 = vadd.f32 %v5946, %v5954
        %v5969 = vadd.f32 %v5947, %v5954
        %v5970 = vadd.f32 %v5948, %v5954
        %v5971 = vadd.f32 %v5949, %v5954
        %v5972 = vpack.c.bf16 %v5957, %v5956
        %v5973 = vpack.c.bf16 %v5959, %v5958
        %v5974 = vpack.c.bf16 %v5961, %v5960
        %v5975 = vpack.c.bf16 %v5963, %v5962
        %v5976 = vpack.c.bf16 %v5965, %v5964
        %v5977 = vpack.c.bf16 %v5967, %v5966
        %v5978 = vpack.c.bf16 %v5969, %v5968
        %v5979 = vpack.c.bf16 %v5971, %v5970
        %v5980 = vld [vmem:[#allocation11] sm:$0xff]
        %v5981 = vld [vmem:[#allocation11 + $0x8] sm:$0xff]
        %v5982 = vld [vmem:[#allocation11 + $0x10] sm:$0xff]
        %v5983 = vld [vmem:[#allocation11 + $0x18] sm:$0xff]
        %v5984 = vld [vmem:[#allocation11 + $0x20] sm:$0xff]
        %v5985 = vld [vmem:[#allocation11 + $0x28] sm:$0xff]
        %v5986 = vld [vmem:[#allocation11 + $0x30] sm:$0xff]
        %v5987 = vld [vmem:[#allocation11 + $0x38] sm:$0xff]
        %v5988 = vld [vmem:[#allocation11 + $0x40] sm:$0xff]
        %v5989 = vld [vmem:[#allocation11 + $0x48] sm:$0xff]
        %v5990 = vld [vmem:[#allocation11 + $0x50] sm:$0xff]
        %v5991 = vld [vmem:[#allocation11 + $0x58] sm:$0xff]
        %v5992 = vld [vmem:[#allocation11 + $0x60] sm:$0xff]
        %v5993 = vld [vmem:[#allocation11 + $0x68] sm:$0xff]
        %v5994 = vld [vmem:[#allocation11 + $0x70] sm:$0xff]
        %v5995 = vld [vmem:[#allocation11 + $0x78] sm:$0xff]
        %v5996 = vld [vmem:[#allocation11 + $0x80] sm:$0xff]
        %v5997 = vld [vmem:[#allocation11 + $0x88] sm:$0xff]
        %v5998 = vld [vmem:[#allocation11 + $0x90] sm:$0xff]
        %v5999 = vld [vmem:[#allocation11 + $0x98] sm:$0xff]
        %v6000 = vld [vmem:[#allocation11 + $0xa0] sm:$0xff]
        %v6001 = vld [vmem:[#allocation11 + $0xa8] sm:$0xff]
        %v6002 = vld [vmem:[#allocation11 + $0xb0] sm:$0xff]
        %v6003 = vld [vmem:[#allocation11 + $0xb8] sm:$0xff]
        %v6004 = vld [vmem:[#allocation11 + $0xc0] sm:$0xff]
        %v6005 = vld [vmem:[#allocation11 + $0xc8] sm:$0xff]
        %v6006 = vld [vmem:[#allocation11 + $0xd0] sm:$0xff]
        %v6007 = vld [vmem:[#allocation11 + $0xd8] sm:$0xff]
        %v6008 = vld [vmem:[#allocation11 + $0xe0] sm:$0xff]
        %v6009 = vld [vmem:[#allocation11 + $0xe8] sm:$0xff]
        %v6010 = vld [vmem:[#allocation11 + $0xf0] sm:$0xff]
        %v6011 = vld [vmem:[#allocation11 + $0xf8] sm:$0xff]
        %v6012 = vld [vmem:[%s12] sm:$0xf]
        %v6014 = vlaneseq
        %v6015 = vshrl.u32 %v6014, 7
        %v6016 = vsub.s32 0, %v6015
        %v6017 = vrot.slane %v6012, %v6016
        %v6018 = vlaneseq
        %v6019 = vshrl.u32 %v6018, 7
        %v6020 = vsub.s32 1, %v6019
        %v6021 = vrot.slane %v6012, %v6020
        %v6022 = vlaneseq
        %v6023 = vshrl.u32 %v6022, 7
        %v6024 = vsub.s32 2, %v6023
        %v6025 = vrot.slane %v6012, %v6024
        %v6026 = vlaneseq
        %v6027 = vshrl.u32 %v6026, 7
        %v6028 = vsub.s32 3, %v6027
        %v6029 = vrot.slane %v6012, %v6028
        %v6066 = vunpack.c.l.b16 %v5980
        %v6067 = vunpack.c.h.b16 %v5980
        %v6068 = vunpack.c.l.b16 %v5981
        %v6069 = vunpack.c.h.b16 %v5981
        %v6070 = vunpack.c.l.b16 %v5982
        %v6071 = vunpack.c.h.b16 %v5982
        %v6072 = vunpack.c.l.b16 %v5983
        %v6073 = vunpack.c.h.b16 %v5983
        %v6074 = vunpack.c.l.b16 %v5984
        %v6075 = vunpack.c.h.b16 %v5984
        %v6076 = vunpack.c.l.b16 %v5985
        %v6077 = vunpack.c.h.b16 %v5985
        %v6078 = vunpack.c.l.b16 %v5986
        %v6079 = vunpack.c.h.b16 %v5986
        %v6080 = vunpack.c.l.b16 %v5987
        %v6081 = vunpack.c.h.b16 %v5987
        %v6082 = vunpack.c.l.b16 %v5988
        %v6083 = vunpack.c.h.b16 %v5988
        %v6084 = vunpack.c.l.b16 %v5989
        %v6085 = vunpack.c.h.b16 %v5989
        %v6086 = vunpack.c.l.b16 %v5990
        %v6087 = vunpack.c.h.b16 %v5990
        %v6088 = vunpack.c.l.b16 %v5991
        %v6089 = vunpack.c.h.b16 %v5991
        %v6090 = vunpack.c.l.b16 %v5992
        %v6091 = vunpack.c.h.b16 %v5992
        %v6092 = vunpack.c.l.b16 %v5993
        %v6093 = vunpack.c.h.b16 %v5993
        %v6094 = vunpack.c.l.b16 %v5994
        %v6095 = vunpack.c.h.b16 %v5994
        %v6096 = vunpack.c.l.b16 %v5995
        %v6097 = vunpack.c.h.b16 %v5995
        %v6098 = vunpack.c.l.b16 %v5996
        %v6099 = vunpack.c.h.b16 %v5996
        %v6100 = vunpack.c.l.b16 %v5997
        %v6101 = vunpack.c.h.b16 %v5997
        %v6102 = vunpack.c.l.b16 %v5998
        %v6103 = vunpack.c.h.b16 %v5998
        %v6104 = vunpack.c.l.b16 %v5999
        %v6105 = vunpack.c.h.b16 %v5999
        %v6106 = vunpack.c.l.b16 %v6000
        %v6107 = vunpack.c.h.b16 %v6000
        %v6108 = vunpack.c.l.b16 %v6001
        %v6109 = vunpack.c.h.b16 %v6001
        %v6110 = vunpack.c.l.b16 %v6002
        %v6111 = vunpack.c.h.b16 %v6002
        %v6112 = vunpack.c.l.b16 %v6003
        %v6113 = vunpack.c.h.b16 %v6003
        %v6114 = vunpack.c.l.b16 %v6004
        %v6115 = vunpack.c.h.b16 %v6004
        %v6116 = vunpack.c.l.b16 %v6005
        %v6117 = vunpack.c.h.b16 %v6005
        %v6118 = vunpack.c.l.b16 %v6006
        %v6119 = vunpack.c.h.b16 %v6006
        %v6120 = vunpack.c.l.b16 %v6007
        %v6121 = vunpack.c.h.b16 %v6007
        %v6122 = vunpack.c.l.b16 %v6008
        %v6123 = vunpack.c.h.b16 %v6008
        %v6124 = vunpack.c.l.b16 %v6009
        %v6125 = vunpack.c.h.b16 %v6009
        %v6126 = vunpack.c.l.b16 %v6010
        %v6127 = vunpack.c.h.b16 %v6010
        %v6128 = vunpack.c.l.b16 %v6011
        %v6129 = vunpack.c.h.b16 %v6011
        %v6130 = vpack.c.b16 %v6070, %v6066
        %v6131 = vpack.c.b16 %v6071, %v6067
        %v6132 = vpack.c.b16 %v6072, %v6068
        %v6133 = vpack.c.b16 %v6073, %v6069
        %v6134 = vpack.c.b16 %v6078, %v6074
        %v6135 = vpack.c.b16 %v6079, %v6075
        %v6136 = vpack.c.b16 %v6080, %v6076
        %v6137 = vpack.c.b16 %v6081, %v6077
        %v6138 = vpack.c.b16 %v6086, %v6082
        %v6139 = vpack.c.b16 %v6087, %v6083
        %v6140 = vpack.c.b16 %v6088, %v6084
        %v6141 = vpack.c.b16 %v6089, %v6085
        %v6142 = vpack.c.b16 %v6094, %v6090
        %v6143 = vpack.c.b16 %v6095, %v6091
        %v6144 = vpack.c.b16 %v6096, %v6092
        %v6145 = vpack.c.b16 %v6097, %v6093
        %v6146 = vpack.c.b16 %v6102, %v6098
        %v6147 = vpack.c.b16 %v6103, %v6099
        %v6148 = vpack.c.b16 %v6104, %v6100
        %v6149 = vpack.c.b16 %v6105, %v6101
        %v6150 = vpack.c.b16 %v6110, %v6106
        %v6151 = vpack.c.b16 %v6111, %v6107
        %v6152 = vpack.c.b16 %v6112, %v6108
        %v6153 = vpack.c.b16 %v6113, %v6109
        %v6154 = vpack.c.b16 %v6118, %v6114
        %v6155 = vpack.c.b16 %v6119, %v6115
        %v6156 = vpack.c.b16 %v6120, %v6116
        %v6157 = vpack.c.b16 %v6121, %v6117
        %v6158 = vpack.c.b16 %v6126, %v6122
        %v6159 = vpack.c.b16 %v6127, %v6123
        %v6160 = vpack.c.b16 %v6128, %v6124
        %v6161 = vpack.c.b16 %v6129, %v6125
        %6194 = vmatprep.subr.bf16.mxu0 %v6131
        %6195 = vmatpush1.bf16.msra.mxu0 %v6130
        %6196 = vmatprep.subr.bf16.mxu0 %v6135
        %6197 = vmatpush1.bf16.msra.mxu0 %v6134
        %6198 = vmatprep.subr.bf16.mxu0 %v6139
        %6199 = vmatpush1.bf16.msra.mxu0 %v6138
        %6200 = vmatprep.subr.bf16.mxu0 %v6143
        %6201 = vmatpush1.bf16.msra.mxu0 %v6142
        %6202 = vmatprep.subr.bf16.mxu0 %v6147
        %6203 = vmatpush1.bf16.msra.mxu0 %v6146
        %6204 = vmatprep.subr.bf16.mxu0 %v6151
        %6205 = vmatpush1.bf16.msra.mxu0 %v6150
        %6206 = vmatprep.subr.bf16.mxu0 %v6155
        %6207 = vmatpush1.bf16.msra.mxu0 %v6154
        %6208 = vmatprep.subr.bf16.mxu0 %v6159
        %6209 = vmatpush1.bf16.msra.mxu0 %v6158
        %6210 = vmatprep.subr.bf16.mxu0 0
        %6211 = vmatpush1.bf16.msra.mxu0 0
        %6212 = vmatprep.subr.bf16.mxu0 0
        %6213 = vmatpush1.bf16.msra.mxu0 0
        %6214 = vmatprep.subr.bf16.mxu0 0
        %6215 = vmatpush1.bf16.msra.mxu0 0
        %6216 = vmatprep.subr.bf16.mxu0 0
        %6217 = vmatpush1.bf16.msra.mxu0 0
        %6218 = vmatprep.subr.bf16.mxu0 0
        %6219 = vmatpush1.bf16.msra.mxu0 0
        %6220 = vmatprep.subr.bf16.mxu0 0
        %6221 = vmatpush1.bf16.msra.mxu0 0
        %6222 = vmatprep.subr.bf16.mxu0 0
        %6223 = vmatpush1.bf16.msra.mxu0 0
        %6224 = vmatprep.subr.bf16.mxu0 0
        %6225 = vmatpush1.bf16.msra.mxu0 0
        %6226 = vmatprep.mubr.bf16.mxu0 0
        %6227 = vmatmul.mubr.bf16.gmra.mrb[0].mxu0 %v5972
        %v6228 = vpop.f32.mrb[0].mxu0
        %v6229 = vadd.f32 %v6017, %v6228
        %v6230 = vpop.f32.mrb[0].mxu0
        %v6231 = vadd.f32 %v6021, %v6230
        %v6232 = vpop.f32.mrb[0].mxu0
        %v6233 = vadd.f32 %v6017, %v6232
        %v6234 = vpop.f32.mrb[0].mxu0
        %v6235 = vadd.f32 %v6021, %v6234
        %6236 = vmatprep.mubr.bf16.mxu0 0
        %6237 = vmatmul.mubr.bf16.gmra.mrb[0].mxu0 %v5973
        %v6238 = vpop.f32.mrb[0].mxu0
        %v6239 = vadd.f32 %v6017, %v6238
        %v6240 = vpop.f32.mrb[0].mxu0
        %v6241 = vadd.f32 %v6021, %v6240
        %v6242 = vpop.f32.mrb[0].mxu0
        %v6243 = vadd.f32 %v6017, %v6242
        %v6244 = vpop.f32.mrb[0].mxu0
        %v6245 = vadd.f32 %v6021, %v6244
        %6246 = vmatprep.mubr.bf16.mxu0 0
        %6247 = vmatmul.mubr.bf16.gmra.mrb[0].mxu0 %v5974
        %v6248 = vpop.f32.mrb[0].mxu0
        %v6249 = vadd.f32 %v6017, %v6248
        %v6250 = vpop.f32.mrb[0].mxu0
        %v6251 = vadd.f32 %v6021, %v6250
        %v6252 = vpop.f32.mrb[0].mxu0
        %v6253 = vadd.f32 %v6017, %v6252
        %v6254 = vpop.f32.mrb[0].mxu0
        %v6255 = vadd.f32 %v6021, %v6254
        %6256 = vmatprep.mubr.bf16.mxu0 0
        %6257 = vmatmul.mubr.bf16.gmra.mrb[0].mxu0 %v5975
        %v6258 = vpop.f32.mrb[0].mxu0
        %v6259 = vadd.f32 %v6017, %v6258
        %v6260 = vpop.f32.mrb[0].mxu0
        %v6261 = vadd.f32 %v6021, %v6260
        %v6262 = vpop.f32.mrb[0].mxu0
        %v6263 = vadd.f32 %v6017, %v6262
        %v6264 = vpop.f32.mrb[0].mxu0
        %v6265 = vadd.f32 %v6021, %v6264
        %6266 = vmatprep.mubr.bf16.mxu0 0
        %6267 = vmatmul.mubr.bf16.gmra.mrb[0].mxu0 %v5976
        %v6268 = vpop.f32.mrb[0].mxu0
        %v6269 = vadd.f32 %v6017, %v6268
        %v6270 = vpop.f32.mrb[0].mxu0
        %v6271 = vadd.f32 %v6021, %v6270
        %v6272 = vpop.f32.mrb[0].mxu0
        %v6273 = vadd.f32 %v6017, %v6272
        %v6274 = vpop.f32.mrb[0].mxu0
        %v6275 = vadd.f32 %v6021, %v6274
        %6276 = vmatprep.mubr.bf16.mxu0 0
        %6277 = vmatmul.mubr.bf16.gmra.mrb[0].mxu0 %v5977
        %v6278 = vpop.f32.mrb[0].mxu0
        %v6279 = vadd.f32 %v6017, %v6278
        %v6280 = vpop.f32.mrb[0].mxu0
        %v6281 = vadd.f32 %v6021, %v6280
        %v6282 = vpop.f32.mrb[0].mxu0
        %v6283 = vadd.f32 %v6017, %v6282
        %v6284 = vpop.f32.mrb[0].mxu0
        %v6285 = vadd.f32 %v6021, %v6284
        %6286 = vmatprep.mubr.bf16.mxu0 0
        %6287 = vmatmul.mubr.bf16.gmra.mrb[0].mxu0 %v5978
        %v6288 = vpop.f32.mrb[0].mxu0
        %v6289 = vadd.f32 %v6017, %v6288
        %v6290 = vpop.f32.mrb[0].mxu0
        %v6291 = vadd.f32 %v6021, %v6290
        %v6292 = vpop.f32.mrb[0].mxu0
        %v6293 = vadd.f32 %v6017, %v6292
        %v6294 = vpop.f32.mrb[0].mxu0
        %v6295 = vadd.f32 %v6021, %v6294
        %6296 = vmatprep.mubr.bf16.mxu0 0
        %6297 = vmatmul.mubr.bf16.gmra.mrb[0].mxu0 %v5979
        %v6298 = vpop.f32.mrb[0].mxu0
        %v6299 = vadd.f32 %v6017, %v6298
        %v6300 = vpop.f32.mrb[0].mxu0
        %v6301 = vadd.f32 %v6021, %v6300
        %v6302 = vpop.f32.mrb[0].mxu0
        %v6303 = vadd.f32 %v6017, %v6302
        %v6304 = vpop.f32.mrb[0].mxu0
        %v6305 = vadd.f32 %v6021, %v6304
        %6306 = vdwg.mxu0
        %6307 = vmatprep.subr.bf16.mxu0 %v6133
        %6308 = vmatpush1.bf16.msra.mxu0 %v6132
        %6309 = vmatprep.subr.bf16.mxu0 %v6137
        %6310 = vmatpush1.bf16.msra.mxu0 %v6136
        %6311 = vmatprep.subr.bf16.mxu0 %v6141
        %6312 = vmatpush1.bf16.msra.mxu0 %v6140
        %6313 = vmatprep.subr.bf16.mxu0 %v6145
        %6314 = vmatpush1.bf16.msra.mxu0 %v6144
        %6315 = vmatprep.subr.bf16.mxu0 %v6149
        %6316 = vmatpush1.bf16.msra.mxu0 %v6148
        %6317 = vmatprep.subr.bf16.mxu0 %v6153
        %6318 = vmatpush1.bf16.msra.mxu0 %v6152
        %6319 = vmatprep.subr.bf16.mxu0 %v6157
        %6320 = vmatpush1.bf16.msra.mxu0 %v6156
        %6321 = vmatprep.subr.bf16.mxu0 %v6161
        %6322 = vmatpush1.bf16.msra.mxu0 %v6160
        %6323 = vmatprep.subr.bf16.mxu0 0
        %6324 = vmatpush1.bf16.msra.mxu0 0
        %6325 = vmatprep.subr.bf16.mxu0 0
        %6326 = vmatpush1.bf16.msra.mxu0 0
        %6327 = vmatprep.subr.bf16.mxu0 0
        %6328 = vmatpush1.bf16.msra.mxu0 0
        %6329 = vmatprep.subr.bf16.mxu0 0
        %6330 = vmatpush1.bf16.msra.mxu0 0
        %6331 = vmatprep.subr.bf16.mxu0 0
        %6332 = vmatpush1.bf16.msra.mxu0 0
        %6333 = vmatprep.subr.bf16.mxu0 0
        %6334 = vmatpush1.bf16.msra.mxu0 0
        %6335 = vmatprep.subr.bf16.mxu0 0
        %6336 = vmatpush1.bf16.msra.mxu0 0
        %6337 = vmatprep.subr.bf16.mxu0 0
        %6338 = vmatpush1.bf16.msra.mxu0 0
        %6339 = vmatprep.mubr.bf16.mxu0 0
        %6340 = vmatmul.mubr.bf16.gmra.mrb[0].mxu0 %v5972
        %v6341 = vpop.f32.mrb[0].mxu0
        %v6342 = vadd.f32 %v6025, %v6341
        %v6343 = vpop.f32.mrb[0].mxu0
        %v6344 = vadd.f32 %v6029, %v6343
        %v6345 = vpop.f32.mrb[0].mxu0
        %v6346 = vadd.f32 %v6025, %v6345
        %v6347 = vpop.f32.mrb[0].mxu0
        %v6348 = vadd.f32 %v6029, %v6347
        %6349 = vmatprep.mubr.bf16.mxu0 0
        %6350 = vmatmul.mubr.bf16.gmra.mrb[0].mxu0 %v5973
        %v6351 = vpop.f32.mrb[0].mxu0
        %v6352 = vadd.f32 %v6025, %v6351
        %v6353 = vpop.f32.mrb[0].mxu0
        %v6354 = vadd.f32 %v6029, %v6353
        %v6355 = vpop.f32.mrb[0].mxu0
        %v6356 = vadd.f32 %v6025, %v6355
        %v6357 = vpop.f32.mrb[0].mxu0
        %v6358 = vadd.f32 %v6029, %v6357
        %6359 = vmatprep.mubr.bf16.mxu0 0
        %6360 = vmatmul.mubr.bf16.gmra.mrb[0].mxu0 %v5974
        %v6361 = vpop.f32.mrb[0].mxu0
        %v6362 = vadd.f32 %v6025, %v6361
        %v6363 = vpop.f32.mrb[0].mxu0
        %v6364 = vadd.f32 %v6029, %v6363
        %v6365 = vpop.f32.mrb[0].mxu0
        %v6366 = vadd.f32 %v6025, %v6365
        %v6367 = vpop.f32.mrb[0].mxu0
        %v6368 = vadd.f32 %v6029, %v6367
        %6369 = vmatprep.mubr.bf16.mxu0 0
        %6370 = vmatmul.mubr.bf16.gmra.mrb[0].mxu0 %v5975
        %v6371 = vpop.f32.mrb[0].mxu0
        %v6372 = vadd.f32 %v6025, %v6371
        %v6373 = vpop.f32.mrb[0].mxu0
        %v6374 = vadd.f32 %v6029, %v6373
        %v6375 = vpop.f32.mrb[0].mxu0
        %v6376 = vadd.f32 %v6025, %v6375
        %v6377 = vpop.f32.mrb[0].mxu0
        %v6378 = vadd.f32 %v6029, %v6377
        %6379 = vmatprep.mubr.bf16.mxu0 0
        %6380 = vmatmul.mubr.bf16.gmra.mrb[0].mxu0 %v5976
        %v6381 = vpop.f32.mrb[0].mxu0
        %v6382 = vadd.f32 %v6025, %v6381
        %v6383 = vpop.f32.mrb[0].mxu0
        %v6384 = vadd.f32 %v6029, %v6383
        %v6385 = vpop.f32.mrb[0].mxu0
        %v6386 = vadd.f32 %v6025, %v6385
        %v6387 = vpop.f32.mrb[0].mxu0
        %v6388 = vadd.f32 %v6029, %v6387
        %6389 = vmatprep.mubr.bf16.mxu0 0
        %6390 = vmatmul.mubr.bf16.gmra.mrb[0].mxu0 %v5977
        %v6391 = vpop.f32.mrb[0].mxu0
        %v6392 = vadd.f32 %v6025, %v6391
        %v6393 = vpop.f32.mrb[0].mxu0
        %v6394 = vadd.f32 %v6029, %v6393
        %v6395 = vpop.f32.mrb[0].mxu0
        %v6396 = vadd.f32 %v6025, %v6395
        %v6397 = vpop.f32.mrb[0].mxu0
        %v6398 = vadd.f32 %v6029, %v6397
        %6399 = vmatprep.mubr.bf16.mxu0 0
        %6400 = vmatmul.mubr.bf16.gmra.mrb[0].mxu0 %v5978
        %v6401 = vpop.f32.mrb[0].mxu0
        %v6402 = vadd.f32 %v6025, %v6401
        %v6403 = vpop.f32.mrb[0].mxu0
        %v6404 = vadd.f32 %v6029, %v6403
        %v6405 = vpop.f32.mrb[0].mxu0
        %v6406 = vadd.f32 %v6025, %v6405
        %v6407 = vpop.f32.mrb[0].mxu0
        %v6408 = vadd.f32 %v6029, %v6407
        %6409 = vmatprep.mubr.bf16.mxu0 0
        %6410 = vmatmul.mubr.bf16.gmra.mrb[0].mxu0 %v5979
        %v6411 = vpop.f32.mrb[0].mxu0
        %v6412 = vadd.f32 %v6025, %v6411
        %v6413 = vpop.f32.mrb[0].mxu0
        %v6414 = vadd.f32 %v6029, %v6413
        %v6415 = vpop.f32.mrb[0].mxu0
        %v6416 = vadd.f32 %v6025, %v6415
        %v6417 = vpop.f32.mrb[0].mxu0
        %v6418 = vadd.f32 %v6029, %v6417
        %6419 = vdwg.mxu0
        %v6420 = vmax.f32 %v6229, 0.0
        %v6421 = vmax.f32 %v6231, 0.0
        %v6422 = vmax.f32 %v6342, 0.0
        %v6423 = vmax.f32 %v6344, 0.0
        %v6424 = vmax.f32 %v6233, 0.0
        %v6425 = vmax.f32 %v6235, 0.0
        %v6426 = vmax.f32 %v6346, 0.0
        %v6427 = vmax.f32 %v6348, 0.0
        %v6428 = vmax.f32 %v6239, 0.0
        %v6429 = vmax.f32 %v6241, 0.0
        %v6430 = vmax.f32 %v6352, 0.0
        %v6431 = vmax.f32 %v6354, 0.0
        %v6432 = vmax.f32 %v6243, 0.0
        %v6433 = vmax.f32 %v6245, 0.0
        %v6434 = vmax.f32 %v6356, 0.0
        %v6435 = vmax.f32 %v6358, 0.0
        %v6436 = vmax.f32 %v6249, 0.0
        %v6437 = vmax.f32 %v6251, 0.0
        %v6438 = vmax.f32 %v6362, 0.0
        %v6439 = vmax.f32 %v6364, 0.0
        %v6440 = vmax.f32 %v6253, 0.0
        %v6441 = vmax.f32 %v6255, 0.0
        %v6442 = vmax.f32 %v6366, 0.0
        %v6443 = vmax.f32 %v6368, 0.0
        %v6444 = vmax.f32 %v6259, 0.0
        %v6445 = vmax.f32 %v6261, 0.0
        %v6446 = vmax.f32 %v6372, 0.0
        %v6447 = vmax.f32 %v6374, 0.0
        %v6448 = vmax.f32 %v6263, 0.0
        %v6449 = vmax.f32 %v6265, 0.0
        %v6450 = vmax.f32 %v6376, 0.0
        %v6451 = vmax.f32 %v6378, 0.0
        %v6452 = vmax.f32 %v6269, 0.0
        %v6453 = vmax.f32 %v6271, 0.0
        %v6454 = vmax.f32 %v6382, 0.0
        %v6455 = vmax.f32 %v6384, 0.0
        %v6456 = vmax.f32 %v6273, 0.0
        %v6457 = vmax.f32 %v6275, 0.0
        %v6458 = vmax.f32 %v6386, 0.0
        %v6459 = vmax.f32 %v6388, 0.0
        %v6460 = vmax.f32 %v6279, 0.0
        %v6461 = vmax.f32 %v6281, 0.0
        %v6462 = vmax.f32 %v6392, 0.0
        %v6463 = vmax.f32 %v6394, 0.0
        %v6464 = vmax.f32 %v6283, 0.0
        %v6465 = vmax.f32 %v6285, 0.0
        %v6466 = vmax.f32 %v6396, 0.0
        %v6467 = vmax.f32 %v6398, 0.0
        %v6468 = vmax.f32 %v6289, 0.0
        %v6469 = vmax.f32 %v6291, 0.0
        %v6470 = vmax.f32 %v6402, 0.0
        %v6471 = vmax.f32 %v6404, 0.0
        %v6472 = vmax.f32 %v6293, 0.0
        %v6473 = vmax.f32 %v6295, 0.0
        %v6474 = vmax.f32 %v6406, 0.0
        %v6475 = vmax.f32 %v6408, 0.0
        %v6476 = vmax.f32 %v6299, 0.0
        %v6477 = vmax.f32 %v6301, 0.0
        %v6478 = vmax.f32 %v6412, 0.0
        %v6479 = vmax.f32 %v6414, 0.0
        %v6480 = vmax.f32 %v6303, 0.0
        %v6481 = vmax.f32 %v6305, 0.0
        %v6482 = vmax.f32 %v6416, 0.0
        %v6483 = vmax.f32 %v6418, 0.0
        %v6484 = vpack.c.bf16 %v6424, %v6420
        %v6485 = vpack.c.bf16 %v6425, %v6421
        %v6486 = vpack.c.bf16 %v6426, %v6422
        %v6487 = vpack.c.bf16 %v6427, %v6423
        %v6488 = vpack.c.bf16 %v6432, %v6428
        %v6489 = vpack.c.bf16 %v6433, %v6429
        %v6490 = vpack.c.bf16 %v6434, %v6430
        %v6491 = vpack.c.bf16 %v6435, %v6431
        %v6492 = vpack.c.bf16 %v6440, %v6436
        %v6493 = vpack.c.bf16 %v6441, %v6437
        %v6494 = vpack.c.bf16 %v6442, %v6438
        %v6495 = vpack.c.bf16 %v6443, %v6439
        %v6496 = vpack.c.bf16 %v6448, %v6444
        %v6497 = vpack.c.bf16 %v6449, %v6445
        %v6498 = vpack.c.bf16 %v6450, %v6446
        %v6499 = vpack.c.bf16 %v6451, %v6447
        %v6500 = vpack.c.bf16 %v6456, %v6452
        %v6501 = vpack.c.bf16 %v6457, %v6453
        %v6502 = vpack.c.bf16 %v6458, %v6454
        %v6503 = vpack.c.bf16 %v6459, %v6455
        %v6504 = vpack.c.bf16 %v6464, %v6460
        %v6505 = vpack.c.bf16 %v6465, %v6461
        %v6506 = vpack.c.bf16 %v6466, %v6462
        %v6507 = vpack.c.bf16 %v6467, %v6463
        %v6508 = vpack.c.bf16 %v6472, %v6468
        %v6509 = vpack.c.bf16 %v6473, %v6469
        %v6510 = vpack.c.bf16 %v6474, %v6470
        %v6511 = vpack.c.bf16 %v6475, %v6471
        %v6512 = vpack.c.bf16 %v6480, %v6476
        %v6513 = vpack.c.bf16 %v6481, %v6477
        %v6514 = vpack.c.bf16 %v6482, %v6478
        %v6515 = vpack.c.bf16 %v6483, %v6479
        %v6516 = vld [vmem:[#allocation13] sm:$0xf]
        %v6517 = vld [vmem:[#allocation13 + $0x4] sm:$0xf]
        %v6518 = vld [vmem:[#allocation13 + $0x8] sm:$0xf]
        %v6519 = vld [vmem:[#allocation13 + $0xc] sm:$0xf]
        %v6520 = vld [vmem:[#allocation13 + $0x10] sm:$0xf]
        %v6521 = vld [vmem:[#allocation13 + $0x14] sm:$0xf]
        %v6522 = vld [vmem:[#allocation13 + $0x18] sm:$0xf]
        %v6523 = vld [vmem:[#allocation13 + $0x1c] sm:$0xf]
        %v6524 = vld [vmem:[#allocation13 + $0x20] sm:$0xf]
        %v6525 = vld [vmem:[#allocation13 + $0x24] sm:$0xf]
        %v6526 = vld [vmem:[#allocation13 + $0x28] sm:$0xf]
        %v6527 = vld [vmem:[#allocation13 + $0x2c] sm:$0xf]
        %v6528 = vld [vmem:[#allocation13 + $0x30] sm:$0xf]
        %v6529 = vld [vmem:[#allocation13 + $0x34] sm:$0xf]
        %v6530 = vld [vmem:[#allocation13 + $0x38] sm:$0xf]
        %v6531 = vld [vmem:[#allocation13 + $0x3c] sm:$0xf]
        %v6532 = vld [vmem:[#allocation13 + $0x40] sm:$0xf]
        %v6533 = vld [vmem:[#allocation13 + $0x44] sm:$0xf]
        %v6534 = vld [vmem:[#allocation13 + $0x48] sm:$0xf]
        %v6535 = vld [vmem:[#allocation13 + $0x4c] sm:$0xf]
        %v6536 = vld [vmem:[#allocation13 + $0x50] sm:$0xf]
        %v6537 = vld [vmem:[#allocation13 + $0x54] sm:$0xf]
        %v6538 = vld [vmem:[#allocation13 + $0x58] sm:$0xf]
        %v6539 = vld [vmem:[#allocation13 + $0x5c] sm:$0xf]
        %v6540 = vld [vmem:[#allocation13 + $0x60] sm:$0xf]
        %v6541 = vld [vmem:[#allocation13 + $0x64] sm:$0xf]
        %v6542 = vld [vmem:[#allocation13 + $0x68] sm:$0xf]
        %v6543 = vld [vmem:[#allocation13 + $0x6c] sm:$0xf]
        %v6544 = vld [vmem:[#allocation13 + $0x70] sm:$0xf]
        %v6545 = vld [vmem:[#allocation13 + $0x74] sm:$0xf]
        %v6546 = vld [vmem:[#allocation13 + $0x78] sm:$0xf]
        %v6547 = vld [vmem:[#allocation13 + $0x7c] sm:$0xf]
        %v6548 = vld [vmem:[#allocation13 + $0x80] sm:$0xf]
        %v6549 = vld [vmem:[#allocation13 + $0x84] sm:$0xf]
        %v6550 = vld [vmem:[#allocation13 + $0x88] sm:$0xf]
        %v6551 = vld [vmem:[#allocation13 + $0x8c] sm:$0xf]
        %v6552 = vld [vmem:[#allocation13 + $0x90] sm:$0xf]
        %v6553 = vld [vmem:[#allocation13 + $0x94] sm:$0xf]
        %v6554 = vld [vmem:[#allocation13 + $0x98] sm:$0xf]
        %v6555 = vld [vmem:[#allocation13 + $0x9c] sm:$0xf]
        %v6556 = vld [vmem:[#allocation13 + $0xa0] sm:$0xf]
        %v6557 = vld [vmem:[#allocation13 + $0xa4] sm:$0xf]
        %v6558 = vld [vmem:[#allocation13 + $0xa8] sm:$0xf]
        %v6559 = vld [vmem:[#allocation13 + $0xac] sm:$0xf]
        %v6560 = vld [vmem:[#allocation13 + $0xb0] sm:$0xf]
        %v6561 = vld [vmem:[#allocation13 + $0xb4] sm:$0xf]
        %v6562 = vld [vmem:[#allocation13 + $0xb8] sm:$0xf]
        %v6563 = vld [vmem:[#allocation13 + $0xbc] sm:$0xf]
        %v6564 = vld [vmem:[#allocation13 + $0xc0] sm:$0xf]
        %v6565 = vld [vmem:[#allocation13 + $0xc4] sm:$0xf]
        %v6566 = vld [vmem:[#allocation13 + $0xc8] sm:$0xf]
        %v6567 = vld [vmem:[#allocation13 + $0xcc] sm:$0xf]
        %v6568 = vld [vmem:[#allocation13 + $0xd0] sm:$0xf]
        %v6569 = vld [vmem:[#allocation13 + $0xd4] sm:$0xf]
        %v6570 = vld [vmem:[#allocation13 + $0xd8] sm:$0xf]
        %v6571 = vld [vmem:[#allocation13 + $0xdc] sm:$0xf]
        %v6572 = vld [vmem:[#allocation13 + $0xe0] sm:$0xf]
        %v6573 = vld [vmem:[#allocation13 + $0xe4] sm:$0xf]
        %v6574 = vld [vmem:[#allocation13 + $0xe8] sm:$0xf]
        %v6575 = vld [vmem:[#allocation13 + $0xec] sm:$0xf]
        %v6576 = vld [vmem:[#allocation13 + $0xf0] sm:$0xf]
        %v6577 = vld [vmem:[#allocation13 + $0xf4] sm:$0xf]
        %v6578 = vld [vmem:[#allocation13 + $0xf8] sm:$0xf]
        %v6579 = vld [vmem:[#allocation13 + $0xfc] sm:$0xf]
        %v6580 = vld [vmem:[%s14] sm:$0x1]
        %v6582 = vlaneseq
        %v6583 = vshrl.u32 %v6582, 7
        %v6584 = vsub.s32 0, %v6583
        %v6585 = vrot.slane %v6580, %v6584
        %v6651 = vunpack.c.l.b16 %v6516
        %v6652 = vunpack.c.l.b16 %v6517
        %v6653 = vunpack.c.l.b16 %v6518
        %v6654 = vunpack.c.l.b16 %v6519
        %v6655 = vunpack.c.l.b16 %v6520
        %v6656 = vunpack.c.l.b16 %v6521
        %v6657 = vunpack.c.l.b16 %v6522
        %v6658 = vunpack.c.l.b16 %v6523
        %v6659 = vunpack.c.l.b16 %v6524
        %v6660 = vunpack.c.l.b16 %v6525
        %v6661 = vunpack.c.l.b16 %v6526
        %v6662 = vunpack.c.l.b16 %v6527
        %v6663 = vunpack.c.l.b16 %v6528
        %v6664 = vunpack.c.l.b16 %v6529
        %v6665 = vunpack.c.l.b16 %v6530
        %v6666 = vunpack.c.l.b16 %v6531
        %v6667 = vunpack.c.l.b16 %v6532
        %v6668 = vunpack.c.l.b16 %v6533
        %v6669 = vunpack.c.l.b16 %v6534
        %v6670 = vunpack.c.l.b16 %v6535
        %v6671 = vunpack.c.l.b16 %v6536
        %v6672 = vunpack.c.l.b16 %v6537
        %v6673 = vunpack.c.l.b16 %v6538
        %v6674 = vunpack.c.l.b16 %v6539
        %v6675 = vunpack.c.l.b16 %v6540
        %v6676 = vunpack.c.l.b16 %v6541
        %v6677 = vunpack.c.l.b16 %v6542
        %v6678 = vunpack.c.l.b16 %v6543
        %v6679 = vunpack.c.l.b16 %v6544
        %v6680 = vunpack.c.l.b16 %v6545
        %v6681 = vunpack.c.l.b16 %v6546
        %v6682 = vunpack.c.l.b16 %v6547
        %v6683 = vunpack.c.l.b16 %v6548
        %v6684 = vunpack.c.l.b16 %v6549
        %v6685 = vunpack.c.l.b16 %v6550
        %v6686 = vunpack.c.l.b16 %v6551
        %v6687 = vunpack.c.l.b16 %v6552
        %v6688 = vunpack.c.l.b16 %v6553
        %v6689 = vunpack.c.l.b16 %v6554
        %v6690 = vunpack.c.l.b16 %v6555
        %v6691 = vunpack.c.l.b16 %v6556
        %v6692 = vunpack.c.l.b16 %v6557
        %v6693 = vunpack.c.l.b16 %v6558
        %v6694 = vunpack.c.l.b16 %v6559
        %v6695 = vunpack.c.l.b16 %v6560
        %v6696 = vunpack.c.l.b16 %v6561
        %v6697 = vunpack.c.l.b16 %v6562
        %v6698 = vunpack.c.l.b16 %v6563
        %v6699 = vunpack.c.l.b16 %v6564
        %v6700 = vunpack.c.l.b16 %v6565
        %v6701 = vunpack.c.l.b16 %v6566
        %v6702 = vunpack.c.l.b16 %v6567
        %v6703 = vunpack.c.l.b16 %v6568
        %v6704 = vunpack.c.l.b16 %v6569
        %v6705 = vunpack.c.l.b16 %v6570
        %v6706 = vunpack.c.l.b16 %v6571
        %v6707 = vunpack.c.l.b16 %v6572
        %v6708 = vunpack.c.l.b16 %v6573
        %v6709 = vunpack.c.l.b16 %v6574
        %v6710 = vunpack.c.l.b16 %v6575
        %v6711 = vunpack.c.l.b16 %v6576
        %v6712 = vunpack.c.l.b16 %v6577
        %v6713 = vunpack.c.l.b16 %v6578
        %v6714 = vunpack.c.l.b16 %v6579
        %v6715 = vpack.c.b16 %v6652, %v6651
        %v6716 = vpack.c.b16 %v6654, %v6653
        %v6717 = vpack.c.b16 %v6656, %v6655
        %v6718 = vpack.c.b16 %v6658, %v6657
        %v6719 = vpack.c.b16 %v6660, %v6659
        %v6720 = vpack.c.b16 %v6662, %v6661
        %v6721 = vpack.c.b16 %v6664, %v6663
        %v6722 = vpack.c.b16 %v6666, %v6665
        %v6723 = vpack.c.b16 %v6668, %v6667
        %v6724 = vpack.c.b16 %v6670, %v6669
        %v6725 = vpack.c.b16 %v6672, %v6671
        %v6726 = vpack.c.b16 %v6674, %v6673
        %v6727 = vpack.c.b16 %v6676, %v6675
        %v6728 = vpack.c.b16 %v6678, %v6677
        %v6729 = vpack.c.b16 %v6680, %v6679
        %v6730 = vpack.c.b16 %v6682, %v6681
        %v6731 = vpack.c.b16 %v6684, %v6683
        %v6732 = vpack.c.b16 %v6686, %v6685
        %v6733 = vpack.c.b16 %v6688, %v6687
        %v6734 = vpack.c.b16 %v6690, %v6689
        %v6735 = vpack.c.b16 %v6692, %v6691
        %v6736 = vpack.c.b16 %v6694, %v6693
        %v6737 = vpack.c.b16 %v6696, %v6695
        %v6738 = vpack.c.b16 %v6698, %v6697
        %v6739 = vpack.c.b16 %v6700, %v6699
        %v6740 = vpack.c.b16 %v6702, %v6701
        %v6741 = vpack.c.b16 %v6704, %v6703
        %v6742 = vpack.c.b16 %v6706, %v6705
        %v6743 = vpack.c.b16 %v6708, %v6707
        %v6744 = vpack.c.b16 %v6710, %v6709
        %v6745 = vpack.c.b16 %v6712, %v6711
        %v6746 = vpack.c.b16 %v6714, %v6713
        %6779 = vmatprep.subr.bf16.mxu0 0
        %6780 = vmatpush1.bf16.msra.mxu0 %v6715
        %6781 = vmatprep.subr.bf16.mxu0 0
        %6782 = vmatpush1.bf16.msra.mxu0 %v6716
        %6783 = vmatprep.subr.bf16.mxu0 0
        %6784 = vmatpush1.bf16.msra.mxu0 %v6717
        %6785 = vmatprep.subr.bf16.mxu0 0
        %6786 = vmatpush1.bf16.msra.mxu0 %v6718
        %6787 = vmatprep.subr.bf16.mxu0 0
        %6788 = vmatpush1.bf16.msra.mxu0 %v6719
        %6789 = vmatprep.subr.bf16.mxu0 0
        %6790 = vmatpush1.bf16.msra.mxu0 %v6720
        %6791 = vmatprep.subr.bf16.mxu0 0
        %6792 = vmatpush1.bf16.msra.mxu0 %v6721
        %6793 = vmatprep.subr.bf16.mxu0 0
        %6794 = vmatpush1.bf16.msra.mxu0 %v6722
        %6795 = vmatprep.subr.bf16.mxu0 0
        %6796 = vmatpush1.bf16.msra.mxu0 %v6723
        %6797 = vmatprep.subr.bf16.mxu0 0
        %6798 = vmatpush1.bf16.msra.mxu0 %v6724
        %6799 = vmatprep.subr.bf16.mxu0 0
        %6800 = vmatpush1.bf16.msra.mxu0 %v6725
        %6801 = vmatprep.subr.bf16.mxu0 0
        %6802 = vmatpush1.bf16.msra.mxu0 %v6726
        %6803 = vmatprep.subr.bf16.mxu0 0
        %6804 = vmatpush1.bf16.msra.mxu0 %v6727
        %6805 = vmatprep.subr.bf16.mxu0 0
        %6806 = vmatpush1.bf16.msra.mxu0 %v6728
        %6807 = vmatprep.subr.bf16.mxu0 0
        %6808 = vmatpush1.bf16.msra.mxu0 %v6729
        %6809 = vmatprep.subr.bf16.mxu0 0
        %6810 = vmatpush1.bf16.msra.mxu0 %v6730
        %6811 = vmatprep.mubr.bf16.mxu0 %v6485
        %6812 = vmatmul.mubr.bf16.gmra.mrb[0].mxu0 %v6484
        %v6813 = vpop.f32.mrb[0].mxu0
        %v6814 = vadd.f32 %v6585, %v6813
        %v6815 = vpop.f32.mrb[0].mxu0
        %v6816 = vpop.f32.mrb[0].mxu0
        %v6817 = vadd.f32 %v6585, %v6816
        %v6818 = vpop.f32.mrb[0].mxu0
        %6819 = vmatprep.mubr.bf16.mxu0 %v6489
        %6820 = vmatmul.mubr.bf16.gmra.mrb[0].mxu0 %v6488
        %v6821 = vpop.f32.mrb[0].mxu0
        %v6822 = vadd.f32 %v6585, %v6821
        %v6823 = vpop.f32.mrb[0].mxu0
        %v6824 = vpop.f32.mrb[0].mxu0
        %v6825 = vadd.f32 %v6585, %v6824
        %v6826 = vpop.f32.mrb[0].mxu0
        %6827 = vmatprep.mubr.bf16.mxu0 %v6493
        %6828 = vmatmul.mubr.bf16.gmra.mrb[0].mxu0 %v6492
        %v6829 = vpop.f32.mrb[0].mxu0
        %v6830 = vadd.f32 %v6585, %v6829
        %v6831 = vpop.f32.mrb[0].mxu0
        %v6832 = vpop.f32.mrb[0].mxu0
        %v6833 = vadd.f32 %v6585, %v6832
        %v6834 = vpop.f32.mrb[0].mxu0
        %6835 = vmatprep.mubr.bf16.mxu0 %v6497
        %6836 = vmatmul.mubr.bf16.gmra.mrb[0].mxu0 %v6496
        %v6837 = vpop.f32.mrb[0].mxu0
        %v6838 = vadd.f32 %v6585, %v6837
        %v6839 = vpop.f32.mrb[0].mxu0
        %v6840 = vpop.f32.mrb[0].mxu0
        %v6841 = vadd.f32 %v6585, %v6840
        %v6842 = vpop.f32.mrb[0].mxu0
        %6843 = vmatprep.mubr.bf16.mxu0 %v6501
        %6844 = vmatmul.mubr.bf16.gmra.mrb[0].mxu0 %v6500
        %v6845 = vpop.f32.mrb[0].mxu0
        %v6846 = vadd.f32 %v6585, %v6845
        %v6847 = vpop.f32.mrb[0].mxu0
        %v6848 = vpop.f32.mrb[0].mxu0
        %v6849 = vadd.f32 %v6585, %v6848
        %v6850 = vpop.f32.mrb[0].mxu0
        %6851 = vmatprep.mubr.bf16.mxu0 %v6505
        %6852 = vmatmul.mubr.bf16.gmra.mrb[0].mxu0 %v6504
        %v6853 = vpop.f32.mrb[0].mxu0
        %v6854 = vadd.f32 %v6585, %v6853
        %v6855 = vpop.f32.mrb[0].mxu0
        %v6856 = vpop.f32.mrb[0].mxu0
        %v6857 = vadd.f32 %v6585, %v6856
        %v6858 = vpop.f32.mrb[0].mxu0
        %6859 = vmatprep.mubr.bf16.mxu0 %v6509
        %6860 = vmatmul.mubr.bf16.gmra.mrb[0].mxu0 %v6508
        %v6861 = vpop.f32.mrb[0].mxu0
        %v6862 = vadd.f32 %v6585, %v6861
        %v6863 = vpop.f32.mrb[0].mxu0
        %v6864 = vpop.f32.mrb[0].mxu0
        %v6865 = vadd.f32 %v6585, %v6864
        %v6866 = vpop.f32.mrb[0].mxu0
        %6867 = vmatprep.mubr.bf16.mxu0 %v6513
        %6868 = vmatmul.mubr.bf16.gmra.mrb[0].mxu0 %v6512
        %v6869 = vpop.f32.mrb[0].mxu0
        %v6870 = vadd.f32 %v6585, %v6869
        %v6871 = vpop.f32.mrb[0].mxu0
        %v6872 = vpop.f32.mrb[0].mxu0
        %v6873 = vadd.f32 %v6585, %v6872
        %v6874 = vpop.f32.mrb[0].mxu0
        %6875 = vdwg.mxu0
        %6876 = vmatprep.subr.bf16.mxu0 0
        %6877 = vmatpush1.bf16.msra.mxu0 %v6731
        %6878 = vmatprep.subr.bf16.mxu0 0
        %6879 = vmatpush1.bf16.msra.mxu0 %v6732
        %6880 = vmatprep.subr.bf16.mxu0 0
        %6881 = vmatpush1.bf16.msra.mxu0 %v6733
        %6882 = vmatprep.subr.bf16.mxu0 0
        %6883 = vmatpush1.bf16.msra.mxu0 %v6734
        %6884 = vmatprep.subr.bf16.mxu0 0
        %6885 = vmatpush1.bf16.msra.mxu0 %v6735
        %6886 = vmatprep.subr.bf16.mxu0 0
        %6887 = vmatpush1.bf16.msra.mxu0 %v6736
        %6888 = vmatprep.subr.bf16.mxu0 0
        %6889 = vmatpush1.bf16.msra.mxu0 %v6737
        %6890 = vmatprep.subr.bf16.mxu0 0
        %6891 = vmatpush1.bf16.msra.mxu0 %v6738
        %6892 = vmatprep.subr.bf16.mxu0 0
        %6893 = vmatpush1.bf16.msra.mxu0 %v6739
        %6894 = vmatprep.subr.bf16.mxu0 0
        %6895 = vmatpush1.bf16.msra.mxu0 %v6740
        %6896 = vmatprep.subr.bf16.mxu0 0
        %6897 = vmatpush1.bf16.msra.mxu0 %v6741
        %6898 = vmatprep.subr.bf16.mxu0 0
        %6899 = vmatpush1.bf16.msra.mxu0 %v6742
        %6900 = vmatprep.subr.bf16.mxu0 0
        %6901 = vmatpush1.bf16.msra.mxu0 %v6743
        %6902 = vmatprep.subr.bf16.mxu0 0
        %6903 = vmatpush1.bf16.msra.mxu0 %v6744
        %6904 = vmatprep.subr.bf16.mxu0 0
        %6905 = vmatpush1.bf16.msra.mxu0 %v6745
        %6906 = vmatprep.subr.bf16.mxu0 0
        %6907 = vmatpush1.bf16.msra.mxu0 %v6746
        %6908 = vmatprep.mubr.bf16.mxu0 %v6487
        %6909 = vmatmul.mubr.bf16.gmra.mrb[0].mxu0 %v6486
        %v6910 = vpop.f32.mrb[0].mxu0
        %v6911 = vadd.f32 %v6814, %v6910
        %v6912 = vpop.f32.mrb[0].mxu0
        %v6913 = vpop.f32.mrb[0].mxu0
        %v6914 = vadd.f32 %v6817, %v6913
        %v6915 = vpop.f32.mrb[0].mxu0
        %6916 = vmatprep.mubr.bf16.mxu0 %v6491
        %6917 = vmatmul.mubr.bf16.gmra.mrb[0].mxu0 %v6490
        %v6918 = vpop.f32.mrb[0].mxu0
        %v6919 = vadd.f32 %v6822, %v6918
        %v6920 = vpop.f32.mrb[0].mxu0
        %v6921 = vpop.f32.mrb[0].mxu0
        %v6922 = vadd.f32 %v6825, %v6921
        %v6923 = vpop.f32.mrb[0].mxu0
        %6924 = vmatprep.mubr.bf16.mxu0 %v6495
        %6925 = vmatmul.mubr.bf16.gmra.mrb[0].mxu0 %v6494
        %v6926 = vpop.f32.mrb[0].mxu0
        %v6927 = vadd.f32 %v6830, %v6926
        %v6928 = vpop.f32.mrb[0].mxu0
        %v6929 = vpop.f32.mrb[0].mxu0
        %v6930 = vadd.f32 %v6833, %v6929
        %v6931 = vpop.f32.mrb[0].mxu0
        %6932 = vmatprep.mubr.bf16.mxu0 %v6499
        %6933 = vmatmul.mubr.bf16.gmra.mrb[0].mxu0 %v6498
        %v6934 = vpop.f32.mrb[0].mxu0
        %v6935 = vadd.f32 %v6838, %v6934
        %v6936 = vpop.f32.mrb[0].mxu0
        %v6937 = vpop.f32.mrb[0].mxu0
        %v6938 = vadd.f32 %v6841, %v6937
        %v6939 = vpop.f32.mrb[0].mxu0
        %6940 = vmatprep.mubr.bf16.mxu0 %v6503
        %6941 = vmatmul.mubr.bf16.gmra.mrb[0].mxu0 %v6502
        %v6942 = vpop.f32.mrb[0].mxu0
        %v6943 = vadd.f32 %v6846, %v6942
        %v6944 = vpop.f32.mrb[0].mxu0
        %v6945 = vpop.f32.mrb[0].mxu0
        %v6946 = vadd.f32 %v6849, %v6945
        %v6947 = vpop.f32.mrb[0].mxu0
        %6948 = vmatprep.mubr.bf16.mxu0 %v6507
        %6949 = vmatmul.mubr.bf16.gmra.mrb[0].mxu0 %v6506
        %v6950 = vpop.f32.mrb[0].mxu0
        %v6951 = vadd.f32 %v6854, %v6950
        %v6952 = vpop.f32.mrb[0].mxu0
        %v6953 = vpop.f32.mrb[0].mxu0
        %v6954 = vadd.f32 %v6857, %v6953
        %v6955 = vpop.f32.mrb[0].mxu0
        %6956 = vmatprep.mubr.bf16.mxu0 %v6511
        %6957 = vmatmul.mubr.bf16.gmra.mrb[0].mxu0 %v6510
        %v6958 = vpop.f32.mrb[0].mxu0
        %v6959 = vadd.f32 %v6862, %v6958
        %v6960 = vpop.f32.mrb[0].mxu0
        %v6961 = vpop.f32.mrb[0].mxu0
        %v6962 = vadd.f32 %v6865, %v6961
        %v6963 = vpop.f32.mrb[0].mxu0
        %6964 = vmatprep.mubr.bf16.mxu0 %v6515
        %6965 = vmatmul.mubr.bf16.gmra.mrb[0].mxu0 %v6514
        %v6966 = vpop.f32.mrb[0].mxu0
        %v6967 = vadd.f32 %v6870, %v6966
        %v6968 = vpop.f32.mrb[0].mxu0
        %v6969 = vpop.f32.mrb[0].mxu0
        %v6970 = vadd.f32 %v6873, %v6969
        %v6971 = vpop.f32.mrb[0].mxu0
        %6972 = vdwg.mxu0
        %v6973 = vadd.f32 %v5734, %v6911
        %v6974 = vadd.f32 %v5735, %v6914
        %v6975 = vadd.f32 %v5736, %v6919
        %v6976 = vadd.f32 %v5737, %v6922
        %v6977 = vadd.f32 %v5738, %v6927
        %v6978 = vadd.f32 %v5739, %v6930
        %v6979 = vadd.f32 %v5740, %v6935
        %v6980 = vadd.f32 %v5741, %v6938
        %v6981 = vadd.f32 %v5742, %v6943
        %v6982 = vadd.f32 %v5743, %v6946
        %v6983 = vadd.f32 %v5744, %v6951
        %v6984 = vadd.f32 %v5745, %v6954
        %v6985 = vadd.f32 %v5746, %v6959
        %v6986 = vadd.f32 %v5747, %v6962
        %v6987 = vadd.f32 %v5748, %v6967
        %v6988 = vadd.f32 %v5749, %v6970
        %6989 = vst [vmem:[%s572] sm:$0xff] %v6973
        %6990 = vst [vmem:[%s572 + $0x8] sm:$0xff] %v6974
        %6991 = vst [vmem:[%s572 + $0x10] sm:$0xff] %v6975
        %6992 = vst [vmem:[%s572 + $0x18] sm:$0xff] %v6976
        %6993 = vst [vmem:[%s572 + $0x20] sm:$0xff] %v6977
        %6994 = vst [vmem:[%s572 + $0x28] sm:$0xff] %v6978
        %6995 = vst [vmem:[%s572 + $0x30] sm:$0xff] %v6979
        %6996 = vst [vmem:[%s572 + $0x38] sm:$0xff] %v6980
        %6997 = vst [vmem:[%s572 + $0x40] sm:$0xff] %v6981
        %6998 = vst [vmem:[%s572 + $0x48] sm:$0xff] %v6982
        %6999 = vst [vmem:[%s572 + $0x50] sm:$0xff] %v6983
        %7000 = vst [vmem:[%s572 + $0x58] sm:$0xff] %v6984
        %7001 = vst [vmem:[%s572 + $0x60] sm:$0xff] %v6985
        %7002 = vst [vmem:[%s572 + $0x68] sm:$0xff] %v6986
        %7003 = vst [vmem:[%s572 + $0x70] sm:$0xff] %v6987
        %7004 = vst [vmem:[%s572 + $0x78] sm:$0xff] %v6988
        %s7005 = sand.u32 %s356, 1
        %s7006 = scalar_lea.sflag [#allocation4], %s7005
        %s7007 = sand.u32 %s356, 1
        %s7008 = smul.addr %s7007, 128
        %s7009 = scalar_lea.vmem [#allocation14], %s7008
        // Predicated region
        $region109: #{tpu_custom_call.1} parent=79 // pred_check
          %p7010 = pneg %p366
        $region110: #{tpu_custom_call.1} parent=79 // pred_check_branch
          %7012 = sbr.rel (%p7010) target = $region112
        $region111: #{tpu_custom_call.1} parent=79 // pred_region
          %s7013 = smul.u32 16, %s33
          %s7015 = ssub.s32 2048, 2048
          %7016 = vsyncadd %s7006, %s7015
          %s7017 = smul.addr %s7013, 128
          %s7018 = scalar_lea.hbm %s15, %s7017
          %s7019 = sshll.u32 %s7009, 4
          %s7020 = int_to_ptr.vmem [resolvable:$true] %s7019
          %7025 = dma.vmem_to_hbm [thread:$0]  %s7020, 2048, %s7018, %s7006, 128, 128, 8
        $region112: #{tpu_custom_call.1} parent=79 // pred_fallthru
          _
      $region80: #{tpu_custom_call.1} parent=5 // pred_fallthru
        _
      %p7026 = scmp.le.s32.totalorder 2, %s28
      // Predicated region
      $region113: #{tpu_custom_call.1} parent=5 // pred_check
        %p7027 = pneg %p7026
      $region114: #{tpu_custom_call.1} parent=5 // pred_check_branch
        %7029 = sbr.rel (%p7027) target = $region116
      $region115: #{tpu_custom_call.1} parent=5 // pred_region
        %s7030 = ssub.s32 %s28, 2
        // Predicated region
        $region117: #{tpu_custom_call.1} parent=115 // pred_check
          %p7031 = pneg %p372
        $region118: #{tpu_custom_call.1} parent=115 // pred_check_branch
          %7033 = sbr.rel (%p7031) target = $region120
        $region119: #{tpu_custom_call.1} parent=115 // pred_region
          %s7034 = sand.u32 %s357, 1
          %s7035 = scalar_lea.sflag [#allocation4], %s7034
          %s7036 = sand.u32 %s357, 1
          %s7037 = smul.addr %s7036, 128
          %s7038 = scalar_lea.vmem [#allocation14], %s7037
          %7039 = dma.done %s7035, 2048
        $region120: #{tpu_custom_call.1} parent=115 // pred_fallthru
          _
      $region116: #{tpu_custom_call.1} parent=5 // pred_fallthru
        _
    $region6: #{tpu_custom_call.1} parent=1 // loop_footer
      %s32 = sadd.s32 1, %s28
    $region7: #{tpu_custom_call.1} parent=1 // loop_footer_branch
      %27 = sbr.rel target = $region3
    $region8: #{tpu_custom_call.1} parent=1 // loop_exit
      _
    %7040 = vsyncpa [#allocation3], 1
    %s7041 = scalar_lea.sflag [#allocation3], 1
    %7042 = vsyncpa %s7041, 1
    %7043 = vsyncpa [#allocation6], 1
    %7044 = vsyncpa [#allocation9], 1
    %7045 = vsyncpa [#allocation12], 1
    %7046 = vsyncpa [#allocation4], 1
    %s7047 = scalar_lea.sflag [#allocation4], 1
    %7048 = vsyncpa %s7047, 1

</llo_original>
